<compile_context>
chip_gen: v7x
topology: tpu7x:2x2x1
jax: 0.10.0
libtpu: 0.0.40
codegen_flags: <defaults>
</compile_context>

<pallas_src>
import functools

import jax
import jax.numpy as jnp
from jax import lax
from jax.experimental import pallas as pl
from jax.experimental.pallas import tpu as pltpu

TB = 8        # images per grid step (keeps M >= 8 for the FC head / output tile)
LANES = 128   # lane-dense padding target for feature / logits slabs


# ----------------------------- in-kernel helpers ----------------------------

def _sel_matrix(rows, cols, scale, offset):
    """M[i, j] = 1 where j == scale*i + offset (row-selection matrix via 2-D iota)."""
    ri = lax.broadcasted_iota(jnp.int32, (rows, cols), 0)
    ci = lax.broadcasted_iota(jnp.int32, (rows, cols), 1)
    return (ci == scale * ri + offset).astype(jnp.float32)


def _shift_matrix(n, k):
    """S[a, b] = 1 where a == b + k, so (V @ S)[:, l] == V[:, l + k] (0 past end)."""
    ri = lax.broadcasted_iota(jnp.int32, (n, n), 0)
    ci = lax.broadcasted_iota(jnp.int32, (n, n), 1)
    return (ri == ci + k).astype(jnp.float32)


# ------------------------------- fused kernel -------------------------------

def _lenet5_kernel(x_ref, w1_ref, b1_ref, w2_ref, b2_ref, w3_ref, b3_ref,
                   wf1_ref, bf1_ref, wf2_ref, bf2_ref, out_ref, feat_ref, *, cin):
    f32 = jnp.float32

    # Pooling helper matrices: built once per program (loop invariant).
    sel_e1 = _sel_matrix(14, 28, 2, 0)     # even conv1 output rows
    sel_o1 = _sel_matrix(14, 28, 2, 1)     # odd  conv1 output rows
    shift1 = _shift_matrix(28 * 6, 6)      # lane shift by one image column (6 ch)
    sel_e2 = _sel_matrix(5, 10, 2, 0)
    sel_o2 = _sel_matrix(5, 10, 2, 1)
    shift2 = _shift_matrix(10 * 16, 16)

    def one_image(tb, carry):
        img = x_ref[tb]                                             # [32, 32*cin]

        # ---- conv1 (5x5, cin -> 6) + bias + ReLU; layout [h, w*6] -----------
        acc1 = jnp.zeros((28, 28 * 6), f32)
        for dy in range(5):
            for dx in range(5):
                lhs = img[dy:dy + 28, dx * cin:(dx + 28) * cin]     # [28, 28*cin]
                acc1 += jnp.dot(lhs, w1_ref[dy * 5 + dx],
                                preferred_element_type=f32)
        a1 = jnp.maximum(acc1 + b1_ref[...], 0.0)                   # [28, 168]

        # ---- maxpool 2x2: rows via selection matmuls, cols via lane shift ---
        v1 = jnp.maximum(jnp.dot(sel_e1, a1, preferred_element_type=f32),
                         jnp.dot(sel_o1, a1, preferred_element_type=f32))
        p1 = jnp.maximum(v1, jnp.dot(v1, shift1, preferred_element_type=f32))
        # pooled pixel (h, w, c) now lives at p1[h, 12*w + c]; odd groups = junk

        # ---- conv2 (5x5, 6 -> 16) + bias + ReLU (zero weight rows eat junk) -
        acc2 = jnp.zeros((10, 10 * 16), f32)
        for dy in range(5):
            for dx in range(5):
                lhs = p1[dy:dy + 10, dx * 12:dx * 12 + 120]         # [10, 120]
                acc2 += jnp.dot(lhs, w2_ref[dy * 5 + dx],
                                preferred_element_type=f32)
        a2 = jnp.maximum(acc2 + b2_ref[...], 0.0)                   # [10, 160]

        # ---- maxpool 2x2 ----------------------------------------------------
        v2 = jnp.maximum(jnp.dot(sel_e2, a2, preferred_element_type=f32),
                         jnp.dot(sel_o2, a2, preferred_element_type=f32))
        p2 = jnp.maximum(v2, jnp.dot(v2, shift2, preferred_element_type=f32))
        # pooled pixel (h, w, c) now lives at p2[h, 32*w + c]

        # ---- conv3 (5x5, 16 -> 120, output 1x1) + bias + ReLU -> feature ----
        acc3 = jnp.zeros((1, LANES), f32)
        for dy in range(5):
            acc3 += jnp.dot(p2[dy:dy + 1, :], w3_ref[dy],
                            preferred_element_type=f32)             # [1, 128]
        feat_ref[pl.ds(tb, 1), :] = jnp.maximum(acc3 + b3_ref[...], 0.0)
        return carry

    lax.fori_loop(0, TB, one_image, 0)

    # ---- FC head, batched over the TB images of this tile (lane-padded) -----
    f = feat_ref[...]                                               # [TB, 128]
    h = jnp.maximum(
        jnp.dot(f, wf1_ref[...], preferred_element_type=f32) + bf1_ref[...], 0.0)
    logits = jnp.dot(h, wf2_ref[...], preferred_element_type=f32) + bf2_ref[...]
    out_ref[...] = logits.astype(out_ref.dtype)


# ------------------------------ host-side setup ------------------------------

def init_params(key, in_channels):
    ks = jax.random.split(key, 10)

    def w(k, shape):
        return (0.05 * jax.random.normal(k, shape)).astype(jnp.float32)

    return {
        "conv1_w": w(ks[0], (6, in_channels, 5, 5)), "conv1_b": w(ks[1], (6,)),
        "conv2_w": w(ks[2], (16, 6, 5, 5)),          "conv2_b": w(ks[3], (16,)),
        "conv3_w": w(ks[4], (120, 16, 5, 5)),        "conv3_b": w(ks[5], (120,)),
        "fc1_w":   w(ks[6], (84, 120)),              "fc1_b":   w(ks[7], (84,)),
        "fc2_w":   w(ks[8], (10, 84)),               "fc2_b":   w(ks[9], (10,)),
    }


def prepare_params(params):
    """One-time weight repacking (call once, OUTSIDE the jitted hot path)."""
    f32 = jnp.float32

    def conv_block_weights(w, wo, in_stride, out_stride):
        # w: [Cout, Cin, kH, kW] (PyTorch layout). Slab [k = dy*kW + dx] maps
        # activation lane (in_stride*w + c) -> output lane (out_stride*w + n)
        # with weight w[n, c, dy, dx]; padded c/n positions get zero weight.
        cout, cin, kh, kw = w.shape
        wt = jnp.transpose(w, (2, 3, 1, 0)).reshape(kh * kw, cin, cout).astype(f32)
        wt = jnp.pad(wt, ((0, 0), (0, in_stride - cin), (0, out_stride - cout)))
        eye = jnp.eye(wo, dtype=f32)
        big = jnp.einsum("wv,kcn->kwcvn", eye, wt)
        return big.reshape(kh * kw, wo * in_stride, wo * out_stride)

    cin = params["conv1_w"].shape[1]
    w3 = jnp.transpose(params["conv3_w"], (2, 3, 1, 0)).astype(f32)   # [5,5,16,120]
    w3 = jnp.pad(w3, ((0, 0), (0, 0), (0, 32 - 16), (0, LANES - 120)))

    return {
        "w1": conv_block_weights(params["conv1_w"], 28, cin, 6),      # [25,28*cin,168]
        "b1": jnp.tile(params["conv1_b"].astype(f32), 28)[None, :],   # [1, 168]
        "w2": conv_block_weights(params["conv2_w"], 10, 12, 16),      # [25, 120, 160]
        "b2": jnp.tile(params["conv2_b"].astype(f32), 10)[None, :],   # [1, 160]
        "w3": w3.reshape(5, 5 * 32, LANES),                           # [5, 160, 128]
        "b3": jnp.pad(params["conv3_b"].astype(f32), (0, LANES - 120))[None, :],
        "wf1": jnp.pad(params["fc1_w"].T.astype(f32),
                       ((0, LANES - 120), (0, LANES - 84))),          # [128, 128]
        "bf1": jnp.pad(params["fc1_b"].astype(f32), (0, LANES - 84))[None, :],
        "wf2": jnp.pad(params["fc2_w"].T.astype(f32),
                       ((0, LANES - 84), (0, LANES - 10))),           # [128, 128]
        "bf2": jnp.pad(params["fc2_b"].astype(f32), (0, LANES - 10))[None, :],
    }


def lenet5_forward(prep, img_nchw):
    """Default forward path of LeNet5 (returns logits [N, 10])."""
    n, cin, hh, ww = img_nchw.shape
    assert (hh, ww) == (32, 32), "LeNet-5 expects 32x32 inputs"

    # NCHW -> per-image [32, 32*cin] slabs (lane index = w*cin + c); pad batch.
    x = jnp.transpose(img_nchw, (0, 2, 3, 1)).reshape(n, 32, 32 * cin)
    x = x.astype(jnp.float32)
    n_pad = ((n + TB - 1) // TB) * TB
    if n_pad != n:
        x = jnp.pad(x, ((0, n_pad - n), (0, 0), (0, 0)))

    weights = (prep["w1"], prep["b1"], prep["w2"], prep["b2"], prep["w3"],
               prep["b3"], prep["wf1"], prep["bf1"], prep["wf2"], prep["bf2"])

    def _resident(a):                 # small weight array, resident whole in VMEM
        ndim = a.ndim
        return pl.BlockSpec(a.shape, lambda i: (0,) * ndim)

    out = pl.pallas_call(
        functools.partial(_lenet5_kernel, cin=cin),
        out_shape=jax.ShapeDtypeStruct((n_pad, LANES), jnp.float32),
        grid_spec=pltpu.PrefetchScalarGridSpec(
            num_scalar_prefetch=0,
            grid=(n_pad // TB,),
            in_specs=[pl.BlockSpec((TB, 32, 32 * cin), lambda i: (i, 0, 0))]
                     + [_resident(a) for a in weights],
            out_specs=pl.BlockSpec((TB, LANES), lambda i: (i, 0)),
            scratch_shapes=[pltpu.VMEM((TB, LANES), jnp.float32)],
        ),
        compiler_params=pltpu.CompilerParams(
            dimension_semantics=("parallel",)),
    )(x, *weights)

    return out[:n, :10]


# ------------------------------ pure-XLA reference ---------------------------

def lenet5_reference(params, img):
    """Reference of the PyTorch forward (default path), f32 precision."""
    hi = lax.Precision.HIGHEST

    def conv_relu(x, w, b):
        y = lax.conv_general_dilated(x, w, (1, 1), "VALID",
                                     dimension_numbers=("NCHW", "OIHW", "NCHW"),
                                     precision=hi)
        return jax.nn.relu(y + b[None, :, None, None])

    def pool(x):
        n, c, h, w = x.shape
        return x.reshape(n, c, h // 2, 2, w // 2, 2).max(axis=(3, 5))

    x = pool(conv_relu(img, params["conv1_w"], params["conv1_b"]))
    x = pool(conv_relu(x, params["conv2_w"], params["conv2_b"]))
    x = conv_relu(x, params["conv3_w"], params["conv3_b"])
    feat = x.reshape(-1, 120)
    h = jax.nn.relu(jnp.dot(feat, params["fc1_w"].T, precision=hi)
                    + params["fc1_b"])
    return jnp.dot(h, params["fc2_w"].T, precision=hi) + params["fc2_b"]


# ------------------------------------ main -----------------------------------

if __name__ == "__main__":
    key = jax.random.PRNGKey(0)
    k_param, k_img = jax.random.split(key)

    batch, in_channels = 2, 1
    img = jax.random.normal(k_img, (batch, in_channels, 32, 32), dtype=jnp.float32)
    params = init_params(k_param, in_channels)

    prep = prepare_params(params)            # one-time weight repacking
    fwd = jax.jit(lenet5_forward)
    logits = fwd(prep, img)
    jax.block_until_ready(logits)

    assert logits.shape == (batch, 10) and logits.dtype == jnp.float32

    ref = lenet5_reference(params, img)
    err = jnp.max(jnp.abs(logits - ref))
    assert jnp.allclose(logits, ref, atol=5e-3, rtol=5e-2), f"max abs err {err}"
    # TODO(synk): out_feature / out_activation alternate return paths of the
    # PyTorch module are not exposed (default path only).
    print("KERNEL_OK")
</pallas_src>

<mosaic_0001>
module attributes {stable_mosaic.version = 11 : i64} {
  func.func @_lenet5_kernel(%arg0: i32, %arg1: memref<8x32x32xf32, #tpu.memory_space<vmem>>, %arg2: memref<25x28x168xf32, #tpu.memory_space<vmem>>, %arg3: memref<1x168xf32, #tpu.memory_space<vmem>>, %arg4: memref<25x120x160xf32, #tpu.memory_space<vmem>>, %arg5: memref<1x160xf32, #tpu.memory_space<vmem>>, %arg6: memref<5x160x128xf32, #tpu.memory_space<vmem>>, %arg7: memref<1x128xf32, #tpu.memory_space<vmem>>, %arg8: memref<128x128xf32, #tpu.memory_space<vmem>>, %arg9: memref<1x128xf32, #tpu.memory_space<vmem>>, %arg10: memref<128x128xf32, #tpu.memory_space<vmem>>, %arg11: memref<1x128xf32, #tpu.memory_space<vmem>>, %arg12: memref<8x128xf32, #tpu.memory_space<vmem>>, %arg13: memref<8x128xf32, #tpu.memory_space<vmem>>) attributes {dimension_semantics = [#tpu.dimension_semantics<parallel>], iteration_bounds = array<i64: 1>, scalar_prefetch = 0 : i64, scratch_operands = 1 : i64, tpu.core_type = #tpu.core_type<tc>, window_params = [{transform_indices = @transform_0, window_bounds = array<i64: 8, 32, 32>}, {pipeline_mode = #tpu.pipeline_mode<synchronous>, transform_indices = @transform_1, window_bounds = array<i64: 25, 28, 168>}, {pipeline_mode = #tpu.pipeline_mode<synchronous>, transform_indices = @transform_2, window_bounds = array<i64: 1, 168>}, {pipeline_mode = #tpu.pipeline_mode<synchronous>, transform_indices = @transform_3, window_bounds = array<i64: 25, 120, 160>}, {pipeline_mode = #tpu.pipeline_mode<synchronous>, transform_indices = @transform_4, window_bounds = array<i64: 1, 160>}, {pipeline_mode = #tpu.pipeline_mode<synchronous>, transform_indices = @transform_5, window_bounds = array<i64: 5, 160, 128>}, {pipeline_mode = #tpu.pipeline_mode<synchronous>, transform_indices = @transform_6, window_bounds = array<i64: 1, 128>}, {pipeline_mode = #tpu.pipeline_mode<synchronous>, transform_indices = @transform_7, window_bounds = array<i64: 128, 128>}, {pipeline_mode = #tpu.pipeline_mode<synchronous>, transform_indices = @transform_8, window_bounds = array<i64: 1, 128>}, {pipeline_mode = #tpu.pipeline_mode<synchronous>, transform_indices = @transform_9, window_bounds = array<i64: 128, 128>}, {pipeline_mode = #tpu.pipeline_mode<synchronous>, transform_indices = @transform_10, window_bounds = array<i64: 1, 128>}, {transform_indices = @transform_11, window_bounds = array<i64: 8, 128>}]} {
    %0 = tpu.iota {dimensions = array<i32: 0>} : vector<14x28xi32>
    %1 = tpu.iota {dimensions = array<i32: 1>} : vector<14x28xi32>
    %c2_i32 = arith.constant 2 : i32
    %2 = vector.broadcast %c2_i32 : i32 to vector<14x28xi32>
    %3 = arith.muli %2, %0 : vector<14x28xi32>
    %c0_i32 = arith.constant 0 : i32
    %4 = vector.broadcast %c0_i32 : i32 to vector<14x28xi32>
    %5 = arith.addi %3, %4 : vector<14x28xi32>
    %6 = arith.cmpi eq, %1, %5 : vector<14x28xi32>
    %7 = arith.extui %6 : vector<14x28xi1> to vector<14x28xi32>
    %8 = arith.sitofp %7 : vector<14x28xi32> to vector<14x28xf32>
    %9 = tpu.iota {dimensions = array<i32: 0>} : vector<14x28xi32>
    %10 = tpu.iota {dimensions = array<i32: 1>} : vector<14x28xi32>
    %c2_i32_0 = arith.constant 2 : i32
    %11 = vector.broadcast %c2_i32_0 : i32 to vector<14x28xi32>
    %12 = arith.muli %11, %9 : vector<14x28xi32>
    %c1_i32 = arith.constant 1 : i32
    %13 = vector.broadcast %c1_i32 : i32 to vector<14x28xi32>
    %14 = arith.addi %12, %13 : vector<14x28xi32>
    %15 = arith.cmpi eq, %10, %14 : vector<14x28xi32>
    %16 = arith.extui %15 : vector<14x28xi1> to vector<14x28xi32>
    %17 = arith.sitofp %16 : vector<14x28xi32> to vector<14x28xf32>
    %18 = tpu.iota {dimensions = array<i32: 0>} : vector<168x168xi32>
    %19 = tpu.iota {dimensions = array<i32: 1>} : vector<168x168xi32>
    %c6_i32 = arith.constant 6 : i32
    %20 = vector.broadcast %c6_i32 : i32 to vector<168x168xi32>
    %21 = arith.addi %19, %20 : vector<168x168xi32>
    %22 = arith.cmpi eq, %18, %21 : vector<168x168xi32>
    %23 = arith.extui %22 : vector<168x168xi1> to vector<168x168xi32>
    %24 = arith.sitofp %23 : vector<168x168xi32> to vector<168x168xf32>
    %25 = tpu.iota {dimensions = array<i32: 0>} : vector<5x10xi32>
    %26 = tpu.iota {dimensions = array<i32: 1>} : vector<5x10xi32>
    %c2_i32_1 = arith.constant 2 : i32
    %27 = vector.broadcast %c2_i32_1 : i32 to vector<5x10xi32>
    %28 = arith.muli %27, %25 : vector<5x10xi32>
    %c0_i32_2 = arith.constant 0 : i32
    %29 = vector.broadcast %c0_i32_2 : i32 to vector<5x10xi32>
    %30 = arith.addi %28, %29 : vector<5x10xi32>
    %31 = arith.cmpi eq, %26, %30 : vector<5x10xi32>
    %32 = arith.extui %31 : vector<5x10xi1> to vector<5x10xi32>
    %33 = arith.sitofp %32 : vector<5x10xi32> to vector<5x10xf32>
    %34 = tpu.iota {dimensions = array<i32: 0>} : vector<5x10xi32>
    %35 = tpu.iota {dimensions = array<i32: 1>} : vector<5x10xi32>
    %c2_i32_3 = arith.constant 2 : i32
    %36 = vector.broadcast %c2_i32_3 : i32 to vector<5x10xi32>
    %37 = arith.muli %36, %34 : vector<5x10xi32>
    %c1_i32_4 = arith.constant 1 : i32
    %38 = vector.broadcast %c1_i32_4 : i32 to vector<5x10xi32>
    %39 = arith.addi %37, %38 : vector<5x10xi32>
    %40 = arith.cmpi eq, %35, %39 : vector<5x10xi32>
    %41 = arith.extui %40 : vector<5x10xi1> to vector<5x10xi32>
    %42 = arith.sitofp %41 : vector<5x10xi32> to vector<5x10xf32>
    %43 = tpu.iota {dimensions = array<i32: 0>} : vector<160x160xi32>
    %44 = tpu.iota {dimensions = array<i32: 1>} : vector<160x160xi32>
    %c16_i32 = arith.constant 16 : i32
    %45 = vector.broadcast %c16_i32 : i32 to vector<160x160xi32>
    %46 = arith.addi %44, %45 : vector<160x160xi32>
    %47 = arith.cmpi eq, %43, %46 : vector<160x160xi32>
    %48 = arith.extui %47 : vector<160x160xi1> to vector<160x160xi32>
    %49 = arith.sitofp %48 : vector<160x160xi32> to vector<160x160xf32>
    %c0_i32_5 = arith.constant 0 : i32
    %c8_i32 = arith.constant 8 : i32
    %50 = arith.addi %c0_i32_5, %c8_i32 : i32
    %c1_i32_6 = arith.constant 1 : i32
    scf.for %arg14 = %c0_i32_5 to %50 step %c1_i32_6  : i32 {
      %65 = arith.index_cast %arg14 : i32 to index
      %c0_21 = arith.constant 0 : index
      %c0_22 = arith.constant 0 : index
      %66 = vector.load %arg1[%65, %c0_21, %c0_22] : memref<8x32x32xf32, #tpu.memory_space<vmem>>, vector<1x32x32xf32>
      %67 = vector.shape_cast %66 : vector<1x32x32xf32> to vector<32x32xf32>
      %cst_23 = arith.constant 0.000000e+00 : f32
      %68 = vector.broadcast %cst_23 : f32 to vector<28x168xf32>
      %69 = vector.extract_strided_slice %67 {offsets = [0, 0], sizes = [28, 28], strides = [1, 1]} : vector<32x32xf32> to vector<28x28xf32>
      %c0_24 = arith.constant 0 : index
      %c0_25 = arith.constant 0 : index
      %c0_26 = arith.constant 0 : index
      %70 = vector.load %arg2[%c0_24, %c0_25, %c0_26] : memref<25x28x168xf32, #tpu.memory_space<vmem>>, vector<1x28x168xf32>
      %71 = vector.shape_cast %70 : vector<1x28x168xf32> to vector<28x168xf32>
      %cst_27 = arith.constant dense<0.000000e+00> : vector<28x168xf32>
      %72 = tpu.matmul %69, %71, %cst_27 {dimension_numbers = #tpu.dot_dimension_numbers<[1], [0], [0], [1], [0, 0, 1, 1], [], []>} : vector<28x28xf32>, vector<28x168xf32>, vector<28x168xf32> -> vector<28x168xf32>
      %73 = arith.addf %68, %72 : vector<28x168xf32>
      %74 = vector.extract_strided_slice %67 {offsets = [0, 1], sizes = [28, 28], strides = [1, 1]} : vector<32x32xf32> to vector<28x28xf32>
      %c1 = arith.constant 1 : index
      %c0_28 = arith.constant 0 : index
      %c0_29 = arith.constant 0 : index
      %75 = vector.load %arg2[%c1, %c0_28, %c0_29] : memref<25x28x168xf32, #tpu.memory_space<vmem>>, vector<1x28x168xf32>
      %76 = vector.shape_cast %75 : vector<1x28x168xf32> to vector<28x168xf32>
      %cst_30 = arith.constant dense<0.000000e+00> : vector<28x168xf32>
      %77 = tpu.matmul %74, %76, %cst_30 {dimension_numbers = #tpu.dot_dimension_numbers<[1], [0], [0], [1], [0, 0, 1, 1], [], []>} : vector<28x28xf32>, vector<28x168xf32>, vector<28x168xf32> -> vector<28x168xf32>
      %78 = arith.addf %73, %77 : vector<28x168xf32>
      %79 = vector.extract_strided_slice %67 {offsets = [0, 2], sizes = [28, 28], strides = [1, 1]} : vector<32x32xf32> to vector<28x28xf32>
      %c2 = arith.constant 2 : index
      %c0_31 = arith.constant 0 : index
      %c0_32 = arith.constant 0 : index
      %80 = vector.load %arg2[%c2, %c0_31, %c0_32] : memref<25x28x168xf32, #tpu.memory_space<vmem>>, vector<1x28x168xf32>
      %81 = vector.shape_cast %80 : vector<1x28x168xf32> to vector<28x168xf32>
      %cst_33 = arith.constant dense<0.000000e+00> : vector<28x168xf32>
      %82 = tpu.matmul %79, %81, %cst_33 {dimension_numbers = #tpu.dot_dimension_numbers<[1], [0], [0], [1], [0, 0, 1, 1], [], []>} : vector<28x28xf32>, vector<28x168xf32>, vector<28x168xf32> -> vector<28x168xf32>
      %83 = arith.addf %78, %82 : vector<28x168xf32>
      %84 = vector.extract_strided_slice %67 {offsets = [0, 3], sizes = [28, 28], strides = [1, 1]} : vector<32x32xf32> to vector<28x28xf32>
      %c3 = arith.constant 3 : index
      %c0_34 = arith.constant 0 : index
      %c0_35 = arith.constant 0 : index
      %85 = vector.load %arg2[%c3, %c0_34, %c0_35] : memref<25x28x168xf32, #tpu.memory_space<vmem>>, vector<1x28x168xf32>
      %86 = vector.shape_cast %85 : vector<1x28x168xf32> to vector<28x168xf32>
      %cst_36 = arith.constant dense<0.000000e+00> : vector<28x168xf32>
      %87 = tpu.matmul %84, %86, %cst_36 {dimension_numbers = #tpu.dot_dimension_numbers<[1], [0], [0], [1], [0, 0, 1, 1], [], []>} : vector<28x28xf32>, vector<28x168xf32>, vector<28x168xf32> -> vector<28x168xf32>
      %88 = arith.addf %83, %87 : vector<28x168xf32>
      %89 = vector.extract_strided_slice %67 {offsets = [0, 4], sizes = [28, 28], strides = [1, 1]} : vector<32x32xf32> to vector<28x28xf32>
      %c4 = arith.constant 4 : index
      %c0_37 = arith.constant 0 : index
      %c0_38 = arith.constant 0 : index
      %90 = vector.load %arg2[%c4, %c0_37, %c0_38] : memref<25x28x168xf32, #tpu.memory_space<vmem>>, vector<1x28x168xf32>
      %91 = vector.shape_cast %90 : vector<1x28x168xf32> to vector<28x168xf32>
      %cst_39 = arith.constant dense<0.000000e+00> : vector<28x168xf32>
      %92 = tpu.matmul %89, %91, %cst_39 {dimension_numbers = #tpu.dot_dimension_numbers<[1], [0], [0], [1], [0, 0, 1, 1], [], []>} : vector<28x28xf32>, vector<28x168xf32>, vector<28x168xf32> -> vector<28x168xf32>
      %93 = arith.addf %88, %92 : vector<28x168xf32>
      %94 = vector.extract_strided_slice %67 {offsets = [1, 0], sizes = [28, 28], strides = [1, 1]} : vector<32x32xf32> to vector<28x28xf32>
      %c5 = arith.constant 5 : index
      %c0_40 = arith.constant 0 : index
      %c0_41 = arith.constant 0 : index
      %95 = vector.load %arg2[%c5, %c0_40, %c0_41] : memref<25x28x168xf32, #tpu.memory_space<vmem>>, vector<1x28x168xf32>
      %96 = vector.shape_cast %95 : vector<1x28x168xf32> to vector<28x168xf32>
      %cst_42 = arith.constant dense<0.000000e+00> : vector<28x168xf32>
      %97 = tpu.matmul %94, %96, %cst_42 {dimension_numbers = #tpu.dot_dimension_numbers<[1], [0], [0], [1], [0, 0, 1, 1], [], []>} : vector<28x28xf32>, vector<28x168xf32>, vector<28x168xf32> -> vector<28x168xf32>
      %98 = arith.addf %93, %97 : vector<28x168xf32>
      %99 = vector.extract_strided_slice %67 {offsets = [1, 1], sizes = [28, 28], strides = [1, 1]} : vector<32x32xf32> to vector<28x28xf32>
      %c6 = arith.constant 6 : index
      %c0_43 = arith.constant 0 : index
      %c0_44 = arith.constant 0 : index
      %100 = vector.load %arg2[%c6, %c0_43, %c0_44] : memref<25x28x168xf32, #tpu.memory_space<vmem>>, vector<1x28x168xf32>
      %101 = vector.shape_cast %100 : vector<1x28x168xf32> to vector<28x168xf32>
      %cst_45 = arith.constant dense<0.000000e+00> : vector<28x168xf32>
      %102 = tpu.matmul %99, %101, %cst_45 {dimension_numbers = #tpu.dot_dimension_numbers<[1], [0], [0], [1], [0, 0, 1, 1], [], []>} : vector<28x28xf32>, vector<28x168xf32>, vector<28x168xf32> -> vector<28x168xf32>
      %103 = arith.addf %98, %102 : vector<28x168xf32>
      %104 = vector.extract_strided_slice %67 {offsets = [1, 2], sizes = [28, 28], strides = [1, 1]} : vector<32x32xf32> to vector<28x28xf32>
      %c7 = arith.constant 7 : index
      %c0_46 = arith.constant 0 : index
      %c0_47 = arith.constant 0 : index
      %105 = vector.load %arg2[%c7, %c0_46, %c0_47] : memref<25x28x168xf32, #tpu.memory_space<vmem>>, vector<1x28x168xf32>
      %106 = vector.shape_cast %105 : vector<1x28x168xf32> to vector<28x168xf32>
      %cst_48 = arith.constant dense<0.000000e+00> : vector<28x168xf32>
      %107 = tpu.matmul %104, %106, %cst_48 {dimension_numbers = #tpu.dot_dimension_numbers<[1], [0], [0], [1], [0, 0, 1, 1], [], []>} : vector<28x28xf32>, vector<28x168xf32>, vector<28x168xf32> -> vector<28x168xf32>
      %108 = arith.addf %103, %107 : vector<28x168xf32>
      %109 = vector.extract_strided_slice %67 {offsets = [1, 3], sizes = [28, 28], strides = [1, 1]} : vector<32x32xf32> to vector<28x28xf32>
      %c8 = arith.constant 8 : index
      %c0_49 = arith.constant 0 : index
      %c0_50 = arith.constant 0 : index
      %110 = vector.load %arg2[%c8, %c0_49, %c0_50] : memref<25x28x168xf32, #tpu.memory_space<vmem>>, vector<1x28x168xf32>
      %111 = vector.shape_cast %110 : vector<1x28x168xf32> to vector<28x168xf32>
      %cst_51 = arith.constant dense<0.000000e+00> : vector<28x168xf32>
      %112 = tpu.matmul %109, %111, %cst_51 {dimension_numbers = #tpu.dot_dimension_numbers<[1], [0], [0], [1], [0, 0, 1, 1], [], []>} : vector<28x28xf32>, vector<28x168xf32>, vector<28x168xf32> -> vector<28x168xf32>
      %113 = arith.addf %108, %112 : vector<28x168xf32>
      %114 = vector.extract_strided_slice %67 {offsets = [1, 4], sizes = [28, 28], strides = [1, 1]} : vector<32x32xf32> to vector<28x28xf32>
      %c9 = arith.constant 9 : index
      %c0_52 = arith.constant 0 : index
      %c0_53 = arith.constant 0 : index
      %115 = vector.load %arg2[%c9, %c0_52, %c0_53] : memref<25x28x168xf32, #tpu.memory_space<vmem>>, vector<1x28x168xf32>
      %116 = vector.shape_cast %115 : vector<1x28x168xf32> to vector<28x168xf32>
      %cst_54 = arith.constant dense<0.000000e+00> : vector<28x168xf32>
      %117 = tpu.matmul %114, %116, %cst_54 {dimension_numbers = #tpu.dot_dimension_numbers<[1], [0], [0], [1], [0, 0, 1, 1], [], []>} : vector<28x28xf32>, vector<28x168xf32>, vector<28x168xf32> -> vector<28x168xf32>
      %118 = arith.addf %113, %117 : vector<28x168xf32>
      %119 = vector.extract_strided_slice %67 {offsets = [2, 0], sizes = [28, 28], strides = [1, 1]} : vector<32x32xf32> to vector<28x28xf32>
      %c10 = arith.constant 10 : index
      %c0_55 = arith.constant 0 : index
      %c0_56 = arith.constant 0 : index
      %120 = vector.load %arg2[%c10, %c0_55, %c0_56] : memref<25x28x168xf32, #tpu.memory_space<vmem>>, vector<1x28x168xf32>
      %121 = vector.shape_cast %120 : vector<1x28x168xf32> to vector<28x168xf32>
      %cst_57 = arith.constant dense<0.000000e+00> : vector<28x168xf32>
      %122 = tpu.matmul %119, %121, %cst_57 {dimension_numbers = #tpu.dot_dimension_numbers<[1], [0], [0], [1], [0, 0, 1, 1], [], []>} : vector<28x28xf32>, vector<28x168xf32>, vector<28x168xf32> -> vector<28x168xf32>
      %123 = arith.addf %118, %122 : vector<28x168xf32>
      %124 = vector.extract_strided_slice %67 {offsets = [2, 1], sizes = [28, 28], strides = [1, 1]} : vector<32x32xf32> to vector<28x28xf32>
      %c11 = arith.constant 11 : index
      %c0_58 = arith.constant 0 : index
      %c0_59 = arith.constant 0 : index
      %125 = vector.load %arg2[%c11, %c0_58, %c0_59] : memref<25x28x168xf32, #tpu.memory_space<vmem>>, vector<1x28x168xf32>
      %126 = vector.shape_cast %125 : vector<1x28x168xf32> to vector<28x168xf32>
      %cst_60 = arith.constant dense<0.000000e+00> : vector<28x168xf32>
      %127 = tpu.matmul %124, %126, %cst_60 {dimension_numbers = #tpu.dot_dimension_numbers<[1], [0], [0], [1], [0, 0, 1, 1], [], []>} : vector<28x28xf32>, vector<28x168xf32>, vector<28x168xf32> -> vector<28x168xf32>
      %128 = arith.addf %123, %127 : vector<28x168xf32>
      %129 = vector.extract_strided_slice %67 {offsets = [2, 2], sizes = [28, 28], strides = [1, 1]} : vector<32x32xf32> to vector<28x28xf32>
      %c12 = arith.constant 12 : index
      %c0_61 = arith.constant 0 : index
      %c0_62 = arith.constant 0 : index
      %130 = vector.load %arg2[%c12, %c0_61, %c0_62] : memref<25x28x168xf32, #tpu.memory_space<vmem>>, vector<1x28x168xf32>
      %131 = vector.shape_cast %130 : vector<1x28x168xf32> to vector<28x168xf32>
      %cst_63 = arith.constant dense<0.000000e+00> : vector<28x168xf32>
      %132 = tpu.matmul %129, %131, %cst_63 {dimension_numbers = #tpu.dot_dimension_numbers<[1], [0], [0], [1], [0, 0, 1, 1], [], []>} : vector<28x28xf32>, vector<28x168xf32>, vector<28x168xf32> -> vector<28x168xf32>
      %133 = arith.addf %128, %132 : vector<28x168xf32>
      %134 = vector.extract_strided_slice %67 {offsets = [2, 3], sizes = [28, 28], strides = [1, 1]} : vector<32x32xf32> to vector<28x28xf32>
      %c13 = arith.constant 13 : index
      %c0_64 = arith.constant 0 : index
      %c0_65 = arith.constant 0 : index
      %135 = vector.load %arg2[%c13, %c0_64, %c0_65] : memref<25x28x168xf32, #tpu.memory_space<vmem>>, vector<1x28x168xf32>
      %136 = vector.shape_cast %135 : vector<1x28x168xf32> to vector<28x168xf32>
      %cst_66 = arith.constant dense<0.000000e+00> : vector<28x168xf32>
      %137 = tpu.matmul %134, %136, %cst_66 {dimension_numbers = #tpu.dot_dimension_numbers<[1], [0], [0], [1], [0, 0, 1, 1], [], []>} : vector<28x28xf32>, vector<28x168xf32>, vector<28x168xf32> -> vector<28x168xf32>
      %138 = arith.addf %133, %137 : vector<28x168xf32>
      %139 = vector.extract_strided_slice %67 {offsets = [2, 4], sizes = [28, 28], strides = [1, 1]} : vector<32x32xf32> to vector<28x28xf32>
      %c14 = arith.constant 14 : index
      %c0_67 = arith.constant 0 : index
      %c0_68 = arith.constant 0 : index
      %140 = vector.load %arg2[%c14, %c0_67, %c0_68] : memref<25x28x168xf32, #tpu.memory_space<vmem>>, vector<1x28x168xf32>
      %141 = vector.shape_cast %140 : vector<1x28x168xf32> to vector<28x168xf32>
      %cst_69 = arith.constant dense<0.000000e+00> : vector<28x168xf32>
      %142 = tpu.matmul %139, %141, %cst_69 {dimension_numbers = #tpu.dot_dimension_numbers<[1], [0], [0], [1], [0, 0, 1, 1], [], []>} : vector<28x28xf32>, vector<28x168xf32>, vector<28x168xf32> -> vector<28x168xf32>
      %143 = arith.addf %138, %142 : vector<28x168xf32>
      %144 = vector.extract_strided_slice %67 {offsets = [3, 0], sizes = [28, 28], strides = [1, 1]} : vector<32x32xf32> to vector<28x28xf32>
      %c15 = arith.constant 15 : index
      %c0_70 = arith.constant 0 : index
      %c0_71 = arith.constant 0 : index
      %145 = vector.load %arg2[%c15, %c0_70, %c0_71] : memref<25x28x168xf32, #tpu.memory_space<vmem>>, vector<1x28x168xf32>
      %146 = vector.shape_cast %145 : vector<1x28x168xf32> to vector<28x168xf32>
      %cst_72 = arith.constant dense<0.000000e+00> : vector<28x168xf32>
      %147 = tpu.matmul %144, %146, %cst_72 {dimension_numbers = #tpu.dot_dimension_numbers<[1], [0], [0], [1], [0, 0, 1, 1], [], []>} : vector<28x28xf32>, vector<28x168xf32>, vector<28x168xf32> -> vector<28x168xf32>
      %148 = arith.addf %143, %147 : vector<28x168xf32>
      %149 = vector.extract_strided_slice %67 {offsets = [3, 1], sizes = [28, 28], strides = [1, 1]} : vector<32x32xf32> to vector<28x28xf32>
      %c16 = arith.constant 16 : index
      %c0_73 = arith.constant 0 : index
      %c0_74 = arith.constant 0 : index
      %150 = vector.load %arg2[%c16, %c0_73, %c0_74] : memref<25x28x168xf32, #tpu.memory_space<vmem>>, vector<1x28x168xf32>
      %151 = vector.shape_cast %150 : vector<1x28x168xf32> to vector<28x168xf32>
      %cst_75 = arith.constant dense<0.000000e+00> : vector<28x168xf32>
      %152 = tpu.matmul %149, %151, %cst_75 {dimension_numbers = #tpu.dot_dimension_numbers<[1], [0], [0], [1], [0, 0, 1, 1], [], []>} : vector<28x28xf32>, vector<28x168xf32>, vector<28x168xf32> -> vector<28x168xf32>
      %153 = arith.addf %148, %152 : vector<28x168xf32>
      %154 = vector.extract_strided_slice %67 {offsets = [3, 2], sizes = [28, 28], strides = [1, 1]} : vector<32x32xf32> to vector<28x28xf32>
      %c17 = arith.constant 17 : index
      %c0_76 = arith.constant 0 : index
      %c0_77 = arith.constant 0 : index
      %155 = vector.load %arg2[%c17, %c0_76, %c0_77] : memref<25x28x168xf32, #tpu.memory_space<vmem>>, vector<1x28x168xf32>
      %156 = vector.shape_cast %155 : vector<1x28x168xf32> to vector<28x168xf32>
      %cst_78 = arith.constant dense<0.000000e+00> : vector<28x168xf32>
      %157 = tpu.matmul %154, %156, %cst_78 {dimension_numbers = #tpu.dot_dimension_numbers<[1], [0], [0], [1], [0, 0, 1, 1], [], []>} : vector<28x28xf32>, vector<28x168xf32>, vector<28x168xf32> -> vector<28x168xf32>
      %158 = arith.addf %153, %157 : vector<28x168xf32>
      %159 = vector.extract_strided_slice %67 {offsets = [3, 3], sizes = [28, 28], strides = [1, 1]} : vector<32x32xf32> to vector<28x28xf32>
      %c18 = arith.constant 18 : index
      %c0_79 = arith.constant 0 : index
      %c0_80 = arith.constant 0 : index
      %160 = vector.load %arg2[%c18, %c0_79, %c0_80] : memref<25x28x168xf32, #tpu.memory_space<vmem>>, vector<1x28x168xf32>
      %161 = vector.shape_cast %160 : vector<1x28x168xf32> to vector<28x168xf32>
      %cst_81 = arith.constant dense<0.000000e+00> : vector<28x168xf32>
      %162 = tpu.matmul %159, %161, %cst_81 {dimension_numbers = #tpu.dot_dimension_numbers<[1], [0], [0], [1], [0, 0, 1, 1], [], []>} : vector<28x28xf32>, vector<28x168xf32>, vector<28x168xf32> -> vector<28x168xf32>
      %163 = arith.addf %158, %162 : vector<28x168xf32>
      %164 = vector.extract_strided_slice %67 {offsets = [3, 4], sizes = [28, 28], strides = [1, 1]} : vector<32x32xf32> to vector<28x28xf32>
      %c19 = arith.constant 19 : index
      %c0_82 = arith.constant 0 : index
      %c0_83 = arith.constant 0 : index
      %165 = vector.load %arg2[%c19, %c0_82, %c0_83] : memref<25x28x168xf32, #tpu.memory_space<vmem>>, vector<1x28x168xf32>
      %166 = vector.shape_cast %165 : vector<1x28x168xf32> to vector<28x168xf32>
      %cst_84 = arith.constant dense<0.000000e+00> : vector<28x168xf32>
      %167 = tpu.matmul %164, %166, %cst_84 {dimension_numbers = #tpu.dot_dimension_numbers<[1], [0], [0], [1], [0, 0, 1, 1], [], []>} : vector<28x28xf32>, vector<28x168xf32>, vector<28x168xf32> -> vector<28x168xf32>
      %168 = arith.addf %163, %167 : vector<28x168xf32>
      %169 = vector.extract_strided_slice %67 {offsets = [4, 0], sizes = [28, 28], strides = [1, 1]} : vector<32x32xf32> to vector<28x28xf32>
      %c20 = arith.constant 20 : index
      %c0_85 = arith.constant 0 : index
      %c0_86 = arith.constant 0 : index
      %170 = vector.load %arg2[%c20, %c0_85, %c0_86] : memref<25x28x168xf32, #tpu.memory_space<vmem>>, vector<1x28x168xf32>
      %171 = vector.shape_cast %170 : vector<1x28x168xf32> to vector<28x168xf32>
      %cst_87 = arith.constant dense<0.000000e+00> : vector<28x168xf32>
      %172 = tpu.matmul %169, %171, %cst_87 {dimension_numbers = #tpu.dot_dimension_numbers<[1], [0], [0], [1], [0, 0, 1, 1], [], []>} : vector<28x28xf32>, vector<28x168xf32>, vector<28x168xf32> -> vector<28x168xf32>
      %173 = arith.addf %168, %172 : vector<28x168xf32>
      %174 = vector.extract_strided_slice %67 {offsets = [4, 1], sizes = [28, 28], strides = [1, 1]} : vector<32x32xf32> to vector<28x28xf32>
      %c21 = arith.constant 21 : index
      %c0_88 = arith.constant 0 : index
      %c0_89 = arith.constant 0 : index
      %175 = vector.load %arg2[%c21, %c0_88, %c0_89] : memref<25x28x168xf32, #tpu.memory_space<vmem>>, vector<1x28x168xf32>
      %176 = vector.shape_cast %175 : vector<1x28x168xf32> to vector<28x168xf32>
      %cst_90 = arith.constant dense<0.000000e+00> : vector<28x168xf32>
      %177 = tpu.matmul %174, %176, %cst_90 {dimension_numbers = #tpu.dot_dimension_numbers<[1], [0], [0], [1], [0, 0, 1, 1], [], []>} : vector<28x28xf32>, vector<28x168xf32>, vector<28x168xf32> -> vector<28x168xf32>
      %178 = arith.addf %173, %177 : vector<28x168xf32>
      %179 = vector.extract_strided_slice %67 {offsets = [4, 2], sizes = [28, 28], strides = [1, 1]} : vector<32x32xf32> to vector<28x28xf32>
      %c22 = arith.constant 22 : index
      %c0_91 = arith.constant 0 : index
      %c0_92 = arith.constant 0 : index
      %180 = vector.load %arg2[%c22, %c0_91, %c0_92] : memref<25x28x168xf32, #tpu.memory_space<vmem>>, vector<1x28x168xf32>
      %181 = vector.shape_cast %180 : vector<1x28x168xf32> to vector<28x168xf32>
      %cst_93 = arith.constant dense<0.000000e+00> : vector<28x168xf32>
      %182 = tpu.matmul %179, %181, %cst_93 {dimension_numbers = #tpu.dot_dimension_numbers<[1], [0], [0], [1], [0, 0, 1, 1], [], []>} : vector<28x28xf32>, vector<28x168xf32>, vector<28x168xf32> -> vector<28x168xf32>
      %183 = arith.addf %178, %182 : vector<28x168xf32>
      %184 = vector.extract_strided_slice %67 {offsets = [4, 3], sizes = [28, 28], strides = [1, 1]} : vector<32x32xf32> to vector<28x28xf32>
      %c23 = arith.constant 23 : index
      %c0_94 = arith.constant 0 : index
      %c0_95 = arith.constant 0 : index
      %185 = vector.load %arg2[%c23, %c0_94, %c0_95] : memref<25x28x168xf32, #tpu.memory_space<vmem>>, vector<1x28x168xf32>
      %186 = vector.shape_cast %185 : vector<1x28x168xf32> to vector<28x168xf32>
      %cst_96 = arith.constant dense<0.000000e+00> : vector<28x168xf32>
      %187 = tpu.matmul %184, %186, %cst_96 {dimension_numbers = #tpu.dot_dimension_numbers<[1], [0], [0], [1], [0, 0, 1, 1], [], []>} : vector<28x28xf32>, vector<28x168xf32>, vector<28x168xf32> -> vector<28x168xf32>
      %188 = arith.addf %183, %187 : vector<28x168xf32>
      %189 = vector.extract_strided_slice %67 {offsets = [4, 4], sizes = [28, 28], strides = [1, 1]} : vector<32x32xf32> to vector<28x28xf32>
      %c24 = arith.constant 24 : index
      %c0_97 = arith.constant 0 : index
      %c0_98 = arith.constant 0 : index
      %190 = vector.load %arg2[%c24, %c0_97, %c0_98] : memref<25x28x168xf32, #tpu.memory_space<vmem>>, vector<1x28x168xf32>
      %191 = vector.shape_cast %190 : vector<1x28x168xf32> to vector<28x168xf32>
      %cst_99 = arith.constant dense<0.000000e+00> : vector<28x168xf32>
      %192 = tpu.matmul %189, %191, %cst_99 {dimension_numbers = #tpu.dot_dimension_numbers<[1], [0], [0], [1], [0, 0, 1, 1], [], []>} : vector<28x28xf32>, vector<28x168xf32>, vector<28x168xf32> -> vector<28x168xf32>
      %193 = arith.addf %188, %192 : vector<28x168xf32>
      %c0_100 = arith.constant 0 : index
      %c0_101 = arith.constant 0 : index
      %194 = vector.load %arg3[%c0_100, %c0_101] : memref<1x168xf32, #tpu.memory_space<vmem>>, vector<1x168xf32>
      %195 = vector.broadcast %194 : vector<1x168xf32> to vector<28x168xf32>
      %196 = arith.addf %193, %195 : vector<28x168xf32>
      %cst_102 = arith.constant 0.000000e+00 : f32
      %197 = vector.broadcast %cst_102 : f32 to vector<28x168xf32>
      %198 = arith.maximumf %196, %197 : vector<28x168xf32>
      %cst_103 = arith.constant dense<0.000000e+00> : vector<14x168xf32>
      %199 = tpu.matmul %8, %198, %cst_103 {dimension_numbers = #tpu.dot_dimension_numbers<[1], [0], [0], [1], [0, 0, 1, 1], [], []>} : vector<14x28xf32>, vector<28x168xf32>, vector<14x168xf32> -> vector<14x168xf32>
      %cst_104 = arith.constant dense<0.000000e+00> : vector<14x168xf32>
      %200 = tpu.matmul %17, %198, %cst_104 {dimension_numbers = #tpu.dot_dimension_numbers<[1], [0], [0], [1], [0, 0, 1, 1], [], []>} : vector<14x28xf32>, vector<28x168xf32>, vector<14x168xf32> -> vector<14x168xf32>
      %201 = arith.maximumf %199, %200 : vector<14x168xf32>
      %cst_105 = arith.constant dense<0.000000e+00> : vector<14x168xf32>
      %202 = tpu.matmul %201, %24, %cst_105 {dimension_numbers = #tpu.dot_dimension_numbers<[1], [0], [0], [1], [0, 0, 1, 1], [], []>} : vector<14x168xf32>, vector<168x168xf32>, vector<14x168xf32> -> vector<14x168xf32>
      %203 = arith.maximumf %201, %202 : vector<14x168xf32>
      %cst_106 = arith.constant 0.000000e+00 : f32
      %204 = vector.broadcast %cst_106 : f32 to vector<10x160xf32>
      %205 = vector.extract_strided_slice %203 {offsets = [0, 0], sizes = [10, 120], strides = [1, 1]} : vector<14x168xf32> to vector<10x120xf32>
      %c0_107 = arith.constant 0 : index
      %c0_108 = arith.constant 0 : index
      %c0_109 = arith.constant 0 : index
      %206 = vector.load %arg4[%c0_107, %c0_108, %c0_109] : memref<25x120x160xf32, #tpu.memory_space<vmem>>, vector<1x120x160xf32>
      %207 = vector.shape_cast %206 : vector<1x120x160xf32> to vector<120x160xf32>
      %cst_110 = arith.constant dense<0.000000e+00> : vector<10x160xf32>
      %208 = tpu.matmul %205, %207, %cst_110 {dimension_numbers = #tpu.dot_dimension_numbers<[1], [0], [0], [1], [0, 0, 1, 1], [], []>} : vector<10x120xf32>, vector<120x160xf32>, vector<10x160xf32> -> vector<10x160xf32>
      %209 = arith.addf %204, %208 : vector<10x160xf32>
      %210 = vector.extract_strided_slice %203 {offsets = [0, 12], sizes = [10, 120], strides = [1, 1]} : vector<14x168xf32> to vector<10x120xf32>
      %c1_111 = arith.constant 1 : index
      %c0_112 = arith.constant 0 : index
      %c0_113 = arith.constant 0 : index
      %211 = vector.load %arg4[%c1_111, %c0_112, %c0_113] : memref<25x120x160xf32, #tpu.memory_space<vmem>>, vector<1x120x160xf32>
      %212 = vector.shape_cast %211 : vector<1x120x160xf32> to vector<120x160xf32>
      %cst_114 = arith.constant dense<0.000000e+00> : vector<10x160xf32>
      %213 = tpu.matmul %210, %212, %cst_114 {dimension_numbers = #tpu.dot_dimension_numbers<[1], [0], [0], [1], [0, 0, 1, 1], [], []>} : vector<10x120xf32>, vector<120x160xf32>, vector<10x160xf32> -> vector<10x160xf32>
      %214 = arith.addf %209, %213 : vector<10x160xf32>
      %215 = vector.extract_strided_slice %203 {offsets = [0, 24], sizes = [10, 120], strides = [1, 1]} : vector<14x168xf32> to vector<10x120xf32>
      %c2_115 = arith.constant 2 : index
      %c0_116 = arith.constant 0 : index
      %c0_117 = arith.constant 0 : index
      %216 = vector.load %arg4[%c2_115, %c0_116, %c0_117] : memref<25x120x160xf32, #tpu.memory_space<vmem>>, vector<1x120x160xf32>
      %217 = vector.shape_cast %216 : vector<1x120x160xf32> to vector<120x160xf32>
      %cst_118 = arith.constant dense<0.000000e+00> : vector<10x160xf32>
      %218 = tpu.matmul %215, %217, %cst_118 {dimension_numbers = #tpu.dot_dimension_numbers<[1], [0], [0], [1], [0, 0, 1, 1], [], []>} : vector<10x120xf32>, vector<120x160xf32>, vector<10x160xf32> -> vector<10x160xf32>
      %219 = arith.addf %214, %218 : vector<10x160xf32>
      %220 = vector.extract_strided_slice %203 {offsets = [0, 36], sizes = [10, 120], strides = [1, 1]} : vector<14x168xf32> to vector<10x120xf32>
      %c3_119 = arith.constant 3 : index
      %c0_120 = arith.constant 0 : index
      %c0_121 = arith.constant 0 : index
      %221 = vector.load %arg4[%c3_119, %c0_120, %c0_121] : memref<25x120x160xf32, #tpu.memory_space<vmem>>, vector<1x120x160xf32>
      %222 = vector.shape_cast %221 : vector<1x120x160xf32> to vector<120x160xf32>
      %cst_122 = arith.constant dense<0.000000e+00> : vector<10x160xf32>
      %223 = tpu.matmul %220, %222, %cst_122 {dimension_numbers = #tpu.dot_dimension_numbers<[1], [0], [0], [1], [0, 0, 1, 1], [], []>} : vector<10x120xf32>, vector<120x160xf32>, vector<10x160xf32> -> vector<10x160xf32>
      %224 = arith.addf %219, %223 : vector<10x160xf32>
      %225 = vector.extract_strided_slice %203 {offsets = [0, 48], sizes = [10, 120], strides = [1, 1]} : vector<14x168xf32> to vector<10x120xf32>
      %c4_123 = arith.constant 4 : index
      %c0_124 = arith.constant 0 : index
      %c0_125 = arith.constant 0 : index
      %226 = vector.load %arg4[%c4_123, %c0_124, %c0_125] : memref<25x120x160xf32, #tpu.memory_space<vmem>>, vector<1x120x160xf32>
      %227 = vector.shape_cast %226 : vector<1x120x160xf32> to vector<120x160xf32>
      %cst_126 = arith.constant dense<0.000000e+00> : vector<10x160xf32>
      %228 = tpu.matmul %225, %227, %cst_126 {dimension_numbers = #tpu.dot_dimension_numbers<[1], [0], [0], [1], [0, 0, 1, 1], [], []>} : vector<10x120xf32>, vector<120x160xf32>, vector<10x160xf32> -> vector<10x160xf32>
      %229 = arith.addf %224, %228 : vector<10x160xf32>
      %230 = vector.extract_strided_slice %203 {offsets = [1, 0], sizes = [10, 120], strides = [1, 1]} : vector<14x168xf32> to vector<10x120xf32>
      %c5_127 = arith.constant 5 : index
      %c0_128 = arith.constant 0 : index
      %c0_129 = arith.constant 0 : index
      %231 = vector.load %arg4[%c5_127, %c0_128, %c0_129] : memref<25x120x160xf32, #tpu.memory_space<vmem>>, vector<1x120x160xf32>
      %232 = vector.shape_cast %231 : vector<1x120x160xf32> to vector<120x160xf32>
      %cst_130 = arith.constant dense<0.000000e+00> : vector<10x160xf32>
      %233 = tpu.matmul %230, %232, %cst_130 {dimension_numbers = #tpu.dot_dimension_numbers<[1], [0], [0], [1], [0, 0, 1, 1], [], []>} : vector<10x120xf32>, vector<120x160xf32>, vector<10x160xf32> -> vector<10x160xf32>
      %234 = arith.addf %229, %233 : vector<10x160xf32>
      %235 = vector.extract_strided_slice %203 {offsets = [1, 12], sizes = [10, 120], strides = [1, 1]} : vector<14x168xf32> to vector<10x120xf32>
      %c6_131 = arith.constant 6 : index
      %c0_132 = arith.constant 0 : index
      %c0_133 = arith.constant 0 : index
      %236 = vector.load %arg4[%c6_131, %c0_132, %c0_133] : memref<25x120x160xf32, #tpu.memory_space<vmem>>, vector<1x120x160xf32>
      %237 = vector.shape_cast %236 : vector<1x120x160xf32> to vector<120x160xf32>
      %cst_134 = arith.constant dense<0.000000e+00> : vector<10x160xf32>
      %238 = tpu.matmul %235, %237, %cst_134 {dimension_numbers = #tpu.dot_dimension_numbers<[1], [0], [0], [1], [0, 0, 1, 1], [], []>} : vector<10x120xf32>, vector<120x160xf32>, vector<10x160xf32> -> vector<10x160xf32>
      %239 = arith.addf %234, %238 : vector<10x160xf32>
      %240 = vector.extract_strided_slice %203 {offsets = [1, 24], sizes = [10, 120], strides = [1, 1]} : vector<14x168xf32> to vector<10x120xf32>
      %c7_135 = arith.constant 7 : index
      %c0_136 = arith.constant 0 : index
      %c0_137 = arith.constant 0 : index
      %241 = vector.load %arg4[%c7_135, %c0_136, %c0_137] : memref<25x120x160xf32, #tpu.memory_space<vmem>>, vector<1x120x160xf32>
      %242 = vector.shape_cast %241 : vector<1x120x160xf32> to vector<120x160xf32>
      %cst_138 = arith.constant dense<0.000000e+00> : vector<10x160xf32>
      %243 = tpu.matmul %240, %242, %cst_138 {dimension_numbers = #tpu.dot_dimension_numbers<[1], [0], [0], [1], [0, 0, 1, 1], [], []>} : vector<10x120xf32>, vector<120x160xf32>, vector<10x160xf32> -> vector<10x160xf32>
      %244 = arith.addf %239, %243 : vector<10x160xf32>
      %245 = vector.extract_strided_slice %203 {offsets = [1, 36], sizes = [10, 120], strides = [1, 1]} : vector<14x168xf32> to vector<10x120xf32>
      %c8_139 = arith.constant 8 : index
      %c0_140 = arith.constant 0 : index
      %c0_141 = arith.constant 0 : index
      %246 = vector.load %arg4[%c8_139, %c0_140, %c0_141] : memref<25x120x160xf32, #tpu.memory_space<vmem>>, vector<1x120x160xf32>
      %247 = vector.shape_cast %246 : vector<1x120x160xf32> to vector<120x160xf32>
      %cst_142 = arith.constant dense<0.000000e+00> : vector<10x160xf32>
      %248 = tpu.matmul %245, %247, %cst_142 {dimension_numbers = #tpu.dot_dimension_numbers<[1], [0], [0], [1], [0, 0, 1, 1], [], []>} : vector<10x120xf32>, vector<120x160xf32>, vector<10x160xf32> -> vector<10x160xf32>
      %249 = arith.addf %244, %248 : vector<10x160xf32>
      %250 = vector.extract_strided_slice %203 {offsets = [1, 48], sizes = [10, 120], strides = [1, 1]} : vector<14x168xf32> to vector<10x120xf32>
      %c9_143 = arith.constant 9 : index
      %c0_144 = arith.constant 0 : index
      %c0_145 = arith.constant 0 : index
      %251 = vector.load %arg4[%c9_143, %c0_144, %c0_145] : memref<25x120x160xf32, #tpu.memory_space<vmem>>, vector<1x120x160xf32>
      %252 = vector.shape_cast %251 : vector<1x120x160xf32> to vector<120x160xf32>
      %cst_146 = arith.constant dense<0.000000e+00> : vector<10x160xf32>
      %253 = tpu.matmul %250, %252, %cst_146 {dimension_numbers = #tpu.dot_dimension_numbers<[1], [0], [0], [1], [0, 0, 1, 1], [], []>} : vector<10x120xf32>, vector<120x160xf32>, vector<10x160xf32> -> vector<10x160xf32>
      %254 = arith.addf %249, %253 : vector<10x160xf32>
      %255 = vector.extract_strided_slice %203 {offsets = [2, 0], sizes = [10, 120], strides = [1, 1]} : vector<14x168xf32> to vector<10x120xf32>
      %c10_147 = arith.constant 10 : index
      %c0_148 = arith.constant 0 : index
      %c0_149 = arith.constant 0 : index
      %256 = vector.load %arg4[%c10_147, %c0_148, %c0_149] : memref<25x120x160xf32, #tpu.memory_space<vmem>>, vector<1x120x160xf32>
      %257 = vector.shape_cast %256 : vector<1x120x160xf32> to vector<120x160xf32>
      %cst_150 = arith.constant dense<0.000000e+00> : vector<10x160xf32>
      %258 = tpu.matmul %255, %257, %cst_150 {dimension_numbers = #tpu.dot_dimension_numbers<[1], [0], [0], [1], [0, 0, 1, 1], [], []>} : vector<10x120xf32>, vector<120x160xf32>, vector<10x160xf32> -> vector<10x160xf32>
      %259 = arith.addf %254, %258 : vector<10x160xf32>
      %260 = vector.extract_strided_slice %203 {offsets = [2, 12], sizes = [10, 120], strides = [1, 1]} : vector<14x168xf32> to vector<10x120xf32>
      %c11_151 = arith.constant 11 : index
      %c0_152 = arith.constant 0 : index
      %c0_153 = arith.constant 0 : index
      %261 = vector.load %arg4[%c11_151, %c0_152, %c0_153] : memref<25x120x160xf32, #tpu.memory_space<vmem>>, vector<1x120x160xf32>
      %262 = vector.shape_cast %261 : vector<1x120x160xf32> to vector<120x160xf32>
      %cst_154 = arith.constant dense<0.000000e+00> : vector<10x160xf32>
      %263 = tpu.matmul %260, %262, %cst_154 {dimension_numbers = #tpu.dot_dimension_numbers<[1], [0], [0], [1], [0, 0, 1, 1], [], []>} : vector<10x120xf32>, vector<120x160xf32>, vector<10x160xf32> -> vector<10x160xf32>
      %264 = arith.addf %259, %263 : vector<10x160xf32>
      %265 = vector.extract_strided_slice %203 {offsets = [2, 24], sizes = [10, 120], strides = [1, 1]} : vector<14x168xf32> to vector<10x120xf32>
      %c12_155 = arith.constant 12 : index
      %c0_156 = arith.constant 0 : index
      %c0_157 = arith.constant 0 : index
      %266 = vector.load %arg4[%c12_155, %c0_156, %c0_157] : memref<25x120x160xf32, #tpu.memory_space<vmem>>, vector<1x120x160xf32>
      %267 = vector.shape_cast %266 : vector<1x120x160xf32> to vector<120x160xf32>
      %cst_158 = arith.constant dense<0.000000e+00> : vector<10x160xf32>
      %268 = tpu.matmul %265, %267, %cst_158 {dimension_numbers = #tpu.dot_dimension_numbers<[1], [0], [0], [1], [0, 0, 1, 1], [], []>} : vector<10x120xf32>, vector<120x160xf32>, vector<10x160xf32> -> vector<10x160xf32>
      %269 = arith.addf %264, %268 : vector<10x160xf32>
      %270 = vector.extract_strided_slice %203 {offsets = [2, 36], sizes = [10, 120], strides = [1, 1]} : vector<14x168xf32> to vector<10x120xf32>
      %c13_159 = arith.constant 13 : index
      %c0_160 = arith.constant 0 : index
      %c0_161 = arith.constant 0 : index
      %271 = vector.load %arg4[%c13_159, %c0_160, %c0_161] : memref<25x120x160xf32, #tpu.memory_space<vmem>>, vector<1x120x160xf32>
      %272 = vector.shape_cast %271 : vector<1x120x160xf32> to vector<120x160xf32>
      %cst_162 = arith.constant dense<0.000000e+00> : vector<10x160xf32>
      %273 = tpu.matmul %270, %272, %cst_162 {dimension_numbers = #tpu.dot_dimension_numbers<[1], [0], [0], [1], [0, 0, 1, 1], [], []>} : vector<10x120xf32>, vector<120x160xf32>, vector<10x160xf32> -> vector<10x160xf32>
      %274 = arith.addf %269, %273 : vector<10x160xf32>
      %275 = vector.extract_strided_slice %203 {offsets = [2, 48], sizes = [10, 120], strides = [1, 1]} : vector<14x168xf32> to vector<10x120xf32>
      %c14_163 = arith.constant 14 : index
      %c0_164 = arith.constant 0 : index
      %c0_165 = arith.constant 0 : index
      %276 = vector.load %arg4[%c14_163, %c0_164, %c0_165] : memref<25x120x160xf32, #tpu.memory_space<vmem>>, vector<1x120x160xf32>
      %277 = vector.shape_cast %276 : vector<1x120x160xf32> to vector<120x160xf32>
      %cst_166 = arith.constant dense<0.000000e+00> : vector<10x160xf32>
      %278 = tpu.matmul %275, %277, %cst_166 {dimension_numbers = #tpu.dot_dimension_numbers<[1], [0], [0], [1], [0, 0, 1, 1], [], []>} : vector<10x120xf32>, vector<120x160xf32>, vector<10x160xf32> -> vector<10x160xf32>
      %279 = arith.addf %274, %278 : vector<10x160xf32>
      %280 = vector.extract_strided_slice %203 {offsets = [3, 0], sizes = [10, 120], strides = [1, 1]} : vector<14x168xf32> to vector<10x120xf32>
      %c15_167 = arith.constant 15 : index
      %c0_168 = arith.constant 0 : index
      %c0_169 = arith.constant 0 : index
      %281 = vector.load %arg4[%c15_167, %c0_168, %c0_169] : memref<25x120x160xf32, #tpu.memory_space<vmem>>, vector<1x120x160xf32>
      %282 = vector.shape_cast %281 : vector<1x120x160xf32> to vector<120x160xf32>
      %cst_170 = arith.constant dense<0.000000e+00> : vector<10x160xf32>
      %283 = tpu.matmul %280, %282, %cst_170 {dimension_numbers = #tpu.dot_dimension_numbers<[1], [0], [0], [1], [0, 0, 1, 1], [], []>} : vector<10x120xf32>, vector<120x160xf32>, vector<10x160xf32> -> vector<10x160xf32>
      %284 = arith.addf %279, %283 : vector<10x160xf32>
      %285 = vector.extract_strided_slice %203 {offsets = [3, 12], sizes = [10, 120], strides = [1, 1]} : vector<14x168xf32> to vector<10x120xf32>
      %c16_171 = arith.constant 16 : index
      %c0_172 = arith.constant 0 : index
      %c0_173 = arith.constant 0 : index
      %286 = vector.load %arg4[%c16_171, %c0_172, %c0_173] : memref<25x120x160xf32, #tpu.memory_space<vmem>>, vector<1x120x160xf32>
      %287 = vector.shape_cast %286 : vector<1x120x160xf32> to vector<120x160xf32>
      %cst_174 = arith.constant dense<0.000000e+00> : vector<10x160xf32>
      %288 = tpu.matmul %285, %287, %cst_174 {dimension_numbers = #tpu.dot_dimension_numbers<[1], [0], [0], [1], [0, 0, 1, 1], [], []>} : vector<10x120xf32>, vector<120x160xf32>, vector<10x160xf32> -> vector<10x160xf32>
      %289 = arith.addf %284, %288 : vector<10x160xf32>
      %290 = vector.extract_strided_slice %203 {offsets = [3, 24], sizes = [10, 120], strides = [1, 1]} : vector<14x168xf32> to vector<10x120xf32>
      %c17_175 = arith.constant 17 : index
      %c0_176 = arith.constant 0 : index
      %c0_177 = arith.constant 0 : index
      %291 = vector.load %arg4[%c17_175, %c0_176, %c0_177] : memref<25x120x160xf32, #tpu.memory_space<vmem>>, vector<1x120x160xf32>
      %292 = vector.shape_cast %291 : vector<1x120x160xf32> to vector<120x160xf32>
      %cst_178 = arith.constant dense<0.000000e+00> : vector<10x160xf32>
      %293 = tpu.matmul %290, %292, %cst_178 {dimension_numbers = #tpu.dot_dimension_numbers<[1], [0], [0], [1], [0, 0, 1, 1], [], []>} : vector<10x120xf32>, vector<120x160xf32>, vector<10x160xf32> -> vector<10x160xf32>
      %294 = arith.addf %289, %293 : vector<10x160xf32>
      %295 = vector.extract_strided_slice %203 {offsets = [3, 36], sizes = [10, 120], strides = [1, 1]} : vector<14x168xf32> to vector<10x120xf32>
      %c18_179 = arith.constant 18 : index
      %c0_180 = arith.constant 0 : index
      %c0_181 = arith.constant 0 : index
      %296 = vector.load %arg4[%c18_179, %c0_180, %c0_181] : memref<25x120x160xf32, #tpu.memory_space<vmem>>, vector<1x120x160xf32>
      %297 = vector.shape_cast %296 : vector<1x120x160xf32> to vector<120x160xf32>
      %cst_182 = arith.constant dense<0.000000e+00> : vector<10x160xf32>
      %298 = tpu.matmul %295, %297, %cst_182 {dimension_numbers = #tpu.dot_dimension_numbers<[1], [0], [0], [1], [0, 0, 1, 1], [], []>} : vector<10x120xf32>, vector<120x160xf32>, vector<10x160xf32> -> vector<10x160xf32>
      %299 = arith.addf %294, %298 : vector<10x160xf32>
      %300 = vector.extract_strided_slice %203 {offsets = [3, 48], sizes = [10, 120], strides = [1, 1]} : vector<14x168xf32> to vector<10x120xf32>
      %c19_183 = arith.constant 19 : index
      %c0_184 = arith.constant 0 : index
      %c0_185 = arith.constant 0 : index
      %301 = vector.load %arg4[%c19_183, %c0_184, %c0_185] : memref<25x120x160xf32, #tpu.memory_space<vmem>>, vector<1x120x160xf32>
      %302 = vector.shape_cast %301 : vector<1x120x160xf32> to vector<120x160xf32>
      %cst_186 = arith.constant dense<0.000000e+00> : vector<10x160xf32>
      %303 = tpu.matmul %300, %302, %cst_186 {dimension_numbers = #tpu.dot_dimension_numbers<[1], [0], [0], [1], [0, 0, 1, 1], [], []>} : vector<10x120xf32>, vector<120x160xf32>, vector<10x160xf32> -> vector<10x160xf32>
      %304 = arith.addf %299, %303 : vector<10x160xf32>
      %305 = vector.extract_strided_slice %203 {offsets = [4, 0], sizes = [10, 120], strides = [1, 1]} : vector<14x168xf32> to vector<10x120xf32>
      %c20_187 = arith.constant 20 : index
      %c0_188 = arith.constant 0 : index
      %c0_189 = arith.constant 0 : index
      %306 = vector.load %arg4[%c20_187, %c0_188, %c0_189] : memref<25x120x160xf32, #tpu.memory_space<vmem>>, vector<1x120x160xf32>
      %307 = vector.shape_cast %306 : vector<1x120x160xf32> to vector<120x160xf32>
      %cst_190 = arith.constant dense<0.000000e+00> : vector<10x160xf32>
      %308 = tpu.matmul %305, %307, %cst_190 {dimension_numbers = #tpu.dot_dimension_numbers<[1], [0], [0], [1], [0, 0, 1, 1], [], []>} : vector<10x120xf32>, vector<120x160xf32>, vector<10x160xf32> -> vector<10x160xf32>
      %309 = arith.addf %304, %308 : vector<10x160xf32>
      %310 = vector.extract_strided_slice %203 {offsets = [4, 12], sizes = [10, 120], strides = [1, 1]} : vector<14x168xf32> to vector<10x120xf32>
      %c21_191 = arith.constant 21 : index
      %c0_192 = arith.constant 0 : index
      %c0_193 = arith.constant 0 : index
      %311 = vector.load %arg4[%c21_191, %c0_192, %c0_193] : memref<25x120x160xf32, #tpu.memory_space<vmem>>, vector<1x120x160xf32>
      %312 = vector.shape_cast %311 : vector<1x120x160xf32> to vector<120x160xf32>
      %cst_194 = arith.constant dense<0.000000e+00> : vector<10x160xf32>
      %313 = tpu.matmul %310, %312, %cst_194 {dimension_numbers = #tpu.dot_dimension_numbers<[1], [0], [0], [1], [0, 0, 1, 1], [], []>} : vector<10x120xf32>, vector<120x160xf32>, vector<10x160xf32> -> vector<10x160xf32>
      %314 = arith.addf %309, %313 : vector<10x160xf32>
      %315 = vector.extract_strided_slice %203 {offsets = [4, 24], sizes = [10, 120], strides = [1, 1]} : vector<14x168xf32> to vector<10x120xf32>
      %c22_195 = arith.constant 22 : index
      %c0_196 = arith.constant 0 : index
      %c0_197 = arith.constant 0 : index
      %316 = vector.load %arg4[%c22_195, %c0_196, %c0_197] : memref<25x120x160xf32, #tpu.memory_space<vmem>>, vector<1x120x160xf32>
      %317 = vector.shape_cast %316 : vector<1x120x160xf32> to vector<120x160xf32>
      %cst_198 = arith.constant dense<0.000000e+00> : vector<10x160xf32>
      %318 = tpu.matmul %315, %317, %cst_198 {dimension_numbers = #tpu.dot_dimension_numbers<[1], [0], [0], [1], [0, 0, 1, 1], [], []>} : vector<10x120xf32>, vector<120x160xf32>, vector<10x160xf32> -> vector<10x160xf32>
      %319 = arith.addf %314, %318 : vector<10x160xf32>
      %320 = vector.extract_strided_slice %203 {offsets = [4, 36], sizes = [10, 120], strides = [1, 1]} : vector<14x168xf32> to vector<10x120xf32>
      %c23_199 = arith.constant 23 : index
      %c0_200 = arith.constant 0 : index
      %c0_201 = arith.constant 0 : index
      %321 = vector.load %arg4[%c23_199, %c0_200, %c0_201] : memref<25x120x160xf32, #tpu.memory_space<vmem>>, vector<1x120x160xf32>
      %322 = vector.shape_cast %321 : vector<1x120x160xf32> to vector<120x160xf32>
      %cst_202 = arith.constant dense<0.000000e+00> : vector<10x160xf32>
      %323 = tpu.matmul %320, %322, %cst_202 {dimension_numbers = #tpu.dot_dimension_numbers<[1], [0], [0], [1], [0, 0, 1, 1], [], []>} : vector<10x120xf32>, vector<120x160xf32>, vector<10x160xf32> -> vector<10x160xf32>
      %324 = arith.addf %319, %323 : vector<10x160xf32>
      %325 = vector.extract_strided_slice %203 {offsets = [4, 48], sizes = [10, 120], strides = [1, 1]} : vector<14x168xf32> to vector<10x120xf32>
      %c24_203 = arith.constant 24 : index
      %c0_204 = arith.constant 0 : index
      %c0_205 = arith.constant 0 : index
      %326 = vector.load %arg4[%c24_203, %c0_204, %c0_205] : memref<25x120x160xf32, #tpu.memory_space<vmem>>, vector<1x120x160xf32>
      %327 = vector.shape_cast %326 : vector<1x120x160xf32> to vector<120x160xf32>
      %cst_206 = arith.constant dense<0.000000e+00> : vector<10x160xf32>
      %328 = tpu.matmul %325, %327, %cst_206 {dimension_numbers = #tpu.dot_dimension_numbers<[1], [0], [0], [1], [0, 0, 1, 1], [], []>} : vector<10x120xf32>, vector<120x160xf32>, vector<10x160xf32> -> vector<10x160xf32>
      %329 = arith.addf %324, %328 : vector<10x160xf32>
      %c0_207 = arith.constant 0 : index
      %c0_208 = arith.constant 0 : index
      %330 = vector.load %arg5[%c0_207, %c0_208] : memref<1x160xf32, #tpu.memory_space<vmem>>, vector<1x160xf32>
      %331 = vector.broadcast %330 : vector<1x160xf32> to vector<10x160xf32>
      %332 = arith.addf %329, %331 : vector<10x160xf32>
      %cst_209 = arith.constant 0.000000e+00 : f32
      %333 = vector.broadcast %cst_209 : f32 to vector<10x160xf32>
      %334 = arith.maximumf %332, %333 : vector<10x160xf32>
      %cst_210 = arith.constant dense<0.000000e+00> : vector<5x160xf32>
      %335 = tpu.matmul %33, %334, %cst_210 {dimension_numbers = #tpu.dot_dimension_numbers<[1], [0], [0], [1], [0, 0, 1, 1], [], []>} : vector<5x10xf32>, vector<10x160xf32>, vector<5x160xf32> -> vector<5x160xf32>
      %cst_211 = arith.constant dense<0.000000e+00> : vector<5x160xf32>
      %336 = tpu.matmul %42, %334, %cst_211 {dimension_numbers = #tpu.dot_dimension_numbers<[1], [0], [0], [1], [0, 0, 1, 1], [], []>} : vector<5x10xf32>, vector<10x160xf32>, vector<5x160xf32> -> vector<5x160xf32>
      %337 = arith.maximumf %335, %336 : vector<5x160xf32>
      %cst_212 = arith.constant dense<0.000000e+00> : vector<5x160xf32>
      %338 = tpu.matmul %337, %49, %cst_212 {dimension_numbers = #tpu.dot_dimension_numbers<[1], [0], [0], [1], [0, 0, 1, 1], [], []>} : vector<5x160xf32>, vector<160x160xf32>, vector<5x160xf32> -> vector<5x160xf32>
      %339 = arith.maximumf %337, %338 : vector<5x160xf32>
      %cst_213 = arith.constant 0.000000e+00 : f32
      %340 = vector.broadcast %cst_213 : f32 to vector<1x128xf32>
      %341 = vector.extract_strided_slice %339 {offsets = [0, 0], sizes = [1, 160], strides = [1, 1]} : vector<5x160xf32> to vector<1x160xf32>
      %c0_214 = arith.constant 0 : index
      %c0_215 = arith.constant 0 : index
      %c0_216 = arith.constant 0 : index
      %342 = vector.load %arg6[%c0_214, %c0_215, %c0_216] : memref<5x160x128xf32, #tpu.memory_space<vmem>>, vector<1x160x128xf32>
      %343 = vector.shape_cast %342 : vector<1x160x128xf32> to vector<160x128xf32>
      %cst_217 = arith.constant dense<0.000000e+00> : vector<1x128xf32>
      %344 = tpu.matmul %341, %343, %cst_217 {dimension_numbers = #tpu.dot_dimension_numbers<[1], [0], [0], [1], [0, 0, 1, 1], [], []>} : vector<1x160xf32>, vector<160x128xf32>, vector<1x128xf32> -> vector<1x128xf32>
      %345 = arith.addf %340, %344 : vector<1x128xf32>
      %346 = vector.extract_strided_slice %339 {offsets = [1, 0], sizes = [1, 160], strides = [1, 1]} : vector<5x160xf32> to vector<1x160xf32>
      %c1_218 = arith.constant 1 : index
      %c0_219 = arith.constant 0 : index
      %c0_220 = arith.constant 0 : index
      %347 = vector.load %arg6[%c1_218, %c0_219, %c0_220] : memref<5x160x128xf32, #tpu.memory_space<vmem>>, vector<1x160x128xf32>
      %348 = vector.shape_cast %347 : vector<1x160x128xf32> to vector<160x128xf32>
      %cst_221 = arith.constant dense<0.000000e+00> : vector<1x128xf32>
      %349 = tpu.matmul %346, %348, %cst_221 {dimension_numbers = #tpu.dot_dimension_numbers<[1], [0], [0], [1], [0, 0, 1, 1], [], []>} : vector<1x160xf32>, vector<160x128xf32>, vector<1x128xf32> -> vector<1x128xf32>
      %350 = arith.addf %345, %349 : vector<1x128xf32>
      %351 = vector.extract_strided_slice %339 {offsets = [2, 0], sizes = [1, 160], strides = [1, 1]} : vector<5x160xf32> to vector<1x160xf32>
      %c2_222 = arith.constant 2 : index
      %c0_223 = arith.constant 0 : index
      %c0_224 = arith.constant 0 : index
      %352 = vector.load %arg6[%c2_222, %c0_223, %c0_224] : memref<5x160x128xf32, #tpu.memory_space<vmem>>, vector<1x160x128xf32>
      %353 = vector.shape_cast %352 : vector<1x160x128xf32> to vector<160x128xf32>
      %cst_225 = arith.constant dense<0.000000e+00> : vector<1x128xf32>
      %354 = tpu.matmul %351, %353, %cst_225 {dimension_numbers = #tpu.dot_dimension_numbers<[1], [0], [0], [1], [0, 0, 1, 1], [], []>} : vector<1x160xf32>, vector<160x128xf32>, vector<1x128xf32> -> vector<1x128xf32>
      %355 = arith.addf %350, %354 : vector<1x128xf32>
      %356 = vector.extract_strided_slice %339 {offsets = [3, 0], sizes = [1, 160], strides = [1, 1]} : vector<5x160xf32> to vector<1x160xf32>
      %c3_226 = arith.constant 3 : index
      %c0_227 = arith.constant 0 : index
      %c0_228 = arith.constant 0 : index
      %357 = vector.load %arg6[%c3_226, %c0_227, %c0_228] : memref<5x160x128xf32, #tpu.memory_space<vmem>>, vector<1x160x128xf32>
      %358 = vector.shape_cast %357 : vector<1x160x128xf32> to vector<160x128xf32>
      %cst_229 = arith.constant dense<0.000000e+00> : vector<1x128xf32>
      %359 = tpu.matmul %356, %358, %cst_229 {dimension_numbers = #tpu.dot_dimension_numbers<[1], [0], [0], [1], [0, 0, 1, 1], [], []>} : vector<1x160xf32>, vector<160x128xf32>, vector<1x128xf32> -> vector<1x128xf32>
      %360 = arith.addf %355, %359 : vector<1x128xf32>
      %361 = vector.extract_strided_slice %339 {offsets = [4, 0], sizes = [1, 160], strides = [1, 1]} : vector<5x160xf32> to vector<1x160xf32>
      %c4_230 = arith.constant 4 : index
      %c0_231 = arith.constant 0 : index
      %c0_232 = arith.constant 0 : index
      %362 = vector.load %arg6[%c4_230, %c0_231, %c0_232] : memref<5x160x128xf32, #tpu.memory_space<vmem>>, vector<1x160x128xf32>
      %363 = vector.shape_cast %362 : vector<1x160x128xf32> to vector<160x128xf32>
      %cst_233 = arith.constant dense<0.000000e+00> : vector<1x128xf32>
      %364 = tpu.matmul %361, %363, %cst_233 {dimension_numbers = #tpu.dot_dimension_numbers<[1], [0], [0], [1], [0, 0, 1, 1], [], []>} : vector<1x160xf32>, vector<160x128xf32>, vector<1x128xf32> -> vector<1x128xf32>
      %365 = arith.addf %360, %364 : vector<1x128xf32>
      %c0_234 = arith.constant 0 : index
      %c0_235 = arith.constant 0 : index
      %366 = vector.load %arg7[%c0_234, %c0_235] : memref<1x128xf32, #tpu.memory_space<vmem>>, vector<1x128xf32>
      %367 = arith.addf %365, %366 : vector<1x128xf32>
      %cst_236 = arith.constant 0.000000e+00 : f32
      %368 = vector.broadcast %cst_236 : f32 to vector<1x128xf32>
      %369 = arith.maximumf %367, %368 : vector<1x128xf32>
      %370 = arith.index_cast %arg14 : i32 to index
      %c0_237 = arith.constant 0 : index
      %371 = vector.load %arg13[%370, %c0_237] : memref<8x128xf32, #tpu.memory_space<vmem>>, vector<1x128xf32>
      tpu.vector_store %arg13[%370, %c0_237], %369 {strides = array<i32>} : memref<8x128xf32, #tpu.memory_space<vmem>>, vector<1x128xf32>,
    }
    %c8_i32_7 = arith.constant 8 : i32
    %c0 = arith.constant 0 : index
    %c0_8 = arith.constant 0 : index
    %51 = vector.load %arg13[%c0, %c0_8] : memref<8x128xf32, #tpu.memory_space<vmem>>, vector<8x128xf32>
    %c0_9 = arith.constant 0 : index
    %c0_10 = arith.constant 0 : index
    %52 = vector.load %arg8[%c0_9, %c0_10] : memref<128x128xf32, #tpu.memory_space<vmem>>, vector<128x128xf32>
    %cst = arith.constant dense<0.000000e+00> : vector<8x128xf32>
    %53 = tpu.matmul %51, %52, %cst {dimension_numbers = #tpu.dot_dimension_numbers<[1], [0], [0], [1], [0, 0, 1, 1], [], []>} : vector<8x128xf32>, vector<128x128xf32>, vector<8x128xf32> -> vector<8x128xf32>
    %c0_11 = arith.constant 0 : index
    %c0_12 = arith.constant 0 : index
    %54 = vector.load %arg9[%c0_11, %c0_12] : memref<1x128xf32, #tpu.memory_space<vmem>>, vector<1x128xf32>
    %55 = vector.broadcast %54 : vector<1x128xf32> to vector<8x128xf32>
    %56 = arith.addf %53, %55 : vector<8x128xf32>
    %cst_13 = arith.constant 0.000000e+00 : f32
    %57 = vector.broadcast %cst_13 : f32 to vector<8x128xf32>
    %58 = arith.maximumf %56, %57 : vector<8x128xf32>
    %c0_14 = arith.constant 0 : index
    %c0_15 = arith.constant 0 : index
    %59 = vector.load %arg10[%c0_14, %c0_15] : memref<128x128xf32, #tpu.memory_space<vmem>>, vector<128x128xf32>
    %cst_16 = arith.constant dense<0.000000e+00> : vector<8x128xf32>
    %60 = tpu.matmul %58, %59, %cst_16 {dimension_numbers = #tpu.dot_dimension_numbers<[1], [0], [0], [1], [0, 0, 1, 1], [], []>} : vector<8x128xf32>, vector<128x128xf32>, vector<8x128xf32> -> vector<8x128xf32>
    %c0_17 = arith.constant 0 : index
    %c0_18 = arith.constant 0 : index
    %61 = vector.load %arg11[%c0_17, %c0_18] : memref<1x128xf32, #tpu.memory_space<vmem>>, vector<1x128xf32>
    %62 = vector.broadcast %61 : vector<1x128xf32> to vector<8x128xf32>
    %63 = arith.addf %60, %62 : vector<8x128xf32>
    %c0_19 = arith.constant 0 : index
    %c0_20 = arith.constant 0 : index
    %64 = vector.load %arg12[%c0_19, %c0_20] : memref<8x128xf32, #tpu.memory_space<vmem>>, vector<8x128xf32>
    tpu.vector_store %arg12[%c0_19, %c0_20], %63 {strides = array<i32>} : memref<8x128xf32, #tpu.memory_space<vmem>>, vector<8x128xf32>,
    return
  }
  func.func @transform_0(%arg0: i32) -> (i32, i32, i32) {
    %c0_i32 = arith.constant 0 : i32
    %c0_i32_0 = arith.constant 0 : i32
    %c0_i32_1 = arith.constant 0 : i32
    return %arg0, %c0_i32, %c0_i32_0 : i32, i32, i32
  }
  func.func @transform_1(%arg0: i32) -> (i32, i32, i32) {
    %c0_i32 = arith.constant 0 : i32
    %c0_i32_0 = arith.constant 0 : i32
    %c0_i32_1 = arith.constant 0 : i32
    %c0_i32_2 = arith.constant 0 : i32
    return %c0_i32, %c0_i32_0, %c0_i32_1 : i32, i32, i32
  }
  func.func @transform_2(%arg0: i32) -> (i32, i32) {
    %c0_i32 = arith.constant 0 : i32
    %c0_i32_0 = arith.constant 0 : i32
    %c0_i32_1 = arith.constant 0 : i32
    return %c0_i32, %c0_i32_0 : i32, i32
  }
  func.func @transform_3(%arg0: i32) -> (i32, i32, i32) {
    %c0_i32 = arith.constant 0 : i32
    %c0_i32_0 = arith.constant 0 : i32
    %c0_i32_1 = arith.constant 0 : i32
    %c0_i32_2 = arith.constant 0 : i32
    return %c0_i32, %c0_i32_0, %c0_i32_1 : i32, i32, i32
  }
  func.func @transform_4(%arg0: i32) -> (i32, i32) {
    %c0_i32 = arith.constant 0 : i32
    %c0_i32_0 = arith.constant 0 : i32
    %c0_i32_1 = arith.constant 0 : i32
    return %c0_i32, %c0_i32_0 : i32, i32
  }
  func.func @transform_5(%arg0: i32) -> (i32, i32, i32) {
    %c0_i32 = arith.constant 0 : i32
    %c0_i32_0 = arith.constant 0 : i32
    %c0_i32_1 = arith.constant 0 : i32
    %c0_i32_2 = arith.constant 0 : i32
    return %c0_i32, %c0_i32_0, %c0_i32_1 : i32, i32, i32
  }
  func.func @transform_6(%arg0: i32) -> (i32, i32) {
    %c0_i32 = arith.constant 0 : i32
    %c0_i32_0 = arith.constant 0 : i32
    %c0_i32_1 = arith.constant 0 : i32
    return %c0_i32, %c0_i32_0 : i32, i32
  }
  func.func @transform_7(%arg0: i32) -> (i32, i32) {
    %c0_i32 = arith.constant 0 : i32
    %c0_i32_0 = arith.constant 0 : i32
    %c0_i32_1 = arith.constant 0 : i32
    return %c0_i32, %c0_i32_0 : i32, i32
  }
  func.func @transform_8(%arg0: i32) -> (i32, i32) {
    %c0_i32 = arith.constant 0 : i32
    %c0_i32_0 = arith.constant 0 : i32
    %c0_i32_1 = arith.constant 0 : i32
    return %c0_i32, %c0_i32_0 : i32, i32
  }
  func.func @transform_9(%arg0: i32) -> (i32, i32) {
    %c0_i32 = arith.constant 0 : i32
    %c0_i32_0 = arith.constant 0 : i32
    %c0_i32_1 = arith.constant 0 : i32
    return %c0_i32, %c0_i32_0 : i32, i32
  }
  func.func @transform_10(%arg0: i32) -> (i32, i32) {
    %c0_i32 = arith.constant 0 : i32
    %c0_i32_0 = arith.constant 0 : i32
    %c0_i32_1 = arith.constant 0 : i32
    return %c0_i32, %c0_i32_0 : i32, i32
  }
  func.func @transform_11(%arg0: i32) -> (i32, i32) {
    %c0_i32 = arith.constant 0 : i32
    %c0_i32_0 = arith.constant 0 : i32
    return %arg0, %c0_i32 : i32, i32
  }
}

</mosaic_0001>

<llo_original>
// kernel: lenet5_forward.1
$region0: #{lenet5_forward.1}
  #allocation0 [shape = 'u32[]', space=smem, size = 0x4, offset = 0x4, fixed_abs, tag = 'smem constant byte address 0x4 - core index']
  #allocation1 [shape = 'u32[144,128]{1,0:T(1,128)}', space=vmem, size = 0x12000, scoped, tag = 'internal scratch']
  #allocation2 [shape = 'f32[8,128]{1,0:T(8,128)}', space=vmem, size = 0x1000, scoped, tag = 'scratch operand']
  %s0 = inlined_call_operand.vmem [shape: f32[8,32,32], index: 0, kind: input, shape index: {}]
  %s1 = inlined_call_operand.vmem [shape: f32[25,28,168], index: 1, kind: input, shape index: {}]
  %s2 = inlined_call_operand.vmem [shape: f32[1,168], index: 2, kind: input, shape index: {}]
  %s3 = inlined_call_operand.vmem [shape: f32[25,120,160], index: 3, kind: input, shape index: {}]
  %s4 = inlined_call_operand.vmem [shape: f32[1,160], index: 4, kind: input, shape index: {}]
  %s5 = inlined_call_operand.vmem [shape: f32[5,160,128], index: 5, kind: input, shape index: {}]
  %s6 = inlined_call_operand.vmem [shape: f32[1,128], index: 6, kind: input, shape index: {}]
  %s7 = inlined_call_operand.vmem [shape: f32[128,128], index: 7, kind: input, shape index: {}]
  %s8 = inlined_call_operand.vmem [shape: f32[1,128], index: 8, kind: input, shape index: {}]
  %s9 = inlined_call_operand.vmem [shape: f32[128,128], index: 9, kind: input, shape index: {}]
  %s10 = inlined_call_operand.vmem [shape: f32[1,128], index: 10, kind: input, shape index: {}]
  %s11 = inlined_call_operand.vmem [shape: f32[8,128], index: 11, kind: output, shape index: {}]
  %s12 = sld [smem:[#allocation0]]
  $region61: #{lenet5_forward.1} parent=0
    _
  %s14 = ssub.s32 1, %s12
  %s15 = scalar_select 0, %s14, %s12
  // Predicated region
  $region2: #{lenet5_forward.1} parent=0 // pred_check
    _
  $region3: #{lenet5_forward.1} parent=0 // pred_check_branch
    %17 = sbr.rel (0) target = $region5
  $region4: #{lenet5_forward.1} parent=0 // pred_region
    _
  $region5: #{lenet5_forward.1} parent=0 // pred_fallthru
    _
  // Predicated region
  $region6: #{lenet5_forward.1} parent=0 // pred_check
    _
  $region7: #{lenet5_forward.1} parent=0 // pred_check_branch
    %19 = sbr.rel (0) target = $region9
  $region8: #{lenet5_forward.1} parent=0 // pred_region
    _
  $region9: #{lenet5_forward.1} parent=0 // pred_fallthru
    _
  // Predicated region
  $region10: #{lenet5_forward.1} parent=0 // pred_check
    _
  $region11: #{lenet5_forward.1} parent=0 // pred_check_branch
    %21 = sbr.rel (0) target = $region13
  $region12: #{lenet5_forward.1} parent=0 // pred_region
    _
  $region13: #{lenet5_forward.1} parent=0 // pred_fallthru
    _
  // Predicated region
  $region14: #{lenet5_forward.1} parent=0 // pred_check
    _
  $region15: #{lenet5_forward.1} parent=0 // pred_check_branch
    %23 = sbr.rel (0) target = $region17
  $region16: #{lenet5_forward.1} parent=0 // pred_region
    _
  $region17: #{lenet5_forward.1} parent=0 // pred_fallthru
    _
  // Predicated region
  $region18: #{lenet5_forward.1} parent=0 // pred_check
    _
  $region19: #{lenet5_forward.1} parent=0 // pred_check_branch
    %25 = sbr.rel (0) target = $region21
  $region20: #{lenet5_forward.1} parent=0 // pred_region
    _
  $region21: #{lenet5_forward.1} parent=0 // pred_fallthru
    _
  // Predicated region
  $region22: #{lenet5_forward.1} parent=0 // pred_check
    _
  $region23: #{lenet5_forward.1} parent=0 // pred_check_branch
    %27 = sbr.rel (0) target = $region25
  $region24: #{lenet5_forward.1} parent=0 // pred_region
    _
  $region25: #{lenet5_forward.1} parent=0 // pred_fallthru
    _
  // Predicated region
  $region26: #{lenet5_forward.1} parent=0 // pred_check
    _
  $region27: #{lenet5_forward.1} parent=0 // pred_check_branch
    %29 = sbr.rel (0) target = $region29
  $region28: #{lenet5_forward.1} parent=0 // pred_region
    _
  $region29: #{lenet5_forward.1} parent=0 // pred_fallthru
    _
  // Predicated region
  $region30: #{lenet5_forward.1} parent=0 // pred_check
    _
  $region31: #{lenet5_forward.1} parent=0 // pred_check_branch
    %31 = sbr.rel (0) target = $region33
  $region32: #{lenet5_forward.1} parent=0 // pred_region
    _
  $region33: #{lenet5_forward.1} parent=0 // pred_fallthru
    _
  // Predicated region
  $region34: #{lenet5_forward.1} parent=0 // pred_check
    _
  $region35: #{lenet5_forward.1} parent=0 // pred_check_branch
    %33 = sbr.rel (0) target = $region37
  $region36: #{lenet5_forward.1} parent=0 // pred_region
    _
  $region37: #{lenet5_forward.1} parent=0 // pred_fallthru
    _
  // Predicated region
  $region38: #{lenet5_forward.1} parent=0 // pred_check
    _
  $region39: #{lenet5_forward.1} parent=0 // pred_check_branch
    %35 = sbr.rel (0) target = $region41
  $region40: #{lenet5_forward.1} parent=0 // pred_region
    _
  $region41: #{lenet5_forward.1} parent=0 // pred_fallthru
    _
  // Predicated region
  $region42: #{lenet5_forward.1} parent=0 // pred_check
    _
  $region43: #{lenet5_forward.1} parent=0 // pred_check_branch
    %37 = sbr.rel (0) target = $region45
  $region44: #{lenet5_forward.1} parent=0 // pred_region
    _
  $region45: #{lenet5_forward.1} parent=0 // pred_fallthru
    _
  %v38 = vlaneseq
  %v39 = vshrl.u32 %v38, 7
  %v40 = vadd.s32 %v39, 8
  %v41 = vlaneseq
  %v42 = vand.u32 %v41, 127
  %v43 = vmul.u32 %v39, 2
  %v44 = vmul.u32 %v40, 2
  %vm45 = vcmp.eq.s32.totalorder %v42, %v43
  %vm46 = vcmp.eq.s32.totalorder %v42, %v44
  %v47 = vsel %vm45, 1, 0
  %v48 = vsel %vm46, 1, 0
  %v49 = vcvt.s32.f32 %v47
  %v50 = vcvt.s32.f32 %v48
  %v51 = vadd.s32 %v43, 1
  %v52 = vadd.s32 %v44, 1
  %vm53 = vcmp.eq.s32.totalorder %v42, %v51
  %vm54 = vcmp.eq.s32.totalorder %v42, %v52
  %v55 = vsel %vm53, 1, 0
  %v56 = vsel %vm54, 1, 0
  %v57 = vcvt.s32.f32 %v55
  %v58 = vcvt.s32.f32 %v56
  %v59 = vadd.s32 %v39, 16
  %v60 = vadd.s32 %v39, 24
  %v61 = vadd.s32 %v39, 32
  %v62 = vadd.s32 %v39, 40
  %v63 = vadd.s32 %v39, 48
  %v64 = vadd.s32 %v39, 56
  %v65 = vadd.s32 %v39, 64
  %v66 = vadd.s32 %v39, 72
  %v67 = vadd.s32 %v39, 80
  %v68 = vadd.s32 %v39, 88
  %v69 = vadd.s32 %v39, 96
  %v70 = vadd.s32 %v39, 104
  %v71 = vadd.s32 %v39, 112
  %v72 = vadd.s32 %v39, 120
  %v73 = vadd.s32 %v39, 128
  %v74 = vadd.s32 %v39, 136
  %v75 = vadd.s32 %v39, 144
  %v76 = vadd.s32 %v39, 152
  %v77 = vadd.s32 %v39, 160
  %v78 = vadd.s32 %v42, 128
  %v79 = vadd.s32 %v42, 6
  %v80 = vadd.s32 %v78, 6
  %vm81 = vcmp.eq.s32.totalorder %v39, %v79
  %vm82 = vcmp.eq.s32.totalorder %v39, %v80
  %vm83 = vcmp.eq.s32.totalorder %v40, %v79
  %vm84 = vcmp.eq.s32.totalorder %v40, %v80
  %vm85 = vcmp.eq.s32.totalorder %v59, %v79
  %vm86 = vcmp.eq.s32.totalorder %v59, %v80
  %vm87 = vcmp.eq.s32.totalorder %v60, %v79
  %vm88 = vcmp.eq.s32.totalorder %v60, %v80
  %vm89 = vcmp.eq.s32.totalorder %v61, %v79
  %vm90 = vcmp.eq.s32.totalorder %v61, %v80
  %vm91 = vcmp.eq.s32.totalorder %v62, %v79
  %vm92 = vcmp.eq.s32.totalorder %v62, %v80
  %vm93 = vcmp.eq.s32.totalorder %v63, %v79
  %vm94 = vcmp.eq.s32.totalorder %v63, %v80
  %vm95 = vcmp.eq.s32.totalorder %v64, %v79
  %vm96 = vcmp.eq.s32.totalorder %v64, %v80
  %vm97 = vcmp.eq.s32.totalorder %v65, %v79
  %vm98 = vcmp.eq.s32.totalorder %v65, %v80
  %vm99 = vcmp.eq.s32.totalorder %v66, %v79
  %vm100 = vcmp.eq.s32.totalorder %v66, %v80
  %vm101 = vcmp.eq.s32.totalorder %v67, %v79
  %vm102 = vcmp.eq.s32.totalorder %v67, %v80
  %vm103 = vcmp.eq.s32.totalorder %v68, %v79
  %vm104 = vcmp.eq.s32.totalorder %v68, %v80
  %vm105 = vcmp.eq.s32.totalorder %v69, %v79
  %vm106 = vcmp.eq.s32.totalorder %v69, %v80
  %vm107 = vcmp.eq.s32.totalorder %v70, %v79
  %vm108 = vcmp.eq.s32.totalorder %v70, %v80
  %vm109 = vcmp.eq.s32.totalorder %v71, %v79
  %vm110 = vcmp.eq.s32.totalorder %v71, %v80
  %vm111 = vcmp.eq.s32.totalorder %v72, %v79
  %vm112 = vcmp.eq.s32.totalorder %v72, %v80
  %vm113 = vcmp.eq.s32.totalorder %v73, %v79
  %vm114 = vcmp.eq.s32.totalorder %v73, %v80
  %vm115 = vcmp.eq.s32.totalorder %v74, %v79
  %vm116 = vcmp.eq.s32.totalorder %v74, %v80
  %vm117 = vcmp.eq.s32.totalorder %v75, %v79
  %vm118 = vcmp.eq.s32.totalorder %v75, %v80
  %vm119 = vcmp.eq.s32.totalorder %v76, %v79
  %vm120 = vcmp.eq.s32.totalorder %v76, %v80
  %vm121 = vcmp.eq.s32.totalorder %v77, %v79
  %vm122 = vcmp.eq.s32.totalorder %v77, %v80
  %v123 = vsel %vm81, 1, 0
  %v124 = vsel %vm82, 1, 0
  %v125 = vsel %vm83, 1, 0
  %v126 = vsel %vm84, 1, 0
  %v127 = vsel %vm85, 1, 0
  %v128 = vsel %vm86, 1, 0
  %v129 = vsel %vm87, 1, 0
  %v130 = vsel %vm88, 1, 0
  %v131 = vsel %vm89, 1, 0
  %v132 = vsel %vm90, 1, 0
  %v133 = vsel %vm91, 1, 0
  %v134 = vsel %vm92, 1, 0
  %v135 = vsel %vm93, 1, 0
  %v136 = vsel %vm94, 1, 0
  %v137 = vsel %vm95, 1, 0
  %v138 = vsel %vm96, 1, 0
  %v139 = vsel %vm97, 1, 0
  %v140 = vsel %vm98, 1, 0
  %v141 = vsel %vm99, 1, 0
  %v142 = vsel %vm100, 1, 0
  %v143 = vsel %vm101, 1, 0
  %v144 = vsel %vm102, 1, 0
  %v145 = vsel %vm103, 1, 0
  %v146 = vsel %vm104, 1, 0
  %v147 = vsel %vm105, 1, 0
  %v148 = vsel %vm106, 1, 0
  %v149 = vsel %vm107, 1, 0
  %v150 = vsel %vm108, 1, 0
  %v151 = vsel %vm109, 1, 0
  %v152 = vsel %vm110, 1, 0
  %v153 = vsel %vm111, 1, 0
  %v154 = vsel %vm112, 1, 0
  %v155 = vsel %vm113, 1, 0
  %v156 = vsel %vm114, 1, 0
  %v157 = vsel %vm115, 1, 0
  %v158 = vsel %vm116, 1, 0
  %v159 = vsel %vm117, 1, 0
  %v160 = vsel %vm118, 1, 0
  %v161 = vsel %vm119, 1, 0
  %v162 = vsel %vm120, 1, 0
  %v163 = vsel %vm121, 1, 0
  %v164 = vsel %vm122, 1, 0
  %v165 = vcvt.s32.f32 %v123
  %v166 = vcvt.s32.f32 %v124
  %v167 = vcvt.s32.f32 %v125
  %v168 = vcvt.s32.f32 %v126
  %v169 = vcvt.s32.f32 %v127
  %v170 = vcvt.s32.f32 %v128
  %v171 = vcvt.s32.f32 %v129
  %v172 = vcvt.s32.f32 %v130
  %v173 = vcvt.s32.f32 %v131
  %v174 = vcvt.s32.f32 %v132
  %v175 = vcvt.s32.f32 %v133
  %v176 = vcvt.s32.f32 %v134
  %v177 = vcvt.s32.f32 %v135
  %v178 = vcvt.s32.f32 %v136
  %v179 = vcvt.s32.f32 %v137
  %v180 = vcvt.s32.f32 %v138
  %v181 = vcvt.s32.f32 %v139
  %v182 = vcvt.s32.f32 %v140
  %v183 = vcvt.s32.f32 %v141
  %v184 = vcvt.s32.f32 %v142
  %v185 = vcvt.s32.f32 %v143
  %v186 = vcvt.s32.f32 %v144
  %v187 = vcvt.s32.f32 %v145
  %v188 = vcvt.s32.f32 %v146
  %v189 = vcvt.s32.f32 %v147
  %v190 = vcvt.s32.f32 %v148
  %v191 = vcvt.s32.f32 %v149
  %v192 = vcvt.s32.f32 %v150
  %v193 = vcvt.s32.f32 %v151
  %v194 = vcvt.s32.f32 %v152
  %v195 = vcvt.s32.f32 %v153
  %v196 = vcvt.s32.f32 %v154
  %v197 = vcvt.s32.f32 %v155
  %v198 = vcvt.s32.f32 %v156
  %v199 = vcvt.s32.f32 %v157
  %v200 = vcvt.s32.f32 %v158
  %v201 = vcvt.s32.f32 %v159
  %v202 = vcvt.s32.f32 %v160
  %v203 = vcvt.s32.f32 %v161
  %v204 = vcvt.s32.f32 %v162
  %v205 = vcvt.s32.f32 %v163
  %v206 = vcvt.s32.f32 %v164
  %v207 = vadd.s32 %v42, 16
  %v208 = vadd.s32 %v78, 16
  %vm209 = vcmp.eq.s32.totalorder %v39, %v207
  %vm210 = vcmp.eq.s32.totalorder %v39, %v208
  %vm211 = vcmp.eq.s32.totalorder %v40, %v207
  %vm212 = vcmp.eq.s32.totalorder %v40, %v208
  %vm213 = vcmp.eq.s32.totalorder %v59, %v207
  %vm214 = vcmp.eq.s32.totalorder %v59, %v208
  %vm215 = vcmp.eq.s32.totalorder %v60, %v207
  %vm216 = vcmp.eq.s32.totalorder %v60, %v208
  %vm217 = vcmp.eq.s32.totalorder %v61, %v207
  %vm218 = vcmp.eq.s32.totalorder %v61, %v208
  %vm219 = vcmp.eq.s32.totalorder %v62, %v207
  %vm220 = vcmp.eq.s32.totalorder %v62, %v208
  %vm221 = vcmp.eq.s32.totalorder %v63, %v207
  %vm222 = vcmp.eq.s32.totalorder %v63, %v208
  %vm223 = vcmp.eq.s32.totalorder %v64, %v207
  %vm224 = vcmp.eq.s32.totalorder %v64, %v208
  %vm225 = vcmp.eq.s32.totalorder %v65, %v207
  %vm226 = vcmp.eq.s32.totalorder %v65, %v208
  %vm227 = vcmp.eq.s32.totalorder %v66, %v207
  %vm228 = vcmp.eq.s32.totalorder %v66, %v208
  %vm229 = vcmp.eq.s32.totalorder %v67, %v207
  %vm230 = vcmp.eq.s32.totalorder %v67, %v208
  %vm231 = vcmp.eq.s32.totalorder %v68, %v207
  %vm232 = vcmp.eq.s32.totalorder %v68, %v208
  %vm233 = vcmp.eq.s32.totalorder %v69, %v207
  %vm234 = vcmp.eq.s32.totalorder %v69, %v208
  %vm235 = vcmp.eq.s32.totalorder %v70, %v207
  %vm236 = vcmp.eq.s32.totalorder %v70, %v208
  %vm237 = vcmp.eq.s32.totalorder %v71, %v207
  %vm238 = vcmp.eq.s32.totalorder %v71, %v208
  %vm239 = vcmp.eq.s32.totalorder %v72, %v207
  %vm240 = vcmp.eq.s32.totalorder %v72, %v208
  %vm241 = vcmp.eq.s32.totalorder %v73, %v207
  %vm242 = vcmp.eq.s32.totalorder %v73, %v208
  %vm243 = vcmp.eq.s32.totalorder %v74, %v207
  %vm244 = vcmp.eq.s32.totalorder %v74, %v208
  %vm245 = vcmp.eq.s32.totalorder %v75, %v207
  %vm246 = vcmp.eq.s32.totalorder %v75, %v208
  %vm247 = vcmp.eq.s32.totalorder %v76, %v207
  %vm248 = vcmp.eq.s32.totalorder %v76, %v208
  %v249 = vsel %vm209, 1, 0
  %v250 = vsel %vm210, 1, 0
  %v251 = vsel %vm211, 1, 0
  %v252 = vsel %vm212, 1, 0
  %v253 = vsel %vm213, 1, 0
  %v254 = vsel %vm214, 1, 0
  %v255 = vsel %vm215, 1, 0
  %v256 = vsel %vm216, 1, 0
  %v257 = vsel %vm217, 1, 0
  %v258 = vsel %vm218, 1, 0
  %v259 = vsel %vm219, 1, 0
  %v260 = vsel %vm220, 1, 0
  %v261 = vsel %vm221, 1, 0
  %v262 = vsel %vm222, 1, 0
  %v263 = vsel %vm223, 1, 0
  %v264 = vsel %vm224, 1, 0
  %v265 = vsel %vm225, 1, 0
  %v266 = vsel %vm226, 1, 0
  %v267 = vsel %vm227, 1, 0
  %v268 = vsel %vm228, 1, 0
  %v269 = vsel %vm229, 1, 0
  %v270 = vsel %vm230, 1, 0
  %v271 = vsel %vm231, 1, 0
  %v272 = vsel %vm232, 1, 0
  %v273 = vsel %vm233, 1, 0
  %v274 = vsel %vm234, 1, 0
  %v275 = vsel %vm235, 1, 0
  %v276 = vsel %vm236, 1, 0
  %v277 = vsel %vm237, 1, 0
  %v278 = vsel %vm238, 1, 0
  %v279 = vsel %vm239, 1, 0
  %v280 = vsel %vm240, 1, 0
  %v281 = vsel %vm241, 1, 0
  %v282 = vsel %vm242, 1, 0
  %v283 = vsel %vm243, 1, 0
  %v284 = vsel %vm244, 1, 0
  %v285 = vsel %vm245, 1, 0
  %v286 = vsel %vm246, 1, 0
  %v287 = vsel %vm247, 1, 0
  %v288 = vsel %vm248, 1, 0
  %v289 = vcvt.s32.f32 %v249
  %v290 = vcvt.s32.f32 %v250
  %v291 = vcvt.s32.f32 %v251
  %v292 = vcvt.s32.f32 %v252
  %v293 = vcvt.s32.f32 %v253
  %v294 = vcvt.s32.f32 %v254
  %v295 = vcvt.s32.f32 %v255
  %v296 = vcvt.s32.f32 %v256
  %v297 = vcvt.s32.f32 %v257
  %v298 = vcvt.s32.f32 %v258
  %v299 = vcvt.s32.f32 %v259
  %v300 = vcvt.s32.f32 %v260
  %v301 = vcvt.s32.f32 %v261
  %v302 = vcvt.s32.f32 %v262
  %v303 = vcvt.s32.f32 %v263
  %v304 = vcvt.s32.f32 %v264
  %v305 = vcvt.s32.f32 %v265
  %v306 = vcvt.s32.f32 %v266
  %v307 = vcvt.s32.f32 %v267
  %v308 = vcvt.s32.f32 %v268
  %v309 = vcvt.s32.f32 %v269
  %v310 = vcvt.s32.f32 %v270
  %v311 = vcvt.s32.f32 %v271
  %v312 = vcvt.s32.f32 %v272
  %v313 = vcvt.s32.f32 %v273
  %v314 = vcvt.s32.f32 %v274
  %v315 = vcvt.s32.f32 %v275
  %v316 = vcvt.s32.f32 %v276
  %v317 = vcvt.s32.f32 %v277
  %v318 = vcvt.s32.f32 %v278
  %v319 = vcvt.s32.f32 %v279
  %v320 = vcvt.s32.f32 %v280
  %v321 = vcvt.s32.f32 %v281
  %v322 = vcvt.s32.f32 %v282
  %v323 = vcvt.s32.f32 %v283
  %v324 = vcvt.s32.f32 %v284
  %v325 = vcvt.s32.f32 %v285
  %v326 = vcvt.s32.f32 %v286
  %v327 = vcvt.s32.f32 %v287
  %v328 = vcvt.s32.f32 %v288
  loop: start=0, step=1, limit=8
  $region46: #{lenet5_forward.1} parent=0 // loop_pre_header
    _
  $region47: #{lenet5_forward.1} parent=0 // loop_header
    %s330 = sphi 0, %s334
    %p331 = scmp.ge.s32.totalorder %s330, 8
  $region48: #{lenet5_forward.1} parent=0 // loop_header_branch
    %333 = sbr.rel (%p331) target = $region52
  $region49: #{lenet5_forward.1} parent=0 // loop_body
    %s335 = smul.u32 %s330, 32
    %s336 = scalar_lea.vmem %s0, %s335
    %v337 = vld [vmem:[%s336] sm:$0xff]
    %v338 = vld [vmem:[%s336 + $0x8] sm:$0xff]
    %v339 = vld [vmem:[%s336 + $0x10] sm:$0xff]
    %v340 = vld [vmem:[%s336 + $0x18] sm:$0xff]
    %v341 = vld [vmem:[%s1] sm:$0xff]
    %v342 = vld [vmem:[%s1 + $0x8] sm:$0xff]
    %v343 = vld [vmem:[%s1 + $0x10] sm:$0xff]
    %v344 = vld [vmem:[%s1 + $0x18] sm:$0xff]
    %v345 = vld [vmem:[%s1 + $0x20] sm:$0xff]
    %v346 = vld [vmem:[%s1 + $0x28] sm:$0xff]
    %v347 = vld [vmem:[%s1 + $0x30] sm:$0xf]
    %v348 = vld [vmem:[%s1 + $0x38] sm:$0xf]
    %s349 = scalar_lea.vmem %s1, 64
    %v350 = vld [vmem:[%s349] sm:$0xff]
    %v351 = vld [vmem:[%s349 + $0x8] sm:$0xff]
    %v352 = vld [vmem:[%s349 + $0x10] sm:$0xff]
    %v353 = vld [vmem:[%s349 + $0x18] sm:$0xff]
    %v354 = vld [vmem:[%s349 + $0x20] sm:$0xff]
    %v355 = vld [vmem:[%s349 + $0x28] sm:$0xff]
    %v356 = vld [vmem:[%s349 + $0x30] sm:$0xf]
    %v357 = vld [vmem:[%s349 + $0x38] sm:$0xf]
    %362 = vrot.lane.b32.xlu0 %v337, 127
    %v363 = vpop.permute.xlu0 %362
    %364 = vrot.lane.b32.xlu0 %v338, 127
    %v365 = vpop.permute.xlu0 %364
    %366 = vrot.lane.b32.xlu0 %v339, 127
    %v367 = vpop.permute.xlu0 %366
    %368 = vrot.lane.b32.xlu0 %v340, 127
    %v369 = vpop.permute.xlu0 %368
    %vm370 = vcmask 228352
    %v371 = vsel %vm370, %v363, 0
    %v373 = vsel %vm370, %v365, 0
    %v375 = vsel %vm370, %v367, 0
    %v377 = vsel %vm370, %v369, 0
    %vm379 = vcmask 1043456
    %v381 = vsel %vm379, %v356, 0
    %v384 = vsel %vm379, %v357, 0
    %386 = vmatprep.subr.mxu0 %v351
    %387 = vmatpush1.msra.mxu0 %v350
    %388 = vmatprep.subr.mxu0 %v353
    %389 = vmatpush1.msra.mxu0 %v352
    %390 = vmatprep.subr.mxu0 %v355
    %391 = vmatpush1.msra.mxu0 %v354
    %392 = vmatprep.subr.mxu0 %v384
    %393 = vmatpush1.msra.mxu0 %v381
    %394 = vmatprep.subr.mxu0 0.0
    %395 = vmatpush1.msra.mxu0 0.0
    %396 = vmatprep.subr.mxu0 0.0
    %397 = vmatpush1.msra.mxu0 0.0
    %398 = vmatprep.subr.mxu0 0.0
    %399 = vmatpush1.msra.mxu0 0.0
    %400 = vmatprep.subr.mxu0 0.0
    %401 = vmatpush1.msra.mxu0 0.0
    %402 = vmatprep.subr.mxu0 0.0
    %403 = vmatpush1.msra.mxu0 0.0
    %404 = vmatprep.subr.mxu0 0.0
    %405 = vmatpush1.msra.mxu0 0.0
    %406 = vmatprep.subr.mxu0 0.0
    %407 = vmatpush1.msra.mxu0 0.0
    %408 = vmatprep.subr.mxu0 0.0
    %409 = vmatpush1.msra.mxu0 0.0
    %410 = vmatprep.subr.mxu0 0.0
    %411 = vmatpush1.msra.mxu0 0.0
    %412 = vmatprep.subr.mxu0 0.0
    %413 = vmatpush1.msra.mxu0 0.0
    %414 = vmatprep.subr.mxu0 0.0
    %415 = vmatpush1.msra.mxu0 0.0
    %416 = vmatprep.subr.mxu0 0.0
    %417 = vmatpush1.msra.mxu0 0.0
    %418 = vmatprep.subr.mxu0 0.0
    %419 = vmatpush1.msra.mxu0 0.0
    %420 = vmatprep.subr.mxu0 0.0
    %421 = vmatpush1.msra.mxu0 0.0
    %422 = vmatprep.subr.mxu0 0.0
    %423 = vmatpush1.msra.mxu0 0.0
    %424 = vmatprep.subr.mxu0 0.0
    %425 = vmatpush1.msra.mxu0 0.0
    %426 = vmatprep.subr.mxu0 0.0
    %427 = vmatpush1.msra.mxu0 0.0
    %428 = vmatprep.subr.mxu0 0.0
    %429 = vmatpush1.msra.mxu0 0.0
    %430 = vmatprep.subr.mxu0 0.0
    %431 = vmatpush1.msra.mxu0 0.0
    %432 = vmatprep.subr.mxu0 0.0
    %433 = vmatpush1.msra.mxu0 0.0
    %434 = vmatprep.subr.mxu0 0.0
    %435 = vmatpush1.msra.mxu0 0.0
    %436 = vmatprep.subr.mxu0 0.0
    %437 = vmatpush1.msra.mxu0 0.0
    %438 = vmatprep.subr.mxu0 0.0
    %439 = vmatpush1.msra.mxu0 0.0
    %440 = vmatprep.subr.mxu0 0.0
    %441 = vmatpush1.msra.mxu0 0.0
    %442 = vmatprep.subr.mxu0 0.0
    %443 = vmatpush1.msra.mxu0 0.0
    %444 = vmatprep.subr.mxu0 0.0
    %445 = vmatpush1.msra.mxu0 0.0
    %446 = vmatprep.subr.mxu0 0.0
    %447 = vmatpush1.msra.mxu0 0.0
    %448 = vmatprep.subr.mxu0 0.0
    %449 = vmatpush1.msra.mxu0 0.0
    %450 = vmatprep.mubr.f32.mxu0 0.0
    %451 = vmatmul.mubr.f32.gmra.mrb[0].mxu0 %v371
    %v452 = vpop.f32.mrb[0].mxu0
    %v453 = vadd.f32 0.0, %v452
    %v454 = vpop.f32.mrb[0].mxu0
    %v455 = vadd.f32 0.0, %v454
    %456 = vmatprep.mubr.f32.mxu0 0.0
    %457 = vmatmul.mubr.f32.gmra.mrb[0].mxu0 %v373
    %v458 = vpop.f32.mrb[0].mxu0
    %v459 = vadd.f32 0.0, %v458
    %v460 = vpop.f32.mrb[0].mxu0
    %v461 = vadd.f32 0.0, %v460
    %462 = vmatprep.mubr.f32.mxu0 0.0
    %463 = vmatmul.mubr.f32.gmra.mrb[0].mxu0 %v375
    %v464 = vpop.f32.mrb[0].mxu0
    %v465 = vadd.f32 0.0, %v464
    %v466 = vpop.f32.mrb[0].mxu0
    %v467 = vadd.f32 0.0, %v466
    %468 = vmatprep.mubr.f32.mxu0 0.0
    %469 = vmatmul.mubr.f32.gmra.mrb[0].mxu0 %v377
    %v470 = vpop.f32.mrb[0].mxu0
    %v471 = vadd.f32 0.0, %v470
    %v472 = vpop.f32.mrb[0].mxu0
    %v473 = vadd.f32 0.0, %v472
    %474 = vdwg.mxu0
    %v475 = vsel %vm370, %v337, 0
    %v477 = vsel %vm370, %v338, 0
    %v479 = vsel %vm370, %v339, 0
    %v481 = vsel %vm370, %v340, 0
    %v484 = vsel %vm379, %v347, 0
    %v487 = vsel %vm379, %v348, 0
    %489 = vmatprep.subr.mxu0 %v342
    %490 = vmatpush1.msra.mxu0 %v341
    %491 = vmatprep.subr.mxu0 %v344
    %492 = vmatpush1.msra.mxu0 %v343
    %493 = vmatprep.subr.mxu0 %v346
    %494 = vmatpush1.msra.mxu0 %v345
    %495 = vmatprep.subr.mxu0 %v487
    %496 = vmatpush1.msra.mxu0 %v484
    %497 = vmatprep.subr.mxu0 0.0
    %498 = vmatpush1.msra.mxu0 0.0
    %499 = vmatprep.subr.mxu0 0.0
    %500 = vmatpush1.msra.mxu0 0.0
    %501 = vmatprep.subr.mxu0 0.0
    %502 = vmatpush1.msra.mxu0 0.0
    %503 = vmatprep.subr.mxu0 0.0
    %504 = vmatpush1.msra.mxu0 0.0
    %505 = vmatprep.subr.mxu0 0.0
    %506 = vmatpush1.msra.mxu0 0.0
    %507 = vmatprep.subr.mxu0 0.0
    %508 = vmatpush1.msra.mxu0 0.0
    %509 = vmatprep.subr.mxu0 0.0
    %510 = vmatpush1.msra.mxu0 0.0
    %511 = vmatprep.subr.mxu0 0.0
    %512 = vmatpush1.msra.mxu0 0.0
    %513 = vmatprep.subr.mxu0 0.0
    %514 = vmatpush1.msra.mxu0 0.0
    %515 = vmatprep.subr.mxu0 0.0
    %516 = vmatpush1.msra.mxu0 0.0
    %517 = vmatprep.subr.mxu0 0.0
    %518 = vmatpush1.msra.mxu0 0.0
    %519 = vmatprep.subr.mxu0 0.0
    %520 = vmatpush1.msra.mxu0 0.0
    %521 = vmatprep.subr.mxu0 0.0
    %522 = vmatpush1.msra.mxu0 0.0
    %523 = vmatprep.subr.mxu0 0.0
    %524 = vmatpush1.msra.mxu0 0.0
    %525 = vmatprep.subr.mxu0 0.0
    %526 = vmatpush1.msra.mxu0 0.0
    %527 = vmatprep.subr.mxu0 0.0
    %528 = vmatpush1.msra.mxu0 0.0
    %529 = vmatprep.subr.mxu0 0.0
    %530 = vmatpush1.msra.mxu0 0.0
    %531 = vmatprep.subr.mxu0 0.0
    %532 = vmatpush1.msra.mxu0 0.0
    %533 = vmatprep.subr.mxu0 0.0
    %534 = vmatpush1.msra.mxu0 0.0
    %535 = vmatprep.subr.mxu0 0.0
    %536 = vmatpush1.msra.mxu0 0.0
    %537 = vmatprep.subr.mxu0 0.0
    %538 = vmatpush1.msra.mxu0 0.0
    %539 = vmatprep.subr.mxu0 0.0
    %540 = vmatpush1.msra.mxu0 0.0
    %541 = vmatprep.subr.mxu0 0.0
    %542 = vmatpush1.msra.mxu0 0.0
    %543 = vmatprep.subr.mxu0 0.0
    %544 = vmatpush1.msra.mxu0 0.0
    %545 = vmatprep.subr.mxu0 0.0
    %546 = vmatpush1.msra.mxu0 0.0
    %547 = vmatprep.subr.mxu0 0.0
    %548 = vmatpush1.msra.mxu0 0.0
    %549 = vmatprep.subr.mxu0 0.0
    %550 = vmatpush1.msra.mxu0 0.0
    %551 = vmatprep.subr.mxu0 0.0
    %552 = vmatpush1.msra.mxu0 0.0
    %553 = vmatprep.mubr.f32.mxu0 0.0
    %554 = vmatmul.mubr.f32.gmra.mrb[0].mxu0 %v475
    %v555 = vpop.f32.mrb[0].mxu0
    %v556 = vadd.f32 %v453, %v555
    %v557 = vpop.f32.mrb[0].mxu0
    %v558 = vadd.f32 %v455, %v557
    %559 = vmatprep.mubr.f32.mxu0 0.0
    %560 = vmatmul.mubr.f32.gmra.mrb[0].mxu0 %v477
    %v561 = vpop.f32.mrb[0].mxu0
    %v562 = vadd.f32 %v459, %v561
    %v563 = vpop.f32.mrb[0].mxu0
    %v564 = vadd.f32 %v461, %v563
    %565 = vmatprep.mubr.f32.mxu0 0.0
    %566 = vmatmul.mubr.f32.gmra.mrb[0].mxu0 %v479
    %v567 = vpop.f32.mrb[0].mxu0
    %v568 = vadd.f32 %v465, %v567
    %v569 = vpop.f32.mrb[0].mxu0
    %v570 = vadd.f32 %v467, %v569
    %571 = vmatprep.mubr.f32.mxu0 0.0
    %572 = vmatmul.mubr.f32.gmra.mrb[0].mxu0 %v481
    %v573 = vpop.f32.mrb[0].mxu0
    %v574 = vadd.f32 %v471, %v573
    %v575 = vpop.f32.mrb[0].mxu0
    %v576 = vadd.f32 %v473, %v575
    %577 = vdwg.mxu0
    %s578 = scalar_lea.vmem %s1, 128
    %v579 = vld [vmem:[%s578] sm:$0xff]
    %v580 = vld [vmem:[%s578 + $0x8] sm:$0xff]
    %v581 = vld [vmem:[%s578 + $0x10] sm:$0xff]
    %v582 = vld [vmem:[%s578 + $0x18] sm:$0xff]
    %v583 = vld [vmem:[%s578 + $0x20] sm:$0xff]
    %v584 = vld [vmem:[%s578 + $0x28] sm:$0xff]
    %v585 = vld [vmem:[%s578 + $0x30] sm:$0xf]
    %v586 = vld [vmem:[%s578 + $0x38] sm:$0xf]
    %587 = vrot.lane.b32.xlu0 %v337, 126
    %v588 = vpop.permute.xlu0 %587
    %589 = vrot.lane.b32.xlu0 %v338, 126
    %v590 = vpop.permute.xlu0 %589
    %591 = vrot.lane.b32.xlu0 %v339, 126
    %v592 = vpop.permute.xlu0 %591
    %593 = vrot.lane.b32.xlu0 %v340, 126
    %v594 = vpop.permute.xlu0 %593
    %v595 = vsel %vm370, %v588, 0
    %v597 = vsel %vm370, %v590, 0
    %v599 = vsel %vm370, %v592, 0
    %v601 = vsel %vm370, %v594, 0
    %v604 = vsel %vm379, %v585, 0
    %v607 = vsel %vm379, %v586, 0
    %609 = vmatprep.subr.mxu0 %v580
    %610 = vmatpush1.msra.mxu0 %v579
    %611 = vmatprep.subr.mxu0 %v582
    %612 = vmatpush1.msra.mxu0 %v581
    %613 = vmatprep.subr.mxu0 %v584
    %614 = vmatpush1.msra.mxu0 %v583
    %615 = vmatprep.subr.mxu0 %v607
    %616 = vmatpush1.msra.mxu0 %v604
    %617 = vmatprep.subr.mxu0 0.0
    %618 = vmatpush1.msra.mxu0 0.0
    %619 = vmatprep.subr.mxu0 0.0
    %620 = vmatpush1.msra.mxu0 0.0
    %621 = vmatprep.subr.mxu0 0.0
    %622 = vmatpush1.msra.mxu0 0.0
    %623 = vmatprep.subr.mxu0 0.0
    %624 = vmatpush1.msra.mxu0 0.0
    %625 = vmatprep.subr.mxu0 0.0
    %626 = vmatpush1.msra.mxu0 0.0
    %627 = vmatprep.subr.mxu0 0.0
    %628 = vmatpush1.msra.mxu0 0.0
    %629 = vmatprep.subr.mxu0 0.0
    %630 = vmatpush1.msra.mxu0 0.0
    %631 = vmatprep.subr.mxu0 0.0
    %632 = vmatpush1.msra.mxu0 0.0
    %633 = vmatprep.subr.mxu0 0.0
    %634 = vmatpush1.msra.mxu0 0.0
    %635 = vmatprep.subr.mxu0 0.0
    %636 = vmatpush1.msra.mxu0 0.0
    %637 = vmatprep.subr.mxu0 0.0
    %638 = vmatpush1.msra.mxu0 0.0
    %639 = vmatprep.subr.mxu0 0.0
    %640 = vmatpush1.msra.mxu0 0.0
    %641 = vmatprep.subr.mxu0 0.0
    %642 = vmatpush1.msra.mxu0 0.0
    %643 = vmatprep.subr.mxu0 0.0
    %644 = vmatpush1.msra.mxu0 0.0
    %645 = vmatprep.subr.mxu0 0.0
    %646 = vmatpush1.msra.mxu0 0.0
    %647 = vmatprep.subr.mxu0 0.0
    %648 = vmatpush1.msra.mxu0 0.0
    %649 = vmatprep.subr.mxu0 0.0
    %650 = vmatpush1.msra.mxu0 0.0
    %651 = vmatprep.subr.mxu0 0.0
    %652 = vmatpush1.msra.mxu0 0.0
    %653 = vmatprep.subr.mxu0 0.0
    %654 = vmatpush1.msra.mxu0 0.0
    %655 = vmatprep.subr.mxu0 0.0
    %656 = vmatpush1.msra.mxu0 0.0
    %657 = vmatprep.subr.mxu0 0.0
    %658 = vmatpush1.msra.mxu0 0.0
    %659 = vmatprep.subr.mxu0 0.0
    %660 = vmatpush1.msra.mxu0 0.0
    %661 = vmatprep.subr.mxu0 0.0
    %662 = vmatpush1.msra.mxu0 0.0
    %663 = vmatprep.subr.mxu0 0.0
    %664 = vmatpush1.msra.mxu0 0.0
    %665 = vmatprep.subr.mxu0 0.0
    %666 = vmatpush1.msra.mxu0 0.0
    %667 = vmatprep.subr.mxu0 0.0
    %668 = vmatpush1.msra.mxu0 0.0
    %669 = vmatprep.subr.mxu0 0.0
    %670 = vmatpush1.msra.mxu0 0.0
    %671 = vmatprep.subr.mxu0 0.0
    %672 = vmatpush1.msra.mxu0 0.0
    %673 = vmatprep.mubr.f32.mxu0 0.0
    %674 = vmatmul.mubr.f32.gmra.mrb[0].mxu0 %v595
    %v675 = vpop.f32.mrb[0].mxu0
    %v676 = vadd.f32 0.0, %v675
    %v677 = vpop.f32.mrb[0].mxu0
    %v678 = vadd.f32 0.0, %v677
    %679 = vmatprep.mubr.f32.mxu0 0.0
    %680 = vmatmul.mubr.f32.gmra.mrb[0].mxu0 %v597
    %v681 = vpop.f32.mrb[0].mxu0
    %v682 = vadd.f32 0.0, %v681
    %v683 = vpop.f32.mrb[0].mxu0
    %v684 = vadd.f32 0.0, %v683
    %685 = vmatprep.mubr.f32.mxu0 0.0
    %686 = vmatmul.mubr.f32.gmra.mrb[0].mxu0 %v599
    %v687 = vpop.f32.mrb[0].mxu0
    %v688 = vadd.f32 0.0, %v687
    %v689 = vpop.f32.mrb[0].mxu0
    %v690 = vadd.f32 0.0, %v689
    %691 = vmatprep.mubr.f32.mxu0 0.0
    %692 = vmatmul.mubr.f32.gmra.mrb[0].mxu0 %v601
    %v693 = vpop.f32.mrb[0].mxu0
    %v694 = vadd.f32 0.0, %v693
    %v695 = vpop.f32.mrb[0].mxu0
    %v696 = vadd.f32 0.0, %v695
    %697 = vdwg.mxu0
    %v698 = vadd.f32 %v556, %v676
    %v699 = vadd.f32 %v558, %v678
    %v700 = vadd.f32 %v562, %v682
    %v701 = vadd.f32 %v564, %v684
    %v702 = vadd.f32 %v568, %v688
    %v703 = vadd.f32 %v570, %v690
    %v704 = vadd.f32 %v574, %v694
    %v705 = vadd.f32 %v576, %v696
    %s706 = scalar_lea.vmem %s1, 192
    %v707 = vld [vmem:[%s706] sm:$0xff]
    %v708 = vld [vmem:[%s706 + $0x8] sm:$0xff]
    %v709 = vld [vmem:[%s706 + $0x10] sm:$0xff]
    %v710 = vld [vmem:[%s706 + $0x18] sm:$0xff]
    %v711 = vld [vmem:[%s706 + $0x20] sm:$0xff]
    %v712 = vld [vmem:[%s706 + $0x28] sm:$0xff]
    %v713 = vld [vmem:[%s706 + $0x30] sm:$0xf]
    %v714 = vld [vmem:[%s706 + $0x38] sm:$0xf]
    %715 = vrot.lane.b32.xlu0 %v337, 125
    %v716 = vpop.permute.xlu0 %715
    %717 = vrot.lane.b32.xlu0 %v338, 125
    %v718 = vpop.permute.xlu0 %717
    %719 = vrot.lane.b32.xlu0 %v339, 125
    %v720 = vpop.permute.xlu0 %719
    %721 = vrot.lane.b32.xlu0 %v340, 125
    %v722 = vpop.permute.xlu0 %721
    %v723 = vsel %vm370, %v716, 0
    %v725 = vsel %vm370, %v718, 0
    %v727 = vsel %vm370, %v720, 0
    %v729 = vsel %vm370, %v722, 0
    %v732 = vsel %vm379, %v713, 0
    %v735 = vsel %vm379, %v714, 0
    %737 = vmatprep.subr.mxu0 %v708
    %738 = vmatpush1.msra.mxu0 %v707
    %739 = vmatprep.subr.mxu0 %v710
    %740 = vmatpush1.msra.mxu0 %v709
    %741 = vmatprep.subr.mxu0 %v712
    %742 = vmatpush1.msra.mxu0 %v711
    %743 = vmatprep.subr.mxu0 %v735
    %744 = vmatpush1.msra.mxu0 %v732
    %745 = vmatprep.subr.mxu0 0.0
    %746 = vmatpush1.msra.mxu0 0.0
    %747 = vmatprep.subr.mxu0 0.0
    %748 = vmatpush1.msra.mxu0 0.0
    %749 = vmatprep.subr.mxu0 0.0
    %750 = vmatpush1.msra.mxu0 0.0
    %751 = vmatprep.subr.mxu0 0.0
    %752 = vmatpush1.msra.mxu0 0.0
    %753 = vmatprep.subr.mxu0 0.0
    %754 = vmatpush1.msra.mxu0 0.0
    %755 = vmatprep.subr.mxu0 0.0
    %756 = vmatpush1.msra.mxu0 0.0
    %757 = vmatprep.subr.mxu0 0.0
    %758 = vmatpush1.msra.mxu0 0.0
    %759 = vmatprep.subr.mxu0 0.0
    %760 = vmatpush1.msra.mxu0 0.0
    %761 = vmatprep.subr.mxu0 0.0
    %762 = vmatpush1.msra.mxu0 0.0
    %763 = vmatprep.subr.mxu0 0.0
    %764 = vmatpush1.msra.mxu0 0.0
    %765 = vmatprep.subr.mxu0 0.0
    %766 = vmatpush1.msra.mxu0 0.0
    %767 = vmatprep.subr.mxu0 0.0
    %768 = vmatpush1.msra.mxu0 0.0
    %769 = vmatprep.subr.mxu0 0.0
    %770 = vmatpush1.msra.mxu0 0.0
    %771 = vmatprep.subr.mxu0 0.0
    %772 = vmatpush1.msra.mxu0 0.0
    %773 = vmatprep.subr.mxu0 0.0
    %774 = vmatpush1.msra.mxu0 0.0
    %775 = vmatprep.subr.mxu0 0.0
    %776 = vmatpush1.msra.mxu0 0.0
    %777 = vmatprep.subr.mxu0 0.0
    %778 = vmatpush1.msra.mxu0 0.0
    %779 = vmatprep.subr.mxu0 0.0
    %780 = vmatpush1.msra.mxu0 0.0
    %781 = vmatprep.subr.mxu0 0.0
    %782 = vmatpush1.msra.mxu0 0.0
    %783 = vmatprep.subr.mxu0 0.0
    %784 = vmatpush1.msra.mxu0 0.0
    %785 = vmatprep.subr.mxu0 0.0
    %786 = vmatpush1.msra.mxu0 0.0
    %787 = vmatprep.subr.mxu0 0.0
    %788 = vmatpush1.msra.mxu0 0.0
    %789 = vmatprep.subr.mxu0 0.0
    %790 = vmatpush1.msra.mxu0 0.0
    %791 = vmatprep.subr.mxu0 0.0
    %792 = vmatpush1.msra.mxu0 0.0
    %793 = vmatprep.subr.mxu0 0.0
    %794 = vmatpush1.msra.mxu0 0.0
    %795 = vmatprep.subr.mxu0 0.0
    %796 = vmatpush1.msra.mxu0 0.0
    %797 = vmatprep.subr.mxu0 0.0
    %798 = vmatpush1.msra.mxu0 0.0
    %799 = vmatprep.subr.mxu0 0.0
    %800 = vmatpush1.msra.mxu0 0.0
    %801 = vmatprep.mubr.f32.mxu0 0.0
    %802 = vmatmul.mubr.f32.gmra.mrb[0].mxu0 %v723
    %v803 = vpop.f32.mrb[0].mxu0
    %v804 = vadd.f32 0.0, %v803
    %v805 = vpop.f32.mrb[0].mxu0
    %v806 = vadd.f32 0.0, %v805
    %807 = vmatprep.mubr.f32.mxu0 0.0
    %808 = vmatmul.mubr.f32.gmra.mrb[0].mxu0 %v725
    %v809 = vpop.f32.mrb[0].mxu0
    %v810 = vadd.f32 0.0, %v809
    %v811 = vpop.f32.mrb[0].mxu0
    %v812 = vadd.f32 0.0, %v811
    %813 = vmatprep.mubr.f32.mxu0 0.0
    %814 = vmatmul.mubr.f32.gmra.mrb[0].mxu0 %v727
    %v815 = vpop.f32.mrb[0].mxu0
    %v816 = vadd.f32 0.0, %v815
    %v817 = vpop.f32.mrb[0].mxu0
    %v818 = vadd.f32 0.0, %v817
    %819 = vmatprep.mubr.f32.mxu0 0.0
    %820 = vmatmul.mubr.f32.gmra.mrb[0].mxu0 %v729
    %v821 = vpop.f32.mrb[0].mxu0
    %v822 = vadd.f32 0.0, %v821
    %v823 = vpop.f32.mrb[0].mxu0
    %v824 = vadd.f32 0.0, %v823
    %825 = vdwg.mxu0
    %v826 = vadd.f32 %v698, %v804
    %v827 = vadd.f32 %v699, %v806
    %v828 = vadd.f32 %v700, %v810
    %v829 = vadd.f32 %v701, %v812
    %v830 = vadd.f32 %v702, %v816
    %v831 = vadd.f32 %v703, %v818
    %v832 = vadd.f32 %v704, %v822
    %v833 = vadd.f32 %v705, %v824
    %s834 = scalar_lea.vmem %s1, 256
    %v835 = vld [vmem:[%s834] sm:$0xff]
    %v836 = vld [vmem:[%s834 + $0x8] sm:$0xff]
    %v837 = vld [vmem:[%s834 + $0x10] sm:$0xff]
    %v838 = vld [vmem:[%s834 + $0x18] sm:$0xff]
    %v839 = vld [vmem:[%s834 + $0x20] sm:$0xff]
    %v840 = vld [vmem:[%s834 + $0x28] sm:$0xff]
    %v841 = vld [vmem:[%s834 + $0x30] sm:$0xf]
    %v842 = vld [vmem:[%s834 + $0x38] sm:$0xf]
    %843 = vrot.lane.b32.xlu0 %v337, 124
    %v844 = vpop.permute.xlu0 %843
    %845 = vrot.lane.b32.xlu0 %v338, 124
    %v846 = vpop.permute.xlu0 %845
    %847 = vrot.lane.b32.xlu0 %v339, 124
    %v848 = vpop.permute.xlu0 %847
    %849 = vrot.lane.b32.xlu0 %v340, 124
    %v850 = vpop.permute.xlu0 %849
    %v851 = vsel %vm370, %v844, 0
    %v853 = vsel %vm370, %v846, 0
    %v855 = vsel %vm370, %v848, 0
    %v857 = vsel %vm370, %v850, 0
    %v860 = vsel %vm379, %v841, 0
    %v863 = vsel %vm379, %v842, 0
    %865 = vmatprep.subr.mxu0 %v836
    %866 = vmatpush1.msra.mxu0 %v835
    %867 = vmatprep.subr.mxu0 %v838
    %868 = vmatpush1.msra.mxu0 %v837
    %869 = vmatprep.subr.mxu0 %v840
    %870 = vmatpush1.msra.mxu0 %v839
    %871 = vmatprep.subr.mxu0 %v863
    %872 = vmatpush1.msra.mxu0 %v860
    %873 = vmatprep.subr.mxu0 0.0
    %874 = vmatpush1.msra.mxu0 0.0
    %875 = vmatprep.subr.mxu0 0.0
    %876 = vmatpush1.msra.mxu0 0.0
    %877 = vmatprep.subr.mxu0 0.0
    %878 = vmatpush1.msra.mxu0 0.0
    %879 = vmatprep.subr.mxu0 0.0
    %880 = vmatpush1.msra.mxu0 0.0
    %881 = vmatprep.subr.mxu0 0.0
    %882 = vmatpush1.msra.mxu0 0.0
    %883 = vmatprep.subr.mxu0 0.0
    %884 = vmatpush1.msra.mxu0 0.0
    %885 = vmatprep.subr.mxu0 0.0
    %886 = vmatpush1.msra.mxu0 0.0
    %887 = vmatprep.subr.mxu0 0.0
    %888 = vmatpush1.msra.mxu0 0.0
    %889 = vmatprep.subr.mxu0 0.0
    %890 = vmatpush1.msra.mxu0 0.0
    %891 = vmatprep.subr.mxu0 0.0
    %892 = vmatpush1.msra.mxu0 0.0
    %893 = vmatprep.subr.mxu0 0.0
    %894 = vmatpush1.msra.mxu0 0.0
    %895 = vmatprep.subr.mxu0 0.0
    %896 = vmatpush1.msra.mxu0 0.0
    %897 = vmatprep.subr.mxu0 0.0
    %898 = vmatpush1.msra.mxu0 0.0
    %899 = vmatprep.subr.mxu0 0.0
    %900 = vmatpush1.msra.mxu0 0.0
    %901 = vmatprep.subr.mxu0 0.0
    %902 = vmatpush1.msra.mxu0 0.0
    %903 = vmatprep.subr.mxu0 0.0
    %904 = vmatpush1.msra.mxu0 0.0
    %905 = vmatprep.subr.mxu0 0.0
    %906 = vmatpush1.msra.mxu0 0.0
    %907 = vmatprep.subr.mxu0 0.0
    %908 = vmatpush1.msra.mxu0 0.0
    %909 = vmatprep.subr.mxu0 0.0
    %910 = vmatpush1.msra.mxu0 0.0
    %911 = vmatprep.subr.mxu0 0.0
    %912 = vmatpush1.msra.mxu0 0.0
    %913 = vmatprep.subr.mxu0 0.0
    %914 = vmatpush1.msra.mxu0 0.0
    %915 = vmatprep.subr.mxu0 0.0
    %916 = vmatpush1.msra.mxu0 0.0
    %917 = vmatprep.subr.mxu0 0.0
    %918 = vmatpush1.msra.mxu0 0.0
    %919 = vmatprep.subr.mxu0 0.0
    %920 = vmatpush1.msra.mxu0 0.0
    %921 = vmatprep.subr.mxu0 0.0
    %922 = vmatpush1.msra.mxu0 0.0
    %923 = vmatprep.subr.mxu0 0.0
    %924 = vmatpush1.msra.mxu0 0.0
    %925 = vmatprep.subr.mxu0 0.0
    %926 = vmatpush1.msra.mxu0 0.0
    %927 = vmatprep.subr.mxu0 0.0
    %928 = vmatpush1.msra.mxu0 0.0
    %929 = vmatprep.mubr.f32.mxu0 0.0
    %930 = vmatmul.mubr.f32.gmra.mrb[0].mxu0 %v851
    %v931 = vpop.f32.mrb[0].mxu0
    %v932 = vadd.f32 0.0, %v931
    %v933 = vpop.f32.mrb[0].mxu0
    %v934 = vadd.f32 0.0, %v933
    %935 = vmatprep.mubr.f32.mxu0 0.0
    %936 = vmatmul.mubr.f32.gmra.mrb[0].mxu0 %v853
    %v937 = vpop.f32.mrb[0].mxu0
    %v938 = vadd.f32 0.0, %v937
    %v939 = vpop.f32.mrb[0].mxu0
    %v940 = vadd.f32 0.0, %v939
    %941 = vmatprep.mubr.f32.mxu0 0.0
    %942 = vmatmul.mubr.f32.gmra.mrb[0].mxu0 %v855
    %v943 = vpop.f32.mrb[0].mxu0
    %v944 = vadd.f32 0.0, %v943
    %v945 = vpop.f32.mrb[0].mxu0
    %v946 = vadd.f32 0.0, %v945
    %947 = vmatprep.mubr.f32.mxu0 0.0
    %948 = vmatmul.mubr.f32.gmra.mrb[0].mxu0 %v857
    %v949 = vpop.f32.mrb[0].mxu0
    %v950 = vadd.f32 0.0, %v949
    %v951 = vpop.f32.mrb[0].mxu0
    %v952 = vadd.f32 0.0, %v951
    %953 = vdwg.mxu0
    %v954 = vadd.f32 %v826, %v932
    %v955 = vadd.f32 %v827, %v934
    %v956 = vadd.f32 %v828, %v938
    %v957 = vadd.f32 %v829, %v940
    %v958 = vadd.f32 %v830, %v944
    %v959 = vadd.f32 %v831, %v946
    %v960 = vadd.f32 %v832, %v950
    %v961 = vadd.f32 %v833, %v952
    %s962 = scalar_lea.vmem %s1, 320
    %v963 = vld [vmem:[%s962] sm:$0xff]
    %v964 = vld [vmem:[%s962 + $0x8] sm:$0xff]
    %v965 = vld [vmem:[%s962 + $0x10] sm:$0xff]
    %v966 = vld [vmem:[%s962 + $0x18] sm:$0xff]
    %v967 = vld [vmem:[%s962 + $0x20] sm:$0xff]
    %v968 = vld [vmem:[%s962 + $0x28] sm:$0xff]
    %v969 = vld [vmem:[%s962 + $0x30] sm:$0xf]
    %v970 = vld [vmem:[%s962 + $0x38] sm:$0xf]
    %vm971 = vcmask 1046528
    %v972 = vrot.slane %v337, 1
    %v973 = vrot.slane %v338, 1
    %v974 = vsel %vm971, %v972, %v973
    %v975 = vrot.slane %v339, 1
    %v976 = vsel %vm971, %v973, %v975
    %v977 = vrot.slane %v340, 1
    %v978 = vsel %vm971, %v975, %v977
    %v979 = vsel %vm370, %v974, 0
    %v981 = vsel %vm370, %v976, 0
    %v983 = vsel %vm370, %v978, 0
    %v985 = vsel %vm370, %v977, 0
    %v988 = vsel %vm379, %v969, 0
    %v991 = vsel %vm379, %v970, 0
    %993 = vmatprep.subr.mxu0 %v964
    %994 = vmatpush1.msra.mxu0 %v963
    %995 = vmatprep.subr.mxu0 %v966
    %996 = vmatpush1.msra.mxu0 %v965
    %997 = vmatprep.subr.mxu0 %v968
    %998 = vmatpush1.msra.mxu0 %v967
    %999 = vmatprep.subr.mxu0 %v991
    %1000 = vmatpush1.msra.mxu0 %v988
    %1001 = vmatprep.subr.mxu0 0.0
    %1002 = vmatpush1.msra.mxu0 0.0
    %1003 = vmatprep.subr.mxu0 0.0
    %1004 = vmatpush1.msra.mxu0 0.0
    %1005 = vmatprep.subr.mxu0 0.0
    %1006 = vmatpush1.msra.mxu0 0.0
    %1007 = vmatprep.subr.mxu0 0.0
    %1008 = vmatpush1.msra.mxu0 0.0
    %1009 = vmatprep.subr.mxu0 0.0
    %1010 = vmatpush1.msra.mxu0 0.0
    %1011 = vmatprep.subr.mxu0 0.0
    %1012 = vmatpush1.msra.mxu0 0.0
    %1013 = vmatprep.subr.mxu0 0.0
    %1014 = vmatpush1.msra.mxu0 0.0
    %1015 = vmatprep.subr.mxu0 0.0
    %1016 = vmatpush1.msra.mxu0 0.0
    %1017 = vmatprep.subr.mxu0 0.0
    %1018 = vmatpush1.msra.mxu0 0.0
    %1019 = vmatprep.subr.mxu0 0.0
    %1020 = vmatpush1.msra.mxu0 0.0
    %1021 = vmatprep.subr.mxu0 0.0
    %1022 = vmatpush1.msra.mxu0 0.0
    %1023 = vmatprep.subr.mxu0 0.0
    %1024 = vmatpush1.msra.mxu0 0.0
    %1025 = vmatprep.subr.mxu0 0.0
    %1026 = vmatpush1.msra.mxu0 0.0
    %1027 = vmatprep.subr.mxu0 0.0
    %1028 = vmatpush1.msra.mxu0 0.0
    %1029 = vmatprep.subr.mxu0 0.0
    %1030 = vmatpush1.msra.mxu0 0.0
    %1031 = vmatprep.subr.mxu0 0.0
    %1032 = vmatpush1.msra.mxu0 0.0
    %1033 = vmatprep.subr.mxu0 0.0
    %1034 = vmatpush1.msra.mxu0 0.0
    %1035 = vmatprep.subr.mxu0 0.0
    %1036 = vmatpush1.msra.mxu0 0.0
    %1037 = vmatprep.subr.mxu0 0.0
    %1038 = vmatpush1.msra.mxu0 0.0
    %1039 = vmatprep.subr.mxu0 0.0
    %1040 = vmatpush1.msra.mxu0 0.0
    %1041 = vmatprep.subr.mxu0 0.0
    %1042 = vmatpush1.msra.mxu0 0.0
    %1043 = vmatprep.subr.mxu0 0.0
    %1044 = vmatpush1.msra.mxu0 0.0
    %1045 = vmatprep.subr.mxu0 0.0
    %1046 = vmatpush1.msra.mxu0 0.0
    %1047 = vmatprep.subr.mxu0 0.0
    %1048 = vmatpush1.msra.mxu0 0.0
    %1049 = vmatprep.subr.mxu0 0.0
    %1050 = vmatpush1.msra.mxu0 0.0
    %1051 = vmatprep.subr.mxu0 0.0
    %1052 = vmatpush1.msra.mxu0 0.0
    %1053 = vmatprep.subr.mxu0 0.0
    %1054 = vmatpush1.msra.mxu0 0.0
    %1055 = vmatprep.subr.mxu0 0.0
    %1056 = vmatpush1.msra.mxu0 0.0
    %1057 = vmatprep.mubr.f32.mxu0 0.0
    %1058 = vmatmul.mubr.f32.gmra.mrb[0].mxu0 %v979
    %v1059 = vpop.f32.mrb[0].mxu0
    %v1060 = vadd.f32 0.0, %v1059
    %v1061 = vpop.f32.mrb[0].mxu0
    %v1062 = vadd.f32 0.0, %v1061
    %1063 = vmatprep.mubr.f32.mxu0 0.0
    %1064 = vmatmul.mubr.f32.gmra.mrb[0].mxu0 %v981
    %v1065 = vpop.f32.mrb[0].mxu0
    %v1066 = vadd.f32 0.0, %v1065
    %v1067 = vpop.f32.mrb[0].mxu0
    %v1068 = vadd.f32 0.0, %v1067
    %1069 = vmatprep.mubr.f32.mxu0 0.0
    %1070 = vmatmul.mubr.f32.gmra.mrb[0].mxu0 %v983
    %v1071 = vpop.f32.mrb[0].mxu0
    %v1072 = vadd.f32 0.0, %v1071
    %v1073 = vpop.f32.mrb[0].mxu0
    %v1074 = vadd.f32 0.0, %v1073
    %1075 = vmatprep.mubr.f32.mxu0 0.0
    %1076 = vmatmul.mubr.f32.gmra.mrb[0].mxu0 %v985
    %v1077 = vpop.f32.mrb[0].mxu0
    %v1078 = vadd.f32 0.0, %v1077
    %v1079 = vpop.f32.mrb[0].mxu0
    %v1080 = vadd.f32 0.0, %v1079
    %1081 = vdwg.mxu0
    %v1082 = vadd.f32 %v954, %v1060
    %v1083 = vadd.f32 %v955, %v1062
    %v1084 = vadd.f32 %v956, %v1066
    %v1085 = vadd.f32 %v957, %v1068
    %v1086 = vadd.f32 %v958, %v1072
    %v1087 = vadd.f32 %v959, %v1074
    %v1088 = vadd.f32 %v960, %v1078
    %v1089 = vadd.f32 %v961, %v1080
    %s1090 = scalar_lea.vmem %s1, 384
    %v1091 = vld [vmem:[%s1090] sm:$0xff]
    %v1092 = vld [vmem:[%s1090 + $0x8] sm:$0xff]
    %v1093 = vld [vmem:[%s1090 + $0x10] sm:$0xff]
    %v1094 = vld [vmem:[%s1090 + $0x18] sm:$0xff]
    %v1095 = vld [vmem:[%s1090 + $0x20] sm:$0xff]
    %v1096 = vld [vmem:[%s1090 + $0x28] sm:$0xff]
    %v1097 = vld [vmem:[%s1090 + $0x30] sm:$0xf]
    %v1098 = vld [vmem:[%s1090 + $0x38] sm:$0xf]
    %1099 = vrot.lane.b32.xlu0 %v974, 127
    %v1100 = vpop.permute.xlu0 %1099
    %1101 = vrot.lane.b32.xlu0 %v976, 127
    %v1102 = vpop.permute.xlu0 %1101
    %1103 = vrot.lane.b32.xlu0 %v978, 127
    %v1104 = vpop.permute.xlu0 %1103
    %1105 = vrot.lane.b32.xlu0 %v977, 127
    %v1106 = vpop.permute.xlu0 %1105
    %v1107 = vsel %vm370, %v1100, 0
    %v1109 = vsel %vm370, %v1102, 0
    %v1111 = vsel %vm370, %v1104, 0
    %v1113 = vsel %vm370, %v1106, 0
    %v1116 = vsel %vm379, %v1097, 0
    %v1119 = vsel %vm379, %v1098, 0
    %1121 = vmatprep.subr.mxu0 %v1092
    %1122 = vmatpush1.msra.mxu0 %v1091
    %1123 = vmatprep.subr.mxu0 %v1094
    %1124 = vmatpush1.msra.mxu0 %v1093
    %1125 = vmatprep.subr.mxu0 %v1096
    %1126 = vmatpush1.msra.mxu0 %v1095
    %1127 = vmatprep.subr.mxu0 %v1119
    %1128 = vmatpush1.msra.mxu0 %v1116
    %1129 = vmatprep.subr.mxu0 0.0
    %1130 = vmatpush1.msra.mxu0 0.0
    %1131 = vmatprep.subr.mxu0 0.0
    %1132 = vmatpush1.msra.mxu0 0.0
    %1133 = vmatprep.subr.mxu0 0.0
    %1134 = vmatpush1.msra.mxu0 0.0
    %1135 = vmatprep.subr.mxu0 0.0
    %1136 = vmatpush1.msra.mxu0 0.0
    %1137 = vmatprep.subr.mxu0 0.0
    %1138 = vmatpush1.msra.mxu0 0.0
    %1139 = vmatprep.subr.mxu0 0.0
    %1140 = vmatpush1.msra.mxu0 0.0
    %1141 = vmatprep.subr.mxu0 0.0
    %1142 = vmatpush1.msra.mxu0 0.0
    %1143 = vmatprep.subr.mxu0 0.0
    %1144 = vmatpush1.msra.mxu0 0.0
    %1145 = vmatprep.subr.mxu0 0.0
    %1146 = vmatpush1.msra.mxu0 0.0
    %1147 = vmatprep.subr.mxu0 0.0
    %1148 = vmatpush1.msra.mxu0 0.0
    %1149 = vmatprep.subr.mxu0 0.0
    %1150 = vmatpush1.msra.mxu0 0.0
    %1151 = vmatprep.subr.mxu0 0.0
    %1152 = vmatpush1.msra.mxu0 0.0
    %1153 = vmatprep.subr.mxu0 0.0
    %1154 = vmatpush1.msra.mxu0 0.0
    %1155 = vmatprep.subr.mxu0 0.0
    %1156 = vmatpush1.msra.mxu0 0.0
    %1157 = vmatprep.subr.mxu0 0.0
    %1158 = vmatpush1.msra.mxu0 0.0
    %1159 = vmatprep.subr.mxu0 0.0
    %1160 = vmatpush1.msra.mxu0 0.0
    %1161 = vmatprep.subr.mxu0 0.0
    %1162 = vmatpush1.msra.mxu0 0.0
    %1163 = vmatprep.subr.mxu0 0.0
    %1164 = vmatpush1.msra.mxu0 0.0
    %1165 = vmatprep.subr.mxu0 0.0
    %1166 = vmatpush1.msra.mxu0 0.0
    %1167 = vmatprep.subr.mxu0 0.0
    %1168 = vmatpush1.msra.mxu0 0.0
    %1169 = vmatprep.subr.mxu0 0.0
    %1170 = vmatpush1.msra.mxu0 0.0
    %1171 = vmatprep.subr.mxu0 0.0
    %1172 = vmatpush1.msra.mxu0 0.0
    %1173 = vmatprep.subr.mxu0 0.0
    %1174 = vmatpush1.msra.mxu0 0.0
    %1175 = vmatprep.subr.mxu0 0.0
    %1176 = vmatpush1.msra.mxu0 0.0
    %1177 = vmatprep.subr.mxu0 0.0
    %1178 = vmatpush1.msra.mxu0 0.0
    %1179 = vmatprep.subr.mxu0 0.0
    %1180 = vmatpush1.msra.mxu0 0.0
    %1181 = vmatprep.subr.mxu0 0.0
    %1182 = vmatpush1.msra.mxu0 0.0
    %1183 = vmatprep.subr.mxu0 0.0
    %1184 = vmatpush1.msra.mxu0 0.0
    %1185 = vmatprep.mubr.f32.mxu0 0.0
    %1186 = vmatmul.mubr.f32.gmra.mrb[0].mxu0 %v1107
    %v1187 = vpop.f32.mrb[0].mxu0
    %v1188 = vadd.f32 0.0, %v1187
    %v1189 = vpop.f32.mrb[0].mxu0
    %v1190 = vadd.f32 0.0, %v1189
    %1191 = vmatprep.mubr.f32.mxu0 0.0
    %1192 = vmatmul.mubr.f32.gmra.mrb[0].mxu0 %v1109
    %v1193 = vpop.f32.mrb[0].mxu0
    %v1194 = vadd.f32 0.0, %v1193
    %v1195 = vpop.f32.mrb[0].mxu0
    %v1196 = vadd.f32 0.0, %v1195
    %1197 = vmatprep.mubr.f32.mxu0 0.0
    %1198 = vmatmul.mubr.f32.gmra.mrb[0].mxu0 %v1111
    %v1199 = vpop.f32.mrb[0].mxu0
    %v1200 = vadd.f32 0.0, %v1199
    %v1201 = vpop.f32.mrb[0].mxu0
    %v1202 = vadd.f32 0.0, %v1201
    %1203 = vmatprep.mubr.f32.mxu0 0.0
    %1204 = vmatmul.mubr.f32.gmra.mrb[0].mxu0 %v1113
    %v1205 = vpop.f32.mrb[0].mxu0
    %v1206 = vadd.f32 0.0, %v1205
    %v1207 = vpop.f32.mrb[0].mxu0
    %v1208 = vadd.f32 0.0, %v1207
    %1209 = vdwg.mxu0
    %v1210 = vadd.f32 %v1082, %v1188
    %v1211 = vadd.f32 %v1083, %v1190
    %v1212 = vadd.f32 %v1084, %v1194
    %v1213 = vadd.f32 %v1085, %v1196
    %v1214 = vadd.f32 %v1086, %v1200
    %v1215 = vadd.f32 %v1087, %v1202
    %v1216 = vadd.f32 %v1088, %v1206
    %v1217 = vadd.f32 %v1089, %v1208
    %s1218 = scalar_lea.vmem %s1, 448
    %v1219 = vld [vmem:[%s1218] sm:$0xff]
    %v1220 = vld [vmem:[%s1218 + $0x8] sm:$0xff]
    %v1221 = vld [vmem:[%s1218 + $0x10] sm:$0xff]
    %v1222 = vld [vmem:[%s1218 + $0x18] sm:$0xff]
    %v1223 = vld [vmem:[%s1218 + $0x20] sm:$0xff]
    %v1224 = vld [vmem:[%s1218 + $0x28] sm:$0xff]
    %v1225 = vld [vmem:[%s1218 + $0x30] sm:$0xf]
    %v1226 = vld [vmem:[%s1218 + $0x38] sm:$0xf]
    %1227 = vrot.lane.b32.xlu0 %v974, 126
    %v1228 = vpop.permute.xlu0 %1227
    %1229 = vrot.lane.b32.xlu0 %v976, 126
    %v1230 = vpop.permute.xlu0 %1229
    %1231 = vrot.lane.b32.xlu0 %v978, 126
    %v1232 = vpop.permute.xlu0 %1231
    %1233 = vrot.lane.b32.xlu0 %v977, 126
    %v1234 = vpop.permute.xlu0 %1233
    %v1235 = vsel %vm370, %v1228, 0
    %v1237 = vsel %vm370, %v1230, 0
    %v1239 = vsel %vm370, %v1232, 0
    %v1241 = vsel %vm370, %v1234, 0
    %v1244 = vsel %vm379, %v1225, 0
    %v1247 = vsel %vm379, %v1226, 0
    %1249 = vmatprep.subr.mxu0 %v1220
    %1250 = vmatpush1.msra.mxu0 %v1219
    %1251 = vmatprep.subr.mxu0 %v1222
    %1252 = vmatpush1.msra.mxu0 %v1221
    %1253 = vmatprep.subr.mxu0 %v1224
    %1254 = vmatpush1.msra.mxu0 %v1223
    %1255 = vmatprep.subr.mxu0 %v1247
    %1256 = vmatpush1.msra.mxu0 %v1244
    %1257 = vmatprep.subr.mxu0 0.0
    %1258 = vmatpush1.msra.mxu0 0.0
    %1259 = vmatprep.subr.mxu0 0.0
    %1260 = vmatpush1.msra.mxu0 0.0
    %1261 = vmatprep.subr.mxu0 0.0
    %1262 = vmatpush1.msra.mxu0 0.0
    %1263 = vmatprep.subr.mxu0 0.0
    %1264 = vmatpush1.msra.mxu0 0.0
    %1265 = vmatprep.subr.mxu0 0.0
    %1266 = vmatpush1.msra.mxu0 0.0
    %1267 = vmatprep.subr.mxu0 0.0
    %1268 = vmatpush1.msra.mxu0 0.0
    %1269 = vmatprep.subr.mxu0 0.0
    %1270 = vmatpush1.msra.mxu0 0.0
    %1271 = vmatprep.subr.mxu0 0.0
    %1272 = vmatpush1.msra.mxu0 0.0
    %1273 = vmatprep.subr.mxu0 0.0
    %1274 = vmatpush1.msra.mxu0 0.0
    %1275 = vmatprep.subr.mxu0 0.0
    %1276 = vmatpush1.msra.mxu0 0.0
    %1277 = vmatprep.subr.mxu0 0.0
    %1278 = vmatpush1.msra.mxu0 0.0
    %1279 = vmatprep.subr.mxu0 0.0
    %1280 = vmatpush1.msra.mxu0 0.0
    %1281 = vmatprep.subr.mxu0 0.0
    %1282 = vmatpush1.msra.mxu0 0.0
    %1283 = vmatprep.subr.mxu0 0.0
    %1284 = vmatpush1.msra.mxu0 0.0
    %1285 = vmatprep.subr.mxu0 0.0
    %1286 = vmatpush1.msra.mxu0 0.0
    %1287 = vmatprep.subr.mxu0 0.0
    %1288 = vmatpush1.msra.mxu0 0.0
    %1289 = vmatprep.subr.mxu0 0.0
    %1290 = vmatpush1.msra.mxu0 0.0
    %1291 = vmatprep.subr.mxu0 0.0
    %1292 = vmatpush1.msra.mxu0 0.0
    %1293 = vmatprep.subr.mxu0 0.0
    %1294 = vmatpush1.msra.mxu0 0.0
    %1295 = vmatprep.subr.mxu0 0.0
    %1296 = vmatpush1.msra.mxu0 0.0
    %1297 = vmatprep.subr.mxu0 0.0
    %1298 = vmatpush1.msra.mxu0 0.0
    %1299 = vmatprep.subr.mxu0 0.0
    %1300 = vmatpush1.msra.mxu0 0.0
    %1301 = vmatprep.subr.mxu0 0.0
    %1302 = vmatpush1.msra.mxu0 0.0
    %1303 = vmatprep.subr.mxu0 0.0
    %1304 = vmatpush1.msra.mxu0 0.0
    %1305 = vmatprep.subr.mxu0 0.0
    %1306 = vmatpush1.msra.mxu0 0.0
    %1307 = vmatprep.subr.mxu0 0.0
    %1308 = vmatpush1.msra.mxu0 0.0
    %1309 = vmatprep.subr.mxu0 0.0
    %1310 = vmatpush1.msra.mxu0 0.0
    %1311 = vmatprep.subr.mxu0 0.0
    %1312 = vmatpush1.msra.mxu0 0.0
    %1313 = vmatprep.mubr.f32.mxu0 0.0
    %1314 = vmatmul.mubr.f32.gmra.mrb[0].mxu0 %v1235
    %v1315 = vpop.f32.mrb[0].mxu0
    %v1316 = vadd.f32 0.0, %v1315
    %v1317 = vpop.f32.mrb[0].mxu0
    %v1318 = vadd.f32 0.0, %v1317
    %1319 = vmatprep.mubr.f32.mxu0 0.0
    %1320 = vmatmul.mubr.f32.gmra.mrb[0].mxu0 %v1237
    %v1321 = vpop.f32.mrb[0].mxu0
    %v1322 = vadd.f32 0.0, %v1321
    %v1323 = vpop.f32.mrb[0].mxu0
    %v1324 = vadd.f32 0.0, %v1323
    %1325 = vmatprep.mubr.f32.mxu0 0.0
    %1326 = vmatmul.mubr.f32.gmra.mrb[0].mxu0 %v1239
    %v1327 = vpop.f32.mrb[0].mxu0
    %v1328 = vadd.f32 0.0, %v1327
    %v1329 = vpop.f32.mrb[0].mxu0
    %v1330 = vadd.f32 0.0, %v1329
    %1331 = vmatprep.mubr.f32.mxu0 0.0
    %1332 = vmatmul.mubr.f32.gmra.mrb[0].mxu0 %v1241
    %v1333 = vpop.f32.mrb[0].mxu0
    %v1334 = vadd.f32 0.0, %v1333
    %v1335 = vpop.f32.mrb[0].mxu0
    %v1336 = vadd.f32 0.0, %v1335
    %1337 = vdwg.mxu0
    %v1338 = vadd.f32 %v1210, %v1316
    %v1339 = vadd.f32 %v1211, %v1318
    %v1340 = vadd.f32 %v1212, %v1322
    %v1341 = vadd.f32 %v1213, %v1324
    %v1342 = vadd.f32 %v1214, %v1328
    %v1343 = vadd.f32 %v1215, %v1330
    %v1344 = vadd.f32 %v1216, %v1334
    %v1345 = vadd.f32 %v1217, %v1336
    %s1346 = scalar_lea.vmem %s1, 512
    %v1347 = vld [vmem:[%s1346] sm:$0xff]
    %v1348 = vld [vmem:[%s1346 + $0x8] sm:$0xff]
    %v1349 = vld [vmem:[%s1346 + $0x10] sm:$0xff]
    %v1350 = vld [vmem:[%s1346 + $0x18] sm:$0xff]
    %v1351 = vld [vmem:[%s1346 + $0x20] sm:$0xff]
    %v1352 = vld [vmem:[%s1346 + $0x28] sm:$0xff]
    %v1353 = vld [vmem:[%s1346 + $0x30] sm:$0xf]
    %v1354 = vld [vmem:[%s1346 + $0x38] sm:$0xf]
    %1355 = vrot.lane.b32.xlu0 %v974, 125
    %v1356 = vpop.permute.xlu0 %1355
    %1357 = vrot.lane.b32.xlu0 %v976, 125
    %v1358 = vpop.permute.xlu0 %1357
    %1359 = vrot.lane.b32.xlu0 %v978, 125
    %v1360 = vpop.permute.xlu0 %1359
    %1361 = vrot.lane.b32.xlu0 %v977, 125
    %v1362 = vpop.permute.xlu0 %1361
    %v1363 = vsel %vm370, %v1356, 0
    %v1365 = vsel %vm370, %v1358, 0
    %v1367 = vsel %vm370, %v1360, 0
    %v1369 = vsel %vm370, %v1362, 0
    %v1372 = vsel %vm379, %v1353, 0
    %v1375 = vsel %vm379, %v1354, 0
    %1377 = vmatprep.subr.mxu0 %v1348
    %1378 = vmatpush1.msra.mxu0 %v1347
    %1379 = vmatprep.subr.mxu0 %v1350
    %1380 = vmatpush1.msra.mxu0 %v1349
    %1381 = vmatprep.subr.mxu0 %v1352
    %1382 = vmatpush1.msra.mxu0 %v1351
    %1383 = vmatprep.subr.mxu0 %v1375
    %1384 = vmatpush1.msra.mxu0 %v1372
    %1385 = vmatprep.subr.mxu0 0.0
    %1386 = vmatpush1.msra.mxu0 0.0
    %1387 = vmatprep.subr.mxu0 0.0
    %1388 = vmatpush1.msra.mxu0 0.0
    %1389 = vmatprep.subr.mxu0 0.0
    %1390 = vmatpush1.msra.mxu0 0.0
    %1391 = vmatprep.subr.mxu0 0.0
    %1392 = vmatpush1.msra.mxu0 0.0
    %1393 = vmatprep.subr.mxu0 0.0
    %1394 = vmatpush1.msra.mxu0 0.0
    %1395 = vmatprep.subr.mxu0 0.0
    %1396 = vmatpush1.msra.mxu0 0.0
    %1397 = vmatprep.subr.mxu0 0.0
    %1398 = vmatpush1.msra.mxu0 0.0
    %1399 = vmatprep.subr.mxu0 0.0
    %1400 = vmatpush1.msra.mxu0 0.0
    %1401 = vmatprep.subr.mxu0 0.0
    %1402 = vmatpush1.msra.mxu0 0.0
    %1403 = vmatprep.subr.mxu0 0.0
    %1404 = vmatpush1.msra.mxu0 0.0
    %1405 = vmatprep.subr.mxu0 0.0
    %1406 = vmatpush1.msra.mxu0 0.0
    %1407 = vmatprep.subr.mxu0 0.0
    %1408 = vmatpush1.msra.mxu0 0.0
    %1409 = vmatprep.subr.mxu0 0.0
    %1410 = vmatpush1.msra.mxu0 0.0
    %1411 = vmatprep.subr.mxu0 0.0
    %1412 = vmatpush1.msra.mxu0 0.0
    %1413 = vmatprep.subr.mxu0 0.0
    %1414 = vmatpush1.msra.mxu0 0.0
    %1415 = vmatprep.subr.mxu0 0.0
    %1416 = vmatpush1.msra.mxu0 0.0
    %1417 = vmatprep.subr.mxu0 0.0
    %1418 = vmatpush1.msra.mxu0 0.0
    %1419 = vmatprep.subr.mxu0 0.0
    %1420 = vmatpush1.msra.mxu0 0.0
    %1421 = vmatprep.subr.mxu0 0.0
    %1422 = vmatpush1.msra.mxu0 0.0
    %1423 = vmatprep.subr.mxu0 0.0
    %1424 = vmatpush1.msra.mxu0 0.0
    %1425 = vmatprep.subr.mxu0 0.0
    %1426 = vmatpush1.msra.mxu0 0.0
    %1427 = vmatprep.subr.mxu0 0.0
    %1428 = vmatpush1.msra.mxu0 0.0
    %1429 = vmatprep.subr.mxu0 0.0
    %1430 = vmatpush1.msra.mxu0 0.0
    %1431 = vmatprep.subr.mxu0 0.0
    %1432 = vmatpush1.msra.mxu0 0.0
    %1433 = vmatprep.subr.mxu0 0.0
    %1434 = vmatpush1.msra.mxu0 0.0
    %1435 = vmatprep.subr.mxu0 0.0
    %1436 = vmatpush1.msra.mxu0 0.0
    %1437 = vmatprep.subr.mxu0 0.0
    %1438 = vmatpush1.msra.mxu0 0.0
    %1439 = vmatprep.subr.mxu0 0.0
    %1440 = vmatpush1.msra.mxu0 0.0
    %1441 = vmatprep.mubr.f32.mxu0 0.0
    %1442 = vmatmul.mubr.f32.gmra.mrb[0].mxu0 %v1363
    %v1443 = vpop.f32.mrb[0].mxu0
    %v1444 = vadd.f32 0.0, %v1443
    %v1445 = vpop.f32.mrb[0].mxu0
    %v1446 = vadd.f32 0.0, %v1445
    %1447 = vmatprep.mubr.f32.mxu0 0.0
    %1448 = vmatmul.mubr.f32.gmra.mrb[0].mxu0 %v1365
    %v1449 = vpop.f32.mrb[0].mxu0
    %v1450 = vadd.f32 0.0, %v1449
    %v1451 = vpop.f32.mrb[0].mxu0
    %v1452 = vadd.f32 0.0, %v1451
    %1453 = vmatprep.mubr.f32.mxu0 0.0
    %1454 = vmatmul.mubr.f32.gmra.mrb[0].mxu0 %v1367
    %v1455 = vpop.f32.mrb[0].mxu0
    %v1456 = vadd.f32 0.0, %v1455
    %v1457 = vpop.f32.mrb[0].mxu0
    %v1458 = vadd.f32 0.0, %v1457
    %1459 = vmatprep.mubr.f32.mxu0 0.0
    %1460 = vmatmul.mubr.f32.gmra.mrb[0].mxu0 %v1369
    %v1461 = vpop.f32.mrb[0].mxu0
    %v1462 = vadd.f32 0.0, %v1461
    %v1463 = vpop.f32.mrb[0].mxu0
    %v1464 = vadd.f32 0.0, %v1463
    %1465 = vdwg.mxu0
    %v1466 = vadd.f32 %v1338, %v1444
    %v1467 = vadd.f32 %v1339, %v1446
    %v1468 = vadd.f32 %v1340, %v1450
    %v1469 = vadd.f32 %v1341, %v1452
    %v1470 = vadd.f32 %v1342, %v1456
    %v1471 = vadd.f32 %v1343, %v1458
    %v1472 = vadd.f32 %v1344, %v1462
    %v1473 = vadd.f32 %v1345, %v1464
    %s1474 = scalar_lea.vmem %s1, 576
    %v1475 = vld [vmem:[%s1474] sm:$0xff]
    %v1476 = vld [vmem:[%s1474 + $0x8] sm:$0xff]
    %v1477 = vld [vmem:[%s1474 + $0x10] sm:$0xff]
    %v1478 = vld [vmem:[%s1474 + $0x18] sm:$0xff]
    %v1479 = vld [vmem:[%s1474 + $0x20] sm:$0xff]
    %v1480 = vld [vmem:[%s1474 + $0x28] sm:$0xff]
    %v1481 = vld [vmem:[%s1474 + $0x30] sm:$0xf]
    %v1482 = vld [vmem:[%s1474 + $0x38] sm:$0xf]
    %1483 = vrot.lane.b32.xlu0 %v974, 124
    %v1484 = vpop.permute.xlu0 %1483
    %1485 = vrot.lane.b32.xlu0 %v976, 124
    %v1486 = vpop.permute.xlu0 %1485
    %1487 = vrot.lane.b32.xlu0 %v978, 124
    %v1488 = vpop.permute.xlu0 %1487
    %1489 = vrot.lane.b32.xlu0 %v977, 124
    %v1490 = vpop.permute.xlu0 %1489
    %v1491 = vsel %vm370, %v1484, 0
    %v1493 = vsel %vm370, %v1486, 0
    %v1495 = vsel %vm370, %v1488, 0
    %v1497 = vsel %vm370, %v1490, 0
    %v1500 = vsel %vm379, %v1481, 0
    %v1503 = vsel %vm379, %v1482, 0
    %1505 = vmatprep.subr.mxu0 %v1476
    %1506 = vmatpush1.msra.mxu0 %v1475
    %1507 = vmatprep.subr.mxu0 %v1478
    %1508 = vmatpush1.msra.mxu0 %v1477
    %1509 = vmatprep.subr.mxu0 %v1480
    %1510 = vmatpush1.msra.mxu0 %v1479
    %1511 = vmatprep.subr.mxu0 %v1503
    %1512 = vmatpush1.msra.mxu0 %v1500
    %1513 = vmatprep.subr.mxu0 0.0
    %1514 = vmatpush1.msra.mxu0 0.0
    %1515 = vmatprep.subr.mxu0 0.0
    %1516 = vmatpush1.msra.mxu0 0.0
    %1517 = vmatprep.subr.mxu0 0.0
    %1518 = vmatpush1.msra.mxu0 0.0
    %1519 = vmatprep.subr.mxu0 0.0
    %1520 = vmatpush1.msra.mxu0 0.0
    %1521 = vmatprep.subr.mxu0 0.0
    %1522 = vmatpush1.msra.mxu0 0.0
    %1523 = vmatprep.subr.mxu0 0.0
    %1524 = vmatpush1.msra.mxu0 0.0
    %1525 = vmatprep.subr.mxu0 0.0
    %1526 = vmatpush1.msra.mxu0 0.0
    %1527 = vmatprep.subr.mxu0 0.0
    %1528 = vmatpush1.msra.mxu0 0.0
    %1529 = vmatprep.subr.mxu0 0.0
    %1530 = vmatpush1.msra.mxu0 0.0
    %1531 = vmatprep.subr.mxu0 0.0
    %1532 = vmatpush1.msra.mxu0 0.0
    %1533 = vmatprep.subr.mxu0 0.0
    %1534 = vmatpush1.msra.mxu0 0.0
    %1535 = vmatprep.subr.mxu0 0.0
    %1536 = vmatpush1.msra.mxu0 0.0
    %1537 = vmatprep.subr.mxu0 0.0
    %1538 = vmatpush1.msra.mxu0 0.0
    %1539 = vmatprep.subr.mxu0 0.0
    %1540 = vmatpush1.msra.mxu0 0.0
    %1541 = vmatprep.subr.mxu0 0.0
    %1542 = vmatpush1.msra.mxu0 0.0
    %1543 = vmatprep.subr.mxu0 0.0
    %1544 = vmatpush1.msra.mxu0 0.0
    %1545 = vmatprep.subr.mxu0 0.0
    %1546 = vmatpush1.msra.mxu0 0.0
    %1547 = vmatprep.subr.mxu0 0.0
    %1548 = vmatpush1.msra.mxu0 0.0
    %1549 = vmatprep.subr.mxu0 0.0
    %1550 = vmatpush1.msra.mxu0 0.0
    %1551 = vmatprep.subr.mxu0 0.0
    %1552 = vmatpush1.msra.mxu0 0.0
    %1553 = vmatprep.subr.mxu0 0.0
    %1554 = vmatpush1.msra.mxu0 0.0
    %1555 = vmatprep.subr.mxu0 0.0
    %1556 = vmatpush1.msra.mxu0 0.0
    %1557 = vmatprep.subr.mxu0 0.0
    %1558 = vmatpush1.msra.mxu0 0.0
    %1559 = vmatprep.subr.mxu0 0.0
    %1560 = vmatpush1.msra.mxu0 0.0
    %1561 = vmatprep.subr.mxu0 0.0
    %1562 = vmatpush1.msra.mxu0 0.0
    %1563 = vmatprep.subr.mxu0 0.0
    %1564 = vmatpush1.msra.mxu0 0.0
    %1565 = vmatprep.subr.mxu0 0.0
    %1566 = vmatpush1.msra.mxu0 0.0
    %1567 = vmatprep.subr.mxu0 0.0
    %1568 = vmatpush1.msra.mxu0 0.0
    %1569 = vmatprep.mubr.f32.mxu0 0.0
    %1570 = vmatmul.mubr.f32.gmra.mrb[0].mxu0 %v1491
    %v1571 = vpop.f32.mrb[0].mxu0
    %v1572 = vadd.f32 0.0, %v1571
    %v1573 = vpop.f32.mrb[0].mxu0
    %v1574 = vadd.f32 0.0, %v1573
    %1575 = vmatprep.mubr.f32.mxu0 0.0
    %1576 = vmatmul.mubr.f32.gmra.mrb[0].mxu0 %v1493
    %v1577 = vpop.f32.mrb[0].mxu0
    %v1578 = vadd.f32 0.0, %v1577
    %v1579 = vpop.f32.mrb[0].mxu0
    %v1580 = vadd.f32 0.0, %v1579
    %1581 = vmatprep.mubr.f32.mxu0 0.0
    %1582 = vmatmul.mubr.f32.gmra.mrb[0].mxu0 %v1495
    %v1583 = vpop.f32.mrb[0].mxu0
    %v1584 = vadd.f32 0.0, %v1583
    %v1585 = vpop.f32.mrb[0].mxu0
    %v1586 = vadd.f32 0.0, %v1585
    %1587 = vmatprep.mubr.f32.mxu0 0.0
    %1588 = vmatmul.mubr.f32.gmra.mrb[0].mxu0 %v1497
    %v1589 = vpop.f32.mrb[0].mxu0
    %v1590 = vadd.f32 0.0, %v1589
    %v1591 = vpop.f32.mrb[0].mxu0
    %v1592 = vadd.f32 0.0, %v1591
    %1593 = vdwg.mxu0
    %v1594 = vadd.f32 %v1466, %v1572
    %v1595 = vadd.f32 %v1467, %v1574
    %v1596 = vadd.f32 %v1468, %v1578
    %v1597 = vadd.f32 %v1469, %v1580
    %v1598 = vadd.f32 %v1470, %v1584
    %v1599 = vadd.f32 %v1471, %v1586
    %v1600 = vadd.f32 %v1472, %v1590
    %v1601 = vadd.f32 %v1473, %v1592
    %s1602 = scalar_lea.vmem %s1, 640
    %v1603 = vld [vmem:[%s1602] sm:$0xff]
    %v1604 = vld [vmem:[%s1602 + $0x8] sm:$0xff]
    %v1605 = vld [vmem:[%s1602 + $0x10] sm:$0xff]
    %v1606 = vld [vmem:[%s1602 + $0x18] sm:$0xff]
    %v1607 = vld [vmem:[%s1602 + $0x20] sm:$0xff]
    %v1608 = vld [vmem:[%s1602 + $0x28] sm:$0xff]
    %v1609 = vld [vmem:[%s1602 + $0x30] sm:$0xf]
    %v1610 = vld [vmem:[%s1602 + $0x38] sm:$0xf]
    %vm1611 = vcmask 1045504
    %v1612 = vrot.slane %v337, 2
    %v1613 = vrot.slane %v338, 2
    %v1614 = vsel %vm1611, %v1612, %v1613
    %v1615 = vrot.slane %v339, 2
    %v1616 = vsel %vm1611, %v1613, %v1615
    %v1617 = vrot.slane %v340, 2
    %v1618 = vsel %vm1611, %v1615, %v1617
    %v1619 = vsel %vm370, %v1614, 0
    %v1621 = vsel %vm370, %v1616, 0
    %v1623 = vsel %vm370, %v1618, 0
    %v1625 = vsel %vm370, %v1617, 0
    %v1628 = vsel %vm379, %v1609, 0
    %v1631 = vsel %vm379, %v1610, 0
    %1633 = vmatprep.subr.mxu0 %v1604
    %1634 = vmatpush1.msra.mxu0 %v1603
    %1635 = vmatprep.subr.mxu0 %v1606
    %1636 = vmatpush1.msra.mxu0 %v1605
    %1637 = vmatprep.subr.mxu0 %v1608
    %1638 = vmatpush1.msra.mxu0 %v1607
    %1639 = vmatprep.subr.mxu0 %v1631
    %1640 = vmatpush1.msra.mxu0 %v1628
    %1641 = vmatprep.subr.mxu0 0.0
    %1642 = vmatpush1.msra.mxu0 0.0
    %1643 = vmatprep.subr.mxu0 0.0
    %1644 = vmatpush1.msra.mxu0 0.0
    %1645 = vmatprep.subr.mxu0 0.0
    %1646 = vmatpush1.msra.mxu0 0.0
    %1647 = vmatprep.subr.mxu0 0.0
    %1648 = vmatpush1.msra.mxu0 0.0
    %1649 = vmatprep.subr.mxu0 0.0
    %1650 = vmatpush1.msra.mxu0 0.0
    %1651 = vmatprep.subr.mxu0 0.0
    %1652 = vmatpush1.msra.mxu0 0.0
    %1653 = vmatprep.subr.mxu0 0.0
    %1654 = vmatpush1.msra.mxu0 0.0
    %1655 = vmatprep.subr.mxu0 0.0
    %1656 = vmatpush1.msra.mxu0 0.0
    %1657 = vmatprep.subr.mxu0 0.0
    %1658 = vmatpush1.msra.mxu0 0.0
    %1659 = vmatprep.subr.mxu0 0.0
    %1660 = vmatpush1.msra.mxu0 0.0
    %1661 = vmatprep.subr.mxu0 0.0
    %1662 = vmatpush1.msra.mxu0 0.0
    %1663 = vmatprep.subr.mxu0 0.0
    %1664 = vmatpush1.msra.mxu0 0.0
    %1665 = vmatprep.subr.mxu0 0.0
    %1666 = vmatpush1.msra.mxu0 0.0
    %1667 = vmatprep.subr.mxu0 0.0
    %1668 = vmatpush1.msra.mxu0 0.0
    %1669 = vmatprep.subr.mxu0 0.0
    %1670 = vmatpush1.msra.mxu0 0.0
    %1671 = vmatprep.subr.mxu0 0.0
    %1672 = vmatpush1.msra.mxu0 0.0
    %1673 = vmatprep.subr.mxu0 0.0
    %1674 = vmatpush1.msra.mxu0 0.0
    %1675 = vmatprep.subr.mxu0 0.0
    %1676 = vmatpush1.msra.mxu0 0.0
    %1677 = vmatprep.subr.mxu0 0.0
    %1678 = vmatpush1.msra.mxu0 0.0
    %1679 = vmatprep.subr.mxu0 0.0
    %1680 = vmatpush1.msra.mxu0 0.0
    %1681 = vmatprep.subr.mxu0 0.0
    %1682 = vmatpush1.msra.mxu0 0.0
    %1683 = vmatprep.subr.mxu0 0.0
    %1684 = vmatpush1.msra.mxu0 0.0
    %1685 = vmatprep.subr.mxu0 0.0
    %1686 = vmatpush1.msra.mxu0 0.0
    %1687 = vmatprep.subr.mxu0 0.0
    %1688 = vmatpush1.msra.mxu0 0.0
    %1689 = vmatprep.subr.mxu0 0.0
    %1690 = vmatpush1.msra.mxu0 0.0
    %1691 = vmatprep.subr.mxu0 0.0
    %1692 = vmatpush1.msra.mxu0 0.0
    %1693 = vmatprep.subr.mxu0 0.0
    %1694 = vmatpush1.msra.mxu0 0.0
    %1695 = vmatprep.subr.mxu0 0.0
    %1696 = vmatpush1.msra.mxu0 0.0
    %1697 = vmatprep.mubr.f32.mxu0 0.0
    %1698 = vmatmul.mubr.f32.gmra.mrb[0].mxu0 %v1619
    %v1699 = vpop.f32.mrb[0].mxu0
    %v1700 = vadd.f32 0.0, %v1699
    %v1701 = vpop.f32.mrb[0].mxu0
    %v1702 = vadd.f32 0.0, %v1701
    %1703 = vmatprep.mubr.f32.mxu0 0.0
    %1704 = vmatmul.mubr.f32.gmra.mrb[0].mxu0 %v1621
    %v1705 = vpop.f32.mrb[0].mxu0
    %v1706 = vadd.f32 0.0, %v1705
    %v1707 = vpop.f32.mrb[0].mxu0
    %v1708 = vadd.f32 0.0, %v1707
    %1709 = vmatprep.mubr.f32.mxu0 0.0
    %1710 = vmatmul.mubr.f32.gmra.mrb[0].mxu0 %v1623
    %v1711 = vpop.f32.mrb[0].mxu0
    %v1712 = vadd.f32 0.0, %v1711
    %v1713 = vpop.f32.mrb[0].mxu0
    %v1714 = vadd.f32 0.0, %v1713
    %1715 = vmatprep.mubr.f32.mxu0 0.0
    %1716 = vmatmul.mubr.f32.gmra.mrb[0].mxu0 %v1625
    %v1717 = vpop.f32.mrb[0].mxu0
    %v1718 = vadd.f32 0.0, %v1717
    %v1719 = vpop.f32.mrb[0].mxu0
    %v1720 = vadd.f32 0.0, %v1719
    %1721 = vdwg.mxu0
    %v1722 = vadd.f32 %v1594, %v1700
    %v1723 = vadd.f32 %v1595, %v1702
    %v1724 = vadd.f32 %v1596, %v1706
    %v1725 = vadd.f32 %v1597, %v1708
    %v1726 = vadd.f32 %v1598, %v1712
    %v1727 = vadd.f32 %v1599, %v1714
    %v1728 = vadd.f32 %v1600, %v1718
    %v1729 = vadd.f32 %v1601, %v1720
    %s1730 = scalar_lea.vmem %s1, 704
    %v1731 = vld [vmem:[%s1730] sm:$0xff]
    %v1732 = vld [vmem:[%s1730 + $0x8] sm:$0xff]
    %v1733 = vld [vmem:[%s1730 + $0x10] sm:$0xff]
    %v1734 = vld [vmem:[%s1730 + $0x18] sm:$0xff]
    %v1735 = vld [vmem:[%s1730 + $0x20] sm:$0xff]
    %v1736 = vld [vmem:[%s1730 + $0x28] sm:$0xff]
    %v1737 = vld [vmem:[%s1730 + $0x30] sm:$0xf]
    %v1738 = vld [vmem:[%s1730 + $0x38] sm:$0xf]
    %1739 = vrot.lane.b32.xlu0 %v1614, 127
    %v1740 = vpop.permute.xlu0 %1739
    %1741 = vrot.lane.b32.xlu0 %v1616, 127
    %v1742 = vpop.permute.xlu0 %1741
    %1743 = vrot.lane.b32.xlu0 %v1618, 127
    %v1744 = vpop.permute.xlu0 %1743
    %1745 = vrot.lane.b32.xlu0 %v1617, 127
    %v1746 = vpop.permute.xlu0 %1745
    %v1747 = vsel %vm370, %v1740, 0
    %v1749 = vsel %vm370, %v1742, 0
    %v1751 = vsel %vm370, %v1744, 0
    %v1753 = vsel %vm370, %v1746, 0
    %v1756 = vsel %vm379, %v1737, 0
    %v1759 = vsel %vm379, %v1738, 0
    %1761 = vmatprep.subr.mxu0 %v1732
    %1762 = vmatpush1.msra.mxu0 %v1731
    %1763 = vmatprep.subr.mxu0 %v1734
    %1764 = vmatpush1.msra.mxu0 %v1733
    %1765 = vmatprep.subr.mxu0 %v1736
    %1766 = vmatpush1.msra.mxu0 %v1735
    %1767 = vmatprep.subr.mxu0 %v1759
    %1768 = vmatpush1.msra.mxu0 %v1756
    %1769 = vmatprep.subr.mxu0 0.0
    %1770 = vmatpush1.msra.mxu0 0.0
    %1771 = vmatprep.subr.mxu0 0.0
    %1772 = vmatpush1.msra.mxu0 0.0
    %1773 = vmatprep.subr.mxu0 0.0
    %1774 = vmatpush1.msra.mxu0 0.0
    %1775 = vmatprep.subr.mxu0 0.0
    %1776 = vmatpush1.msra.mxu0 0.0
    %1777 = vmatprep.subr.mxu0 0.0
    %1778 = vmatpush1.msra.mxu0 0.0
    %1779 = vmatprep.subr.mxu0 0.0
    %1780 = vmatpush1.msra.mxu0 0.0
    %1781 = vmatprep.subr.mxu0 0.0
    %1782 = vmatpush1.msra.mxu0 0.0
    %1783 = vmatprep.subr.mxu0 0.0
    %1784 = vmatpush1.msra.mxu0 0.0
    %1785 = vmatprep.subr.mxu0 0.0
    %1786 = vmatpush1.msra.mxu0 0.0
    %1787 = vmatprep.subr.mxu0 0.0
    %1788 = vmatpush1.msra.mxu0 0.0
    %1789 = vmatprep.subr.mxu0 0.0
    %1790 = vmatpush1.msra.mxu0 0.0
    %1791 = vmatprep.subr.mxu0 0.0
    %1792 = vmatpush1.msra.mxu0 0.0
    %1793 = vmatprep.subr.mxu0 0.0
    %1794 = vmatpush1.msra.mxu0 0.0
    %1795 = vmatprep.subr.mxu0 0.0
    %1796 = vmatpush1.msra.mxu0 0.0
    %1797 = vmatprep.subr.mxu0 0.0
    %1798 = vmatpush1.msra.mxu0 0.0
    %1799 = vmatprep.subr.mxu0 0.0
    %1800 = vmatpush1.msra.mxu0 0.0
    %1801 = vmatprep.subr.mxu0 0.0
    %1802 = vmatpush1.msra.mxu0 0.0
    %1803 = vmatprep.subr.mxu0 0.0
    %1804 = vmatpush1.msra.mxu0 0.0
    %1805 = vmatprep.subr.mxu0 0.0
    %1806 = vmatpush1.msra.mxu0 0.0
    %1807 = vmatprep.subr.mxu0 0.0
    %1808 = vmatpush1.msra.mxu0 0.0
    %1809 = vmatprep.subr.mxu0 0.0
    %1810 = vmatpush1.msra.mxu0 0.0
    %1811 = vmatprep.subr.mxu0 0.0
    %1812 = vmatpush1.msra.mxu0 0.0
    %1813 = vmatprep.subr.mxu0 0.0
    %1814 = vmatpush1.msra.mxu0 0.0
    %1815 = vmatprep.subr.mxu0 0.0
    %1816 = vmatpush1.msra.mxu0 0.0
    %1817 = vmatprep.subr.mxu0 0.0
    %1818 = vmatpush1.msra.mxu0 0.0
    %1819 = vmatprep.subr.mxu0 0.0
    %1820 = vmatpush1.msra.mxu0 0.0
    %1821 = vmatprep.subr.mxu0 0.0
    %1822 = vmatpush1.msra.mxu0 0.0
    %1823 = vmatprep.subr.mxu0 0.0
    %1824 = vmatpush1.msra.mxu0 0.0
    %1825 = vmatprep.mubr.f32.mxu0 0.0
    %1826 = vmatmul.mubr.f32.gmra.mrb[0].mxu0 %v1747
    %v1827 = vpop.f32.mrb[0].mxu0
    %v1828 = vadd.f32 0.0, %v1827
    %v1829 = vpop.f32.mrb[0].mxu0
    %v1830 = vadd.f32 0.0, %v1829
    %1831 = vmatprep.mubr.f32.mxu0 0.0
    %1832 = vmatmul.mubr.f32.gmra.mrb[0].mxu0 %v1749
    %v1833 = vpop.f32.mrb[0].mxu0
    %v1834 = vadd.f32 0.0, %v1833
    %v1835 = vpop.f32.mrb[0].mxu0
    %v1836 = vadd.f32 0.0, %v1835
    %1837 = vmatprep.mubr.f32.mxu0 0.0
    %1838 = vmatmul.mubr.f32.gmra.mrb[0].mxu0 %v1751
    %v1839 = vpop.f32.mrb[0].mxu0
    %v1840 = vadd.f32 0.0, %v1839
    %v1841 = vpop.f32.mrb[0].mxu0
    %v1842 = vadd.f32 0.0, %v1841
    %1843 = vmatprep.mubr.f32.mxu0 0.0
    %1844 = vmatmul.mubr.f32.gmra.mrb[0].mxu0 %v1753
    %v1845 = vpop.f32.mrb[0].mxu0
    %v1846 = vadd.f32 0.0, %v1845
    %v1847 = vpop.f32.mrb[0].mxu0
    %v1848 = vadd.f32 0.0, %v1847
    %1849 = vdwg.mxu0
    %v1850 = vadd.f32 %v1722, %v1828
    %v1851 = vadd.f32 %v1723, %v1830
    %v1852 = vadd.f32 %v1724, %v1834
    %v1853 = vadd.f32 %v1725, %v1836
    %v1854 = vadd.f32 %v1726, %v1840
    %v1855 = vadd.f32 %v1727, %v1842
    %v1856 = vadd.f32 %v1728, %v1846
    %v1857 = vadd.f32 %v1729, %v1848
    %s1858 = scalar_lea.vmem %s1, 768
    %v1859 = vld [vmem:[%s1858] sm:$0xff]
    %v1860 = vld [vmem:[%s1858 + $0x8] sm:$0xff]
    %v1861 = vld [vmem:[%s1858 + $0x10] sm:$0xff]
    %v1862 = vld [vmem:[%s1858 + $0x18] sm:$0xff]
    %v1863 = vld [vmem:[%s1858 + $0x20] sm:$0xff]
    %v1864 = vld [vmem:[%s1858 + $0x28] sm:$0xff]
    %v1865 = vld [vmem:[%s1858 + $0x30] sm:$0xf]
    %v1866 = vld [vmem:[%s1858 + $0x38] sm:$0xf]
    %1867 = vrot.lane.b32.xlu0 %v1614, 126
    %v1868 = vpop.permute.xlu0 %1867
    %1869 = vrot.lane.b32.xlu0 %v1616, 126
    %v1870 = vpop.permute.xlu0 %1869
    %1871 = vrot.lane.b32.xlu0 %v1618, 126
    %v1872 = vpop.permute.xlu0 %1871
    %1873 = vrot.lane.b32.xlu0 %v1617, 126
    %v1874 = vpop.permute.xlu0 %1873
    %v1875 = vsel %vm370, %v1868, 0
    %v1877 = vsel %vm370, %v1870, 0
    %v1879 = vsel %vm370, %v1872, 0
    %v1881 = vsel %vm370, %v1874, 0
    %v1884 = vsel %vm379, %v1865, 0
    %v1887 = vsel %vm379, %v1866, 0
    %1889 = vmatprep.subr.mxu0 %v1860
    %1890 = vmatpush1.msra.mxu0 %v1859
    %1891 = vmatprep.subr.mxu0 %v1862
    %1892 = vmatpush1.msra.mxu0 %v1861
    %1893 = vmatprep.subr.mxu0 %v1864
    %1894 = vmatpush1.msra.mxu0 %v1863
    %1895 = vmatprep.subr.mxu0 %v1887
    %1896 = vmatpush1.msra.mxu0 %v1884
    %1897 = vmatprep.subr.mxu0 0.0
    %1898 = vmatpush1.msra.mxu0 0.0
    %1899 = vmatprep.subr.mxu0 0.0
    %1900 = vmatpush1.msra.mxu0 0.0
    %1901 = vmatprep.subr.mxu0 0.0
    %1902 = vmatpush1.msra.mxu0 0.0
    %1903 = vmatprep.subr.mxu0 0.0
    %1904 = vmatpush1.msra.mxu0 0.0
    %1905 = vmatprep.subr.mxu0 0.0
    %1906 = vmatpush1.msra.mxu0 0.0
    %1907 = vmatprep.subr.mxu0 0.0
    %1908 = vmatpush1.msra.mxu0 0.0
    %1909 = vmatprep.subr.mxu0 0.0
    %1910 = vmatpush1.msra.mxu0 0.0
    %1911 = vmatprep.subr.mxu0 0.0
    %1912 = vmatpush1.msra.mxu0 0.0
    %1913 = vmatprep.subr.mxu0 0.0
    %1914 = vmatpush1.msra.mxu0 0.0
    %1915 = vmatprep.subr.mxu0 0.0
    %1916 = vmatpush1.msra.mxu0 0.0
    %1917 = vmatprep.subr.mxu0 0.0
    %1918 = vmatpush1.msra.mxu0 0.0
    %1919 = vmatprep.subr.mxu0 0.0
    %1920 = vmatpush1.msra.mxu0 0.0
    %1921 = vmatprep.subr.mxu0 0.0
    %1922 = vmatpush1.msra.mxu0 0.0
    %1923 = vmatprep.subr.mxu0 0.0
    %1924 = vmatpush1.msra.mxu0 0.0
    %1925 = vmatprep.subr.mxu0 0.0
    %1926 = vmatpush1.msra.mxu0 0.0
    %1927 = vmatprep.subr.mxu0 0.0
    %1928 = vmatpush1.msra.mxu0 0.0
    %1929 = vmatprep.subr.mxu0 0.0
    %1930 = vmatpush1.msra.mxu0 0.0
    %1931 = vmatprep.subr.mxu0 0.0
    %1932 = vmatpush1.msra.mxu0 0.0
    %1933 = vmatprep.subr.mxu0 0.0
    %1934 = vmatpush1.msra.mxu0 0.0
    %1935 = vmatprep.subr.mxu0 0.0
    %1936 = vmatpush1.msra.mxu0 0.0
    %1937 = vmatprep.subr.mxu0 0.0
    %1938 = vmatpush1.msra.mxu0 0.0
    %1939 = vmatprep.subr.mxu0 0.0
    %1940 = vmatpush1.msra.mxu0 0.0
    %1941 = vmatprep.subr.mxu0 0.0
    %1942 = vmatpush1.msra.mxu0 0.0
    %1943 = vmatprep.subr.mxu0 0.0
    %1944 = vmatpush1.msra.mxu0 0.0
    %1945 = vmatprep.subr.mxu0 0.0
    %1946 = vmatpush1.msra.mxu0 0.0
    %1947 = vmatprep.subr.mxu0 0.0
    %1948 = vmatpush1.msra.mxu0 0.0
    %1949 = vmatprep.subr.mxu0 0.0
    %1950 = vmatpush1.msra.mxu0 0.0
    %1951 = vmatprep.subr.mxu0 0.0
    %1952 = vmatpush1.msra.mxu0 0.0
    %1953 = vmatprep.mubr.f32.mxu0 0.0
    %1954 = vmatmul.mubr.f32.gmra.mrb[0].mxu0 %v1875
    %v1955 = vpop.f32.mrb[0].mxu0
    %v1956 = vadd.f32 0.0, %v1955
    %v1957 = vpop.f32.mrb[0].mxu0
    %v1958 = vadd.f32 0.0, %v1957
    %1959 = vmatprep.mubr.f32.mxu0 0.0
    %1960 = vmatmul.mubr.f32.gmra.mrb[0].mxu0 %v1877
    %v1961 = vpop.f32.mrb[0].mxu0
    %v1962 = vadd.f32 0.0, %v1961
    %v1963 = vpop.f32.mrb[0].mxu0
    %v1964 = vadd.f32 0.0, %v1963
    %1965 = vmatprep.mubr.f32.mxu0 0.0
    %1966 = vmatmul.mubr.f32.gmra.mrb[0].mxu0 %v1879
    %v1967 = vpop.f32.mrb[0].mxu0
    %v1968 = vadd.f32 0.0, %v1967
    %v1969 = vpop.f32.mrb[0].mxu0
    %v1970 = vadd.f32 0.0, %v1969
    %1971 = vmatprep.mubr.f32.mxu0 0.0
    %1972 = vmatmul.mubr.f32.gmra.mrb[0].mxu0 %v1881
    %v1973 = vpop.f32.mrb[0].mxu0
    %v1974 = vadd.f32 0.0, %v1973
    %v1975 = vpop.f32.mrb[0].mxu0
    %v1976 = vadd.f32 0.0, %v1975
    %1977 = vdwg.mxu0
    %v1978 = vadd.f32 %v1850, %v1956
    %v1979 = vadd.f32 %v1851, %v1958
    %v1980 = vadd.f32 %v1852, %v1962
    %v1981 = vadd.f32 %v1853, %v1964
    %v1982 = vadd.f32 %v1854, %v1968
    %v1983 = vadd.f32 %v1855, %v1970
    %v1984 = vadd.f32 %v1856, %v1974
    %v1985 = vadd.f32 %v1857, %v1976
    %s1986 = scalar_lea.vmem %s1, 832
    %v1987 = vld [vmem:[%s1986] sm:$0xff]
    %v1988 = vld [vmem:[%s1986 + $0x8] sm:$0xff]
    %v1989 = vld [vmem:[%s1986 + $0x10] sm:$0xff]
    %v1990 = vld [vmem:[%s1986 + $0x18] sm:$0xff]
    %v1991 = vld [vmem:[%s1986 + $0x20] sm:$0xff]
    %v1992 = vld [vmem:[%s1986 + $0x28] sm:$0xff]
    %v1993 = vld [vmem:[%s1986 + $0x30] sm:$0xf]
    %v1994 = vld [vmem:[%s1986 + $0x38] sm:$0xf]
    %1995 = vrot.lane.b32.xlu0 %v1614, 125
    %v1996 = vpop.permute.xlu0 %1995
    %1997 = vrot.lane.b32.xlu0 %v1616, 125
    %v1998 = vpop.permute.xlu0 %1997
    %1999 = vrot.lane.b32.xlu0 %v1618, 125
    %v2000 = vpop.permute.xlu0 %1999
    %2001 = vrot.lane.b32.xlu0 %v1617, 125
    %v2002 = vpop.permute.xlu0 %2001
    %v2003 = vsel %vm370, %v1996, 0
    %v2005 = vsel %vm370, %v1998, 0
    %v2007 = vsel %vm370, %v2000, 0
    %v2009 = vsel %vm370, %v2002, 0
    %v2012 = vsel %vm379, %v1993, 0
    %v2015 = vsel %vm379, %v1994, 0
    %2017 = vmatprep.subr.mxu0 %v1988
    %2018 = vmatpush1.msra.mxu0 %v1987
    %2019 = vmatprep.subr.mxu0 %v1990
    %2020 = vmatpush1.msra.mxu0 %v1989
    %2021 = vmatprep.subr.mxu0 %v1992
    %2022 = vmatpush1.msra.mxu0 %v1991
    %2023 = vmatprep.subr.mxu0 %v2015
    %2024 = vmatpush1.msra.mxu0 %v2012
    %2025 = vmatprep.subr.mxu0 0.0
    %2026 = vmatpush1.msra.mxu0 0.0
    %2027 = vmatprep.subr.mxu0 0.0
    %2028 = vmatpush1.msra.mxu0 0.0
    %2029 = vmatprep.subr.mxu0 0.0
    %2030 = vmatpush1.msra.mxu0 0.0
    %2031 = vmatprep.subr.mxu0 0.0
    %2032 = vmatpush1.msra.mxu0 0.0
    %2033 = vmatprep.subr.mxu0 0.0
    %2034 = vmatpush1.msra.mxu0 0.0
    %2035 = vmatprep.subr.mxu0 0.0
    %2036 = vmatpush1.msra.mxu0 0.0
    %2037 = vmatprep.subr.mxu0 0.0
    %2038 = vmatpush1.msra.mxu0 0.0
    %2039 = vmatprep.subr.mxu0 0.0
    %2040 = vmatpush1.msra.mxu0 0.0
    %2041 = vmatprep.subr.mxu0 0.0
    %2042 = vmatpush1.msra.mxu0 0.0
    %2043 = vmatprep.subr.mxu0 0.0
    %2044 = vmatpush1.msra.mxu0 0.0
    %2045 = vmatprep.subr.mxu0 0.0
    %2046 = vmatpush1.msra.mxu0 0.0
    %2047 = vmatprep.subr.mxu0 0.0
    %2048 = vmatpush1.msra.mxu0 0.0
    %2049 = vmatprep.subr.mxu0 0.0
    %2050 = vmatpush1.msra.mxu0 0.0
    %2051 = vmatprep.subr.mxu0 0.0
    %2052 = vmatpush1.msra.mxu0 0.0
    %2053 = vmatprep.subr.mxu0 0.0
    %2054 = vmatpush1.msra.mxu0 0.0
    %2055 = vmatprep.subr.mxu0 0.0
    %2056 = vmatpush1.msra.mxu0 0.0
    %2057 = vmatprep.subr.mxu0 0.0
    %2058 = vmatpush1.msra.mxu0 0.0
    %2059 = vmatprep.subr.mxu0 0.0
    %2060 = vmatpush1.msra.mxu0 0.0
    %2061 = vmatprep.subr.mxu0 0.0
    %2062 = vmatpush1.msra.mxu0 0.0
    %2063 = vmatprep.subr.mxu0 0.0
    %2064 = vmatpush1.msra.mxu0 0.0
    %2065 = vmatprep.subr.mxu0 0.0
    %2066 = vmatpush1.msra.mxu0 0.0
    %2067 = vmatprep.subr.mxu0 0.0
    %2068 = vmatpush1.msra.mxu0 0.0
    %2069 = vmatprep.subr.mxu0 0.0
    %2070 = vmatpush1.msra.mxu0 0.0
    %2071 = vmatprep.subr.mxu0 0.0
    %2072 = vmatpush1.msra.mxu0 0.0
    %2073 = vmatprep.subr.mxu0 0.0
    %2074 = vmatpush1.msra.mxu0 0.0
    %2075 = vmatprep.subr.mxu0 0.0
    %2076 = vmatpush1.msra.mxu0 0.0
    %2077 = vmatprep.subr.mxu0 0.0
    %2078 = vmatpush1.msra.mxu0 0.0
    %2079 = vmatprep.subr.mxu0 0.0
    %2080 = vmatpush1.msra.mxu0 0.0
    %2081 = vmatprep.mubr.f32.mxu0 0.0
    %2082 = vmatmul.mubr.f32.gmra.mrb[0].mxu0 %v2003
    %v2083 = vpop.f32.mrb[0].mxu0
    %v2084 = vadd.f32 0.0, %v2083
    %v2085 = vpop.f32.mrb[0].mxu0
    %v2086 = vadd.f32 0.0, %v2085
    %2087 = vmatprep.mubr.f32.mxu0 0.0
    %2088 = vmatmul.mubr.f32.gmra.mrb[0].mxu0 %v2005
    %v2089 = vpop.f32.mrb[0].mxu0
    %v2090 = vadd.f32 0.0, %v2089
    %v2091 = vpop.f32.mrb[0].mxu0
    %v2092 = vadd.f32 0.0, %v2091
    %2093 = vmatprep.mubr.f32.mxu0 0.0
    %2094 = vmatmul.mubr.f32.gmra.mrb[0].mxu0 %v2007
    %v2095 = vpop.f32.mrb[0].mxu0
    %v2096 = vadd.f32 0.0, %v2095
    %v2097 = vpop.f32.mrb[0].mxu0
    %v2098 = vadd.f32 0.0, %v2097
    %2099 = vmatprep.mubr.f32.mxu0 0.0
    %2100 = vmatmul.mubr.f32.gmra.mrb[0].mxu0 %v2009
    %v2101 = vpop.f32.mrb[0].mxu0
    %v2102 = vadd.f32 0.0, %v2101
    %v2103 = vpop.f32.mrb[0].mxu0
    %v2104 = vadd.f32 0.0, %v2103
    %2105 = vdwg.mxu0
    %v2106 = vadd.f32 %v1978, %v2084
    %v2107 = vadd.f32 %v1979, %v2086
    %v2108 = vadd.f32 %v1980, %v2090
    %v2109 = vadd.f32 %v1981, %v2092
    %v2110 = vadd.f32 %v1982, %v2096
    %v2111 = vadd.f32 %v1983, %v2098
    %v2112 = vadd.f32 %v1984, %v2102
    %v2113 = vadd.f32 %v1985, %v2104
    %s2114 = scalar_lea.vmem %s1, 896
    %v2115 = vld [vmem:[%s2114] sm:$0xff]
    %v2116 = vld [vmem:[%s2114 + $0x8] sm:$0xff]
    %v2117 = vld [vmem:[%s2114 + $0x10] sm:$0xff]
    %v2118 = vld [vmem:[%s2114 + $0x18] sm:$0xff]
    %v2119 = vld [vmem:[%s2114 + $0x20] sm:$0xff]
    %v2120 = vld [vmem:[%s2114 + $0x28] sm:$0xff]
    %v2121 = vld [vmem:[%s2114 + $0x30] sm:$0xf]
    %v2122 = vld [vmem:[%s2114 + $0x38] sm:$0xf]
    %2123 = vrot.lane.b32.xlu0 %v1614, 124
    %v2124 = vpop.permute.xlu0 %2123
    %2125 = vrot.lane.b32.xlu0 %v1616, 124
    %v2126 = vpop.permute.xlu0 %2125
    %2127 = vrot.lane.b32.xlu0 %v1618, 124
    %v2128 = vpop.permute.xlu0 %2127
    %2129 = vrot.lane.b32.xlu0 %v1617, 124
    %v2130 = vpop.permute.xlu0 %2129
    %v2131 = vsel %vm370, %v2124, 0
    %v2133 = vsel %vm370, %v2126, 0
    %v2135 = vsel %vm370, %v2128, 0
    %v2137 = vsel %vm370, %v2130, 0
    %v2140 = vsel %vm379, %v2121, 0
    %v2143 = vsel %vm379, %v2122, 0
    %2145 = vmatprep.subr.mxu0 %v2116
    %2146 = vmatpush1.msra.mxu0 %v2115
    %2147 = vmatprep.subr.mxu0 %v2118
    %2148 = vmatpush1.msra.mxu0 %v2117
    %2149 = vmatprep.subr.mxu0 %v2120
    %2150 = vmatpush1.msra.mxu0 %v2119
    %2151 = vmatprep.subr.mxu0 %v2143
    %2152 = vmatpush1.msra.mxu0 %v2140
    %2153 = vmatprep.subr.mxu0 0.0
    %2154 = vmatpush1.msra.mxu0 0.0
    %2155 = vmatprep.subr.mxu0 0.0
    %2156 = vmatpush1.msra.mxu0 0.0
    %2157 = vmatprep.subr.mxu0 0.0
    %2158 = vmatpush1.msra.mxu0 0.0
    %2159 = vmatprep.subr.mxu0 0.0
    %2160 = vmatpush1.msra.mxu0 0.0
    %2161 = vmatprep.subr.mxu0 0.0
    %2162 = vmatpush1.msra.mxu0 0.0
    %2163 = vmatprep.subr.mxu0 0.0
    %2164 = vmatpush1.msra.mxu0 0.0
    %2165 = vmatprep.subr.mxu0 0.0
    %2166 = vmatpush1.msra.mxu0 0.0
    %2167 = vmatprep.subr.mxu0 0.0
    %2168 = vmatpush1.msra.mxu0 0.0
    %2169 = vmatprep.subr.mxu0 0.0
    %2170 = vmatpush1.msra.mxu0 0.0
    %2171 = vmatprep.subr.mxu0 0.0
    %2172 = vmatpush1.msra.mxu0 0.0
    %2173 = vmatprep.subr.mxu0 0.0
    %2174 = vmatpush1.msra.mxu0 0.0
    %2175 = vmatprep.subr.mxu0 0.0
    %2176 = vmatpush1.msra.mxu0 0.0
    %2177 = vmatprep.subr.mxu0 0.0
    %2178 = vmatpush1.msra.mxu0 0.0
    %2179 = vmatprep.subr.mxu0 0.0
    %2180 = vmatpush1.msra.mxu0 0.0
    %2181 = vmatprep.subr.mxu0 0.0
    %2182 = vmatpush1.msra.mxu0 0.0
    %2183 = vmatprep.subr.mxu0 0.0
    %2184 = vmatpush1.msra.mxu0 0.0
    %2185 = vmatprep.subr.mxu0 0.0
    %2186 = vmatpush1.msra.mxu0 0.0
    %2187 = vmatprep.subr.mxu0 0.0
    %2188 = vmatpush1.msra.mxu0 0.0
    %2189 = vmatprep.subr.mxu0 0.0
    %2190 = vmatpush1.msra.mxu0 0.0
    %2191 = vmatprep.subr.mxu0 0.0
    %2192 = vmatpush1.msra.mxu0 0.0
    %2193 = vmatprep.subr.mxu0 0.0
    %2194 = vmatpush1.msra.mxu0 0.0
    %2195 = vmatprep.subr.mxu0 0.0
    %2196 = vmatpush1.msra.mxu0 0.0
    %2197 = vmatprep.subr.mxu0 0.0
    %2198 = vmatpush1.msra.mxu0 0.0
    %2199 = vmatprep.subr.mxu0 0.0
    %2200 = vmatpush1.msra.mxu0 0.0
    %2201 = vmatprep.subr.mxu0 0.0
    %2202 = vmatpush1.msra.mxu0 0.0
    %2203 = vmatprep.subr.mxu0 0.0
    %2204 = vmatpush1.msra.mxu0 0.0
    %2205 = vmatprep.subr.mxu0 0.0
    %2206 = vmatpush1.msra.mxu0 0.0
    %2207 = vmatprep.subr.mxu0 0.0
    %2208 = vmatpush1.msra.mxu0 0.0
    %2209 = vmatprep.mubr.f32.mxu0 0.0
    %2210 = vmatmul.mubr.f32.gmra.mrb[0].mxu0 %v2131
    %v2211 = vpop.f32.mrb[0].mxu0
    %v2212 = vadd.f32 0.0, %v2211
    %v2213 = vpop.f32.mrb[0].mxu0
    %v2214 = vadd.f32 0.0, %v2213
    %2215 = vmatprep.mubr.f32.mxu0 0.0
    %2216 = vmatmul.mubr.f32.gmra.mrb[0].mxu0 %v2133
    %v2217 = vpop.f32.mrb[0].mxu0
    %v2218 = vadd.f32 0.0, %v2217
    %v2219 = vpop.f32.mrb[0].mxu0
    %v2220 = vadd.f32 0.0, %v2219
    %2221 = vmatprep.mubr.f32.mxu0 0.0
    %2222 = vmatmul.mubr.f32.gmra.mrb[0].mxu0 %v2135
    %v2223 = vpop.f32.mrb[0].mxu0
    %v2224 = vadd.f32 0.0, %v2223
    %v2225 = vpop.f32.mrb[0].mxu0
    %v2226 = vadd.f32 0.0, %v2225
    %2227 = vmatprep.mubr.f32.mxu0 0.0
    %2228 = vmatmul.mubr.f32.gmra.mrb[0].mxu0 %v2137
    %v2229 = vpop.f32.mrb[0].mxu0
    %v2230 = vadd.f32 0.0, %v2229
    %v2231 = vpop.f32.mrb[0].mxu0
    %v2232 = vadd.f32 0.0, %v2231
    %2233 = vdwg.mxu0
    %v2234 = vadd.f32 %v2106, %v2212
    %v2235 = vadd.f32 %v2107, %v2214
    %v2236 = vadd.f32 %v2108, %v2218
    %v2237 = vadd.f32 %v2109, %v2220
    %v2238 = vadd.f32 %v2110, %v2224
    %v2239 = vadd.f32 %v2111, %v2226
    %v2240 = vadd.f32 %v2112, %v2230
    %v2241 = vadd.f32 %v2113, %v2232
    %s2242 = scalar_lea.vmem %s1, 960
    %v2243 = vld [vmem:[%s2242] sm:$0xff]
    %v2244 = vld [vmem:[%s2242 + $0x8] sm:$0xff]
    %v2245 = vld [vmem:[%s2242 + $0x10] sm:$0xff]
    %v2246 = vld [vmem:[%s2242 + $0x18] sm:$0xff]
    %v2247 = vld [vmem:[%s2242 + $0x20] sm:$0xff]
    %v2248 = vld [vmem:[%s2242 + $0x28] sm:$0xff]
    %v2249 = vld [vmem:[%s2242 + $0x30] sm:$0xf]
    %v2250 = vld [vmem:[%s2242 + $0x38] sm:$0xf]
    %vm2251 = vcmask 1044480
    %v2252 = vrot.slane %v337, 3
    %v2253 = vrot.slane %v338, 3
    %v2254 = vsel %vm2251, %v2252, %v2253
    %v2255 = vrot.slane %v339, 3
    %v2256 = vsel %vm2251, %v2253, %v2255
    %v2257 = vrot.slane %v340, 3
    %v2258 = vsel %vm2251, %v2255, %v2257
    %v2259 = vsel %vm370, %v2254, 0
    %v2261 = vsel %vm370, %v2256, 0
    %v2263 = vsel %vm370, %v2258, 0
    %v2265 = vsel %vm370, %v2257, 0
    %v2268 = vsel %vm379, %v2249, 0
    %v2271 = vsel %vm379, %v2250, 0
    %2273 = vmatprep.subr.mxu0 %v2244
    %2274 = vmatpush1.msra.mxu0 %v2243
    %2275 = vmatprep.subr.mxu0 %v2246
    %2276 = vmatpush1.msra.mxu0 %v2245
    %2277 = vmatprep.subr.mxu0 %v2248
    %2278 = vmatpush1.msra.mxu0 %v2247
    %2279 = vmatprep.subr.mxu0 %v2271
    %2280 = vmatpush1.msra.mxu0 %v2268
    %2281 = vmatprep.subr.mxu0 0.0
    %2282 = vmatpush1.msra.mxu0 0.0
    %2283 = vmatprep.subr.mxu0 0.0
    %2284 = vmatpush1.msra.mxu0 0.0
    %2285 = vmatprep.subr.mxu0 0.0
    %2286 = vmatpush1.msra.mxu0 0.0
    %2287 = vmatprep.subr.mxu0 0.0
    %2288 = vmatpush1.msra.mxu0 0.0
    %2289 = vmatprep.subr.mxu0 0.0
    %2290 = vmatpush1.msra.mxu0 0.0
    %2291 = vmatprep.subr.mxu0 0.0
    %2292 = vmatpush1.msra.mxu0 0.0
    %2293 = vmatprep.subr.mxu0 0.0
    %2294 = vmatpush1.msra.mxu0 0.0
    %2295 = vmatprep.subr.mxu0 0.0
    %2296 = vmatpush1.msra.mxu0 0.0
    %2297 = vmatprep.subr.mxu0 0.0
    %2298 = vmatpush1.msra.mxu0 0.0
    %2299 = vmatprep.subr.mxu0 0.0
    %2300 = vmatpush1.msra.mxu0 0.0
    %2301 = vmatprep.subr.mxu0 0.0
    %2302 = vmatpush1.msra.mxu0 0.0
    %2303 = vmatprep.subr.mxu0 0.0
    %2304 = vmatpush1.msra.mxu0 0.0
    %2305 = vmatprep.subr.mxu0 0.0
    %2306 = vmatpush1.msra.mxu0 0.0
    %2307 = vmatprep.subr.mxu0 0.0
    %2308 = vmatpush1.msra.mxu0 0.0
    %2309 = vmatprep.subr.mxu0 0.0
    %2310 = vmatpush1.msra.mxu0 0.0
    %2311 = vmatprep.subr.mxu0 0.0
    %2312 = vmatpush1.msra.mxu0 0.0
    %2313 = vmatprep.subr.mxu0 0.0
    %2314 = vmatpush1.msra.mxu0 0.0
    %2315 = vmatprep.subr.mxu0 0.0
    %2316 = vmatpush1.msra.mxu0 0.0
    %2317 = vmatprep.subr.mxu0 0.0
    %2318 = vmatpush1.msra.mxu0 0.0
    %2319 = vmatprep.subr.mxu0 0.0
    %2320 = vmatpush1.msra.mxu0 0.0
    %2321 = vmatprep.subr.mxu0 0.0
    %2322 = vmatpush1.msra.mxu0 0.0
    %2323 = vmatprep.subr.mxu0 0.0
    %2324 = vmatpush1.msra.mxu0 0.0
    %2325 = vmatprep.subr.mxu0 0.0
    %2326 = vmatpush1.msra.mxu0 0.0
    %2327 = vmatprep.subr.mxu0 0.0
    %2328 = vmatpush1.msra.mxu0 0.0
    %2329 = vmatprep.subr.mxu0 0.0
    %2330 = vmatpush1.msra.mxu0 0.0
    %2331 = vmatprep.subr.mxu0 0.0
    %2332 = vmatpush1.msra.mxu0 0.0
    %2333 = vmatprep.subr.mxu0 0.0
    %2334 = vmatpush1.msra.mxu0 0.0
    %2335 = vmatprep.subr.mxu0 0.0
    %2336 = vmatpush1.msra.mxu0 0.0
    %2337 = vmatprep.mubr.f32.mxu0 0.0
    %2338 = vmatmul.mubr.f32.gmra.mrb[0].mxu0 %v2259
    %v2339 = vpop.f32.mrb[0].mxu0
    %v2340 = vadd.f32 0.0, %v2339
    %v2341 = vpop.f32.mrb[0].mxu0
    %v2342 = vadd.f32 0.0, %v2341
    %2343 = vmatprep.mubr.f32.mxu0 0.0
    %2344 = vmatmul.mubr.f32.gmra.mrb[0].mxu0 %v2261
    %v2345 = vpop.f32.mrb[0].mxu0
    %v2346 = vadd.f32 0.0, %v2345
    %v2347 = vpop.f32.mrb[0].mxu0
    %v2348 = vadd.f32 0.0, %v2347
    %2349 = vmatprep.mubr.f32.mxu0 0.0
    %2350 = vmatmul.mubr.f32.gmra.mrb[0].mxu0 %v2263
    %v2351 = vpop.f32.mrb[0].mxu0
    %v2352 = vadd.f32 0.0, %v2351
    %v2353 = vpop.f32.mrb[0].mxu0
    %v2354 = vadd.f32 0.0, %v2353
    %2355 = vmatprep.mubr.f32.mxu0 0.0
    %2356 = vmatmul.mubr.f32.gmra.mrb[0].mxu0 %v2265
    %v2357 = vpop.f32.mrb[0].mxu0
    %v2358 = vadd.f32 0.0, %v2357
    %v2359 = vpop.f32.mrb[0].mxu0
    %v2360 = vadd.f32 0.0, %v2359
    %2361 = vdwg.mxu0
    %v2362 = vadd.f32 %v2234, %v2340
    %v2363 = vadd.f32 %v2235, %v2342
    %v2364 = vadd.f32 %v2236, %v2346
    %v2365 = vadd.f32 %v2237, %v2348
    %v2366 = vadd.f32 %v2238, %v2352
    %v2367 = vadd.f32 %v2239, %v2354
    %v2368 = vadd.f32 %v2240, %v2358
    %v2369 = vadd.f32 %v2241, %v2360
    %s2370 = scalar_lea.vmem %s1, 1024
    %v2371 = vld [vmem:[%s2370] sm:$0xff]
    %v2372 = vld [vmem:[%s2370 + $0x8] sm:$0xff]
    %v2373 = vld [vmem:[%s2370 + $0x10] sm:$0xff]
    %v2374 = vld [vmem:[%s2370 + $0x18] sm:$0xff]
    %v2375 = vld [vmem:[%s2370 + $0x20] sm:$0xff]
    %v2376 = vld [vmem:[%s2370 + $0x28] sm:$0xff]
    %v2377 = vld [vmem:[%s2370 + $0x30] sm:$0xf]
    %v2378 = vld [vmem:[%s2370 + $0x38] sm:$0xf]
    %2379 = vrot.lane.b32.xlu0 %v2254, 127
    %v2380 = vpop.permute.xlu0 %2379
    %2381 = vrot.lane.b32.xlu0 %v2256, 127
    %v2382 = vpop.permute.xlu0 %2381
    %2383 = vrot.lane.b32.xlu0 %v2258, 127
    %v2384 = vpop.permute.xlu0 %2383
    %2385 = vrot.lane.b32.xlu0 %v2257, 127
    %v2386 = vpop.permute.xlu0 %2385
    %v2387 = vsel %vm370, %v2380, 0
    %v2389 = vsel %vm370, %v2382, 0
    %v2391 = vsel %vm370, %v2384, 0
    %v2393 = vsel %vm370, %v2386, 0
    %v2396 = vsel %vm379, %v2377, 0
    %v2399 = vsel %vm379, %v2378, 0
    %2401 = vmatprep.subr.mxu0 %v2372
    %2402 = vmatpush1.msra.mxu0 %v2371
    %2403 = vmatprep.subr.mxu0 %v2374
    %2404 = vmatpush1.msra.mxu0 %v2373
    %2405 = vmatprep.subr.mxu0 %v2376
    %2406 = vmatpush1.msra.mxu0 %v2375
    %2407 = vmatprep.subr.mxu0 %v2399
    %2408 = vmatpush1.msra.mxu0 %v2396
    %2409 = vmatprep.subr.mxu0 0.0
    %2410 = vmatpush1.msra.mxu0 0.0
    %2411 = vmatprep.subr.mxu0 0.0
    %2412 = vmatpush1.msra.mxu0 0.0
    %2413 = vmatprep.subr.mxu0 0.0
    %2414 = vmatpush1.msra.mxu0 0.0
    %2415 = vmatprep.subr.mxu0 0.0
    %2416 = vmatpush1.msra.mxu0 0.0
    %2417 = vmatprep.subr.mxu0 0.0
    %2418 = vmatpush1.msra.mxu0 0.0
    %2419 = vmatprep.subr.mxu0 0.0
    %2420 = vmatpush1.msra.mxu0 0.0
    %2421 = vmatprep.subr.mxu0 0.0
    %2422 = vmatpush1.msra.mxu0 0.0
    %2423 = vmatprep.subr.mxu0 0.0
    %2424 = vmatpush1.msra.mxu0 0.0
    %2425 = vmatprep.subr.mxu0 0.0
    %2426 = vmatpush1.msra.mxu0 0.0
    %2427 = vmatprep.subr.mxu0 0.0
    %2428 = vmatpush1.msra.mxu0 0.0
    %2429 = vmatprep.subr.mxu0 0.0
    %2430 = vmatpush1.msra.mxu0 0.0
    %2431 = vmatprep.subr.mxu0 0.0
    %2432 = vmatpush1.msra.mxu0 0.0
    %2433 = vmatprep.subr.mxu0 0.0
    %2434 = vmatpush1.msra.mxu0 0.0
    %2435 = vmatprep.subr.mxu0 0.0
    %2436 = vmatpush1.msra.mxu0 0.0
    %2437 = vmatprep.subr.mxu0 0.0
    %2438 = vmatpush1.msra.mxu0 0.0
    %2439 = vmatprep.subr.mxu0 0.0
    %2440 = vmatpush1.msra.mxu0 0.0
    %2441 = vmatprep.subr.mxu0 0.0
    %2442 = vmatpush1.msra.mxu0 0.0
    %2443 = vmatprep.subr.mxu0 0.0
    %2444 = vmatpush1.msra.mxu0 0.0
    %2445 = vmatprep.subr.mxu0 0.0
    %2446 = vmatpush1.msra.mxu0 0.0
    %2447 = vmatprep.subr.mxu0 0.0
    %2448 = vmatpush1.msra.mxu0 0.0
    %2449 = vmatprep.subr.mxu0 0.0
    %2450 = vmatpush1.msra.mxu0 0.0
    %2451 = vmatprep.subr.mxu0 0.0
    %2452 = vmatpush1.msra.mxu0 0.0
    %2453 = vmatprep.subr.mxu0 0.0
    %2454 = vmatpush1.msra.mxu0 0.0
    %2455 = vmatprep.subr.mxu0 0.0
    %2456 = vmatpush1.msra.mxu0 0.0
    %2457 = vmatprep.subr.mxu0 0.0
    %2458 = vmatpush1.msra.mxu0 0.0
    %2459 = vmatprep.subr.mxu0 0.0
    %2460 = vmatpush1.msra.mxu0 0.0
    %2461 = vmatprep.subr.mxu0 0.0
    %2462 = vmatpush1.msra.mxu0 0.0
    %2463 = vmatprep.subr.mxu0 0.0
    %2464 = vmatpush1.msra.mxu0 0.0
    %2465 = vmatprep.mubr.f32.mxu0 0.0
    %2466 = vmatmul.mubr.f32.gmra.mrb[0].mxu0 %v2387
    %v2467 = vpop.f32.mrb[0].mxu0
    %v2468 = vadd.f32 0.0, %v2467
    %v2469 = vpop.f32.mrb[0].mxu0
    %v2470 = vadd.f32 0.0, %v2469
    %2471 = vmatprep.mubr.f32.mxu0 0.0
    %2472 = vmatmul.mubr.f32.gmra.mrb[0].mxu0 %v2389
    %v2473 = vpop.f32.mrb[0].mxu0
    %v2474 = vadd.f32 0.0, %v2473
    %v2475 = vpop.f32.mrb[0].mxu0
    %v2476 = vadd.f32 0.0, %v2475
    %2477 = vmatprep.mubr.f32.mxu0 0.0
    %2478 = vmatmul.mubr.f32.gmra.mrb[0].mxu0 %v2391
    %v2479 = vpop.f32.mrb[0].mxu0
    %v2480 = vadd.f32 0.0, %v2479
    %v2481 = vpop.f32.mrb[0].mxu0
    %v2482 = vadd.f32 0.0, %v2481
    %2483 = vmatprep.mubr.f32.mxu0 0.0
    %2484 = vmatmul.mubr.f32.gmra.mrb[0].mxu0 %v2393
    %v2485 = vpop.f32.mrb[0].mxu0
    %v2486 = vadd.f32 0.0, %v2485
    %v2487 = vpop.f32.mrb[0].mxu0
    %v2488 = vadd.f32 0.0, %v2487
    %2489 = vdwg.mxu0
    %v2490 = vadd.f32 %v2362, %v2468
    %v2491 = vadd.f32 %v2363, %v2470
    %v2492 = vadd.f32 %v2364, %v2474
    %v2493 = vadd.f32 %v2365, %v2476
    %v2494 = vadd.f32 %v2366, %v2480
    %v2495 = vadd.f32 %v2367, %v2482
    %v2496 = vadd.f32 %v2368, %v2486
    %v2497 = vadd.f32 %v2369, %v2488
    %s2498 = scalar_lea.vmem %s1, 1088
    %v2499 = vld [vmem:[%s2498] sm:$0xff]
    %v2500 = vld [vmem:[%s2498 + $0x8] sm:$0xff]
    %v2501 = vld [vmem:[%s2498 + $0x10] sm:$0xff]
    %v2502 = vld [vmem:[%s2498 + $0x18] sm:$0xff]
    %v2503 = vld [vmem:[%s2498 + $0x20] sm:$0xff]
    %v2504 = vld [vmem:[%s2498 + $0x28] sm:$0xff]
    %v2505 = vld [vmem:[%s2498 + $0x30] sm:$0xf]
    %v2506 = vld [vmem:[%s2498 + $0x38] sm:$0xf]
    %2507 = vrot.lane.b32.xlu0 %v2254, 126
    %v2508 = vpop.permute.xlu0 %2507
    %2509 = vrot.lane.b32.xlu0 %v2256, 126
    %v2510 = vpop.permute.xlu0 %2509
    %2511 = vrot.lane.b32.xlu0 %v2258, 126
    %v2512 = vpop.permute.xlu0 %2511
    %2513 = vrot.lane.b32.xlu0 %v2257, 126
    %v2514 = vpop.permute.xlu0 %2513
    %v2515 = vsel %vm370, %v2508, 0
    %v2517 = vsel %vm370, %v2510, 0
    %v2519 = vsel %vm370, %v2512, 0
    %v2521 = vsel %vm370, %v2514, 0
    %v2524 = vsel %vm379, %v2505, 0
    %v2527 = vsel %vm379, %v2506, 0
    %2529 = vmatprep.subr.mxu0 %v2500
    %2530 = vmatpush1.msra.mxu0 %v2499
    %2531 = vmatprep.subr.mxu0 %v2502
    %2532 = vmatpush1.msra.mxu0 %v2501
    %2533 = vmatprep.subr.mxu0 %v2504
    %2534 = vmatpush1.msra.mxu0 %v2503
    %2535 = vmatprep.subr.mxu0 %v2527
    %2536 = vmatpush1.msra.mxu0 %v2524
    %2537 = vmatprep.subr.mxu0 0.0
    %2538 = vmatpush1.msra.mxu0 0.0
    %2539 = vmatprep.subr.mxu0 0.0
    %2540 = vmatpush1.msra.mxu0 0.0
    %2541 = vmatprep.subr.mxu0 0.0
    %2542 = vmatpush1.msra.mxu0 0.0
    %2543 = vmatprep.subr.mxu0 0.0
    %2544 = vmatpush1.msra.mxu0 0.0
    %2545 = vmatprep.subr.mxu0 0.0
    %2546 = vmatpush1.msra.mxu0 0.0
    %2547 = vmatprep.subr.mxu0 0.0
    %2548 = vmatpush1.msra.mxu0 0.0
    %2549 = vmatprep.subr.mxu0 0.0
    %2550 = vmatpush1.msra.mxu0 0.0
    %2551 = vmatprep.subr.mxu0 0.0
    %2552 = vmatpush1.msra.mxu0 0.0
    %2553 = vmatprep.subr.mxu0 0.0
    %2554 = vmatpush1.msra.mxu0 0.0
    %2555 = vmatprep.subr.mxu0 0.0
    %2556 = vmatpush1.msra.mxu0 0.0
    %2557 = vmatprep.subr.mxu0 0.0
    %2558 = vmatpush1.msra.mxu0 0.0
    %2559 = vmatprep.subr.mxu0 0.0
    %2560 = vmatpush1.msra.mxu0 0.0
    %2561 = vmatprep.subr.mxu0 0.0
    %2562 = vmatpush1.msra.mxu0 0.0
    %2563 = vmatprep.subr.mxu0 0.0
    %2564 = vmatpush1.msra.mxu0 0.0
    %2565 = vmatprep.subr.mxu0 0.0
    %2566 = vmatpush1.msra.mxu0 0.0
    %2567 = vmatprep.subr.mxu0 0.0
    %2568 = vmatpush1.msra.mxu0 0.0
    %2569 = vmatprep.subr.mxu0 0.0
    %2570 = vmatpush1.msra.mxu0 0.0
    %2571 = vmatprep.subr.mxu0 0.0
    %2572 = vmatpush1.msra.mxu0 0.0
    %2573 = vmatprep.subr.mxu0 0.0
    %2574 = vmatpush1.msra.mxu0 0.0
    %2575 = vmatprep.subr.mxu0 0.0
    %2576 = vmatpush1.msra.mxu0 0.0
    %2577 = vmatprep.subr.mxu0 0.0
    %2578 = vmatpush1.msra.mxu0 0.0
    %2579 = vmatprep.subr.mxu0 0.0
    %2580 = vmatpush1.msra.mxu0 0.0
    %2581 = vmatprep.subr.mxu0 0.0
    %2582 = vmatpush1.msra.mxu0 0.0
    %2583 = vmatprep.subr.mxu0 0.0
    %2584 = vmatpush1.msra.mxu0 0.0
    %2585 = vmatprep.subr.mxu0 0.0
    %2586 = vmatpush1.msra.mxu0 0.0
    %2587 = vmatprep.subr.mxu0 0.0
    %2588 = vmatpush1.msra.mxu0 0.0
    %2589 = vmatprep.subr.mxu0 0.0
    %2590 = vmatpush1.msra.mxu0 0.0
    %2591 = vmatprep.subr.mxu0 0.0
    %2592 = vmatpush1.msra.mxu0 0.0
    %2593 = vmatprep.mubr.f32.mxu0 0.0
    %2594 = vmatmul.mubr.f32.gmra.mrb[0].mxu0 %v2515
    %v2595 = vpop.f32.mrb[0].mxu0
    %v2596 = vadd.f32 0.0, %v2595
    %v2597 = vpop.f32.mrb[0].mxu0
    %v2598 = vadd.f32 0.0, %v2597
    %2599 = vmatprep.mubr.f32.mxu0 0.0
    %2600 = vmatmul.mubr.f32.gmra.mrb[0].mxu0 %v2517
    %v2601 = vpop.f32.mrb[0].mxu0
    %v2602 = vadd.f32 0.0, %v2601
    %v2603 = vpop.f32.mrb[0].mxu0
    %v2604 = vadd.f32 0.0, %v2603
    %2605 = vmatprep.mubr.f32.mxu0 0.0
    %2606 = vmatmul.mubr.f32.gmra.mrb[0].mxu0 %v2519
    %v2607 = vpop.f32.mrb[0].mxu0
    %v2608 = vadd.f32 0.0, %v2607
    %v2609 = vpop.f32.mrb[0].mxu0
    %v2610 = vadd.f32 0.0, %v2609
    %2611 = vmatprep.mubr.f32.mxu0 0.0
    %2612 = vmatmul.mubr.f32.gmra.mrb[0].mxu0 %v2521
    %v2613 = vpop.f32.mrb[0].mxu0
    %v2614 = vadd.f32 0.0, %v2613
    %v2615 = vpop.f32.mrb[0].mxu0
    %v2616 = vadd.f32 0.0, %v2615
    %2617 = vdwg.mxu0
    %v2618 = vadd.f32 %v2490, %v2596
    %v2619 = vadd.f32 %v2491, %v2598
    %v2620 = vadd.f32 %v2492, %v2602
    %v2621 = vadd.f32 %v2493, %v2604
    %v2622 = vadd.f32 %v2494, %v2608
    %v2623 = vadd.f32 %v2495, %v2610
    %v2624 = vadd.f32 %v2496, %v2614
    %v2625 = vadd.f32 %v2497, %v2616
    %s2626 = scalar_lea.vmem %s1, 1152
    %v2627 = vld [vmem:[%s2626] sm:$0xff]
    %v2628 = vld [vmem:[%s2626 + $0x8] sm:$0xff]
    %v2629 = vld [vmem:[%s2626 + $0x10] sm:$0xff]
    %v2630 = vld [vmem:[%s2626 + $0x18] sm:$0xff]
    %v2631 = vld [vmem:[%s2626 + $0x20] sm:$0xff]
    %v2632 = vld [vmem:[%s2626 + $0x28] sm:$0xff]
    %v2633 = vld [vmem:[%s2626 + $0x30] sm:$0xf]
    %v2634 = vld [vmem:[%s2626 + $0x38] sm:$0xf]
    %2635 = vrot.lane.b32.xlu0 %v2254, 125
    %v2636 = vpop.permute.xlu0 %2635
    %2637 = vrot.lane.b32.xlu0 %v2256, 125
    %v2638 = vpop.permute.xlu0 %2637
    %2639 = vrot.lane.b32.xlu0 %v2258, 125
    %v2640 = vpop.permute.xlu0 %2639
    %2641 = vrot.lane.b32.xlu0 %v2257, 125
    %v2642 = vpop.permute.xlu0 %2641
    %v2643 = vsel %vm370, %v2636, 0
    %v2645 = vsel %vm370, %v2638, 0
    %v2647 = vsel %vm370, %v2640, 0
    %v2649 = vsel %vm370, %v2642, 0
    %v2652 = vsel %vm379, %v2633, 0
    %v2655 = vsel %vm379, %v2634, 0
    %2657 = vmatprep.subr.mxu0 %v2628
    %2658 = vmatpush1.msra.mxu0 %v2627
    %2659 = vmatprep.subr.mxu0 %v2630
    %2660 = vmatpush1.msra.mxu0 %v2629
    %2661 = vmatprep.subr.mxu0 %v2632
    %2662 = vmatpush1.msra.mxu0 %v2631
    %2663 = vmatprep.subr.mxu0 %v2655
    %2664 = vmatpush1.msra.mxu0 %v2652
    %2665 = vmatprep.subr.mxu0 0.0
    %2666 = vmatpush1.msra.mxu0 0.0
    %2667 = vmatprep.subr.mxu0 0.0
    %2668 = vmatpush1.msra.mxu0 0.0
    %2669 = vmatprep.subr.mxu0 0.0
    %2670 = vmatpush1.msra.mxu0 0.0
    %2671 = vmatprep.subr.mxu0 0.0
    %2672 = vmatpush1.msra.mxu0 0.0
    %2673 = vmatprep.subr.mxu0 0.0
    %2674 = vmatpush1.msra.mxu0 0.0
    %2675 = vmatprep.subr.mxu0 0.0
    %2676 = vmatpush1.msra.mxu0 0.0
    %2677 = vmatprep.subr.mxu0 0.0
    %2678 = vmatpush1.msra.mxu0 0.0
    %2679 = vmatprep.subr.mxu0 0.0
    %2680 = vmatpush1.msra.mxu0 0.0
    %2681 = vmatprep.subr.mxu0 0.0
    %2682 = vmatpush1.msra.mxu0 0.0
    %2683 = vmatprep.subr.mxu0 0.0
    %2684 = vmatpush1.msra.mxu0 0.0
    %2685 = vmatprep.subr.mxu0 0.0
    %2686 = vmatpush1.msra.mxu0 0.0
    %2687 = vmatprep.subr.mxu0 0.0
    %2688 = vmatpush1.msra.mxu0 0.0
    %2689 = vmatprep.subr.mxu0 0.0
    %2690 = vmatpush1.msra.mxu0 0.0
    %2691 = vmatprep.subr.mxu0 0.0
    %2692 = vmatpush1.msra.mxu0 0.0
    %2693 = vmatprep.subr.mxu0 0.0
    %2694 = vmatpush1.msra.mxu0 0.0
    %2695 = vmatprep.subr.mxu0 0.0
    %2696 = vmatpush1.msra.mxu0 0.0
    %2697 = vmatprep.subr.mxu0 0.0
    %2698 = vmatpush1.msra.mxu0 0.0
    %2699 = vmatprep.subr.mxu0 0.0
    %2700 = vmatpush1.msra.mxu0 0.0
    %2701 = vmatprep.subr.mxu0 0.0
    %2702 = vmatpush1.msra.mxu0 0.0
    %2703 = vmatprep.subr.mxu0 0.0
    %2704 = vmatpush1.msra.mxu0 0.0
    %2705 = vmatprep.subr.mxu0 0.0
    %2706 = vmatpush1.msra.mxu0 0.0
    %2707 = vmatprep.subr.mxu0 0.0
    %2708 = vmatpush1.msra.mxu0 0.0
    %2709 = vmatprep.subr.mxu0 0.0
    %2710 = vmatpush1.msra.mxu0 0.0
    %2711 = vmatprep.subr.mxu0 0.0
    %2712 = vmatpush1.msra.mxu0 0.0
    %2713 = vmatprep.subr.mxu0 0.0
    %2714 = vmatpush1.msra.mxu0 0.0
    %2715 = vmatprep.subr.mxu0 0.0
    %2716 = vmatpush1.msra.mxu0 0.0
    %2717 = vmatprep.subr.mxu0 0.0
    %2718 = vmatpush1.msra.mxu0 0.0
    %2719 = vmatprep.subr.mxu0 0.0
    %2720 = vmatpush1.msra.mxu0 0.0
    %2721 = vmatprep.mubr.f32.mxu0 0.0
    %2722 = vmatmul.mubr.f32.gmra.mrb[0].mxu0 %v2643
    %v2723 = vpop.f32.mrb[0].mxu0
    %v2724 = vadd.f32 0.0, %v2723
    %v2725 = vpop.f32.mrb[0].mxu0
    %v2726 = vadd.f32 0.0, %v2725
    %2727 = vmatprep.mubr.f32.mxu0 0.0
    %2728 = vmatmul.mubr.f32.gmra.mrb[0].mxu0 %v2645
    %v2729 = vpop.f32.mrb[0].mxu0
    %v2730 = vadd.f32 0.0, %v2729
    %v2731 = vpop.f32.mrb[0].mxu0
    %v2732 = vadd.f32 0.0, %v2731
    %2733 = vmatprep.mubr.f32.mxu0 0.0
    %2734 = vmatmul.mubr.f32.gmra.mrb[0].mxu0 %v2647
    %v2735 = vpop.f32.mrb[0].mxu0
    %v2736 = vadd.f32 0.0, %v2735
    %v2737 = vpop.f32.mrb[0].mxu0
    %v2738 = vadd.f32 0.0, %v2737
    %2739 = vmatprep.mubr.f32.mxu0 0.0
    %2740 = vmatmul.mubr.f32.gmra.mrb[0].mxu0 %v2649
    %v2741 = vpop.f32.mrb[0].mxu0
    %v2742 = vadd.f32 0.0, %v2741
    %v2743 = vpop.f32.mrb[0].mxu0
    %v2744 = vadd.f32 0.0, %v2743
    %2745 = vdwg.mxu0
    %v2746 = vadd.f32 %v2618, %v2724
    %v2747 = vadd.f32 %v2619, %v2726
    %v2748 = vadd.f32 %v2620, %v2730
    %v2749 = vadd.f32 %v2621, %v2732
    %v2750 = vadd.f32 %v2622, %v2736
    %v2751 = vadd.f32 %v2623, %v2738
    %v2752 = vadd.f32 %v2624, %v2742
    %v2753 = vadd.f32 %v2625, %v2744
    %s2754 = scalar_lea.vmem %s1, 1216
    %v2755 = vld [vmem:[%s2754] sm:$0xff]
    %v2756 = vld [vmem:[%s2754 + $0x8] sm:$0xff]
    %v2757 = vld [vmem:[%s2754 + $0x10] sm:$0xff]
    %v2758 = vld [vmem:[%s2754 + $0x18] sm:$0xff]
    %v2759 = vld [vmem:[%s2754 + $0x20] sm:$0xff]
    %v2760 = vld [vmem:[%s2754 + $0x28] sm:$0xff]
    %v2761 = vld [vmem:[%s2754 + $0x30] sm:$0xf]
    %v2762 = vld [vmem:[%s2754 + $0x38] sm:$0xf]
    %2763 = vrot.lane.b32.xlu0 %v2254, 124
    %v2764 = vpop.permute.xlu0 %2763
    %2765 = vrot.lane.b32.xlu0 %v2256, 124
    %v2766 = vpop.permute.xlu0 %2765
    %2767 = vrot.lane.b32.xlu0 %v2258, 124
    %v2768 = vpop.permute.xlu0 %2767
    %2769 = vrot.lane.b32.xlu0 %v2257, 124
    %v2770 = vpop.permute.xlu0 %2769
    %v2771 = vsel %vm370, %v2764, 0
    %v2773 = vsel %vm370, %v2766, 0
    %v2775 = vsel %vm370, %v2768, 0
    %v2777 = vsel %vm370, %v2770, 0
    %v2780 = vsel %vm379, %v2761, 0
    %v2783 = vsel %vm379, %v2762, 0
    %2785 = vmatprep.subr.mxu0 %v2756
    %2786 = vmatpush1.msra.mxu0 %v2755
    %2787 = vmatprep.subr.mxu0 %v2758
    %2788 = vmatpush1.msra.mxu0 %v2757
    %2789 = vmatprep.subr.mxu0 %v2760
    %2790 = vmatpush1.msra.mxu0 %v2759
    %2791 = vmatprep.subr.mxu0 %v2783
    %2792 = vmatpush1.msra.mxu0 %v2780
    %2793 = vmatprep.subr.mxu0 0.0
    %2794 = vmatpush1.msra.mxu0 0.0
    %2795 = vmatprep.subr.mxu0 0.0
    %2796 = vmatpush1.msra.mxu0 0.0
    %2797 = vmatprep.subr.mxu0 0.0
    %2798 = vmatpush1.msra.mxu0 0.0
    %2799 = vmatprep.subr.mxu0 0.0
    %2800 = vmatpush1.msra.mxu0 0.0
    %2801 = vmatprep.subr.mxu0 0.0
    %2802 = vmatpush1.msra.mxu0 0.0
    %2803 = vmatprep.subr.mxu0 0.0
    %2804 = vmatpush1.msra.mxu0 0.0
    %2805 = vmatprep.subr.mxu0 0.0
    %2806 = vmatpush1.msra.mxu0 0.0
    %2807 = vmatprep.subr.mxu0 0.0
    %2808 = vmatpush1.msra.mxu0 0.0
    %2809 = vmatprep.subr.mxu0 0.0
    %2810 = vmatpush1.msra.mxu0 0.0
    %2811 = vmatprep.subr.mxu0 0.0
    %2812 = vmatpush1.msra.mxu0 0.0
    %2813 = vmatprep.subr.mxu0 0.0
    %2814 = vmatpush1.msra.mxu0 0.0
    %2815 = vmatprep.subr.mxu0 0.0
    %2816 = vmatpush1.msra.mxu0 0.0
    %2817 = vmatprep.subr.mxu0 0.0
    %2818 = vmatpush1.msra.mxu0 0.0
    %2819 = vmatprep.subr.mxu0 0.0
    %2820 = vmatpush1.msra.mxu0 0.0
    %2821 = vmatprep.subr.mxu0 0.0
    %2822 = vmatpush1.msra.mxu0 0.0
    %2823 = vmatprep.subr.mxu0 0.0
    %2824 = vmatpush1.msra.mxu0 0.0
    %2825 = vmatprep.subr.mxu0 0.0
    %2826 = vmatpush1.msra.mxu0 0.0
    %2827 = vmatprep.subr.mxu0 0.0
    %2828 = vmatpush1.msra.mxu0 0.0
    %2829 = vmatprep.subr.mxu0 0.0
    %2830 = vmatpush1.msra.mxu0 0.0
    %2831 = vmatprep.subr.mxu0 0.0
    %2832 = vmatpush1.msra.mxu0 0.0
    %2833 = vmatprep.subr.mxu0 0.0
    %2834 = vmatpush1.msra.mxu0 0.0
    %2835 = vmatprep.subr.mxu0 0.0
    %2836 = vmatpush1.msra.mxu0 0.0
    %2837 = vmatprep.subr.mxu0 0.0
    %2838 = vmatpush1.msra.mxu0 0.0
    %2839 = vmatprep.subr.mxu0 0.0
    %2840 = vmatpush1.msra.mxu0 0.0
    %2841 = vmatprep.subr.mxu0 0.0
    %2842 = vmatpush1.msra.mxu0 0.0
    %2843 = vmatprep.subr.mxu0 0.0
    %2844 = vmatpush1.msra.mxu0 0.0
    %2845 = vmatprep.subr.mxu0 0.0
    %2846 = vmatpush1.msra.mxu0 0.0
    %2847 = vmatprep.subr.mxu0 0.0
    %2848 = vmatpush1.msra.mxu0 0.0
    %2849 = vmatprep.mubr.f32.mxu0 0.0
    %2850 = vmatmul.mubr.f32.gmra.mrb[0].mxu0 %v2771
    %v2851 = vpop.f32.mrb[0].mxu0
    %v2852 = vadd.f32 0.0, %v2851
    %v2853 = vpop.f32.mrb[0].mxu0
    %v2854 = vadd.f32 0.0, %v2853
    %2855 = vmatprep.mubr.f32.mxu0 0.0
    %2856 = vmatmul.mubr.f32.gmra.mrb[0].mxu0 %v2773
    %v2857 = vpop.f32.mrb[0].mxu0
    %v2858 = vadd.f32 0.0, %v2857
    %v2859 = vpop.f32.mrb[0].mxu0
    %v2860 = vadd.f32 0.0, %v2859
    %2861 = vmatprep.mubr.f32.mxu0 0.0
    %2862 = vmatmul.mubr.f32.gmra.mrb[0].mxu0 %v2775
    %v2863 = vpop.f32.mrb[0].mxu0
    %v2864 = vadd.f32 0.0, %v2863
    %v2865 = vpop.f32.mrb[0].mxu0
    %v2866 = vadd.f32 0.0, %v2865
    %2867 = vmatprep.mubr.f32.mxu0 0.0
    %2868 = vmatmul.mubr.f32.gmra.mrb[0].mxu0 %v2777
    %v2869 = vpop.f32.mrb[0].mxu0
    %v2870 = vadd.f32 0.0, %v2869
    %v2871 = vpop.f32.mrb[0].mxu0
    %v2872 = vadd.f32 0.0, %v2871
    %2873 = vdwg.mxu0
    %v2874 = vadd.f32 %v2746, %v2852
    %v2875 = vadd.f32 %v2747, %v2854
    %v2876 = vadd.f32 %v2748, %v2858
    %v2877 = vadd.f32 %v2749, %v2860
    %v2878 = vadd.f32 %v2750, %v2864
    %v2879 = vadd.f32 %v2751, %v2866
    %v2880 = vadd.f32 %v2752, %v2870
    %v2881 = vadd.f32 %v2753, %v2872
    %s2882 = scalar_lea.vmem %s1, 1280
    %v2883 = vld [vmem:[%s2882] sm:$0xff]
    %v2884 = vld [vmem:[%s2882 + $0x8] sm:$0xff]
    %v2885 = vld [vmem:[%s2882 + $0x10] sm:$0xff]
    %v2886 = vld [vmem:[%s2882 + $0x18] sm:$0xff]
    %v2887 = vld [vmem:[%s2882 + $0x20] sm:$0xff]
    %v2888 = vld [vmem:[%s2882 + $0x28] sm:$0xff]
    %v2889 = vld [vmem:[%s2882 + $0x30] sm:$0xf]
    %v2890 = vld [vmem:[%s2882 + $0x38] sm:$0xf]
    %v2891 = vrot.slane %v337, 4
    %v2892 = vrot.slane %v338, 4
    %v2893 = vsel %vm379, %v2891, %v2892
    %v2894 = vrot.slane %v339, 4
    %v2895 = vsel %vm379, %v2892, %v2894
    %v2896 = vrot.slane %v340, 4
    %v2897 = vsel %vm379, %v2894, %v2896
    %v2898 = vsel %vm370, %v2893, 0
    %v2900 = vsel %vm370, %v2895, 0
    %v2902 = vsel %vm370, %v2897, 0
    %v2904 = vsel %vm370, %v2896, 0
    %v2907 = vsel %vm379, %v2889, 0
    %v2910 = vsel %vm379, %v2890, 0
    %2912 = vmatprep.subr.mxu0 %v2884
    %2913 = vmatpush1.msra.mxu0 %v2883
    %2914 = vmatprep.subr.mxu0 %v2886
    %2915 = vmatpush1.msra.mxu0 %v2885
    %2916 = vmatprep.subr.mxu0 %v2888
    %2917 = vmatpush1.msra.mxu0 %v2887
    %2918 = vmatprep.subr.mxu0 %v2910
    %2919 = vmatpush1.msra.mxu0 %v2907
    %2920 = vmatprep.subr.mxu0 0.0
    %2921 = vmatpush1.msra.mxu0 0.0
    %2922 = vmatprep.subr.mxu0 0.0
    %2923 = vmatpush1.msra.mxu0 0.0
    %2924 = vmatprep.subr.mxu0 0.0
    %2925 = vmatpush1.msra.mxu0 0.0
    %2926 = vmatprep.subr.mxu0 0.0
    %2927 = vmatpush1.msra.mxu0 0.0
    %2928 = vmatprep.subr.mxu0 0.0
    %2929 = vmatpush1.msra.mxu0 0.0
    %2930 = vmatprep.subr.mxu0 0.0
    %2931 = vmatpush1.msra.mxu0 0.0
    %2932 = vmatprep.subr.mxu0 0.0
    %2933 = vmatpush1.msra.mxu0 0.0
    %2934 = vmatprep.subr.mxu0 0.0
    %2935 = vmatpush1.msra.mxu0 0.0
    %2936 = vmatprep.subr.mxu0 0.0
    %2937 = vmatpush1.msra.mxu0 0.0
    %2938 = vmatprep.subr.mxu0 0.0
    %2939 = vmatpush1.msra.mxu0 0.0
    %2940 = vmatprep.subr.mxu0 0.0
    %2941 = vmatpush1.msra.mxu0 0.0
    %2942 = vmatprep.subr.mxu0 0.0
    %2943 = vmatpush1.msra.mxu0 0.0
    %2944 = vmatprep.subr.mxu0 0.0
    %2945 = vmatpush1.msra.mxu0 0.0
    %2946 = vmatprep.subr.mxu0 0.0
    %2947 = vmatpush1.msra.mxu0 0.0
    %2948 = vmatprep.subr.mxu0 0.0
    %2949 = vmatpush1.msra.mxu0 0.0
    %2950 = vmatprep.subr.mxu0 0.0
    %2951 = vmatpush1.msra.mxu0 0.0
    %2952 = vmatprep.subr.mxu0 0.0
    %2953 = vmatpush1.msra.mxu0 0.0
    %2954 = vmatprep.subr.mxu0 0.0
    %2955 = vmatpush1.msra.mxu0 0.0
    %2956 = vmatprep.subr.mxu0 0.0
    %2957 = vmatpush1.msra.mxu0 0.0
    %2958 = vmatprep.subr.mxu0 0.0
    %2959 = vmatpush1.msra.mxu0 0.0
    %2960 = vmatprep.subr.mxu0 0.0
    %2961 = vmatpush1.msra.mxu0 0.0
    %2962 = vmatprep.subr.mxu0 0.0
    %2963 = vmatpush1.msra.mxu0 0.0
    %2964 = vmatprep.subr.mxu0 0.0
    %2965 = vmatpush1.msra.mxu0 0.0
    %2966 = vmatprep.subr.mxu0 0.0
    %2967 = vmatpush1.msra.mxu0 0.0
    %2968 = vmatprep.subr.mxu0 0.0
    %2969 = vmatpush1.msra.mxu0 0.0
    %2970 = vmatprep.subr.mxu0 0.0
    %2971 = vmatpush1.msra.mxu0 0.0
    %2972 = vmatprep.subr.mxu0 0.0
    %2973 = vmatpush1.msra.mxu0 0.0
    %2974 = vmatprep.subr.mxu0 0.0
    %2975 = vmatpush1.msra.mxu0 0.0
    %2976 = vmatprep.mubr.f32.mxu0 0.0
    %2977 = vmatmul.mubr.f32.gmra.mrb[0].mxu0 %v2898
    %v2978 = vpop.f32.mrb[0].mxu0
    %v2979 = vadd.f32 0.0, %v2978
    %v2980 = vpop.f32.mrb[0].mxu0
    %v2981 = vadd.f32 0.0, %v2980
    %2982 = vmatprep.mubr.f32.mxu0 0.0
    %2983 = vmatmul.mubr.f32.gmra.mrb[0].mxu0 %v2900
    %v2984 = vpop.f32.mrb[0].mxu0
    %v2985 = vadd.f32 0.0, %v2984
    %v2986 = vpop.f32.mrb[0].mxu0
    %v2987 = vadd.f32 0.0, %v2986
    %2988 = vmatprep.mubr.f32.mxu0 0.0
    %2989 = vmatmul.mubr.f32.gmra.mrb[0].mxu0 %v2902
    %v2990 = vpop.f32.mrb[0].mxu0
    %v2991 = vadd.f32 0.0, %v2990
    %v2992 = vpop.f32.mrb[0].mxu0
    %v2993 = vadd.f32 0.0, %v2992
    %2994 = vmatprep.mubr.f32.mxu0 0.0
    %2995 = vmatmul.mubr.f32.gmra.mrb[0].mxu0 %v2904
    %v2996 = vpop.f32.mrb[0].mxu0
    %v2997 = vadd.f32 0.0, %v2996
    %v2998 = vpop.f32.mrb[0].mxu0
    %v2999 = vadd.f32 0.0, %v2998
    %3000 = vdwg.mxu0
    %v3001 = vadd.f32 %v2874, %v2979
    %v3002 = vadd.f32 %v2875, %v2981
    %v3003 = vadd.f32 %v2876, %v2985
    %v3004 = vadd.f32 %v2877, %v2987
    %v3005 = vadd.f32 %v2878, %v2991
    %v3006 = vadd.f32 %v2879, %v2993
    %v3007 = vadd.f32 %v2880, %v2997
    %v3008 = vadd.f32 %v2881, %v2999
    %s3009 = scalar_lea.vmem %s1, 1344
    %v3010 = vld [vmem:[%s3009] sm:$0xff]
    %v3011 = vld [vmem:[%s3009 + $0x8] sm:$0xff]
    %v3012 = vld [vmem:[%s3009 + $0x10] sm:$0xff]
    %v3013 = vld [vmem:[%s3009 + $0x18] sm:$0xff]
    %v3014 = vld [vmem:[%s3009 + $0x20] sm:$0xff]
    %v3015 = vld [vmem:[%s3009 + $0x28] sm:$0xff]
    %v3016 = vld [vmem:[%s3009 + $0x30] sm:$0xf]
    %v3017 = vld [vmem:[%s3009 + $0x38] sm:$0xf]
    %3018 = vrot.lane.b32.xlu0 %v2893, 127
    %v3019 = vpop.permute.xlu0 %3018
    %3020 = vrot.lane.b32.xlu0 %v2895, 127
    %v3021 = vpop.permute.xlu0 %3020
    %3022 = vrot.lane.b32.xlu0 %v2897, 127
    %v3023 = vpop.permute.xlu0 %3022
    %3024 = vrot.lane.b32.xlu0 %v2896, 127
    %v3025 = vpop.permute.xlu0 %3024
    %v3026 = vsel %vm370, %v3019, 0
    %v3028 = vsel %vm370, %v3021, 0
    %v3030 = vsel %vm370, %v3023, 0
    %v3032 = vsel %vm370, %v3025, 0
    %v3035 = vsel %vm379, %v3016, 0
    %v3038 = vsel %vm379, %v3017, 0
    %3040 = vmatprep.subr.mxu0 %v3011
    %3041 = vmatpush1.msra.mxu0 %v3010
    %3042 = vmatprep.subr.mxu0 %v3013
    %3043 = vmatpush1.msra.mxu0 %v3012
    %3044 = vmatprep.subr.mxu0 %v3015
    %3045 = vmatpush1.msra.mxu0 %v3014
    %3046 = vmatprep.subr.mxu0 %v3038
    %3047 = vmatpush1.msra.mxu0 %v3035
    %3048 = vmatprep.subr.mxu0 0.0
    %3049 = vmatpush1.msra.mxu0 0.0
    %3050 = vmatprep.subr.mxu0 0.0
    %3051 = vmatpush1.msra.mxu0 0.0
    %3052 = vmatprep.subr.mxu0 0.0
    %3053 = vmatpush1.msra.mxu0 0.0
    %3054 = vmatprep.subr.mxu0 0.0
    %3055 = vmatpush1.msra.mxu0 0.0
    %3056 = vmatprep.subr.mxu0 0.0
    %3057 = vmatpush1.msra.mxu0 0.0
    %3058 = vmatprep.subr.mxu0 0.0
    %3059 = vmatpush1.msra.mxu0 0.0
    %3060 = vmatprep.subr.mxu0 0.0
    %3061 = vmatpush1.msra.mxu0 0.0
    %3062 = vmatprep.subr.mxu0 0.0
    %3063 = vmatpush1.msra.mxu0 0.0
    %3064 = vmatprep.subr.mxu0 0.0
    %3065 = vmatpush1.msra.mxu0 0.0
    %3066 = vmatprep.subr.mxu0 0.0
    %3067 = vmatpush1.msra.mxu0 0.0
    %3068 = vmatprep.subr.mxu0 0.0
    %3069 = vmatpush1.msra.mxu0 0.0
    %3070 = vmatprep.subr.mxu0 0.0
    %3071 = vmatpush1.msra.mxu0 0.0
    %3072 = vmatprep.subr.mxu0 0.0
    %3073 = vmatpush1.msra.mxu0 0.0
    %3074 = vmatprep.subr.mxu0 0.0
    %3075 = vmatpush1.msra.mxu0 0.0
    %3076 = vmatprep.subr.mxu0 0.0
    %3077 = vmatpush1.msra.mxu0 0.0
    %3078 = vmatprep.subr.mxu0 0.0
    %3079 = vmatpush1.msra.mxu0 0.0
    %3080 = vmatprep.subr.mxu0 0.0
    %3081 = vmatpush1.msra.mxu0 0.0
    %3082 = vmatprep.subr.mxu0 0.0
    %3083 = vmatpush1.msra.mxu0 0.0
    %3084 = vmatprep.subr.mxu0 0.0
    %3085 = vmatpush1.msra.mxu0 0.0
    %3086 = vmatprep.subr.mxu0 0.0
    %3087 = vmatpush1.msra.mxu0 0.0
    %3088 = vmatprep.subr.mxu0 0.0
    %3089 = vmatpush1.msra.mxu0 0.0
    %3090 = vmatprep.subr.mxu0 0.0
    %3091 = vmatpush1.msra.mxu0 0.0
    %3092 = vmatprep.subr.mxu0 0.0
    %3093 = vmatpush1.msra.mxu0 0.0
    %3094 = vmatprep.subr.mxu0 0.0
    %3095 = vmatpush1.msra.mxu0 0.0
    %3096 = vmatprep.subr.mxu0 0.0
    %3097 = vmatpush1.msra.mxu0 0.0
    %3098 = vmatprep.subr.mxu0 0.0
    %3099 = vmatpush1.msra.mxu0 0.0
    %3100 = vmatprep.subr.mxu0 0.0
    %3101 = vmatpush1.msra.mxu0 0.0
    %3102 = vmatprep.subr.mxu0 0.0
    %3103 = vmatpush1.msra.mxu0 0.0
    %3104 = vmatprep.mubr.f32.mxu0 0.0
    %3105 = vmatmul.mubr.f32.gmra.mrb[0].mxu0 %v3026
    %v3106 = vpop.f32.mrb[0].mxu0
    %v3107 = vadd.f32 0.0, %v3106
    %v3108 = vpop.f32.mrb[0].mxu0
    %v3109 = vadd.f32 0.0, %v3108
    %3110 = vmatprep.mubr.f32.mxu0 0.0
    %3111 = vmatmul.mubr.f32.gmra.mrb[0].mxu0 %v3028
    %v3112 = vpop.f32.mrb[0].mxu0
    %v3113 = vadd.f32 0.0, %v3112
    %v3114 = vpop.f32.mrb[0].mxu0
    %v3115 = vadd.f32 0.0, %v3114
    %3116 = vmatprep.mubr.f32.mxu0 0.0
    %3117 = vmatmul.mubr.f32.gmra.mrb[0].mxu0 %v3030
    %v3118 = vpop.f32.mrb[0].mxu0
    %v3119 = vadd.f32 0.0, %v3118
    %v3120 = vpop.f32.mrb[0].mxu0
    %v3121 = vadd.f32 0.0, %v3120
    %3122 = vmatprep.mubr.f32.mxu0 0.0
    %3123 = vmatmul.mubr.f32.gmra.mrb[0].mxu0 %v3032
    %v3124 = vpop.f32.mrb[0].mxu0
    %v3125 = vadd.f32 0.0, %v3124
    %v3126 = vpop.f32.mrb[0].mxu0
    %v3127 = vadd.f32 0.0, %v3126
    %3128 = vdwg.mxu0
    %v3129 = vadd.f32 %v3001, %v3107
    %v3130 = vadd.f32 %v3002, %v3109
    %v3131 = vadd.f32 %v3003, %v3113
    %v3132 = vadd.f32 %v3004, %v3115
    %v3133 = vadd.f32 %v3005, %v3119
    %v3134 = vadd.f32 %v3006, %v3121
    %v3135 = vadd.f32 %v3007, %v3125
    %v3136 = vadd.f32 %v3008, %v3127
    %s3137 = scalar_lea.vmem %s1, 1408
    %v3138 = vld [vmem:[%s3137] sm:$0xff]
    %v3139 = vld [vmem:[%s3137 + $0x8] sm:$0xff]
    %v3140 = vld [vmem:[%s3137 + $0x10] sm:$0xff]
    %v3141 = vld [vmem:[%s3137 + $0x18] sm:$0xff]
    %v3142 = vld [vmem:[%s3137 + $0x20] sm:$0xff]
    %v3143 = vld [vmem:[%s3137 + $0x28] sm:$0xff]
    %v3144 = vld [vmem:[%s3137 + $0x30] sm:$0xf]
    %v3145 = vld [vmem:[%s3137 + $0x38] sm:$0xf]
    %3146 = vrot.lane.b32.xlu0 %v2893, 126
    %v3147 = vpop.permute.xlu0 %3146
    %3148 = vrot.lane.b32.xlu0 %v2895, 126
    %v3149 = vpop.permute.xlu0 %3148
    %3150 = vrot.lane.b32.xlu0 %v2897, 126
    %v3151 = vpop.permute.xlu0 %3150
    %3152 = vrot.lane.b32.xlu0 %v2896, 126
    %v3153 = vpop.permute.xlu0 %3152
    %v3154 = vsel %vm370, %v3147, 0
    %v3156 = vsel %vm370, %v3149, 0
    %v3158 = vsel %vm370, %v3151, 0
    %v3160 = vsel %vm370, %v3153, 0
    %v3163 = vsel %vm379, %v3144, 0
    %v3166 = vsel %vm379, %v3145, 0
    %3168 = vmatprep.subr.mxu0 %v3139
    %3169 = vmatpush1.msra.mxu0 %v3138
    %3170 = vmatprep.subr.mxu0 %v3141
    %3171 = vmatpush1.msra.mxu0 %v3140
    %3172 = vmatprep.subr.mxu0 %v3143
    %3173 = vmatpush1.msra.mxu0 %v3142
    %3174 = vmatprep.subr.mxu0 %v3166
    %3175 = vmatpush1.msra.mxu0 %v3163
    %3176 = vmatprep.subr.mxu0 0.0
    %3177 = vmatpush1.msra.mxu0 0.0
    %3178 = vmatprep.subr.mxu0 0.0
    %3179 = vmatpush1.msra.mxu0 0.0
    %3180 = vmatprep.subr.mxu0 0.0
    %3181 = vmatpush1.msra.mxu0 0.0
    %3182 = vmatprep.subr.mxu0 0.0
    %3183 = vmatpush1.msra.mxu0 0.0
    %3184 = vmatprep.subr.mxu0 0.0
    %3185 = vmatpush1.msra.mxu0 0.0
    %3186 = vmatprep.subr.mxu0 0.0
    %3187 = vmatpush1.msra.mxu0 0.0
    %3188 = vmatprep.subr.mxu0 0.0
    %3189 = vmatpush1.msra.mxu0 0.0
    %3190 = vmatprep.subr.mxu0 0.0
    %3191 = vmatpush1.msra.mxu0 0.0
    %3192 = vmatprep.subr.mxu0 0.0
    %3193 = vmatpush1.msra.mxu0 0.0
    %3194 = vmatprep.subr.mxu0 0.0
    %3195 = vmatpush1.msra.mxu0 0.0
    %3196 = vmatprep.subr.mxu0 0.0
    %3197 = vmatpush1.msra.mxu0 0.0
    %3198 = vmatprep.subr.mxu0 0.0
    %3199 = vmatpush1.msra.mxu0 0.0
    %3200 = vmatprep.subr.mxu0 0.0
    %3201 = vmatpush1.msra.mxu0 0.0
    %3202 = vmatprep.subr.mxu0 0.0
    %3203 = vmatpush1.msra.mxu0 0.0
    %3204 = vmatprep.subr.mxu0 0.0
    %3205 = vmatpush1.msra.mxu0 0.0
    %3206 = vmatprep.subr.mxu0 0.0
    %3207 = vmatpush1.msra.mxu0 0.0
    %3208 = vmatprep.subr.mxu0 0.0
    %3209 = vmatpush1.msra.mxu0 0.0
    %3210 = vmatprep.subr.mxu0 0.0
    %3211 = vmatpush1.msra.mxu0 0.0
    %3212 = vmatprep.subr.mxu0 0.0
    %3213 = vmatpush1.msra.mxu0 0.0
    %3214 = vmatprep.subr.mxu0 0.0
    %3215 = vmatpush1.msra.mxu0 0.0
    %3216 = vmatprep.subr.mxu0 0.0
    %3217 = vmatpush1.msra.mxu0 0.0
    %3218 = vmatprep.subr.mxu0 0.0
    %3219 = vmatpush1.msra.mxu0 0.0
    %3220 = vmatprep.subr.mxu0 0.0
    %3221 = vmatpush1.msra.mxu0 0.0
    %3222 = vmatprep.subr.mxu0 0.0
    %3223 = vmatpush1.msra.mxu0 0.0
    %3224 = vmatprep.subr.mxu0 0.0
    %3225 = vmatpush1.msra.mxu0 0.0
    %3226 = vmatprep.subr.mxu0 0.0
    %3227 = vmatpush1.msra.mxu0 0.0
    %3228 = vmatprep.subr.mxu0 0.0
    %3229 = vmatpush1.msra.mxu0 0.0
    %3230 = vmatprep.subr.mxu0 0.0
    %3231 = vmatpush1.msra.mxu0 0.0
    %3232 = vmatprep.mubr.f32.mxu0 0.0
    %3233 = vmatmul.mubr.f32.gmra.mrb[0].mxu0 %v3154
    %v3234 = vpop.f32.mrb[0].mxu0
    %v3235 = vadd.f32 0.0, %v3234
    %v3236 = vpop.f32.mrb[0].mxu0
    %v3237 = vadd.f32 0.0, %v3236
    %3238 = vmatprep.mubr.f32.mxu0 0.0
    %3239 = vmatmul.mubr.f32.gmra.mrb[0].mxu0 %v3156
    %v3240 = vpop.f32.mrb[0].mxu0
    %v3241 = vadd.f32 0.0, %v3240
    %v3242 = vpop.f32.mrb[0].mxu0
    %v3243 = vadd.f32 0.0, %v3242
    %3244 = vmatprep.mubr.f32.mxu0 0.0
    %3245 = vmatmul.mubr.f32.gmra.mrb[0].mxu0 %v3158
    %v3246 = vpop.f32.mrb[0].mxu0
    %v3247 = vadd.f32 0.0, %v3246
    %v3248 = vpop.f32.mrb[0].mxu0
    %v3249 = vadd.f32 0.0, %v3248
    %3250 = vmatprep.mubr.f32.mxu0 0.0
    %3251 = vmatmul.mubr.f32.gmra.mrb[0].mxu0 %v3160
    %v3252 = vpop.f32.mrb[0].mxu0
    %v3253 = vadd.f32 0.0, %v3252
    %v3254 = vpop.f32.mrb[0].mxu0
    %v3255 = vadd.f32 0.0, %v3254
    %3256 = vdwg.mxu0
    %v3257 = vadd.f32 %v3129, %v3235
    %v3258 = vadd.f32 %v3130, %v3237
    %v3259 = vadd.f32 %v3131, %v3241
    %v3260 = vadd.f32 %v3132, %v3243
    %v3261 = vadd.f32 %v3133, %v3247
    %v3262 = vadd.f32 %v3134, %v3249
    %v3263 = vadd.f32 %v3135, %v3253
    %v3264 = vadd.f32 %v3136, %v3255
    %s3265 = scalar_lea.vmem %s1, 1472
    %v3266 = vld [vmem:[%s3265] sm:$0xff]
    %v3267 = vld [vmem:[%s3265 + $0x8] sm:$0xff]
    %v3268 = vld [vmem:[%s3265 + $0x10] sm:$0xff]
    %v3269 = vld [vmem:[%s3265 + $0x18] sm:$0xff]
    %v3270 = vld [vmem:[%s3265 + $0x20] sm:$0xff]
    %v3271 = vld [vmem:[%s3265 + $0x28] sm:$0xff]
    %v3272 = vld [vmem:[%s3265 + $0x30] sm:$0xf]
    %v3273 = vld [vmem:[%s3265 + $0x38] sm:$0xf]
    %3274 = vrot.lane.b32.xlu0 %v2893, 125
    %v3275 = vpop.permute.xlu0 %3274
    %3276 = vrot.lane.b32.xlu0 %v2895, 125
    %v3277 = vpop.permute.xlu0 %3276
    %3278 = vrot.lane.b32.xlu0 %v2897, 125
    %v3279 = vpop.permute.xlu0 %3278
    %3280 = vrot.lane.b32.xlu0 %v2896, 125
    %v3281 = vpop.permute.xlu0 %3280
    %v3282 = vsel %vm370, %v3275, 0
    %v3284 = vsel %vm370, %v3277, 0
    %v3286 = vsel %vm370, %v3279, 0
    %v3288 = vsel %vm370, %v3281, 0
    %v3291 = vsel %vm379, %v3272, 0
    %v3294 = vsel %vm379, %v3273, 0
    %3296 = vmatprep.subr.mxu0 %v3267
    %3297 = vmatpush1.msra.mxu0 %v3266
    %3298 = vmatprep.subr.mxu0 %v3269
    %3299 = vmatpush1.msra.mxu0 %v3268
    %3300 = vmatprep.subr.mxu0 %v3271
    %3301 = vmatpush1.msra.mxu0 %v3270
    %3302 = vmatprep.subr.mxu0 %v3294
    %3303 = vmatpush1.msra.mxu0 %v3291
    %3304 = vmatprep.subr.mxu0 0.0
    %3305 = vmatpush1.msra.mxu0 0.0
    %3306 = vmatprep.subr.mxu0 0.0
    %3307 = vmatpush1.msra.mxu0 0.0
    %3308 = vmatprep.subr.mxu0 0.0
    %3309 = vmatpush1.msra.mxu0 0.0
    %3310 = vmatprep.subr.mxu0 0.0
    %3311 = vmatpush1.msra.mxu0 0.0
    %3312 = vmatprep.subr.mxu0 0.0
    %3313 = vmatpush1.msra.mxu0 0.0
    %3314 = vmatprep.subr.mxu0 0.0
    %3315 = vmatpush1.msra.mxu0 0.0
    %3316 = vmatprep.subr.mxu0 0.0
    %3317 = vmatpush1.msra.mxu0 0.0
    %3318 = vmatprep.subr.mxu0 0.0
    %3319 = vmatpush1.msra.mxu0 0.0
    %3320 = vmatprep.subr.mxu0 0.0
    %3321 = vmatpush1.msra.mxu0 0.0
    %3322 = vmatprep.subr.mxu0 0.0
    %3323 = vmatpush1.msra.mxu0 0.0
    %3324 = vmatprep.subr.mxu0 0.0
    %3325 = vmatpush1.msra.mxu0 0.0
    %3326 = vmatprep.subr.mxu0 0.0
    %3327 = vmatpush1.msra.mxu0 0.0
    %3328 = vmatprep.subr.mxu0 0.0
    %3329 = vmatpush1.msra.mxu0 0.0
    %3330 = vmatprep.subr.mxu0 0.0
    %3331 = vmatpush1.msra.mxu0 0.0
    %3332 = vmatprep.subr.mxu0 0.0
    %3333 = vmatpush1.msra.mxu0 0.0
    %3334 = vmatprep.subr.mxu0 0.0
    %3335 = vmatpush1.msra.mxu0 0.0
    %3336 = vmatprep.subr.mxu0 0.0
    %3337 = vmatpush1.msra.mxu0 0.0
    %3338 = vmatprep.subr.mxu0 0.0
    %3339 = vmatpush1.msra.mxu0 0.0
    %3340 = vmatprep.subr.mxu0 0.0
    %3341 = vmatpush1.msra.mxu0 0.0
    %3342 = vmatprep.subr.mxu0 0.0
    %3343 = vmatpush1.msra.mxu0 0.0
    %3344 = vmatprep.subr.mxu0 0.0
    %3345 = vmatpush1.msra.mxu0 0.0
    %3346 = vmatprep.subr.mxu0 0.0
    %3347 = vmatpush1.msra.mxu0 0.0
    %3348 = vmatprep.subr.mxu0 0.0
    %3349 = vmatpush1.msra.mxu0 0.0
    %3350 = vmatprep.subr.mxu0 0.0
    %3351 = vmatpush1.msra.mxu0 0.0
    %3352 = vmatprep.subr.mxu0 0.0
    %3353 = vmatpush1.msra.mxu0 0.0
    %3354 = vmatprep.subr.mxu0 0.0
    %3355 = vmatpush1.msra.mxu0 0.0
    %3356 = vmatprep.subr.mxu0 0.0
    %3357 = vmatpush1.msra.mxu0 0.0
    %3358 = vmatprep.subr.mxu0 0.0
    %3359 = vmatpush1.msra.mxu0 0.0
    %3360 = vmatprep.mubr.f32.mxu0 0.0
    %3361 = vmatmul.mubr.f32.gmra.mrb[0].mxu0 %v3282
    %v3362 = vpop.f32.mrb[0].mxu0
    %v3363 = vadd.f32 0.0, %v3362
    %v3364 = vpop.f32.mrb[0].mxu0
    %v3365 = vadd.f32 0.0, %v3364
    %3366 = vmatprep.mubr.f32.mxu0 0.0
    %3367 = vmatmul.mubr.f32.gmra.mrb[0].mxu0 %v3284
    %v3368 = vpop.f32.mrb[0].mxu0
    %v3369 = vadd.f32 0.0, %v3368
    %v3370 = vpop.f32.mrb[0].mxu0
    %v3371 = vadd.f32 0.0, %v3370
    %3372 = vmatprep.mubr.f32.mxu0 0.0
    %3373 = vmatmul.mubr.f32.gmra.mrb[0].mxu0 %v3286
    %v3374 = vpop.f32.mrb[0].mxu0
    %v3375 = vadd.f32 0.0, %v3374
    %v3376 = vpop.f32.mrb[0].mxu0
    %v3377 = vadd.f32 0.0, %v3376
    %3378 = vmatprep.mubr.f32.mxu0 0.0
    %3379 = vmatmul.mubr.f32.gmra.mrb[0].mxu0 %v3288
    %v3380 = vpop.f32.mrb[0].mxu0
    %v3381 = vadd.f32 0.0, %v3380
    %v3382 = vpop.f32.mrb[0].mxu0
    %v3383 = vadd.f32 0.0, %v3382
    %3384 = vdwg.mxu0
    %v3385 = vadd.f32 %v3257, %v3363
    %v3386 = vadd.f32 %v3258, %v3365
    %v3387 = vadd.f32 %v3259, %v3369
    %v3388 = vadd.f32 %v3260, %v3371
    %v3389 = vadd.f32 %v3261, %v3375
    %v3390 = vadd.f32 %v3262, %v3377
    %v3391 = vadd.f32 %v3263, %v3381
    %v3392 = vadd.f32 %v3264, %v3383
    %s3393 = scalar_lea.vmem %s1, 1536
    %v3394 = vld [vmem:[%s3393] sm:$0xff]
    %v3395 = vld [vmem:[%s3393 + $0x8] sm:$0xff]
    %v3396 = vld [vmem:[%s3393 + $0x10] sm:$0xff]
    %v3397 = vld [vmem:[%s3393 + $0x18] sm:$0xff]
    %v3398 = vld [vmem:[%s3393 + $0x20] sm:$0xff]
    %v3399 = vld [vmem:[%s3393 + $0x28] sm:$0xff]
    %v3400 = vld [vmem:[%s3393 + $0x30] sm:$0xf]
    %v3401 = vld [vmem:[%s3393 + $0x38] sm:$0xf]
    %3402 = vrot.lane.b32.xlu0 %v2893, 124
    %v3403 = vpop.permute.xlu0 %3402
    %3404 = vrot.lane.b32.xlu0 %v2895, 124
    %v3405 = vpop.permute.xlu0 %3404
    %3406 = vrot.lane.b32.xlu0 %v2897, 124
    %v3407 = vpop.permute.xlu0 %3406
    %3408 = vrot.lane.b32.xlu0 %v2896, 124
    %v3409 = vpop.permute.xlu0 %3408
    %v3410 = vsel %vm370, %v3403, 0
    %v3412 = vsel %vm370, %v3405, 0
    %v3414 = vsel %vm370, %v3407, 0
    %v3416 = vsel %vm370, %v3409, 0
    %v3419 = vsel %vm379, %v3400, 0
    %v3422 = vsel %vm379, %v3401, 0
    %3424 = vmatprep.subr.mxu0 %v3395
    %3425 = vmatpush1.msra.mxu0 %v3394
    %3426 = vmatprep.subr.mxu0 %v3397
    %3427 = vmatpush1.msra.mxu0 %v3396
    %3428 = vmatprep.subr.mxu0 %v3399
    %3429 = vmatpush1.msra.mxu0 %v3398
    %3430 = vmatprep.subr.mxu0 %v3422
    %3431 = vmatpush1.msra.mxu0 %v3419
    %3432 = vmatprep.subr.mxu0 0.0
    %3433 = vmatpush1.msra.mxu0 0.0
    %3434 = vmatprep.subr.mxu0 0.0
    %3435 = vmatpush1.msra.mxu0 0.0
    %3436 = vmatprep.subr.mxu0 0.0
    %3437 = vmatpush1.msra.mxu0 0.0
    %3438 = vmatprep.subr.mxu0 0.0
    %3439 = vmatpush1.msra.mxu0 0.0
    %3440 = vmatprep.subr.mxu0 0.0
    %3441 = vmatpush1.msra.mxu0 0.0
    %3442 = vmatprep.subr.mxu0 0.0
    %3443 = vmatpush1.msra.mxu0 0.0
    %3444 = vmatprep.subr.mxu0 0.0
    %3445 = vmatpush1.msra.mxu0 0.0
    %3446 = vmatprep.subr.mxu0 0.0
    %3447 = vmatpush1.msra.mxu0 0.0
    %3448 = vmatprep.subr.mxu0 0.0
    %3449 = vmatpush1.msra.mxu0 0.0
    %3450 = vmatprep.subr.mxu0 0.0
    %3451 = vmatpush1.msra.mxu0 0.0
    %3452 = vmatprep.subr.mxu0 0.0
    %3453 = vmatpush1.msra.mxu0 0.0
    %3454 = vmatprep.subr.mxu0 0.0
    %3455 = vmatpush1.msra.mxu0 0.0
    %3456 = vmatprep.subr.mxu0 0.0
    %3457 = vmatpush1.msra.mxu0 0.0
    %3458 = vmatprep.subr.mxu0 0.0
    %3459 = vmatpush1.msra.mxu0 0.0
    %3460 = vmatprep.subr.mxu0 0.0
    %3461 = vmatpush1.msra.mxu0 0.0
    %3462 = vmatprep.subr.mxu0 0.0
    %3463 = vmatpush1.msra.mxu0 0.0
    %3464 = vmatprep.subr.mxu0 0.0
    %3465 = vmatpush1.msra.mxu0 0.0
    %3466 = vmatprep.subr.mxu0 0.0
    %3467 = vmatpush1.msra.mxu0 0.0
    %3468 = vmatprep.subr.mxu0 0.0
    %3469 = vmatpush1.msra.mxu0 0.0
    %3470 = vmatprep.subr.mxu0 0.0
    %3471 = vmatpush1.msra.mxu0 0.0
    %3472 = vmatprep.subr.mxu0 0.0
    %3473 = vmatpush1.msra.mxu0 0.0
    %3474 = vmatprep.subr.mxu0 0.0
    %3475 = vmatpush1.msra.mxu0 0.0
    %3476 = vmatprep.subr.mxu0 0.0
    %3477 = vmatpush1.msra.mxu0 0.0
    %3478 = vmatprep.subr.mxu0 0.0
    %3479 = vmatpush1.msra.mxu0 0.0
    %3480 = vmatprep.subr.mxu0 0.0
    %3481 = vmatpush1.msra.mxu0 0.0
    %3482 = vmatprep.subr.mxu0 0.0
    %3483 = vmatpush1.msra.mxu0 0.0
    %3484 = vmatprep.subr.mxu0 0.0
    %3485 = vmatpush1.msra.mxu0 0.0
    %3486 = vmatprep.subr.mxu0 0.0
    %3487 = vmatpush1.msra.mxu0 0.0
    %3488 = vmatprep.mubr.f32.mxu0 0.0
    %3489 = vmatmul.mubr.f32.gmra.mrb[0].mxu0 %v3410
    %v3490 = vpop.f32.mrb[0].mxu0
    %v3491 = vadd.f32 0.0, %v3490
    %v3492 = vpop.f32.mrb[0].mxu0
    %v3493 = vadd.f32 0.0, %v3492
    %3494 = vmatprep.mubr.f32.mxu0 0.0
    %3495 = vmatmul.mubr.f32.gmra.mrb[0].mxu0 %v3412
    %v3496 = vpop.f32.mrb[0].mxu0
    %v3497 = vadd.f32 0.0, %v3496
    %v3498 = vpop.f32.mrb[0].mxu0
    %v3499 = vadd.f32 0.0, %v3498
    %3500 = vmatprep.mubr.f32.mxu0 0.0
    %3501 = vmatmul.mubr.f32.gmra.mrb[0].mxu0 %v3414
    %v3502 = vpop.f32.mrb[0].mxu0
    %v3503 = vadd.f32 0.0, %v3502
    %v3504 = vpop.f32.mrb[0].mxu0
    %v3505 = vadd.f32 0.0, %v3504
    %3506 = vmatprep.mubr.f32.mxu0 0.0
    %3507 = vmatmul.mubr.f32.gmra.mrb[0].mxu0 %v3416
    %v3508 = vpop.f32.mrb[0].mxu0
    %v3509 = vadd.f32 0.0, %v3508
    %v3510 = vpop.f32.mrb[0].mxu0
    %v3511 = vadd.f32 0.0, %v3510
    %3512 = vdwg.mxu0
    %v3513 = vadd.f32 %v3385, %v3491
    %v3514 = vadd.f32 %v3386, %v3493
    %v3515 = vadd.f32 %v3387, %v3497
    %v3516 = vadd.f32 %v3388, %v3499
    %v3517 = vadd.f32 %v3389, %v3503
    %v3518 = vadd.f32 %v3390, %v3505
    %v3519 = vadd.f32 %v3391, %v3509
    %v3520 = vadd.f32 %v3392, %v3511
    %v3521 = vld [vmem:[%s2] sm:$0x3]
    %v3523 = vlaneseq
    %v3524 = vshrl.u32 %v3523, 7
    %v3525 = vsub.s32 0, %v3524
    %v3526 = vrot.slane %v3521, %v3525
    %v3527 = vlaneseq
    %v3528 = vshrl.u32 %v3527, 7
    %v3529 = vsub.s32 1, %v3528
    %v3530 = vrot.slane %v3521, %v3529
    %v3533 = vadd.f32 %v3513, %v3526
    %v3534 = vadd.f32 %v3514, %v3530
    %v3535 = vadd.f32 %v3515, %v3526
    %v3536 = vadd.f32 %v3516, %v3530
    %v3537 = vadd.f32 %v3517, %v3526
    %v3538 = vadd.f32 %v3518, %v3530
    %v3539 = vadd.f32 %v3519, %v3526
    %v3540 = vadd.f32 %v3520, %v3530
    %v3541 = vmax.f32 %v3533, 0.0
    %v3542 = vmax.f32 %v3534, 0.0
    %v3543 = vmax.f32 %v3535, 0.0
    %v3544 = vmax.f32 %v3536, 0.0
    %v3545 = vmax.f32 %v3537, 0.0
    %v3546 = vmax.f32 %v3538, 0.0
    %v3547 = vmax.f32 %v3539, 0.0
    %v3548 = vmax.f32 %v3540, 0.0
    %v3550 = vsel %vm370, %v49, 0
    %v3553 = vsel %vm370, %v50, 0
    %v3556 = vsel %vm379, %v3547, 0
    %v3559 = vsel %vm379, %v3548, 0
    %3561 = vmatprep.subr.mxu0 %v3542
    %3562 = vmatpush1.msra.mxu0 %v3541
    %3563 = vmatprep.subr.mxu0 %v3544
    %3564 = vmatpush1.msra.mxu0 %v3543
    %3565 = vmatprep.subr.mxu0 %v3546
    %3566 = vmatpush1.msra.mxu0 %v3545
    %3567 = vmatprep.subr.mxu0 %v3559
    %3568 = vmatpush1.msra.mxu0 %v3556
    %3569 = vmatprep.subr.mxu0 0.0
    %3570 = vmatpush1.msra.mxu0 0.0
    %3571 = vmatprep.subr.mxu0 0.0
    %3572 = vmatpush1.msra.mxu0 0.0
    %3573 = vmatprep.subr.mxu0 0.0
    %3574 = vmatpush1.msra.mxu0 0.0
    %3575 = vmatprep.subr.mxu0 0.0
    %3576 = vmatpush1.msra.mxu0 0.0
    %3577 = vmatprep.subr.mxu0 0.0
    %3578 = vmatpush1.msra.mxu0 0.0
    %3579 = vmatprep.subr.mxu0 0.0
    %3580 = vmatpush1.msra.mxu0 0.0
    %3581 = vmatprep.subr.mxu0 0.0
    %3582 = vmatpush1.msra.mxu0 0.0
    %3583 = vmatprep.subr.mxu0 0.0
    %3584 = vmatpush1.msra.mxu0 0.0
    %3585 = vmatprep.subr.mxu0 0.0
    %3586 = vmatpush1.msra.mxu0 0.0
    %3587 = vmatprep.subr.mxu0 0.0
    %3588 = vmatpush1.msra.mxu0 0.0
    %3589 = vmatprep.subr.mxu0 0.0
    %3590 = vmatpush1.msra.mxu0 0.0
    %3591 = vmatprep.subr.mxu0 0.0
    %3592 = vmatpush1.msra.mxu0 0.0
    %3593 = vmatprep.subr.mxu0 0.0
    %3594 = vmatpush1.msra.mxu0 0.0
    %3595 = vmatprep.subr.mxu0 0.0
    %3596 = vmatpush1.msra.mxu0 0.0
    %3597 = vmatprep.subr.mxu0 0.0
    %3598 = vmatpush1.msra.mxu0 0.0
    %3599 = vmatprep.subr.mxu0 0.0
    %3600 = vmatpush1.msra.mxu0 0.0
    %3601 = vmatprep.subr.mxu0 0.0
    %3602 = vmatpush1.msra.mxu0 0.0
    %3603 = vmatprep.subr.mxu0 0.0
    %3604 = vmatpush1.msra.mxu0 0.0
    %3605 = vmatprep.subr.mxu0 0.0
    %3606 = vmatpush1.msra.mxu0 0.0
    %3607 = vmatprep.subr.mxu0 0.0
    %3608 = vmatpush1.msra.mxu0 0.0
    %3609 = vmatprep.subr.mxu0 0.0
    %3610 = vmatpush1.msra.mxu0 0.0
    %3611 = vmatprep.subr.mxu0 0.0
    %3612 = vmatpush1.msra.mxu0 0.0
    %3613 = vmatprep.subr.mxu0 0.0
    %3614 = vmatpush1.msra.mxu0 0.0
    %3615 = vmatprep.subr.mxu0 0.0
    %3616 = vmatpush1.msra.mxu0 0.0
    %3617 = vmatprep.subr.mxu0 0.0
    %3618 = vmatpush1.msra.mxu0 0.0
    %3619 = vmatprep.subr.mxu0 0.0
    %3620 = vmatpush1.msra.mxu0 0.0
    %3621 = vmatprep.subr.mxu0 0.0
    %3622 = vmatpush1.msra.mxu0 0.0
    %3623 = vmatprep.subr.mxu0 0.0
    %3624 = vmatpush1.msra.mxu0 0.0
    %3625 = vmatprep.mubr.f32.mxu0 0.0
    %3626 = vmatmul.mubr.f32.gmra.mrb[0].mxu0 %v3550
    %v3627 = vpop.f32.mrb[0].mxu0
    %v3628 = vadd.f32 0.0, %v3627
    %v3629 = vpop.f32.mrb[0].mxu0
    %v3630 = vadd.f32 0.0, %v3629
    %3631 = vmatprep.mubr.f32.mxu0 0.0
    %3632 = vmatmul.mubr.f32.gmra.mrb[0].mxu0 %v3553
    %v3633 = vpop.f32.mrb[0].mxu0
    %v3634 = vadd.f32 0.0, %v3633
    %v3635 = vpop.f32.mrb[0].mxu0
    %v3636 = vadd.f32 0.0, %v3635
    %3637 = vdwg.mxu0
    %v3639 = vsel %vm370, %v57, 0
    %v3642 = vsel %vm370, %v58, 0
    %3644 = vmatprep.subr.mxu0 %v3542
    %3645 = vmatpush1.msra.mxu0 %v3541
    %3646 = vmatprep.subr.mxu0 %v3544
    %3647 = vmatpush1.msra.mxu0 %v3543
    %3648 = vmatprep.subr.mxu0 %v3546
    %3649 = vmatpush1.msra.mxu0 %v3545
    %3650 = vmatprep.subr.mxu0 %v3559
    %3651 = vmatpush1.msra.mxu0 %v3556
    %3652 = vmatprep.subr.mxu0 0.0
    %3653 = vmatpush1.msra.mxu0 0.0
    %3654 = vmatprep.subr.mxu0 0.0
    %3655 = vmatpush1.msra.mxu0 0.0
    %3656 = vmatprep.subr.mxu0 0.0
    %3657 = vmatpush1.msra.mxu0 0.0
    %3658 = vmatprep.subr.mxu0 0.0
    %3659 = vmatpush1.msra.mxu0 0.0
    %3660 = vmatprep.subr.mxu0 0.0
    %3661 = vmatpush1.msra.mxu0 0.0
    %3662 = vmatprep.subr.mxu0 0.0
    %3663 = vmatpush1.msra.mxu0 0.0
    %3664 = vmatprep.subr.mxu0 0.0
    %3665 = vmatpush1.msra.mxu0 0.0
    %3666 = vmatprep.subr.mxu0 0.0
    %3667 = vmatpush1.msra.mxu0 0.0
    %3668 = vmatprep.subr.mxu0 0.0
    %3669 = vmatpush1.msra.mxu0 0.0
    %3670 = vmatprep.subr.mxu0 0.0
    %3671 = vmatpush1.msra.mxu0 0.0
    %3672 = vmatprep.subr.mxu0 0.0
    %3673 = vmatpush1.msra.mxu0 0.0
    %3674 = vmatprep.subr.mxu0 0.0
    %3675 = vmatpush1.msra.mxu0 0.0
    %3676 = vmatprep.subr.mxu0 0.0
    %3677 = vmatpush1.msra.mxu0 0.0
    %3678 = vmatprep.subr.mxu0 0.0
    %3679 = vmatpush1.msra.mxu0 0.0
    %3680 = vmatprep.subr.mxu0 0.0
    %3681 = vmatpush1.msra.mxu0 0.0
    %3682 = vmatprep.subr.mxu0 0.0
    %3683 = vmatpush1.msra.mxu0 0.0
    %3684 = vmatprep.subr.mxu0 0.0
    %3685 = vmatpush1.msra.mxu0 0.0
    %3686 = vmatprep.subr.mxu0 0.0
    %3687 = vmatpush1.msra.mxu0 0.0
    %3688 = vmatprep.subr.mxu0 0.0
    %3689 = vmatpush1.msra.mxu0 0.0
    %3690 = vmatprep.subr.mxu0 0.0
    %3691 = vmatpush1.msra.mxu0 0.0
    %3692 = vmatprep.subr.mxu0 0.0
    %3693 = vmatpush1.msra.mxu0 0.0
    %3694 = vmatprep.subr.mxu0 0.0
    %3695 = vmatpush1.msra.mxu0 0.0
    %3696 = vmatprep.subr.mxu0 0.0
    %3697 = vmatpush1.msra.mxu0 0.0
    %3698 = vmatprep.subr.mxu0 0.0
    %3699 = vmatpush1.msra.mxu0 0.0
    %3700 = vmatprep.subr.mxu0 0.0
    %3701 = vmatpush1.msra.mxu0 0.0
    %3702 = vmatprep.subr.mxu0 0.0
    %3703 = vmatpush1.msra.mxu0 0.0
    %3704 = vmatprep.subr.mxu0 0.0
    %3705 = vmatpush1.msra.mxu0 0.0
    %3706 = vmatprep.subr.mxu0 0.0
    %3707 = vmatpush1.msra.mxu0 0.0
    %3708 = vmatprep.mubr.f32.mxu0 0.0
    %3709 = vmatmul.mubr.f32.gmra.mrb[0].mxu0 %v3639
    %v3710 = vpop.f32.mrb[0].mxu0
    %v3711 = vadd.f32 0.0, %v3710
    %v3712 = vpop.f32.mrb[0].mxu0
    %v3713 = vadd.f32 0.0, %v3712
    %3714 = vmatprep.mubr.f32.mxu0 0.0
    %3715 = vmatmul.mubr.f32.gmra.mrb[0].mxu0 %v3642
    %v3716 = vpop.f32.mrb[0].mxu0
    %v3717 = vadd.f32 0.0, %v3716
    %v3718 = vpop.f32.mrb[0].mxu0
    %v3719 = vadd.f32 0.0, %v3718
    %3720 = vdwg.mxu0
    %v3721 = vmax.f32 %v3628, %v3711
    %v3722 = vmax.f32 %v3630, %v3713
    %v3723 = vmax.f32 %v3634, %v3717
    %v3724 = vmax.f32 %v3636, %v3719
    %vm3725 = vcmask 326656
    %v3727 = vsel %vm3725, %v3722, 0
    %v3730 = vsel %vm3725, %v3724, 0
    %3732 = vmatprep.subr.mxu0 %v166
    %3733 = vmatpush1.msra.mxu0 %v165
    %3734 = vmatprep.subr.mxu0 %v168
    %3735 = vmatpush1.msra.mxu0 %v167
    %3736 = vmatprep.subr.mxu0 %v170
    %3737 = vmatpush1.msra.mxu0 %v169
    %3738 = vmatprep.subr.mxu0 %v172
    %3739 = vmatpush1.msra.mxu0 %v171
    %3740 = vmatprep.subr.mxu0 %v174
    %3741 = vmatpush1.msra.mxu0 %v173
    %3742 = vmatprep.subr.mxu0 %v176
    %3743 = vmatpush1.msra.mxu0 %v175
    %3744 = vmatprep.subr.mxu0 %v178
    %3745 = vmatpush1.msra.mxu0 %v177
    %3746 = vmatprep.subr.mxu0 %v180
    %3747 = vmatpush1.msra.mxu0 %v179
    %3748 = vmatprep.subr.mxu0 %v182
    %3749 = vmatpush1.msra.mxu0 %v181
    %3750 = vmatprep.subr.mxu0 %v184
    %3751 = vmatpush1.msra.mxu0 %v183
    %3752 = vmatprep.subr.mxu0 %v186
    %3753 = vmatpush1.msra.mxu0 %v185
    %3754 = vmatprep.subr.mxu0 %v188
    %3755 = vmatpush1.msra.mxu0 %v187
    %3756 = vmatprep.subr.mxu0 %v190
    %3757 = vmatpush1.msra.mxu0 %v189
    %3758 = vmatprep.subr.mxu0 %v192
    %3759 = vmatpush1.msra.mxu0 %v191
    %3760 = vmatprep.subr.mxu0 %v194
    %3761 = vmatpush1.msra.mxu0 %v193
    %3762 = vmatprep.subr.mxu0 %v196
    %3763 = vmatpush1.msra.mxu0 %v195
    %3764 = vmatprep.subr.mxu0 %v198
    %3765 = vmatpush1.msra.mxu0 %v197
    %3766 = vmatprep.subr.mxu0 %v200
    %3767 = vmatpush1.msra.mxu0 %v199
    %3768 = vmatprep.subr.mxu0 %v202
    %3769 = vmatpush1.msra.mxu0 %v201
    %3770 = vmatprep.subr.mxu0 %v204
    %3771 = vmatpush1.msra.mxu0 %v203
    %3772 = vmatprep.subr.mxu0 %v206
    %3773 = vmatpush1.msra.mxu0 %v205
    %3774 = vmatprep.subr.mxu0 0.0
    %3775 = vmatpush1.msra.mxu0 0.0
    %3776 = vmatprep.subr.mxu0 0.0
    %3777 = vmatpush1.msra.mxu0 0.0
    %3778 = vmatprep.subr.mxu0 0.0
    %3779 = vmatpush1.msra.mxu0 0.0
    %3780 = vmatprep.subr.mxu0 0.0
    %3781 = vmatpush1.msra.mxu0 0.0
    %3782 = vmatprep.subr.mxu0 0.0
    %3783 = vmatpush1.msra.mxu0 0.0
    %3784 = vmatprep.subr.mxu0 0.0
    %3785 = vmatpush1.msra.mxu0 0.0
    %3786 = vmatprep.subr.mxu0 0.0
    %3787 = vmatpush1.msra.mxu0 0.0
    %3788 = vmatprep.subr.mxu0 0.0
    %3789 = vmatpush1.msra.mxu0 0.0
    %3790 = vmatprep.subr.mxu0 0.0
    %3791 = vmatpush1.msra.mxu0 0.0
    %3792 = vmatprep.subr.mxu0 0.0
    %3793 = vmatpush1.msra.mxu0 0.0
    %3794 = vmatprep.subr.mxu0 0.0
    %3795 = vmatpush1.msra.mxu0 0.0
    %3796 = vmatprep.mubr.f32.mxu0 %v3727
    %3797 = vmatmul.mubr.f32.gmra.mrb[0].mxu0 %v3721
    %v3798 = vpop.f32.mrb[0].mxu0
    %v3799 = vadd.f32 0.0, %v3798
    %v3800 = vpop.f32.mrb[0].mxu0
    %v3801 = vadd.f32 0.0, %v3800
    %3802 = vmatprep.mubr.f32.mxu0 %v3730
    %3803 = vmatmul.mubr.f32.gmra.mrb[0].mxu0 %v3723
    %v3804 = vpop.f32.mrb[0].mxu0
    %v3805 = vadd.f32 0.0, %v3804
    %v3806 = vpop.f32.mrb[0].mxu0
    %v3807 = vadd.f32 0.0, %v3806
    %3808 = vdwg.mxu0
    %v3809 = vmax.f32 %v3721, %v3799
    %v3810 = vmax.f32 %v3722, %v3801
    %v3811 = vmax.f32 %v3723, %v3805
    %v3812 = vmax.f32 %v3724, %v3807
    %v3813 = vld [vmem:[%s3] sm:$0xff]
    %v3814 = vld [vmem:[%s3 + $0x8] sm:$0xff]
    %v3815 = vld [vmem:[%s3 + $0x10] sm:$0xff]
    %v3816 = vld [vmem:[%s3 + $0x18] sm:$0xff]
    %v3817 = vld [vmem:[%s3 + $0x20] sm:$0xff]
    %v3818 = vld [vmem:[%s3 + $0x28] sm:$0xff]
    %v3819 = vld [vmem:[%s3 + $0x30] sm:$0xff]
    %v3820 = vld [vmem:[%s3 + $0x38] sm:$0xff]
    %v3821 = vld [vmem:[%s3 + $0x40] sm:$0xff]
    %v3822 = vld [vmem:[%s3 + $0x48] sm:$0xff]
    %v3823 = vld [vmem:[%s3 + $0x50] sm:$0xff]
    %v3824 = vld [vmem:[%s3 + $0x58] sm:$0xff]
    %v3825 = vld [vmem:[%s3 + $0x60] sm:$0xff]
    %v3826 = vld [vmem:[%s3 + $0x68] sm:$0xff]
    %v3827 = vld [vmem:[%s3 + $0x70] sm:$0xff]
    %v3828 = vld [vmem:[%s3 + $0x78] sm:$0xff]
    %v3829 = vld [vmem:[%s3 + $0x80] sm:$0xff]
    %v3830 = vld [vmem:[%s3 + $0x88] sm:$0xff]
    %v3831 = vld [vmem:[%s3 + $0x90] sm:$0xff]
    %v3832 = vld [vmem:[%s3 + $0x98] sm:$0xff]
    %v3833 = vld [vmem:[%s3 + $0xa0] sm:$0xff]
    %v3834 = vld [vmem:[%s3 + $0xa8] sm:$0xff]
    %v3835 = vld [vmem:[%s3 + $0xb0] sm:$0xff]
    %v3836 = vld [vmem:[%s3 + $0xb8] sm:$0xff]
    %v3837 = vld [vmem:[%s3 + $0xc0] sm:$0xff]
    %v3838 = vld [vmem:[%s3 + $0xc8] sm:$0xff]
    %v3839 = vld [vmem:[%s3 + $0xd0] sm:$0xff]
    %v3840 = vld [vmem:[%s3 + $0xd8] sm:$0xff]
    %v3841 = vld [vmem:[%s3 + $0xe0] sm:$0xff]
    %v3842 = vld [vmem:[%s3 + $0xe8] sm:$0xff]
    %s3843 = scalar_lea.vmem %s3, 240
    %v3844 = vld [vmem:[%s3843] sm:$0xff]
    %v3845 = vld [vmem:[%s3843 + $0x8] sm:$0xff]
    %v3846 = vld [vmem:[%s3843 + $0x10] sm:$0xff]
    %v3847 = vld [vmem:[%s3843 + $0x18] sm:$0xff]
    %v3848 = vld [vmem:[%s3843 + $0x20] sm:$0xff]
    %v3849 = vld [vmem:[%s3843 + $0x28] sm:$0xff]
    %v3850 = vld [vmem:[%s3843 + $0x30] sm:$0xff]
    %v3851 = vld [vmem:[%s3843 + $0x38] sm:$0xff]
    %v3852 = vld [vmem:[%s3843 + $0x40] sm:$0xff]
    %v3853 = vld [vmem:[%s3843 + $0x48] sm:$0xff]
    %v3854 = vld [vmem:[%s3843 + $0x50] sm:$0xff]
    %v3855 = vld [vmem:[%s3843 + $0x58] sm:$0xff]
    %v3856 = vld [vmem:[%s3843 + $0x60] sm:$0xff]
    %v3857 = vld [vmem:[%s3843 + $0x68] sm:$0xff]
    %v3858 = vld [vmem:[%s3843 + $0x70] sm:$0xff]
    %v3859 = vld [vmem:[%s3843 + $0x78] sm:$0xff]
    %v3860 = vld [vmem:[%s3843 + $0x80] sm:$0xff]
    %v3861 = vld [vmem:[%s3843 + $0x88] sm:$0xff]
    %v3862 = vld [vmem:[%s3843 + $0x90] sm:$0xff]
    %v3863 = vld [vmem:[%s3843 + $0x98] sm:$0xff]
    %v3864 = vld [vmem:[%s3843 + $0xa0] sm:$0xff]
    %v3865 = vld [vmem:[%s3843 + $0xa8] sm:$0xff]
    %v3866 = vld [vmem:[%s3843 + $0xb0] sm:$0xff]
    %v3867 = vld [vmem:[%s3843 + $0xb8] sm:$0xff]
    %v3868 = vld [vmem:[%s3843 + $0xc0] sm:$0xff]
    %v3869 = vld [vmem:[%s3843 + $0xc8] sm:$0xff]
    %v3870 = vld [vmem:[%s3843 + $0xd0] sm:$0xff]
    %v3871 = vld [vmem:[%s3843 + $0xd8] sm:$0xff]
    %v3872 = vld [vmem:[%s3843 + $0xe0] sm:$0xff]
    %v3873 = vld [vmem:[%s3843 + $0xe8] sm:$0xff]
    %3878 = vrot.lane.b32.xlu0 %v3809, 116
    %v3879 = vpop.permute.xlu0 %3878
    %3880 = vrot.lane.b32.xlu0 %v3810, 116
    %v3881 = vpop.permute.xlu0 %3880
    %3882 = vrot.lane.b32.xlu0 %v3811, 116
    %v3883 = vpop.permute.xlu0 %3882
    %3884 = vrot.lane.b32.xlu0 %v3812, 116
    %v3885 = vpop.permute.xlu0 %3884
    %vm3886 = vcmask 949248
    %v3887 = vsel %vm3886, %v3879, %v3881
    %v3888 = vsel %vm3886, %v3883, %v3885
    %vm3889 = vcmask 982016
    %v3890 = vsel %vm3889, %v3887, 0
    %v3892 = vsel %vm3889, %v3888, 0
    %3894 = vmatprep.subr.mxu0 %v3845
    %3895 = vmatpush1.msra.mxu0 %v3844
    %3896 = vmatprep.subr.mxu0 %v3847
    %3897 = vmatpush1.msra.mxu0 %v3846
    %3898 = vmatprep.subr.mxu0 %v3849
    %3899 = vmatpush1.msra.mxu0 %v3848
    %3900 = vmatprep.subr.mxu0 %v3851
    %3901 = vmatpush1.msra.mxu0 %v3850
    %3902 = vmatprep.subr.mxu0 %v3853
    %3903 = vmatpush1.msra.mxu0 %v3852
    %3904 = vmatprep.subr.mxu0 %v3855
    %3905 = vmatpush1.msra.mxu0 %v3854
    %3906 = vmatprep.subr.mxu0 %v3857
    %3907 = vmatpush1.msra.mxu0 %v3856
    %3908 = vmatprep.subr.mxu0 %v3859
    %3909 = vmatpush1.msra.mxu0 %v3858
    %3910 = vmatprep.subr.mxu0 %v3861
    %3911 = vmatpush1.msra.mxu0 %v3860
    %3912 = vmatprep.subr.mxu0 %v3863
    %3913 = vmatpush1.msra.mxu0 %v3862
    %3914 = vmatprep.subr.mxu0 %v3865
    %3915 = vmatpush1.msra.mxu0 %v3864
    %3916 = vmatprep.subr.mxu0 %v3867
    %3917 = vmatpush1.msra.mxu0 %v3866
    %3918 = vmatprep.subr.mxu0 %v3869
    %3919 = vmatpush1.msra.mxu0 %v3868
    %3920 = vmatprep.subr.mxu0 %v3871
    %3921 = vmatpush1.msra.mxu0 %v3870
    %3922 = vmatprep.subr.mxu0 %v3873
    %3923 = vmatpush1.msra.mxu0 %v3872
    %3924 = vmatprep.subr.mxu0 0.0
    %3925 = vmatpush1.msra.mxu0 0.0
    %3926 = vmatprep.subr.mxu0 0.0
    %3927 = vmatpush1.msra.mxu0 0.0
    %3928 = vmatprep.subr.mxu0 0.0
    %3929 = vmatpush1.msra.mxu0 0.0
    %3930 = vmatprep.subr.mxu0 0.0
    %3931 = vmatpush1.msra.mxu0 0.0
    %3932 = vmatprep.subr.mxu0 0.0
    %3933 = vmatpush1.msra.mxu0 0.0
    %3934 = vmatprep.subr.mxu0 0.0
    %3935 = vmatpush1.msra.mxu0 0.0
    %3936 = vmatprep.subr.mxu0 0.0
    %3937 = vmatpush1.msra.mxu0 0.0
    %3938 = vmatprep.subr.mxu0 0.0
    %3939 = vmatpush1.msra.mxu0 0.0
    %3940 = vmatprep.subr.mxu0 0.0
    %3941 = vmatpush1.msra.mxu0 0.0
    %3942 = vmatprep.subr.mxu0 0.0
    %3943 = vmatpush1.msra.mxu0 0.0
    %3944 = vmatprep.subr.mxu0 0.0
    %3945 = vmatpush1.msra.mxu0 0.0
    %3946 = vmatprep.subr.mxu0 0.0
    %3947 = vmatpush1.msra.mxu0 0.0
    %3948 = vmatprep.subr.mxu0 0.0
    %3949 = vmatpush1.msra.mxu0 0.0
    %3950 = vmatprep.subr.mxu0 0.0
    %3951 = vmatpush1.msra.mxu0 0.0
    %3952 = vmatprep.subr.mxu0 0.0
    %3953 = vmatpush1.msra.mxu0 0.0
    %3954 = vmatprep.subr.mxu0 0.0
    %3955 = vmatpush1.msra.mxu0 0.0
    %3956 = vmatprep.subr.mxu0 0.0
    %3957 = vmatpush1.msra.mxu0 0.0
    %3958 = vmatprep.mubr.f32.mxu0 0.0
    %3959 = vmatmul.mubr.f32.gmra.mrb[0].mxu0 %v3890
    %v3960 = vpop.f32.mrb[0].mxu0
    %v3961 = vadd.f32 0.0, %v3960
    %v3962 = vpop.f32.mrb[0].mxu0
    %v3963 = vadd.f32 0.0, %v3962
    %3964 = vmatprep.mubr.f32.mxu0 0.0
    %3965 = vmatmul.mubr.f32.gmra.mrb[0].mxu0 %v3892
    %v3966 = vpop.f32.mrb[0].mxu0
    %v3967 = vadd.f32 0.0, %v3966
    %v3968 = vpop.f32.mrb[0].mxu0
    %v3969 = vadd.f32 0.0, %v3968
    %3970 = vdwg.mxu0
    %v3971 = vsel %vm3889, %v3809, 0
    %v3973 = vsel %vm3889, %v3811, 0
    %3975 = vmatprep.subr.mxu0 %v3814
    %3976 = vmatpush1.msra.mxu0 %v3813
    %3977 = vmatprep.subr.mxu0 %v3816
    %3978 = vmatpush1.msra.mxu0 %v3815
    %3979 = vmatprep.subr.mxu0 %v3818
    %3980 = vmatpush1.msra.mxu0 %v3817
    %3981 = vmatprep.subr.mxu0 %v3820
    %3982 = vmatpush1.msra.mxu0 %v3819
    %3983 = vmatprep.subr.mxu0 %v3822
    %3984 = vmatpush1.msra.mxu0 %v3821
    %3985 = vmatprep.subr.mxu0 %v3824
    %3986 = vmatpush1.msra.mxu0 %v3823
    %3987 = vmatprep.subr.mxu0 %v3826
    %3988 = vmatpush1.msra.mxu0 %v3825
    %3989 = vmatprep.subr.mxu0 %v3828
    %3990 = vmatpush1.msra.mxu0 %v3827
    %3991 = vmatprep.subr.mxu0 %v3830
    %3992 = vmatpush1.msra.mxu0 %v3829
    %3993 = vmatprep.subr.mxu0 %v3832
    %3994 = vmatpush1.msra.mxu0 %v3831
    %3995 = vmatprep.subr.mxu0 %v3834
    %3996 = vmatpush1.msra.mxu0 %v3833
    %3997 = vmatprep.subr.mxu0 %v3836
    %3998 = vmatpush1.msra.mxu0 %v3835
    %3999 = vmatprep.subr.mxu0 %v3838
    %4000 = vmatpush1.msra.mxu0 %v3837
    %4001 = vmatprep.subr.mxu0 %v3840
    %4002 = vmatpush1.msra.mxu0 %v3839
    %4003 = vmatprep.subr.mxu0 %v3842
    %4004 = vmatpush1.msra.mxu0 %v3841
    %4005 = vmatprep.subr.mxu0 0.0
    %4006 = vmatpush1.msra.mxu0 0.0
    %4007 = vmatprep.subr.mxu0 0.0
    %4008 = vmatpush1.msra.mxu0 0.0
    %4009 = vmatprep.subr.mxu0 0.0
    %4010 = vmatpush1.msra.mxu0 0.0
    %4011 = vmatprep.subr.mxu0 0.0
    %4012 = vmatpush1.msra.mxu0 0.0
    %4013 = vmatprep.subr.mxu0 0.0
    %4014 = vmatpush1.msra.mxu0 0.0
    %4015 = vmatprep.subr.mxu0 0.0
    %4016 = vmatpush1.msra.mxu0 0.0
    %4017 = vmatprep.subr.mxu0 0.0
    %4018 = vmatpush1.msra.mxu0 0.0
    %4019 = vmatprep.subr.mxu0 0.0
    %4020 = vmatpush1.msra.mxu0 0.0
    %4021 = vmatprep.subr.mxu0 0.0
    %4022 = vmatpush1.msra.mxu0 0.0
    %4023 = vmatprep.subr.mxu0 0.0
    %4024 = vmatpush1.msra.mxu0 0.0
    %4025 = vmatprep.subr.mxu0 0.0
    %4026 = vmatpush1.msra.mxu0 0.0
    %4027 = vmatprep.subr.mxu0 0.0
    %4028 = vmatpush1.msra.mxu0 0.0
    %4029 = vmatprep.subr.mxu0 0.0
    %4030 = vmatpush1.msra.mxu0 0.0
    %4031 = vmatprep.subr.mxu0 0.0
    %4032 = vmatpush1.msra.mxu0 0.0
    %4033 = vmatprep.subr.mxu0 0.0
    %4034 = vmatpush1.msra.mxu0 0.0
    %4035 = vmatprep.subr.mxu0 0.0
    %4036 = vmatpush1.msra.mxu0 0.0
    %4037 = vmatprep.subr.mxu0 0.0
    %4038 = vmatpush1.msra.mxu0 0.0
    %4039 = vmatprep.mubr.f32.mxu0 0.0
    %4040 = vmatmul.mubr.f32.gmra.mrb[0].mxu0 %v3971
    %v4041 = vpop.f32.mrb[0].mxu0
    %v4042 = vadd.f32 %v3961, %v4041
    %v4043 = vpop.f32.mrb[0].mxu0
    %v4044 = vadd.f32 %v3963, %v4043
    %4045 = vmatprep.mubr.f32.mxu0 0.0
    %4046 = vmatmul.mubr.f32.gmra.mrb[0].mxu0 %v3973
    %v4047 = vpop.f32.mrb[0].mxu0
    %v4048 = vadd.f32 %v3967, %v4047
    %v4049 = vpop.f32.mrb[0].mxu0
    %v4050 = vadd.f32 %v3969, %v4049
    %4051 = vdwg.mxu0
    %s4052 = scalar_lea.vmem %s3, 480
    %v4053 = vld [vmem:[%s4052] sm:$0xff]
    %v4054 = vld [vmem:[%s4052 + $0x8] sm:$0xff]
    %v4055 = vld [vmem:[%s4052 + $0x10] sm:$0xff]
    %v4056 = vld [vmem:[%s4052 + $0x18] sm:$0xff]
    %v4057 = vld [vmem:[%s4052 + $0x20] sm:$0xff]
    %v4058 = vld [vmem:[%s4052 + $0x28] sm:$0xff]
    %v4059 = vld [vmem:[%s4052 + $0x30] sm:$0xff]
    %v4060 = vld [vmem:[%s4052 + $0x38] sm:$0xff]
    %v4061 = vld [vmem:[%s4052 + $0x40] sm:$0xff]
    %v4062 = vld [vmem:[%s4052 + $0x48] sm:$0xff]
    %v4063 = vld [vmem:[%s4052 + $0x50] sm:$0xff]
    %v4064 = vld [vmem:[%s4052 + $0x58] sm:$0xff]
    %v4065 = vld [vmem:[%s4052 + $0x60] sm:$0xff]
    %v4066 = vld [vmem:[%s4052 + $0x68] sm:$0xff]
    %v4067 = vld [vmem:[%s4052 + $0x70] sm:$0xff]
    %v4068 = vld [vmem:[%s4052 + $0x78] sm:$0xff]
    %v4069 = vld [vmem:[%s4052 + $0x80] sm:$0xff]
    %v4070 = vld [vmem:[%s4052 + $0x88] sm:$0xff]
    %v4071 = vld [vmem:[%s4052 + $0x90] sm:$0xff]
    %v4072 = vld [vmem:[%s4052 + $0x98] sm:$0xff]
    %v4073 = vld [vmem:[%s4052 + $0xa0] sm:$0xff]
    %v4074 = vld [vmem:[%s4052 + $0xa8] sm:$0xff]
    %v4075 = vld [vmem:[%s4052 + $0xb0] sm:$0xff]
    %v4076 = vld [vmem:[%s4052 + $0xb8] sm:$0xff]
    %v4077 = vld [vmem:[%s4052 + $0xc0] sm:$0xff]
    %v4078 = vld [vmem:[%s4052 + $0xc8] sm:$0xff]
    %v4079 = vld [vmem:[%s4052 + $0xd0] sm:$0xff]
    %v4080 = vld [vmem:[%s4052 + $0xd8] sm:$0xff]
    %v4081 = vld [vmem:[%s4052 + $0xe0] sm:$0xff]
    %v4082 = vld [vmem:[%s4052 + $0xe8] sm:$0xff]
    %4083 = vrot.lane.b32.xlu0 %v3809, 104
    %v4084 = vpop.permute.xlu0 %4083
    %4085 = vrot.lane.b32.xlu0 %v3810, 104
    %v4086 = vpop.permute.xlu0 %4085
    %4087 = vrot.lane.b32.xlu0 %v3811, 104
    %v4088 = vpop.permute.xlu0 %4087
    %4089 = vrot.lane.b32.xlu0 %v3812, 104
    %v4090 = vpop.permute.xlu0 %4089
    %vm4091 = vcmask 850944
    %v4092 = vsel %vm4091, %v4084, %v4086
    %v4093 = vsel %vm4091, %v4088, %v4090
    %v4094 = vsel %vm3889, %v4092, 0
    %v4096 = vsel %vm3889, %v4093, 0
    %4098 = vmatprep.subr.mxu0 %v4054
    %4099 = vmatpush1.msra.mxu0 %v4053
    %4100 = vmatprep.subr.mxu0 %v4056
    %4101 = vmatpush1.msra.mxu0 %v4055
    %4102 = vmatprep.subr.mxu0 %v4058
    %4103 = vmatpush1.msra.mxu0 %v4057
    %4104 = vmatprep.subr.mxu0 %v4060
    %4105 = vmatpush1.msra.mxu0 %v4059
    %4106 = vmatprep.subr.mxu0 %v4062
    %4107 = vmatpush1.msra.mxu0 %v4061
    %4108 = vmatprep.subr.mxu0 %v4064
    %4109 = vmatpush1.msra.mxu0 %v4063
    %4110 = vmatprep.subr.mxu0 %v4066
    %4111 = vmatpush1.msra.mxu0 %v4065
    %4112 = vmatprep.subr.mxu0 %v4068
    %4113 = vmatpush1.msra.mxu0 %v4067
    %4114 = vmatprep.subr.mxu0 %v4070
    %4115 = vmatpush1.msra.mxu0 %v4069
    %4116 = vmatprep.subr.mxu0 %v4072
    %4117 = vmatpush1.msra.mxu0 %v4071
    %4118 = vmatprep.subr.mxu0 %v4074
    %4119 = vmatpush1.msra.mxu0 %v4073
    %4120 = vmatprep.subr.mxu0 %v4076
    %4121 = vmatpush1.msra.mxu0 %v4075
    %4122 = vmatprep.subr.mxu0 %v4078
    %4123 = vmatpush1.msra.mxu0 %v4077
    %4124 = vmatprep.subr.mxu0 %v4080
    %4125 = vmatpush1.msra.mxu0 %v4079
    %4126 = vmatprep.subr.mxu0 %v4082
    %4127 = vmatpush1.msra.mxu0 %v4081
    %4128 = vmatprep.subr.mxu0 0.0
    %4129 = vmatpush1.msra.mxu0 0.0
    %4130 = vmatprep.subr.mxu0 0.0
    %4131 = vmatpush1.msra.mxu0 0.0
    %4132 = vmatprep.subr.mxu0 0.0
    %4133 = vmatpush1.msra.mxu0 0.0
    %4134 = vmatprep.subr.mxu0 0.0
    %4135 = vmatpush1.msra.mxu0 0.0
    %4136 = vmatprep.subr.mxu0 0.0
    %4137 = vmatpush1.msra.mxu0 0.0
    %4138 = vmatprep.subr.mxu0 0.0
    %4139 = vmatpush1.msra.mxu0 0.0
    %4140 = vmatprep.subr.mxu0 0.0
    %4141 = vmatpush1.msra.mxu0 0.0
    %4142 = vmatprep.subr.mxu0 0.0
    %4143 = vmatpush1.msra.mxu0 0.0
    %4144 = vmatprep.subr.mxu0 0.0
    %4145 = vmatpush1.msra.mxu0 0.0
    %4146 = vmatprep.subr.mxu0 0.0
    %4147 = vmatpush1.msra.mxu0 0.0
    %4148 = vmatprep.subr.mxu0 0.0
    %4149 = vmatpush1.msra.mxu0 0.0
    %4150 = vmatprep.subr.mxu0 0.0
    %4151 = vmatpush1.msra.mxu0 0.0
    %4152 = vmatprep.subr.mxu0 0.0
    %4153 = vmatpush1.msra.mxu0 0.0
    %4154 = vmatprep.subr.mxu0 0.0
    %4155 = vmatpush1.msra.mxu0 0.0
    %4156 = vmatprep.subr.mxu0 0.0
    %4157 = vmatpush1.msra.mxu0 0.0
    %4158 = vmatprep.subr.mxu0 0.0
    %4159 = vmatpush1.msra.mxu0 0.0
    %4160 = vmatprep.subr.mxu0 0.0
    %4161 = vmatpush1.msra.mxu0 0.0
    %4162 = vmatprep.mubr.f32.mxu0 0.0
    %4163 = vmatmul.mubr.f32.gmra.mrb[0].mxu0 %v4094
    %v4164 = vpop.f32.mrb[0].mxu0
    %v4165 = vadd.f32 0.0, %v4164
    %v4166 = vpop.f32.mrb[0].mxu0
    %v4167 = vadd.f32 0.0, %v4166
    %4168 = vmatprep.mubr.f32.mxu0 0.0
    %4169 = vmatmul.mubr.f32.gmra.mrb[0].mxu0 %v4096
    %v4170 = vpop.f32.mrb[0].mxu0
    %v4171 = vadd.f32 0.0, %v4170
    %v4172 = vpop.f32.mrb[0].mxu0
    %v4173 = vadd.f32 0.0, %v4172
    %4174 = vdwg.mxu0
    %v4175 = vadd.f32 %v4042, %v4165
    %v4176 = vadd.f32 %v4044, %v4167
    %v4177 = vadd.f32 %v4048, %v4171
    %v4178 = vadd.f32 %v4050, %v4173
    %s4179 = scalar_lea.vmem %s3, 720
    %v4180 = vld [vmem:[%s4179] sm:$0xff]
    %v4181 = vld [vmem:[%s4179 + $0x8] sm:$0xff]
    %v4182 = vld [vmem:[%s4179 + $0x10] sm:$0xff]
    %v4183 = vld [vmem:[%s4179 + $0x18] sm:$0xff]
    %v4184 = vld [vmem:[%s4179 + $0x20] sm:$0xff]
    %v4185 = vld [vmem:[%s4179 + $0x28] sm:$0xff]
    %v4186 = vld [vmem:[%s4179 + $0x30] sm:$0xff]
    %v4187 = vld [vmem:[%s4179 + $0x38] sm:$0xff]
    %v4188 = vld [vmem:[%s4179 + $0x40] sm:$0xff]
    %v4189 = vld [vmem:[%s4179 + $0x48] sm:$0xff]
    %v4190 = vld [vmem:[%s4179 + $0x50] sm:$0xff]
    %v4191 = vld [vmem:[%s4179 + $0x58] sm:$0xff]
    %v4192 = vld [vmem:[%s4179 + $0x60] sm:$0xff]
    %v4193 = vld [vmem:[%s4179 + $0x68] sm:$0xff]
    %v4194 = vld [vmem:[%s4179 + $0x70] sm:$0xff]
    %v4195 = vld [vmem:[%s4179 + $0x78] sm:$0xff]
    %v4196 = vld [vmem:[%s4179 + $0x80] sm:$0xff]
    %v4197 = vld [vmem:[%s4179 + $0x88] sm:$0xff]
    %v4198 = vld [vmem:[%s4179 + $0x90] sm:$0xff]
    %v4199 = vld [vmem:[%s4179 + $0x98] sm:$0xff]
    %v4200 = vld [vmem:[%s4179 + $0xa0] sm:$0xff]
    %v4201 = vld [vmem:[%s4179 + $0xa8] sm:$0xff]
    %v4202 = vld [vmem:[%s4179 + $0xb0] sm:$0xff]
    %v4203 = vld [vmem:[%s4179 + $0xb8] sm:$0xff]
    %v4204 = vld [vmem:[%s4179 + $0xc0] sm:$0xff]
    %v4205 = vld [vmem:[%s4179 + $0xc8] sm:$0xff]
    %v4206 = vld [vmem:[%s4179 + $0xd0] sm:$0xff]
    %v4207 = vld [vmem:[%s4179 + $0xd8] sm:$0xff]
    %v4208 = vld [vmem:[%s4179 + $0xe0] sm:$0xff]
    %v4209 = vld [vmem:[%s4179 + $0xe8] sm:$0xff]
    %4210 = vrot.lane.b32.xlu0 %v3809, 92
    %v4211 = vpop.permute.xlu0 %4210
    %4212 = vrot.lane.b32.xlu0 %v3810, 92
    %v4213 = vpop.permute.xlu0 %4212
    %4214 = vrot.lane.b32.xlu0 %v3811, 92
    %v4215 = vpop.permute.xlu0 %4214
    %4216 = vrot.lane.b32.xlu0 %v3812, 92
    %v4217 = vpop.permute.xlu0 %4216
    %vm4218 = vcmask 752640
    %v4219 = vsel %vm4218, %v4211, %v4213
    %v4220 = vsel %vm4218, %v4215, %v4217
    %v4221 = vsel %vm3889, %v4219, 0
    %v4223 = vsel %vm3889, %v4220, 0
    %4225 = vmatprep.subr.mxu0 %v4181
    %4226 = vmatpush1.msra.mxu0 %v4180
    %4227 = vmatprep.subr.mxu0 %v4183
    %4228 = vmatpush1.msra.mxu0 %v4182
    %4229 = vmatprep.subr.mxu0 %v4185
    %4230 = vmatpush1.msra.mxu0 %v4184
    %4231 = vmatprep.subr.mxu0 %v4187
    %4232 = vmatpush1.msra.mxu0 %v4186
    %4233 = vmatprep.subr.mxu0 %v4189
    %4234 = vmatpush1.msra.mxu0 %v4188
    %4235 = vmatprep.subr.mxu0 %v4191
    %4236 = vmatpush1.msra.mxu0 %v4190
    %4237 = vmatprep.subr.mxu0 %v4193
    %4238 = vmatpush1.msra.mxu0 %v4192
    %4239 = vmatprep.subr.mxu0 %v4195
    %4240 = vmatpush1.msra.mxu0 %v4194
    %4241 = vmatprep.subr.mxu0 %v4197
    %4242 = vmatpush1.msra.mxu0 %v4196
    %4243 = vmatprep.subr.mxu0 %v4199
    %4244 = vmatpush1.msra.mxu0 %v4198
    %4245 = vmatprep.subr.mxu0 %v4201
    %4246 = vmatpush1.msra.mxu0 %v4200
    %4247 = vmatprep.subr.mxu0 %v4203
    %4248 = vmatpush1.msra.mxu0 %v4202
    %4249 = vmatprep.subr.mxu0 %v4205
    %4250 = vmatpush1.msra.mxu0 %v4204
    %4251 = vmatprep.subr.mxu0 %v4207
    %4252 = vmatpush1.msra.mxu0 %v4206
    %4253 = vmatprep.subr.mxu0 %v4209
    %4254 = vmatpush1.msra.mxu0 %v4208
    %4255 = vmatprep.subr.mxu0 0.0
    %4256 = vmatpush1.msra.mxu0 0.0
    %4257 = vmatprep.subr.mxu0 0.0
    %4258 = vmatpush1.msra.mxu0 0.0
    %4259 = vmatprep.subr.mxu0 0.0
    %4260 = vmatpush1.msra.mxu0 0.0
    %4261 = vmatprep.subr.mxu0 0.0
    %4262 = vmatpush1.msra.mxu0 0.0
    %4263 = vmatprep.subr.mxu0 0.0
    %4264 = vmatpush1.msra.mxu0 0.0
    %4265 = vmatprep.subr.mxu0 0.0
    %4266 = vmatpush1.msra.mxu0 0.0
    %4267 = vmatprep.subr.mxu0 0.0
    %4268 = vmatpush1.msra.mxu0 0.0
    %4269 = vmatprep.subr.mxu0 0.0
    %4270 = vmatpush1.msra.mxu0 0.0
    %4271 = vmatprep.subr.mxu0 0.0
    %4272 = vmatpush1.msra.mxu0 0.0
    %4273 = vmatprep.subr.mxu0 0.0
    %4274 = vmatpush1.msra.mxu0 0.0
    %4275 = vmatprep.subr.mxu0 0.0
    %4276 = vmatpush1.msra.mxu0 0.0
    %4277 = vmatprep.subr.mxu0 0.0
    %4278 = vmatpush1.msra.mxu0 0.0
    %4279 = vmatprep.subr.mxu0 0.0
    %4280 = vmatpush1.msra.mxu0 0.0
    %4281 = vmatprep.subr.mxu0 0.0
    %4282 = vmatpush1.msra.mxu0 0.0
    %4283 = vmatprep.subr.mxu0 0.0
    %4284 = vmatpush1.msra.mxu0 0.0
    %4285 = vmatprep.subr.mxu0 0.0
    %4286 = vmatpush1.msra.mxu0 0.0
    %4287 = vmatprep.subr.mxu0 0.0
    %4288 = vmatpush1.msra.mxu0 0.0
    %4289 = vmatprep.mubr.f32.mxu0 0.0
    %4290 = vmatmul.mubr.f32.gmra.mrb[0].mxu0 %v4221
    %v4291 = vpop.f32.mrb[0].mxu0
    %v4292 = vadd.f32 0.0, %v4291
    %v4293 = vpop.f32.mrb[0].mxu0
    %v4294 = vadd.f32 0.0, %v4293
    %4295 = vmatprep.mubr.f32.mxu0 0.0
    %4296 = vmatmul.mubr.f32.gmra.mrb[0].mxu0 %v4223
    %v4297 = vpop.f32.mrb[0].mxu0
    %v4298 = vadd.f32 0.0, %v4297
    %v4299 = vpop.f32.mrb[0].mxu0
    %v4300 = vadd.f32 0.0, %v4299
    %4301 = vdwg.mxu0
    %v4302 = vadd.f32 %v4175, %v4292
    %v4303 = vadd.f32 %v4176, %v4294
    %v4304 = vadd.f32 %v4177, %v4298
    %v4305 = vadd.f32 %v4178, %v4300
    %s4306 = scalar_lea.vmem %s3, 960
    %v4307 = vld [vmem:[%s4306] sm:$0xff]
    %v4308 = vld [vmem:[%s4306 + $0x8] sm:$0xff]
    %v4309 = vld [vmem:[%s4306 + $0x10] sm:$0xff]
    %v4310 = vld [vmem:[%s4306 + $0x18] sm:$0xff]
    %v4311 = vld [vmem:[%s4306 + $0x20] sm:$0xff]
    %v4312 = vld [vmem:[%s4306 + $0x28] sm:$0xff]
    %v4313 = vld [vmem:[%s4306 + $0x30] sm:$0xff]
    %v4314 = vld [vmem:[%s4306 + $0x38] sm:$0xff]
    %v4315 = vld [vmem:[%s4306 + $0x40] sm:$0xff]
    %v4316 = vld [vmem:[%s4306 + $0x48] sm:$0xff]
    %v4317 = vld [vmem:[%s4306 + $0x50] sm:$0xff]
    %v4318 = vld [vmem:[%s4306 + $0x58] sm:$0xff]
    %v4319 = vld [vmem:[%s4306 + $0x60] sm:$0xff]
    %v4320 = vld [vmem:[%s4306 + $0x68] sm:$0xff]
    %v4321 = vld [vmem:[%s4306 + $0x70] sm:$0xff]
    %v4322 = vld [vmem:[%s4306 + $0x78] sm:$0xff]
    %v4323 = vld [vmem:[%s4306 + $0x80] sm:$0xff]
    %v4324 = vld [vmem:[%s4306 + $0x88] sm:$0xff]
    %v4325 = vld [vmem:[%s4306 + $0x90] sm:$0xff]
    %v4326 = vld [vmem:[%s4306 + $0x98] sm:$0xff]
    %v4327 = vld [vmem:[%s4306 + $0xa0] sm:$0xff]
    %v4328 = vld [vmem:[%s4306 + $0xa8] sm:$0xff]
    %v4329 = vld [vmem:[%s4306 + $0xb0] sm:$0xff]
    %v4330 = vld [vmem:[%s4306 + $0xb8] sm:$0xff]
    %v4331 = vld [vmem:[%s4306 + $0xc0] sm:$0xff]
    %v4332 = vld [vmem:[%s4306 + $0xc8] sm:$0xff]
    %v4333 = vld [vmem:[%s4306 + $0xd0] sm:$0xff]
    %v4334 = vld [vmem:[%s4306 + $0xd8] sm:$0xff]
    %v4335 = vld [vmem:[%s4306 + $0xe0] sm:$0xff]
    %v4336 = vld [vmem:[%s4306 + $0xe8] sm:$0xff]
    %4337 = vrot.lane.b32.xlu0 %v3809, 80
    %v4338 = vpop.permute.xlu0 %4337
    %4339 = vrot.lane.b32.xlu0 %v3810, 80
    %v4340 = vpop.permute.xlu0 %4339
    %4341 = vrot.lane.b32.xlu0 %v3811, 80
    %v4342 = vpop.permute.xlu0 %4341
    %4343 = vrot.lane.b32.xlu0 %v3812, 80
    %v4344 = vpop.permute.xlu0 %4343
    %vm4345 = vcmask 654336
    %v4346 = vsel %vm4345, %v4338, %v4340
    %v4347 = vsel %vm4345, %v4342, %v4344
    %v4348 = vsel %vm3889, %v4346, 0
    %v4350 = vsel %vm3889, %v4347, 0
    %4352 = vmatprep.subr.mxu0 %v4308
    %4353 = vmatpush1.msra.mxu0 %v4307
    %4354 = vmatprep.subr.mxu0 %v4310
    %4355 = vmatpush1.msra.mxu0 %v4309
    %4356 = vmatprep.subr.mxu0 %v4312
    %4357 = vmatpush1.msra.mxu0 %v4311
    %4358 = vmatprep.subr.mxu0 %v4314
    %4359 = vmatpush1.msra.mxu0 %v4313
    %4360 = vmatprep.subr.mxu0 %v4316
    %4361 = vmatpush1.msra.mxu0 %v4315
    %4362 = vmatprep.subr.mxu0 %v4318
    %4363 = vmatpush1.msra.mxu0 %v4317
    %4364 = vmatprep.subr.mxu0 %v4320
    %4365 = vmatpush1.msra.mxu0 %v4319
    %4366 = vmatprep.subr.mxu0 %v4322
    %4367 = vmatpush1.msra.mxu0 %v4321
    %4368 = vmatprep.subr.mxu0 %v4324
    %4369 = vmatpush1.msra.mxu0 %v4323
    %4370 = vmatprep.subr.mxu0 %v4326
    %4371 = vmatpush1.msra.mxu0 %v4325
    %4372 = vmatprep.subr.mxu0 %v4328
    %4373 = vmatpush1.msra.mxu0 %v4327
    %4374 = vmatprep.subr.mxu0 %v4330
    %4375 = vmatpush1.msra.mxu0 %v4329
    %4376 = vmatprep.subr.mxu0 %v4332
    %4377 = vmatpush1.msra.mxu0 %v4331
    %4378 = vmatprep.subr.mxu0 %v4334
    %4379 = vmatpush1.msra.mxu0 %v4333
    %4380 = vmatprep.subr.mxu0 %v4336
    %4381 = vmatpush1.msra.mxu0 %v4335
    %4382 = vmatprep.subr.mxu0 0.0
    %4383 = vmatpush1.msra.mxu0 0.0
    %4384 = vmatprep.subr.mxu0 0.0
    %4385 = vmatpush1.msra.mxu0 0.0
    %4386 = vmatprep.subr.mxu0 0.0
    %4387 = vmatpush1.msra.mxu0 0.0
    %4388 = vmatprep.subr.mxu0 0.0
    %4389 = vmatpush1.msra.mxu0 0.0
    %4390 = vmatprep.subr.mxu0 0.0
    %4391 = vmatpush1.msra.mxu0 0.0
    %4392 = vmatprep.subr.mxu0 0.0
    %4393 = vmatpush1.msra.mxu0 0.0
    %4394 = vmatprep.subr.mxu0 0.0
    %4395 = vmatpush1.msra.mxu0 0.0
    %4396 = vmatprep.subr.mxu0 0.0
    %4397 = vmatpush1.msra.mxu0 0.0
    %4398 = vmatprep.subr.mxu0 0.0
    %4399 = vmatpush1.msra.mxu0 0.0
    %4400 = vmatprep.subr.mxu0 0.0
    %4401 = vmatpush1.msra.mxu0 0.0
    %4402 = vmatprep.subr.mxu0 0.0
    %4403 = vmatpush1.msra.mxu0 0.0
    %4404 = vmatprep.subr.mxu0 0.0
    %4405 = vmatpush1.msra.mxu0 0.0
    %4406 = vmatprep.subr.mxu0 0.0
    %4407 = vmatpush1.msra.mxu0 0.0
    %4408 = vmatprep.subr.mxu0 0.0
    %4409 = vmatpush1.msra.mxu0 0.0
    %4410 = vmatprep.subr.mxu0 0.0
    %4411 = vmatpush1.msra.mxu0 0.0
    %4412 = vmatprep.subr.mxu0 0.0
    %4413 = vmatpush1.msra.mxu0 0.0
    %4414 = vmatprep.subr.mxu0 0.0
    %4415 = vmatpush1.msra.mxu0 0.0
    %4416 = vmatprep.mubr.f32.mxu0 0.0
    %4417 = vmatmul.mubr.f32.gmra.mrb[0].mxu0 %v4348
    %v4418 = vpop.f32.mrb[0].mxu0
    %v4419 = vadd.f32 0.0, %v4418
    %v4420 = vpop.f32.mrb[0].mxu0
    %v4421 = vadd.f32 0.0, %v4420
    %4422 = vmatprep.mubr.f32.mxu0 0.0
    %4423 = vmatmul.mubr.f32.gmra.mrb[0].mxu0 %v4350
    %v4424 = vpop.f32.mrb[0].mxu0
    %v4425 = vadd.f32 0.0, %v4424
    %v4426 = vpop.f32.mrb[0].mxu0
    %v4427 = vadd.f32 0.0, %v4426
    %4428 = vdwg.mxu0
    %v4429 = vadd.f32 %v4302, %v4419
    %v4430 = vadd.f32 %v4303, %v4421
    %v4431 = vadd.f32 %v4304, %v4425
    %v4432 = vadd.f32 %v4305, %v4427
    %s4433 = scalar_lea.vmem %s3, 1200
    %v4434 = vld [vmem:[%s4433] sm:$0xff]
    %v4435 = vld [vmem:[%s4433 + $0x8] sm:$0xff]
    %v4436 = vld [vmem:[%s4433 + $0x10] sm:$0xff]
    %v4437 = vld [vmem:[%s4433 + $0x18] sm:$0xff]
    %v4438 = vld [vmem:[%s4433 + $0x20] sm:$0xff]
    %v4439 = vld [vmem:[%s4433 + $0x28] sm:$0xff]
    %v4440 = vld [vmem:[%s4433 + $0x30] sm:$0xff]
    %v4441 = vld [vmem:[%s4433 + $0x38] sm:$0xff]
    %v4442 = vld [vmem:[%s4433 + $0x40] sm:$0xff]
    %v4443 = vld [vmem:[%s4433 + $0x48] sm:$0xff]
    %v4444 = vld [vmem:[%s4433 + $0x50] sm:$0xff]
    %v4445 = vld [vmem:[%s4433 + $0x58] sm:$0xff]
    %v4446 = vld [vmem:[%s4433 + $0x60] sm:$0xff]
    %v4447 = vld [vmem:[%s4433 + $0x68] sm:$0xff]
    %v4448 = vld [vmem:[%s4433 + $0x70] sm:$0xff]
    %v4449 = vld [vmem:[%s4433 + $0x78] sm:$0xff]
    %v4450 = vld [vmem:[%s4433 + $0x80] sm:$0xff]
    %v4451 = vld [vmem:[%s4433 + $0x88] sm:$0xff]
    %v4452 = vld [vmem:[%s4433 + $0x90] sm:$0xff]
    %v4453 = vld [vmem:[%s4433 + $0x98] sm:$0xff]
    %v4454 = vld [vmem:[%s4433 + $0xa0] sm:$0xff]
    %v4455 = vld [vmem:[%s4433 + $0xa8] sm:$0xff]
    %v4456 = vld [vmem:[%s4433 + $0xb0] sm:$0xff]
    %v4457 = vld [vmem:[%s4433 + $0xb8] sm:$0xff]
    %v4458 = vld [vmem:[%s4433 + $0xc0] sm:$0xff]
    %v4459 = vld [vmem:[%s4433 + $0xc8] sm:$0xff]
    %v4460 = vld [vmem:[%s4433 + $0xd0] sm:$0xff]
    %v4461 = vld [vmem:[%s4433 + $0xd8] sm:$0xff]
    %v4462 = vld [vmem:[%s4433 + $0xe0] sm:$0xff]
    %v4463 = vld [vmem:[%s4433 + $0xe8] sm:$0xff]
    %v4464 = vrot.slane %v3809, 1
    %v4465 = vrot.slane %v3811, 1
    %v4466 = vsel %vm971, %v4464, %v4465
    %v4467 = vsel %vm3889, %v4466, 0
    %v4469 = vsel %vm3889, %v4465, 0
    %4471 = vmatprep.subr.mxu0 %v4435
    %4472 = vmatpush1.msra.mxu0 %v4434
    %4473 = vmatprep.subr.mxu0 %v4437
    %4474 = vmatpush1.msra.mxu0 %v4436
    %4475 = vmatprep.subr.mxu0 %v4439
    %4476 = vmatpush1.msra.mxu0 %v4438
    %4477 = vmatprep.subr.mxu0 %v4441
    %4478 = vmatpush1.msra.mxu0 %v4440
    %4479 = vmatprep.subr.mxu0 %v4443
    %4480 = vmatpush1.msra.mxu0 %v4442
    %4481 = vmatprep.subr.mxu0 %v4445
    %4482 = vmatpush1.msra.mxu0 %v4444
    %4483 = vmatprep.subr.mxu0 %v4447
    %4484 = vmatpush1.msra.mxu0 %v4446
    %4485 = vmatprep.subr.mxu0 %v4449
    %4486 = vmatpush1.msra.mxu0 %v4448
    %4487 = vmatprep.subr.mxu0 %v4451
    %4488 = vmatpush1.msra.mxu0 %v4450
    %4489 = vmatprep.subr.mxu0 %v4453
    %4490 = vmatpush1.msra.mxu0 %v4452
    %4491 = vmatprep.subr.mxu0 %v4455
    %4492 = vmatpush1.msra.mxu0 %v4454
    %4493 = vmatprep.subr.mxu0 %v4457
    %4494 = vmatpush1.msra.mxu0 %v4456
    %4495 = vmatprep.subr.mxu0 %v4459
    %4496 = vmatpush1.msra.mxu0 %v4458
    %4497 = vmatprep.subr.mxu0 %v4461
    %4498 = vmatpush1.msra.mxu0 %v4460
    %4499 = vmatprep.subr.mxu0 %v4463
    %4500 = vmatpush1.msra.mxu0 %v4462
    %4501 = vmatprep.subr.mxu0 0.0
    %4502 = vmatpush1.msra.mxu0 0.0
    %4503 = vmatprep.subr.mxu0 0.0
    %4504 = vmatpush1.msra.mxu0 0.0
    %4505 = vmatprep.subr.mxu0 0.0
    %4506 = vmatpush1.msra.mxu0 0.0
    %4507 = vmatprep.subr.mxu0 0.0
    %4508 = vmatpush1.msra.mxu0 0.0
    %4509 = vmatprep.subr.mxu0 0.0
    %4510 = vmatpush1.msra.mxu0 0.0
    %4511 = vmatprep.subr.mxu0 0.0
    %4512 = vmatpush1.msra.mxu0 0.0
    %4513 = vmatprep.subr.mxu0 0.0
    %4514 = vmatpush1.msra.mxu0 0.0
    %4515 = vmatprep.subr.mxu0 0.0
    %4516 = vmatpush1.msra.mxu0 0.0
    %4517 = vmatprep.subr.mxu0 0.0
    %4518 = vmatpush1.msra.mxu0 0.0
    %4519 = vmatprep.subr.mxu0 0.0
    %4520 = vmatpush1.msra.mxu0 0.0
    %4521 = vmatprep.subr.mxu0 0.0
    %4522 = vmatpush1.msra.mxu0 0.0
    %4523 = vmatprep.subr.mxu0 0.0
    %4524 = vmatpush1.msra.mxu0 0.0
    %4525 = vmatprep.subr.mxu0 0.0
    %4526 = vmatpush1.msra.mxu0 0.0
    %4527 = vmatprep.subr.mxu0 0.0
    %4528 = vmatpush1.msra.mxu0 0.0
    %4529 = vmatprep.subr.mxu0 0.0
    %4530 = vmatpush1.msra.mxu0 0.0
    %4531 = vmatprep.subr.mxu0 0.0
    %4532 = vmatpush1.msra.mxu0 0.0
    %4533 = vmatprep.subr.mxu0 0.0
    %4534 = vmatpush1.msra.mxu0 0.0
    %4535 = vmatprep.mubr.f32.mxu0 0.0
    %4536 = vmatmul.mubr.f32.gmra.mrb[0].mxu0 %v4467
    %v4537 = vpop.f32.mrb[0].mxu0
    %v4538 = vadd.f32 0.0, %v4537
    %v4539 = vpop.f32.mrb[0].mxu0
    %v4540 = vadd.f32 0.0, %v4539
    %4541 = vmatprep.mubr.f32.mxu0 0.0
    %4542 = vmatmul.mubr.f32.gmra.mrb[0].mxu0 %v4469
    %v4543 = vpop.f32.mrb[0].mxu0
    %v4544 = vadd.f32 0.0, %v4543
    %v4545 = vpop.f32.mrb[0].mxu0
    %v4546 = vadd.f32 0.0, %v4545
    %4547 = vdwg.mxu0
    %v4548 = vadd.f32 %v4429, %v4538
    %v4549 = vadd.f32 %v4430, %v4540
    %v4550 = vadd.f32 %v4431, %v4544
    %v4551 = vadd.f32 %v4432, %v4546
    %s4552 = scalar_lea.vmem %s3, 1440
    %v4553 = vld [vmem:[%s4552] sm:$0xff]
    %v4554 = vld [vmem:[%s4552 + $0x8] sm:$0xff]
    %v4555 = vld [vmem:[%s4552 + $0x10] sm:$0xff]
    %v4556 = vld [vmem:[%s4552 + $0x18] sm:$0xff]
    %v4557 = vld [vmem:[%s4552 + $0x20] sm:$0xff]
    %v4558 = vld [vmem:[%s4552 + $0x28] sm:$0xff]
    %v4559 = vld [vmem:[%s4552 + $0x30] sm:$0xff]
    %v4560 = vld [vmem:[%s4552 + $0x38] sm:$0xff]
    %v4561 = vld [vmem:[%s4552 + $0x40] sm:$0xff]
    %v4562 = vld [vmem:[%s4552 + $0x48] sm:$0xff]
    %v4563 = vld [vmem:[%s4552 + $0x50] sm:$0xff]
    %v4564 = vld [vmem:[%s4552 + $0x58] sm:$0xff]
    %v4565 = vld [vmem:[%s4552 + $0x60] sm:$0xff]
    %v4566 = vld [vmem:[%s4552 + $0x68] sm:$0xff]
    %v4567 = vld [vmem:[%s4552 + $0x70] sm:$0xff]
    %v4568 = vld [vmem:[%s4552 + $0x78] sm:$0xff]
    %v4569 = vld [vmem:[%s4552 + $0x80] sm:$0xff]
    %v4570 = vld [vmem:[%s4552 + $0x88] sm:$0xff]
    %v4571 = vld [vmem:[%s4552 + $0x90] sm:$0xff]
    %v4572 = vld [vmem:[%s4552 + $0x98] sm:$0xff]
    %v4573 = vld [vmem:[%s4552 + $0xa0] sm:$0xff]
    %v4574 = vld [vmem:[%s4552 + $0xa8] sm:$0xff]
    %v4575 = vld [vmem:[%s4552 + $0xb0] sm:$0xff]
    %v4576 = vld [vmem:[%s4552 + $0xb8] sm:$0xff]
    %v4577 = vld [vmem:[%s4552 + $0xc0] sm:$0xff]
    %v4578 = vld [vmem:[%s4552 + $0xc8] sm:$0xff]
    %v4579 = vld [vmem:[%s4552 + $0xd0] sm:$0xff]
    %v4580 = vld [vmem:[%s4552 + $0xd8] sm:$0xff]
    %v4581 = vld [vmem:[%s4552 + $0xe0] sm:$0xff]
    %v4582 = vld [vmem:[%s4552 + $0xe8] sm:$0xff]
    %v4583 = vrot.slane %v3810, 1
    %v4584 = vrot.slane %v3812, 1
    %v4585 = vsel %vm971, %v4583, %v4584
    %4586 = vrot.lane.b32.xlu0 %v4466, 116
    %v4587 = vpop.permute.xlu0 %4586
    %4588 = vrot.lane.b32.xlu0 %v4585, 116
    %v4589 = vpop.permute.xlu0 %4588
    %4590 = vrot.lane.b32.xlu0 %v4465, 116
    %v4591 = vpop.permute.xlu0 %4590
    %4592 = vrot.lane.b32.xlu0 %v4584, 116
    %v4593 = vpop.permute.xlu0 %4592
    %v4594 = vsel %vm3886, %v4587, %v4589
    %v4595 = vsel %vm3886, %v4591, %v4593
    %v4596 = vsel %vm3889, %v4594, 0
    %v4598 = vsel %vm3889, %v4595, 0
    %4600 = vmatprep.subr.mxu0 %v4554
    %4601 = vmatpush1.msra.mxu0 %v4553
    %4602 = vmatprep.subr.mxu0 %v4556
    %4603 = vmatpush1.msra.mxu0 %v4555
    %4604 = vmatprep.subr.mxu0 %v4558
    %4605 = vmatpush1.msra.mxu0 %v4557
    %4606 = vmatprep.subr.mxu0 %v4560
    %4607 = vmatpush1.msra.mxu0 %v4559
    %4608 = vmatprep.subr.mxu0 %v4562
    %4609 = vmatpush1.msra.mxu0 %v4561
    %4610 = vmatprep.subr.mxu0 %v4564
    %4611 = vmatpush1.msra.mxu0 %v4563
    %4612 = vmatprep.subr.mxu0 %v4566
    %4613 = vmatpush1.msra.mxu0 %v4565
    %4614 = vmatprep.subr.mxu0 %v4568
    %4615 = vmatpush1.msra.mxu0 %v4567
    %4616 = vmatprep.subr.mxu0 %v4570
    %4617 = vmatpush1.msra.mxu0 %v4569
    %4618 = vmatprep.subr.mxu0 %v4572
    %4619 = vmatpush1.msra.mxu0 %v4571
    %4620 = vmatprep.subr.mxu0 %v4574
    %4621 = vmatpush1.msra.mxu0 %v4573
    %4622 = vmatprep.subr.mxu0 %v4576
    %4623 = vmatpush1.msra.mxu0 %v4575
    %4624 = vmatprep.subr.mxu0 %v4578
    %4625 = vmatpush1.msra.mxu0 %v4577
    %4626 = vmatprep.subr.mxu0 %v4580
    %4627 = vmatpush1.msra.mxu0 %v4579
    %4628 = vmatprep.subr.mxu0 %v4582
    %4629 = vmatpush1.msra.mxu0 %v4581
    %4630 = vmatprep.subr.mxu0 0.0
    %4631 = vmatpush1.msra.mxu0 0.0
    %4632 = vmatprep.subr.mxu0 0.0
    %4633 = vmatpush1.msra.mxu0 0.0
    %4634 = vmatprep.subr.mxu0 0.0
    %4635 = vmatpush1.msra.mxu0 0.0
    %4636 = vmatprep.subr.mxu0 0.0
    %4637 = vmatpush1.msra.mxu0 0.0
    %4638 = vmatprep.subr.mxu0 0.0
    %4639 = vmatpush1.msra.mxu0 0.0
    %4640 = vmatprep.subr.mxu0 0.0
    %4641 = vmatpush1.msra.mxu0 0.0
    %4642 = vmatprep.subr.mxu0 0.0
    %4643 = vmatpush1.msra.mxu0 0.0
    %4644 = vmatprep.subr.mxu0 0.0
    %4645 = vmatpush1.msra.mxu0 0.0
    %4646 = vmatprep.subr.mxu0 0.0
    %4647 = vmatpush1.msra.mxu0 0.0
    %4648 = vmatprep.subr.mxu0 0.0
    %4649 = vmatpush1.msra.mxu0 0.0
    %4650 = vmatprep.subr.mxu0 0.0
    %4651 = vmatpush1.msra.mxu0 0.0
    %4652 = vmatprep.subr.mxu0 0.0
    %4653 = vmatpush1.msra.mxu0 0.0
    %4654 = vmatprep.subr.mxu0 0.0
    %4655 = vmatpush1.msra.mxu0 0.0
    %4656 = vmatprep.subr.mxu0 0.0
    %4657 = vmatpush1.msra.mxu0 0.0
    %4658 = vmatprep.subr.mxu0 0.0
    %4659 = vmatpush1.msra.mxu0 0.0
    %4660 = vmatprep.subr.mxu0 0.0
    %4661 = vmatpush1.msra.mxu0 0.0
    %4662 = vmatprep.subr.mxu0 0.0
    %4663 = vmatpush1.msra.mxu0 0.0
    %4664 = vmatprep.mubr.f32.mxu0 0.0
    %4665 = vmatmul.mubr.f32.gmra.mrb[0].mxu0 %v4596
    %v4666 = vpop.f32.mrb[0].mxu0
    %v4667 = vadd.f32 0.0, %v4666
    %v4668 = vpop.f32.mrb[0].mxu0
    %v4669 = vadd.f32 0.0, %v4668
    %4670 = vmatprep.mubr.f32.mxu0 0.0
    %4671 = vmatmul.mubr.f32.gmra.mrb[0].mxu0 %v4598
    %v4672 = vpop.f32.mrb[0].mxu0
    %v4673 = vadd.f32 0.0, %v4672
    %v4674 = vpop.f32.mrb[0].mxu0
    %v4675 = vadd.f32 0.0, %v4674
    %4676 = vdwg.mxu0
    %v4677 = vadd.f32 %v4548, %v4667
    %v4678 = vadd.f32 %v4549, %v4669
    %v4679 = vadd.f32 %v4550, %v4673
    %v4680 = vadd.f32 %v4551, %v4675
    %s4681 = scalar_lea.vmem %s3, 1680
    %v4682 = vld [vmem:[%s4681] sm:$0xff]
    %v4683 = vld [vmem:[%s4681 + $0x8] sm:$0xff]
    %v4684 = vld [vmem:[%s4681 + $0x10] sm:$0xff]
    %v4685 = vld [vmem:[%s4681 + $0x18] sm:$0xff]
    %v4686 = vld [vmem:[%s4681 + $0x20] sm:$0xff]
    %v4687 = vld [vmem:[%s4681 + $0x28] sm:$0xff]
    %v4688 = vld [vmem:[%s4681 + $0x30] sm:$0xff]
    %v4689 = vld [vmem:[%s4681 + $0x38] sm:$0xff]
    %v4690 = vld [vmem:[%s4681 + $0x40] sm:$0xff]
    %v4691 = vld [vmem:[%s4681 + $0x48] sm:$0xff]
    %v4692 = vld [vmem:[%s4681 + $0x50] sm:$0xff]
    %v4693 = vld [vmem:[%s4681 + $0x58] sm:$0xff]
    %v4694 = vld [vmem:[%s4681 + $0x60] sm:$0xff]
    %v4695 = vld [vmem:[%s4681 + $0x68] sm:$0xff]
    %v4696 = vld [vmem:[%s4681 + $0x70] sm:$0xff]
    %v4697 = vld [vmem:[%s4681 + $0x78] sm:$0xff]
    %v4698 = vld [vmem:[%s4681 + $0x80] sm:$0xff]
    %v4699 = vld [vmem:[%s4681 + $0x88] sm:$0xff]
    %v4700 = vld [vmem:[%s4681 + $0x90] sm:$0xff]
    %v4701 = vld [vmem:[%s4681 + $0x98] sm:$0xff]
    %v4702 = vld [vmem:[%s4681 + $0xa0] sm:$0xff]
    %v4703 = vld [vmem:[%s4681 + $0xa8] sm:$0xff]
    %v4704 = vld [vmem:[%s4681 + $0xb0] sm:$0xff]
    %v4705 = vld [vmem:[%s4681 + $0xb8] sm:$0xff]
    %v4706 = vld [vmem:[%s4681 + $0xc0] sm:$0xff]
    %v4707 = vld [vmem:[%s4681 + $0xc8] sm:$0xff]
    %v4708 = vld [vmem:[%s4681 + $0xd0] sm:$0xff]
    %v4709 = vld [vmem:[%s4681 + $0xd8] sm:$0xff]
    %v4710 = vld [vmem:[%s4681 + $0xe0] sm:$0xff]
    %v4711 = vld [vmem:[%s4681 + $0xe8] sm:$0xff]
    %4712 = vrot.lane.b32.xlu0 %v4466, 104
    %v4713 = vpop.permute.xlu0 %4712
    %4714 = vrot.lane.b32.xlu0 %v4585, 104
    %v4715 = vpop.permute.xlu0 %4714
    %4716 = vrot.lane.b32.xlu0 %v4465, 104
    %v4717 = vpop.permute.xlu0 %4716
    %4718 = vrot.lane.b32.xlu0 %v4584, 104
    %v4719 = vpop.permute.xlu0 %4718
    %v4720 = vsel %vm4091, %v4713, %v4715
    %v4721 = vsel %vm4091, %v4717, %v4719
    %v4722 = vsel %vm3889, %v4720, 0
    %v4724 = vsel %vm3889, %v4721, 0
    %4726 = vmatprep.subr.mxu0 %v4683
    %4727 = vmatpush1.msra.mxu0 %v4682
    %4728 = vmatprep.subr.mxu0 %v4685
    %4729 = vmatpush1.msra.mxu0 %v4684
    %4730 = vmatprep.subr.mxu0 %v4687
    %4731 = vmatpush1.msra.mxu0 %v4686
    %4732 = vmatprep.subr.mxu0 %v4689
    %4733 = vmatpush1.msra.mxu0 %v4688
    %4734 = vmatprep.subr.mxu0 %v4691
    %4735 = vmatpush1.msra.mxu0 %v4690
    %4736 = vmatprep.subr.mxu0 %v4693
    %4737 = vmatpush1.msra.mxu0 %v4692
    %4738 = vmatprep.subr.mxu0 %v4695
    %4739 = vmatpush1.msra.mxu0 %v4694
    %4740 = vmatprep.subr.mxu0 %v4697
    %4741 = vmatpush1.msra.mxu0 %v4696
    %4742 = vmatprep.subr.mxu0 %v4699
    %4743 = vmatpush1.msra.mxu0 %v4698
    %4744 = vmatprep.subr.mxu0 %v4701
    %4745 = vmatpush1.msra.mxu0 %v4700
    %4746 = vmatprep.subr.mxu0 %v4703
    %4747 = vmatpush1.msra.mxu0 %v4702
    %4748 = vmatprep.subr.mxu0 %v4705
    %4749 = vmatpush1.msra.mxu0 %v4704
    %4750 = vmatprep.subr.mxu0 %v4707
    %4751 = vmatpush1.msra.mxu0 %v4706
    %4752 = vmatprep.subr.mxu0 %v4709
    %4753 = vmatpush1.msra.mxu0 %v4708
    %4754 = vmatprep.subr.mxu0 %v4711
    %4755 = vmatpush1.msra.mxu0 %v4710
    %4756 = vmatprep.subr.mxu0 0.0
    %4757 = vmatpush1.msra.mxu0 0.0
    %4758 = vmatprep.subr.mxu0 0.0
    %4759 = vmatpush1.msra.mxu0 0.0
    %4760 = vmatprep.subr.mxu0 0.0
    %4761 = vmatpush1.msra.mxu0 0.0
    %4762 = vmatprep.subr.mxu0 0.0
    %4763 = vmatpush1.msra.mxu0 0.0
    %4764 = vmatprep.subr.mxu0 0.0
    %4765 = vmatpush1.msra.mxu0 0.0
    %4766 = vmatprep.subr.mxu0 0.0
    %4767 = vmatpush1.msra.mxu0 0.0
    %4768 = vmatprep.subr.mxu0 0.0
    %4769 = vmatpush1.msra.mxu0 0.0
    %4770 = vmatprep.subr.mxu0 0.0
    %4771 = vmatpush1.msra.mxu0 0.0
    %4772 = vmatprep.subr.mxu0 0.0
    %4773 = vmatpush1.msra.mxu0 0.0
    %4774 = vmatprep.subr.mxu0 0.0
    %4775 = vmatpush1.msra.mxu0 0.0
    %4776 = vmatprep.subr.mxu0 0.0
    %4777 = vmatpush1.msra.mxu0 0.0
    %4778 = vmatprep.subr.mxu0 0.0
    %4779 = vmatpush1.msra.mxu0 0.0
    %4780 = vmatprep.subr.mxu0 0.0
    %4781 = vmatpush1.msra.mxu0 0.0
    %4782 = vmatprep.subr.mxu0 0.0
    %4783 = vmatpush1.msra.mxu0 0.0
    %4784 = vmatprep.subr.mxu0 0.0
    %4785 = vmatpush1.msra.mxu0 0.0
    %4786 = vmatprep.subr.mxu0 0.0
    %4787 = vmatpush1.msra.mxu0 0.0
    %4788 = vmatprep.subr.mxu0 0.0
    %4789 = vmatpush1.msra.mxu0 0.0
    %4790 = vmatprep.mubr.f32.mxu0 0.0
    %4791 = vmatmul.mubr.f32.gmra.mrb[0].mxu0 %v4722
    %v4792 = vpop.f32.mrb[0].mxu0
    %v4793 = vadd.f32 0.0, %v4792
    %v4794 = vpop.f32.mrb[0].mxu0
    %v4795 = vadd.f32 0.0, %v4794
    %4796 = vmatprep.mubr.f32.mxu0 0.0
    %4797 = vmatmul.mubr.f32.gmra.mrb[0].mxu0 %v4724
    %v4798 = vpop.f32.mrb[0].mxu0
    %v4799 = vadd.f32 0.0, %v4798
    %v4800 = vpop.f32.mrb[0].mxu0
    %v4801 = vadd.f32 0.0, %v4800
    %4802 = vdwg.mxu0
    %v4803 = vadd.f32 %v4677, %v4793
    %v4804 = vadd.f32 %v4678, %v4795
    %v4805 = vadd.f32 %v4679, %v4799
    %v4806 = vadd.f32 %v4680, %v4801
    %s4807 = scalar_lea.vmem %s3, 1920
    %v4808 = vld [vmem:[%s4807] sm:$0xff]
    %v4809 = vld [vmem:[%s4807 + $0x8] sm:$0xff]
    %v4810 = vld [vmem:[%s4807 + $0x10] sm:$0xff]
    %v4811 = vld [vmem:[%s4807 + $0x18] sm:$0xff]
    %v4812 = vld [vmem:[%s4807 + $0x20] sm:$0xff]
    %v4813 = vld [vmem:[%s4807 + $0x28] sm:$0xff]
    %v4814 = vld [vmem:[%s4807 + $0x30] sm:$0xff]
    %v4815 = vld [vmem:[%s4807 + $0x38] sm:$0xff]
    %v4816 = vld [vmem:[%s4807 + $0x40] sm:$0xff]
    %v4817 = vld [vmem:[%s4807 + $0x48] sm:$0xff]
    %v4818 = vld [vmem:[%s4807 + $0x50] sm:$0xff]
    %v4819 = vld [vmem:[%s4807 + $0x58] sm:$0xff]
    %v4820 = vld [vmem:[%s4807 + $0x60] sm:$0xff]
    %v4821 = vld [vmem:[%s4807 + $0x68] sm:$0xff]
    %v4822 = vld [vmem:[%s4807 + $0x70] sm:$0xff]
    %v4823 = vld [vmem:[%s4807 + $0x78] sm:$0xff]
    %v4824 = vld [vmem:[%s4807 + $0x80] sm:$0xff]
    %v4825 = vld [vmem:[%s4807 + $0x88] sm:$0xff]
    %v4826 = vld [vmem:[%s4807 + $0x90] sm:$0xff]
    %v4827 = vld [vmem:[%s4807 + $0x98] sm:$0xff]
    %v4828 = vld [vmem:[%s4807 + $0xa0] sm:$0xff]
    %v4829 = vld [vmem:[%s4807 + $0xa8] sm:$0xff]
    %v4830 = vld [vmem:[%s4807 + $0xb0] sm:$0xff]
    %v4831 = vld [vmem:[%s4807 + $0xb8] sm:$0xff]
    %v4832 = vld [vmem:[%s4807 + $0xc0] sm:$0xff]
    %v4833 = vld [vmem:[%s4807 + $0xc8] sm:$0xff]
    %v4834 = vld [vmem:[%s4807 + $0xd0] sm:$0xff]
    %v4835 = vld [vmem:[%s4807 + $0xd8] sm:$0xff]
    %v4836 = vld [vmem:[%s4807 + $0xe0] sm:$0xff]
    %v4837 = vld [vmem:[%s4807 + $0xe8] sm:$0xff]
    %4838 = vrot.lane.b32.xlu0 %v4466, 92
    %v4839 = vpop.permute.xlu0 %4838
    %4840 = vrot.lane.b32.xlu0 %v4585, 92
    %v4841 = vpop.permute.xlu0 %4840
    %4842 = vrot.lane.b32.xlu0 %v4465, 92
    %v4843 = vpop.permute.xlu0 %4842
    %4844 = vrot.lane.b32.xlu0 %v4584, 92
    %v4845 = vpop.permute.xlu0 %4844
    %v4846 = vsel %vm4218, %v4839, %v4841
    %v4847 = vsel %vm4218, %v4843, %v4845
    %v4848 = vsel %vm3889, %v4846, 0
    %v4850 = vsel %vm3889, %v4847, 0
    %4852 = vmatprep.subr.mxu0 %v4809
    %4853 = vmatpush1.msra.mxu0 %v4808
    %4854 = vmatprep.subr.mxu0 %v4811
    %4855 = vmatpush1.msra.mxu0 %v4810
    %4856 = vmatprep.subr.mxu0 %v4813
    %4857 = vmatpush1.msra.mxu0 %v4812
    %4858 = vmatprep.subr.mxu0 %v4815
    %4859 = vmatpush1.msra.mxu0 %v4814
    %4860 = vmatprep.subr.mxu0 %v4817
    %4861 = vmatpush1.msra.mxu0 %v4816
    %4862 = vmatprep.subr.mxu0 %v4819
    %4863 = vmatpush1.msra.mxu0 %v4818
    %4864 = vmatprep.subr.mxu0 %v4821
    %4865 = vmatpush1.msra.mxu0 %v4820
    %4866 = vmatprep.subr.mxu0 %v4823
    %4867 = vmatpush1.msra.mxu0 %v4822
    %4868 = vmatprep.subr.mxu0 %v4825
    %4869 = vmatpush1.msra.mxu0 %v4824
    %4870 = vmatprep.subr.mxu0 %v4827
    %4871 = vmatpush1.msra.mxu0 %v4826
    %4872 = vmatprep.subr.mxu0 %v4829
    %4873 = vmatpush1.msra.mxu0 %v4828
    %4874 = vmatprep.subr.mxu0 %v4831
    %4875 = vmatpush1.msra.mxu0 %v4830
    %4876 = vmatprep.subr.mxu0 %v4833
    %4877 = vmatpush1.msra.mxu0 %v4832
    %4878 = vmatprep.subr.mxu0 %v4835
    %4879 = vmatpush1.msra.mxu0 %v4834
    %4880 = vmatprep.subr.mxu0 %v4837
    %4881 = vmatpush1.msra.mxu0 %v4836
    %4882 = vmatprep.subr.mxu0 0.0
    %4883 = vmatpush1.msra.mxu0 0.0
    %4884 = vmatprep.subr.mxu0 0.0
    %4885 = vmatpush1.msra.mxu0 0.0
    %4886 = vmatprep.subr.mxu0 0.0
    %4887 = vmatpush1.msra.mxu0 0.0
    %4888 = vmatprep.subr.mxu0 0.0
    %4889 = vmatpush1.msra.mxu0 0.0
    %4890 = vmatprep.subr.mxu0 0.0
    %4891 = vmatpush1.msra.mxu0 0.0
    %4892 = vmatprep.subr.mxu0 0.0
    %4893 = vmatpush1.msra.mxu0 0.0
    %4894 = vmatprep.subr.mxu0 0.0
    %4895 = vmatpush1.msra.mxu0 0.0
    %4896 = vmatprep.subr.mxu0 0.0
    %4897 = vmatpush1.msra.mxu0 0.0
    %4898 = vmatprep.subr.mxu0 0.0
    %4899 = vmatpush1.msra.mxu0 0.0
    %4900 = vmatprep.subr.mxu0 0.0
    %4901 = vmatpush1.msra.mxu0 0.0
    %4902 = vmatprep.subr.mxu0 0.0
    %4903 = vmatpush1.msra.mxu0 0.0
    %4904 = vmatprep.subr.mxu0 0.0
    %4905 = vmatpush1.msra.mxu0 0.0
    %4906 = vmatprep.subr.mxu0 0.0
    %4907 = vmatpush1.msra.mxu0 0.0
    %4908 = vmatprep.subr.mxu0 0.0
    %4909 = vmatpush1.msra.mxu0 0.0
    %4910 = vmatprep.subr.mxu0 0.0
    %4911 = vmatpush1.msra.mxu0 0.0
    %4912 = vmatprep.subr.mxu0 0.0
    %4913 = vmatpush1.msra.mxu0 0.0
    %4914 = vmatprep.subr.mxu0 0.0
    %4915 = vmatpush1.msra.mxu0 0.0
    %4916 = vmatprep.mubr.f32.mxu0 0.0
    %4917 = vmatmul.mubr.f32.gmra.mrb[0].mxu0 %v4848
    %v4918 = vpop.f32.mrb[0].mxu0
    %v4919 = vadd.f32 0.0, %v4918
    %v4920 = vpop.f32.mrb[0].mxu0
    %v4921 = vadd.f32 0.0, %v4920
    %4922 = vmatprep.mubr.f32.mxu0 0.0
    %4923 = vmatmul.mubr.f32.gmra.mrb[0].mxu0 %v4850
    %v4924 = vpop.f32.mrb[0].mxu0
    %v4925 = vadd.f32 0.0, %v4924
    %v4926 = vpop.f32.mrb[0].mxu0
    %v4927 = vadd.f32 0.0, %v4926
    %4928 = vdwg.mxu0
    %v4929 = vadd.f32 %v4803, %v4919
    %v4930 = vadd.f32 %v4804, %v4921
    %v4931 = vadd.f32 %v4805, %v4925
    %v4932 = vadd.f32 %v4806, %v4927
    %s4933 = scalar_lea.vmem %s3, 2160
    %v4934 = vld [vmem:[%s4933] sm:$0xff]
    %v4935 = vld [vmem:[%s4933 + $0x8] sm:$0xff]
    %v4936 = vld [vmem:[%s4933 + $0x10] sm:$0xff]
    %v4937 = vld [vmem:[%s4933 + $0x18] sm:$0xff]
    %v4938 = vld [vmem:[%s4933 + $0x20] sm:$0xff]
    %v4939 = vld [vmem:[%s4933 + $0x28] sm:$0xff]
    %v4940 = vld [vmem:[%s4933 + $0x30] sm:$0xff]
    %v4941 = vld [vmem:[%s4933 + $0x38] sm:$0xff]
    %v4942 = vld [vmem:[%s4933 + $0x40] sm:$0xff]
    %v4943 = vld [vmem:[%s4933 + $0x48] sm:$0xff]
    %v4944 = vld [vmem:[%s4933 + $0x50] sm:$0xff]
    %v4945 = vld [vmem:[%s4933 + $0x58] sm:$0xff]
    %v4946 = vld [vmem:[%s4933 + $0x60] sm:$0xff]
    %v4947 = vld [vmem:[%s4933 + $0x68] sm:$0xff]
    %v4948 = vld [vmem:[%s4933 + $0x70] sm:$0xff]
    %v4949 = vld [vmem:[%s4933 + $0x78] sm:$0xff]
    %v4950 = vld [vmem:[%s4933 + $0x80] sm:$0xff]
    %v4951 = vld [vmem:[%s4933 + $0x88] sm:$0xff]
    %v4952 = vld [vmem:[%s4933 + $0x90] sm:$0xff]
    %v4953 = vld [vmem:[%s4933 + $0x98] sm:$0xff]
    %v4954 = vld [vmem:[%s4933 + $0xa0] sm:$0xff]
    %v4955 = vld [vmem:[%s4933 + $0xa8] sm:$0xff]
    %v4956 = vld [vmem:[%s4933 + $0xb0] sm:$0xff]
    %v4957 = vld [vmem:[%s4933 + $0xb8] sm:$0xff]
    %v4958 = vld [vmem:[%s4933 + $0xc0] sm:$0xff]
    %v4959 = vld [vmem:[%s4933 + $0xc8] sm:$0xff]
    %v4960 = vld [vmem:[%s4933 + $0xd0] sm:$0xff]
    %v4961 = vld [vmem:[%s4933 + $0xd8] sm:$0xff]
    %v4962 = vld [vmem:[%s4933 + $0xe0] sm:$0xff]
    %v4963 = vld [vmem:[%s4933 + $0xe8] sm:$0xff]
    %4964 = vrot.lane.b32.xlu0 %v4466, 80
    %v4965 = vpop.permute.xlu0 %4964
    %4966 = vrot.lane.b32.xlu0 %v4585, 80
    %v4967 = vpop.permute.xlu0 %4966
    %4968 = vrot.lane.b32.xlu0 %v4465, 80
    %v4969 = vpop.permute.xlu0 %4968
    %4970 = vrot.lane.b32.xlu0 %v4584, 80
    %v4971 = vpop.permute.xlu0 %4970
    %v4972 = vsel %vm4345, %v4965, %v4967
    %v4973 = vsel %vm4345, %v4969, %v4971
    %v4974 = vsel %vm3889, %v4972, 0
    %v4976 = vsel %vm3889, %v4973, 0
    %4978 = vmatprep.subr.mxu0 %v4935
    %4979 = vmatpush1.msra.mxu0 %v4934
    %4980 = vmatprep.subr.mxu0 %v4937
    %4981 = vmatpush1.msra.mxu0 %v4936
    %4982 = vmatprep.subr.mxu0 %v4939
    %4983 = vmatpush1.msra.mxu0 %v4938
    %4984 = vmatprep.subr.mxu0 %v4941
    %4985 = vmatpush1.msra.mxu0 %v4940
    %4986 = vmatprep.subr.mxu0 %v4943
    %4987 = vmatpush1.msra.mxu0 %v4942
    %4988 = vmatprep.subr.mxu0 %v4945
    %4989 = vmatpush1.msra.mxu0 %v4944
    %4990 = vmatprep.subr.mxu0 %v4947
    %4991 = vmatpush1.msra.mxu0 %v4946
    %4992 = vmatprep.subr.mxu0 %v4949
    %4993 = vmatpush1.msra.mxu0 %v4948
    %4994 = vmatprep.subr.mxu0 %v4951
    %4995 = vmatpush1.msra.mxu0 %v4950
    %4996 = vmatprep.subr.mxu0 %v4953
    %4997 = vmatpush1.msra.mxu0 %v4952
    %4998 = vmatprep.subr.mxu0 %v4955
    %4999 = vmatpush1.msra.mxu0 %v4954
    %5000 = vmatprep.subr.mxu0 %v4957
    %5001 = vmatpush1.msra.mxu0 %v4956
    %5002 = vmatprep.subr.mxu0 %v4959
    %5003 = vmatpush1.msra.mxu0 %v4958
    %5004 = vmatprep.subr.mxu0 %v4961
    %5005 = vmatpush1.msra.mxu0 %v4960
    %5006 = vmatprep.subr.mxu0 %v4963
    %5007 = vmatpush1.msra.mxu0 %v4962
    %5008 = vmatprep.subr.mxu0 0.0
    %5009 = vmatpush1.msra.mxu0 0.0
    %5010 = vmatprep.subr.mxu0 0.0
    %5011 = vmatpush1.msra.mxu0 0.0
    %5012 = vmatprep.subr.mxu0 0.0
    %5013 = vmatpush1.msra.mxu0 0.0
    %5014 = vmatprep.subr.mxu0 0.0
    %5015 = vmatpush1.msra.mxu0 0.0
    %5016 = vmatprep.subr.mxu0 0.0
    %5017 = vmatpush1.msra.mxu0 0.0
    %5018 = vmatprep.subr.mxu0 0.0
    %5019 = vmatpush1.msra.mxu0 0.0
    %5020 = vmatprep.subr.mxu0 0.0
    %5021 = vmatpush1.msra.mxu0 0.0
    %5022 = vmatprep.subr.mxu0 0.0
    %5023 = vmatpush1.msra.mxu0 0.0
    %5024 = vmatprep.subr.mxu0 0.0
    %5025 = vmatpush1.msra.mxu0 0.0
    %5026 = vmatprep.subr.mxu0 0.0
    %5027 = vmatpush1.msra.mxu0 0.0
    %5028 = vmatprep.subr.mxu0 0.0
    %5029 = vmatpush1.msra.mxu0 0.0
    %5030 = vmatprep.subr.mxu0 0.0
    %5031 = vmatpush1.msra.mxu0 0.0
    %5032 = vmatprep.subr.mxu0 0.0
    %5033 = vmatpush1.msra.mxu0 0.0
    %5034 = vmatprep.subr.mxu0 0.0
    %5035 = vmatpush1.msra.mxu0 0.0
    %5036 = vmatprep.subr.mxu0 0.0
    %5037 = vmatpush1.msra.mxu0 0.0
    %5038 = vmatprep.subr.mxu0 0.0
    %5039 = vmatpush1.msra.mxu0 0.0
    %5040 = vmatprep.subr.mxu0 0.0
    %5041 = vmatpush1.msra.mxu0 0.0
    %5042 = vmatprep.mubr.f32.mxu0 0.0
    %5043 = vmatmul.mubr.f32.gmra.mrb[0].mxu0 %v4974
    %v5044 = vpop.f32.mrb[0].mxu0
    %v5045 = vadd.f32 0.0, %v5044
    %v5046 = vpop.f32.mrb[0].mxu0
    %v5047 = vadd.f32 0.0, %v5046
    %5048 = vmatprep.mubr.f32.mxu0 0.0
    %5049 = vmatmul.mubr.f32.gmra.mrb[0].mxu0 %v4976
    %v5050 = vpop.f32.mrb[0].mxu0
    %v5051 = vadd.f32 0.0, %v5050
    %v5052 = vpop.f32.mrb[0].mxu0
    %v5053 = vadd.f32 0.0, %v5052
    %5054 = vdwg.mxu0
    %v5055 = vadd.f32 %v4929, %v5045
    %v5056 = vadd.f32 %v4930, %v5047
    %v5057 = vadd.f32 %v4931, %v5051
    %v5058 = vadd.f32 %v4932, %v5053
    %s5059 = scalar_lea.vmem %s3, 2400
    %v5060 = vld [vmem:[%s5059] sm:$0xff]
    %v5061 = vld [vmem:[%s5059 + $0x8] sm:$0xff]
    %v5062 = vld [vmem:[%s5059 + $0x10] sm:$0xff]
    %v5063 = vld [vmem:[%s5059 + $0x18] sm:$0xff]
    %v5064 = vld [vmem:[%s5059 + $0x20] sm:$0xff]
    %v5065 = vld [vmem:[%s5059 + $0x28] sm:$0xff]
    %v5066 = vld [vmem:[%s5059 + $0x30] sm:$0xff]
    %v5067 = vld [vmem:[%s5059 + $0x38] sm:$0xff]
    %v5068 = vld [vmem:[%s5059 + $0x40] sm:$0xff]
    %v5069 = vld [vmem:[%s5059 + $0x48] sm:$0xff]
    %v5070 = vld [vmem:[%s5059 + $0x50] sm:$0xff]
    %v5071 = vld [vmem:[%s5059 + $0x58] sm:$0xff]
    %v5072 = vld [vmem:[%s5059 + $0x60] sm:$0xff]
    %v5073 = vld [vmem:[%s5059 + $0x68] sm:$0xff]
    %v5074 = vld [vmem:[%s5059 + $0x70] sm:$0xff]
    %v5075 = vld [vmem:[%s5059 + $0x78] sm:$0xff]
    %v5076 = vld [vmem:[%s5059 + $0x80] sm:$0xff]
    %v5077 = vld [vmem:[%s5059 + $0x88] sm:$0xff]
    %v5078 = vld [vmem:[%s5059 + $0x90] sm:$0xff]
    %v5079 = vld [vmem:[%s5059 + $0x98] sm:$0xff]
    %v5080 = vld [vmem:[%s5059 + $0xa0] sm:$0xff]
    %v5081 = vld [vmem:[%s5059 + $0xa8] sm:$0xff]
    %v5082 = vld [vmem:[%s5059 + $0xb0] sm:$0xff]
    %v5083 = vld [vmem:[%s5059 + $0xb8] sm:$0xff]
    %v5084 = vld [vmem:[%s5059 + $0xc0] sm:$0xff]
    %v5085 = vld [vmem:[%s5059 + $0xc8] sm:$0xff]
    %v5086 = vld [vmem:[%s5059 + $0xd0] sm:$0xff]
    %v5087 = vld [vmem:[%s5059 + $0xd8] sm:$0xff]
    %v5088 = vld [vmem:[%s5059 + $0xe0] sm:$0xff]
    %v5089 = vld [vmem:[%s5059 + $0xe8] sm:$0xff]
    %v5090 = vrot.slane %v3809, 2
    %v5091 = vrot.slane %v3811, 2
    %v5092 = vsel %vm1611, %v5090, %v5091
    %v5093 = vsel %vm3889, %v5092, 0
    %v5095 = vsel %vm3889, %v5091, 0
    %5097 = vmatprep.subr.mxu0 %v5061
    %5098 = vmatpush1.msra.mxu0 %v5060
    %5099 = vmatprep.subr.mxu0 %v5063
    %5100 = vmatpush1.msra.mxu0 %v5062
    %5101 = vmatprep.subr.mxu0 %v5065
    %5102 = vmatpush1.msra.mxu0 %v5064
    %5103 = vmatprep.subr.mxu0 %v5067
    %5104 = vmatpush1.msra.mxu0 %v5066
    %5105 = vmatprep.subr.mxu0 %v5069
    %5106 = vmatpush1.msra.mxu0 %v5068
    %5107 = vmatprep.subr.mxu0 %v5071
    %5108 = vmatpush1.msra.mxu0 %v5070
    %5109 = vmatprep.subr.mxu0 %v5073
    %5110 = vmatpush1.msra.mxu0 %v5072
    %5111 = vmatprep.subr.mxu0 %v5075
    %5112 = vmatpush1.msra.mxu0 %v5074
    %5113 = vmatprep.subr.mxu0 %v5077
    %5114 = vmatpush1.msra.mxu0 %v5076
    %5115 = vmatprep.subr.mxu0 %v5079
    %5116 = vmatpush1.msra.mxu0 %v5078
    %5117 = vmatprep.subr.mxu0 %v5081
    %5118 = vmatpush1.msra.mxu0 %v5080
    %5119 = vmatprep.subr.mxu0 %v5083
    %5120 = vmatpush1.msra.mxu0 %v5082
    %5121 = vmatprep.subr.mxu0 %v5085
    %5122 = vmatpush1.msra.mxu0 %v5084
    %5123 = vmatprep.subr.mxu0 %v5087
    %5124 = vmatpush1.msra.mxu0 %v5086
    %5125 = vmatprep.subr.mxu0 %v5089
    %5126 = vmatpush1.msra.mxu0 %v5088
    %5127 = vmatprep.subr.mxu0 0.0
    %5128 = vmatpush1.msra.mxu0 0.0
    %5129 = vmatprep.subr.mxu0 0.0
    %5130 = vmatpush1.msra.mxu0 0.0
    %5131 = vmatprep.subr.mxu0 0.0
    %5132 = vmatpush1.msra.mxu0 0.0
    %5133 = vmatprep.subr.mxu0 0.0
    %5134 = vmatpush1.msra.mxu0 0.0
    %5135 = vmatprep.subr.mxu0 0.0
    %5136 = vmatpush1.msra.mxu0 0.0
    %5137 = vmatprep.subr.mxu0 0.0
    %5138 = vmatpush1.msra.mxu0 0.0
    %5139 = vmatprep.subr.mxu0 0.0
    %5140 = vmatpush1.msra.mxu0 0.0
    %5141 = vmatprep.subr.mxu0 0.0
    %5142 = vmatpush1.msra.mxu0 0.0
    %5143 = vmatprep.subr.mxu0 0.0
    %5144 = vmatpush1.msra.mxu0 0.0
    %5145 = vmatprep.subr.mxu0 0.0
    %5146 = vmatpush1.msra.mxu0 0.0
    %5147 = vmatprep.subr.mxu0 0.0
    %5148 = vmatpush1.msra.mxu0 0.0
    %5149 = vmatprep.subr.mxu0 0.0
    %5150 = vmatpush1.msra.mxu0 0.0
    %5151 = vmatprep.subr.mxu0 0.0
    %5152 = vmatpush1.msra.mxu0 0.0
    %5153 = vmatprep.subr.mxu0 0.0
    %5154 = vmatpush1.msra.mxu0 0.0
    %5155 = vmatprep.subr.mxu0 0.0
    %5156 = vmatpush1.msra.mxu0 0.0
    %5157 = vmatprep.subr.mxu0 0.0
    %5158 = vmatpush1.msra.mxu0 0.0
    %5159 = vmatprep.subr.mxu0 0.0
    %5160 = vmatpush1.msra.mxu0 0.0
    %5161 = vmatprep.mubr.f32.mxu0 0.0
    %5162 = vmatmul.mubr.f32.gmra.mrb[0].mxu0 %v5093
    %v5163 = vpop.f32.mrb[0].mxu0
    %v5164 = vadd.f32 0.0, %v5163
    %v5165 = vpop.f32.mrb[0].mxu0
    %v5166 = vadd.f32 0.0, %v5165
    %5167 = vmatprep.mubr.f32.mxu0 0.0
    %5168 = vmatmul.mubr.f32.gmra.mrb[0].mxu0 %v5095
    %v5169 = vpop.f32.mrb[0].mxu0
    %v5170 = vadd.f32 0.0, %v5169
    %v5171 = vpop.f32.mrb[0].mxu0
    %v5172 = vadd.f32 0.0, %v5171
    %5173 = vdwg.mxu0
    %v5174 = vadd.f32 %v5055, %v5164
    %v5175 = vadd.f32 %v5056, %v5166
    %v5176 = vadd.f32 %v5057, %v5170
    %v5177 = vadd.f32 %v5058, %v5172
    %s5178 = scalar_lea.vmem %s3, 2640
    %v5179 = vld [vmem:[%s5178] sm:$0xff]
    %v5180 = vld [vmem:[%s5178 + $0x8] sm:$0xff]
    %v5181 = vld [vmem:[%s5178 + $0x10] sm:$0xff]
    %v5182 = vld [vmem:[%s5178 + $0x18] sm:$0xff]
    %v5183 = vld [vmem:[%s5178 + $0x20] sm:$0xff]
    %v5184 = vld [vmem:[%s5178 + $0x28] sm:$0xff]
    %v5185 = vld [vmem:[%s5178 + $0x30] sm:$0xff]
    %v5186 = vld [vmem:[%s5178 + $0x38] sm:$0xff]
    %v5187 = vld [vmem:[%s5178 + $0x40] sm:$0xff]
    %v5188 = vld [vmem:[%s5178 + $0x48] sm:$0xff]
    %v5189 = vld [vmem:[%s5178 + $0x50] sm:$0xff]
    %v5190 = vld [vmem:[%s5178 + $0x58] sm:$0xff]
    %v5191 = vld [vmem:[%s5178 + $0x60] sm:$0xff]
    %v5192 = vld [vmem:[%s5178 + $0x68] sm:$0xff]
    %v5193 = vld [vmem:[%s5178 + $0x70] sm:$0xff]
    %v5194 = vld [vmem:[%s5178 + $0x78] sm:$0xff]
    %v5195 = vld [vmem:[%s5178 + $0x80] sm:$0xff]
    %v5196 = vld [vmem:[%s5178 + $0x88] sm:$0xff]
    %v5197 = vld [vmem:[%s5178 + $0x90] sm:$0xff]
    %v5198 = vld [vmem:[%s5178 + $0x98] sm:$0xff]
    %v5199 = vld [vmem:[%s5178 + $0xa0] sm:$0xff]
    %v5200 = vld [vmem:[%s5178 + $0xa8] sm:$0xff]
    %v5201 = vld [vmem:[%s5178 + $0xb0] sm:$0xff]
    %v5202 = vld [vmem:[%s5178 + $0xb8] sm:$0xff]
    %v5203 = vld [vmem:[%s5178 + $0xc0] sm:$0xff]
    %v5204 = vld [vmem:[%s5178 + $0xc8] sm:$0xff]
    %v5205 = vld [vmem:[%s5178 + $0xd0] sm:$0xff]
    %v5206 = vld [vmem:[%s5178 + $0xd8] sm:$0xff]
    %v5207 = vld [vmem:[%s5178 + $0xe0] sm:$0xff]
    %v5208 = vld [vmem:[%s5178 + $0xe8] sm:$0xff]
    %v5209 = vrot.slane %v3810, 2
    %v5210 = vrot.slane %v3812, 2
    %v5211 = vsel %vm1611, %v5209, %v5210
    %5212 = vrot.lane.b32.xlu0 %v5092, 116
    %v5213 = vpop.permute.xlu0 %5212
    %5214 = vrot.lane.b32.xlu0 %v5211, 116
    %v5215 = vpop.permute.xlu0 %5214
    %5216 = vrot.lane.b32.xlu0 %v5091, 116
    %v5217 = vpop.permute.xlu0 %5216
    %5218 = vrot.lane.b32.xlu0 %v5210, 116
    %v5219 = vpop.permute.xlu0 %5218
    %v5220 = vsel %vm3886, %v5213, %v5215
    %v5221 = vsel %vm3886, %v5217, %v5219
    %v5222 = vsel %vm3889, %v5220, 0
    %v5224 = vsel %vm3889, %v5221, 0
    %5226 = vmatprep.subr.mxu0 %v5180
    %5227 = vmatpush1.msra.mxu0 %v5179
    %5228 = vmatprep.subr.mxu0 %v5182
    %5229 = vmatpush1.msra.mxu0 %v5181
    %5230 = vmatprep.subr.mxu0 %v5184
    %5231 = vmatpush1.msra.mxu0 %v5183
    %5232 = vmatprep.subr.mxu0 %v5186
    %5233 = vmatpush1.msra.mxu0 %v5185
    %5234 = vmatprep.subr.mxu0 %v5188
    %5235 = vmatpush1.msra.mxu0 %v5187
    %5236 = vmatprep.subr.mxu0 %v5190
    %5237 = vmatpush1.msra.mxu0 %v5189
    %5238 = vmatprep.subr.mxu0 %v5192
    %5239 = vmatpush1.msra.mxu0 %v5191
    %5240 = vmatprep.subr.mxu0 %v5194
    %5241 = vmatpush1.msra.mxu0 %v5193
    %5242 = vmatprep.subr.mxu0 %v5196
    %5243 = vmatpush1.msra.mxu0 %v5195
    %5244 = vmatprep.subr.mxu0 %v5198
    %5245 = vmatpush1.msra.mxu0 %v5197
    %5246 = vmatprep.subr.mxu0 %v5200
    %5247 = vmatpush1.msra.mxu0 %v5199
    %5248 = vmatprep.subr.mxu0 %v5202
    %5249 = vmatpush1.msra.mxu0 %v5201
    %5250 = vmatprep.subr.mxu0 %v5204
    %5251 = vmatpush1.msra.mxu0 %v5203
    %5252 = vmatprep.subr.mxu0 %v5206
    %5253 = vmatpush1.msra.mxu0 %v5205
    %5254 = vmatprep.subr.mxu0 %v5208
    %5255 = vmatpush1.msra.mxu0 %v5207
    %5256 = vmatprep.subr.mxu0 0.0
    %5257 = vmatpush1.msra.mxu0 0.0
    %5258 = vmatprep.subr.mxu0 0.0
    %5259 = vmatpush1.msra.mxu0 0.0
    %5260 = vmatprep.subr.mxu0 0.0
    %5261 = vmatpush1.msra.mxu0 0.0
    %5262 = vmatprep.subr.mxu0 0.0
    %5263 = vmatpush1.msra.mxu0 0.0
    %5264 = vmatprep.subr.mxu0 0.0
    %5265 = vmatpush1.msra.mxu0 0.0
    %5266 = vmatprep.subr.mxu0 0.0
    %5267 = vmatpush1.msra.mxu0 0.0
    %5268 = vmatprep.subr.mxu0 0.0
    %5269 = vmatpush1.msra.mxu0 0.0
    %5270 = vmatprep.subr.mxu0 0.0
    %5271 = vmatpush1.msra.mxu0 0.0
    %5272 = vmatprep.subr.mxu0 0.0
    %5273 = vmatpush1.msra.mxu0 0.0
    %5274 = vmatprep.subr.mxu0 0.0
    %5275 = vmatpush1.msra.mxu0 0.0
    %5276 = vmatprep.subr.mxu0 0.0
    %5277 = vmatpush1.msra.mxu0 0.0
    %5278 = vmatprep.subr.mxu0 0.0
    %5279 = vmatpush1.msra.mxu0 0.0
    %5280 = vmatprep.subr.mxu0 0.0
    %5281 = vmatpush1.msra.mxu0 0.0
    %5282 = vmatprep.subr.mxu0 0.0
    %5283 = vmatpush1.msra.mxu0 0.0
    %5284 = vmatprep.subr.mxu0 0.0
    %5285 = vmatpush1.msra.mxu0 0.0
    %5286 = vmatprep.subr.mxu0 0.0
    %5287 = vmatpush1.msra.mxu0 0.0
    %5288 = vmatprep.subr.mxu0 0.0
    %5289 = vmatpush1.msra.mxu0 0.0
    %5290 = vmatprep.mubr.f32.mxu0 0.0
    %5291 = vmatmul.mubr.f32.gmra.mrb[0].mxu0 %v5222
    %v5292 = vpop.f32.mrb[0].mxu0
    %v5293 = vadd.f32 0.0, %v5292
    %v5294 = vpop.f32.mrb[0].mxu0
    %v5295 = vadd.f32 0.0, %v5294
    %5296 = vmatprep.mubr.f32.mxu0 0.0
    %5297 = vmatmul.mubr.f32.gmra.mrb[0].mxu0 %v5224
    %v5298 = vpop.f32.mrb[0].mxu0
    %v5299 = vadd.f32 0.0, %v5298
    %v5300 = vpop.f32.mrb[0].mxu0
    %v5301 = vadd.f32 0.0, %v5300
    %5302 = vdwg.mxu0
    %v5303 = vadd.f32 %v5174, %v5293
    %v5304 = vadd.f32 %v5175, %v5295
    %v5305 = vadd.f32 %v5176, %v5299
    %v5306 = vadd.f32 %v5177, %v5301
    %s5307 = scalar_lea.vmem %s3, 2880
    %v5308 = vld [vmem:[%s5307] sm:$0xff]
    %v5309 = vld [vmem:[%s5307 + $0x8] sm:$0xff]
    %v5310 = vld [vmem:[%s5307 + $0x10] sm:$0xff]
    %v5311 = vld [vmem:[%s5307 + $0x18] sm:$0xff]
    %v5312 = vld [vmem:[%s5307 + $0x20] sm:$0xff]
    %v5313 = vld [vmem:[%s5307 + $0x28] sm:$0xff]
    %v5314 = vld [vmem:[%s5307 + $0x30] sm:$0xff]
    %v5315 = vld [vmem:[%s5307 + $0x38] sm:$0xff]
    %v5316 = vld [vmem:[%s5307 + $0x40] sm:$0xff]
    %v5317 = vld [vmem:[%s5307 + $0x48] sm:$0xff]
    %v5318 = vld [vmem:[%s5307 + $0x50] sm:$0xff]
    %v5319 = vld [vmem:[%s5307 + $0x58] sm:$0xff]
    %v5320 = vld [vmem:[%s5307 + $0x60] sm:$0xff]
    %v5321 = vld [vmem:[%s5307 + $0x68] sm:$0xff]
    %v5322 = vld [vmem:[%s5307 + $0x70] sm:$0xff]
    %v5323 = vld [vmem:[%s5307 + $0x78] sm:$0xff]
    %v5324 = vld [vmem:[%s5307 + $0x80] sm:$0xff]
    %v5325 = vld [vmem:[%s5307 + $0x88] sm:$0xff]
    %v5326 = vld [vmem:[%s5307 + $0x90] sm:$0xff]
    %v5327 = vld [vmem:[%s5307 + $0x98] sm:$0xff]
    %v5328 = vld [vmem:[%s5307 + $0xa0] sm:$0xff]
    %v5329 = vld [vmem:[%s5307 + $0xa8] sm:$0xff]
    %v5330 = vld [vmem:[%s5307 + $0xb0] sm:$0xff]
    %v5331 = vld [vmem:[%s5307 + $0xb8] sm:$0xff]
    %v5332 = vld [vmem:[%s5307 + $0xc0] sm:$0xff]
    %v5333 = vld [vmem:[%s5307 + $0xc8] sm:$0xff]
    %v5334 = vld [vmem:[%s5307 + $0xd0] sm:$0xff]
    %v5335 = vld [vmem:[%s5307 + $0xd8] sm:$0xff]
    %v5336 = vld [vmem:[%s5307 + $0xe0] sm:$0xff]
    %v5337 = vld [vmem:[%s5307 + $0xe8] sm:$0xff]
    %5338 = vrot.lane.b32.xlu0 %v5092, 104
    %v5339 = vpop.permute.xlu0 %5338
    %5340 = vrot.lane.b32.xlu0 %v5211, 104
    %v5341 = vpop.permute.xlu0 %5340
    %5342 = vrot.lane.b32.xlu0 %v5091, 104
    %v5343 = vpop.permute.xlu0 %5342
    %5344 = vrot.lane.b32.xlu0 %v5210, 104
    %v5345 = vpop.permute.xlu0 %5344
    %v5346 = vsel %vm4091, %v5339, %v5341
    %v5347 = vsel %vm4091, %v5343, %v5345
    %v5348 = vsel %vm3889, %v5346, 0
    %v5350 = vsel %vm3889, %v5347, 0
    %5352 = vmatprep.subr.mxu0 %v5309
    %5353 = vmatpush1.msra.mxu0 %v5308
    %5354 = vmatprep.subr.mxu0 %v5311
    %5355 = vmatpush1.msra.mxu0 %v5310
    %5356 = vmatprep.subr.mxu0 %v5313
    %5357 = vmatpush1.msra.mxu0 %v5312
    %5358 = vmatprep.subr.mxu0 %v5315
    %5359 = vmatpush1.msra.mxu0 %v5314
    %5360 = vmatprep.subr.mxu0 %v5317
    %5361 = vmatpush1.msra.mxu0 %v5316
    %5362 = vmatprep.subr.mxu0 %v5319
    %5363 = vmatpush1.msra.mxu0 %v5318
    %5364 = vmatprep.subr.mxu0 %v5321
    %5365 = vmatpush1.msra.mxu0 %v5320
    %5366 = vmatprep.subr.mxu0 %v5323
    %5367 = vmatpush1.msra.mxu0 %v5322
    %5368 = vmatprep.subr.mxu0 %v5325
    %5369 = vmatpush1.msra.mxu0 %v5324
    %5370 = vmatprep.subr.mxu0 %v5327
    %5371 = vmatpush1.msra.mxu0 %v5326
    %5372 = vmatprep.subr.mxu0 %v5329
    %5373 = vmatpush1.msra.mxu0 %v5328
    %5374 = vmatprep.subr.mxu0 %v5331
    %5375 = vmatpush1.msra.mxu0 %v5330
    %5376 = vmatprep.subr.mxu0 %v5333
    %5377 = vmatpush1.msra.mxu0 %v5332
    %5378 = vmatprep.subr.mxu0 %v5335
    %5379 = vmatpush1.msra.mxu0 %v5334
    %5380 = vmatprep.subr.mxu0 %v5337
    %5381 = vmatpush1.msra.mxu0 %v5336
    %5382 = vmatprep.subr.mxu0 0.0
    %5383 = vmatpush1.msra.mxu0 0.0
    %5384 = vmatprep.subr.mxu0 0.0
    %5385 = vmatpush1.msra.mxu0 0.0
    %5386 = vmatprep.subr.mxu0 0.0
    %5387 = vmatpush1.msra.mxu0 0.0
    %5388 = vmatprep.subr.mxu0 0.0
    %5389 = vmatpush1.msra.mxu0 0.0
    %5390 = vmatprep.subr.mxu0 0.0
    %5391 = vmatpush1.msra.mxu0 0.0
    %5392 = vmatprep.subr.mxu0 0.0
    %5393 = vmatpush1.msra.mxu0 0.0
    %5394 = vmatprep.subr.mxu0 0.0
    %5395 = vmatpush1.msra.mxu0 0.0
    %5396 = vmatprep.subr.mxu0 0.0
    %5397 = vmatpush1.msra.mxu0 0.0
    %5398 = vmatprep.subr.mxu0 0.0
    %5399 = vmatpush1.msra.mxu0 0.0
    %5400 = vmatprep.subr.mxu0 0.0
    %5401 = vmatpush1.msra.mxu0 0.0
    %5402 = vmatprep.subr.mxu0 0.0
    %5403 = vmatpush1.msra.mxu0 0.0
    %5404 = vmatprep.subr.mxu0 0.0
    %5405 = vmatpush1.msra.mxu0 0.0
    %5406 = vmatprep.subr.mxu0 0.0
    %5407 = vmatpush1.msra.mxu0 0.0
    %5408 = vmatprep.subr.mxu0 0.0
    %5409 = vmatpush1.msra.mxu0 0.0
    %5410 = vmatprep.subr.mxu0 0.0
    %5411 = vmatpush1.msra.mxu0 0.0
    %5412 = vmatprep.subr.mxu0 0.0
    %5413 = vmatpush1.msra.mxu0 0.0
    %5414 = vmatprep.subr.mxu0 0.0
    %5415 = vmatpush1.msra.mxu0 0.0
    %5416 = vmatprep.mubr.f32.mxu0 0.0
    %5417 = vmatmul.mubr.f32.gmra.mrb[0].mxu0 %v5348
    %v5418 = vpop.f32.mrb[0].mxu0
    %v5419 = vadd.f32 0.0, %v5418
    %v5420 = vpop.f32.mrb[0].mxu0
    %v5421 = vadd.f32 0.0, %v5420
    %5422 = vmatprep.mubr.f32.mxu0 0.0
    %5423 = vmatmul.mubr.f32.gmra.mrb[0].mxu0 %v5350
    %v5424 = vpop.f32.mrb[0].mxu0
    %v5425 = vadd.f32 0.0, %v5424
    %v5426 = vpop.f32.mrb[0].mxu0
    %v5427 = vadd.f32 0.0, %v5426
    %5428 = vdwg.mxu0
    %v5429 = vadd.f32 %v5303, %v5419
    %v5430 = vadd.f32 %v5304, %v5421
    %v5431 = vadd.f32 %v5305, %v5425
    %v5432 = vadd.f32 %v5306, %v5427
    %s5433 = scalar_lea.vmem %s3, 3120
    %v5434 = vld [vmem:[%s5433] sm:$0xff]
    %v5435 = vld [vmem:[%s5433 + $0x8] sm:$0xff]
    %v5436 = vld [vmem:[%s5433 + $0x10] sm:$0xff]
    %v5437 = vld [vmem:[%s5433 + $0x18] sm:$0xff]
    %v5438 = vld [vmem:[%s5433 + $0x20] sm:$0xff]
    %v5439 = vld [vmem:[%s5433 + $0x28] sm:$0xff]
    %v5440 = vld [vmem:[%s5433 + $0x30] sm:$0xff]
    %v5441 = vld [vmem:[%s5433 + $0x38] sm:$0xff]
    %v5442 = vld [vmem:[%s5433 + $0x40] sm:$0xff]
    %v5443 = vld [vmem:[%s5433 + $0x48] sm:$0xff]
    %v5444 = vld [vmem:[%s5433 + $0x50] sm:$0xff]
    %v5445 = vld [vmem:[%s5433 + $0x58] sm:$0xff]
    %v5446 = vld [vmem:[%s5433 + $0x60] sm:$0xff]
    %v5447 = vld [vmem:[%s5433 + $0x68] sm:$0xff]
    %v5448 = vld [vmem:[%s5433 + $0x70] sm:$0xff]
    %v5449 = vld [vmem:[%s5433 + $0x78] sm:$0xff]
    %v5450 = vld [vmem:[%s5433 + $0x80] sm:$0xff]
    %v5451 = vld [vmem:[%s5433 + $0x88] sm:$0xff]
    %v5452 = vld [vmem:[%s5433 + $0x90] sm:$0xff]
    %v5453 = vld [vmem:[%s5433 + $0x98] sm:$0xff]
    %v5454 = vld [vmem:[%s5433 + $0xa0] sm:$0xff]
    %v5455 = vld [vmem:[%s5433 + $0xa8] sm:$0xff]
    %v5456 = vld [vmem:[%s5433 + $0xb0] sm:$0xff]
    %v5457 = vld [vmem:[%s5433 + $0xb8] sm:$0xff]
    %v5458 = vld [vmem:[%s5433 + $0xc0] sm:$0xff]
    %v5459 = vld [vmem:[%s5433 + $0xc8] sm:$0xff]
    %v5460 = vld [vmem:[%s5433 + $0xd0] sm:$0xff]
    %v5461 = vld [vmem:[%s5433 + $0xd8] sm:$0xff]
    %v5462 = vld [vmem:[%s5433 + $0xe0] sm:$0xff]
    %v5463 = vld [vmem:[%s5433 + $0xe8] sm:$0xff]
    %5464 = vrot.lane.b32.xlu0 %v5092, 92
    %v5465 = vpop.permute.xlu0 %5464
    %5466 = vrot.lane.b32.xlu0 %v5211, 92
    %v5467 = vpop.permute.xlu0 %5466
    %5468 = vrot.lane.b32.xlu0 %v5091, 92
    %v5469 = vpop.permute.xlu0 %5468
    %5470 = vrot.lane.b32.xlu0 %v5210, 92
    %v5471 = vpop.permute.xlu0 %5470
    %v5472 = vsel %vm4218, %v5465, %v5467
    %v5473 = vsel %vm4218, %v5469, %v5471
    %v5474 = vsel %vm3889, %v5472, 0
    %v5476 = vsel %vm3889, %v5473, 0
    %5478 = vmatprep.subr.mxu0 %v5435
    %5479 = vmatpush1.msra.mxu0 %v5434
    %5480 = vmatprep.subr.mxu0 %v5437
    %5481 = vmatpush1.msra.mxu0 %v5436
    %5482 = vmatprep.subr.mxu0 %v5439
    %5483 = vmatpush1.msra.mxu0 %v5438
    %5484 = vmatprep.subr.mxu0 %v5441
    %5485 = vmatpush1.msra.mxu0 %v5440
    %5486 = vmatprep.subr.mxu0 %v5443
    %5487 = vmatpush1.msra.mxu0 %v5442
    %5488 = vmatprep.subr.mxu0 %v5445
    %5489 = vmatpush1.msra.mxu0 %v5444
    %5490 = vmatprep.subr.mxu0 %v5447
    %5491 = vmatpush1.msra.mxu0 %v5446
    %5492 = vmatprep.subr.mxu0 %v5449
    %5493 = vmatpush1.msra.mxu0 %v5448
    %5494 = vmatprep.subr.mxu0 %v5451
    %5495 = vmatpush1.msra.mxu0 %v5450
    %5496 = vmatprep.subr.mxu0 %v5453
    %5497 = vmatpush1.msra.mxu0 %v5452
    %5498 = vmatprep.subr.mxu0 %v5455
    %5499 = vmatpush1.msra.mxu0 %v5454
    %5500 = vmatprep.subr.mxu0 %v5457
    %5501 = vmatpush1.msra.mxu0 %v5456
    %5502 = vmatprep.subr.mxu0 %v5459
    %5503 = vmatpush1.msra.mxu0 %v5458
    %5504 = vmatprep.subr.mxu0 %v5461
    %5505 = vmatpush1.msra.mxu0 %v5460
    %5506 = vmatprep.subr.mxu0 %v5463
    %5507 = vmatpush1.msra.mxu0 %v5462
    %5508 = vmatprep.subr.mxu0 0.0
    %5509 = vmatpush1.msra.mxu0 0.0
    %5510 = vmatprep.subr.mxu0 0.0
    %5511 = vmatpush1.msra.mxu0 0.0
    %5512 = vmatprep.subr.mxu0 0.0
    %5513 = vmatpush1.msra.mxu0 0.0
    %5514 = vmatprep.subr.mxu0 0.0
    %5515 = vmatpush1.msra.mxu0 0.0
    %5516 = vmatprep.subr.mxu0 0.0
    %5517 = vmatpush1.msra.mxu0 0.0
    %5518 = vmatprep.subr.mxu0 0.0
    %5519 = vmatpush1.msra.mxu0 0.0
    %5520 = vmatprep.subr.mxu0 0.0
    %5521 = vmatpush1.msra.mxu0 0.0
    %5522 = vmatprep.subr.mxu0 0.0
    %5523 = vmatpush1.msra.mxu0 0.0
    %5524 = vmatprep.subr.mxu0 0.0
    %5525 = vmatpush1.msra.mxu0 0.0
    %5526 = vmatprep.subr.mxu0 0.0
    %5527 = vmatpush1.msra.mxu0 0.0
    %5528 = vmatprep.subr.mxu0 0.0
    %5529 = vmatpush1.msra.mxu0 0.0
    %5530 = vmatprep.subr.mxu0 0.0
    %5531 = vmatpush1.msra.mxu0 0.0
    %5532 = vmatprep.subr.mxu0 0.0
    %5533 = vmatpush1.msra.mxu0 0.0
    %5534 = vmatprep.subr.mxu0 0.0
    %5535 = vmatpush1.msra.mxu0 0.0
    %5536 = vmatprep.subr.mxu0 0.0
    %5537 = vmatpush1.msra.mxu0 0.0
    %5538 = vmatprep.subr.mxu0 0.0
    %5539 = vmatpush1.msra.mxu0 0.0
    %5540 = vmatprep.subr.mxu0 0.0
    %5541 = vmatpush1.msra.mxu0 0.0
    %5542 = vmatprep.mubr.f32.mxu0 0.0
    %5543 = vmatmul.mubr.f32.gmra.mrb[0].mxu0 %v5474
    %v5544 = vpop.f32.mrb[0].mxu0
    %v5545 = vadd.f32 0.0, %v5544
    %v5546 = vpop.f32.mrb[0].mxu0
    %v5547 = vadd.f32 0.0, %v5546
    %5548 = vmatprep.mubr.f32.mxu0 0.0
    %5549 = vmatmul.mubr.f32.gmra.mrb[0].mxu0 %v5476
    %v5550 = vpop.f32.mrb[0].mxu0
    %v5551 = vadd.f32 0.0, %v5550
    %v5552 = vpop.f32.mrb[0].mxu0
    %v5553 = vadd.f32 0.0, %v5552
    %5554 = vdwg.mxu0
    %v5555 = vadd.f32 %v5429, %v5545
    %v5556 = vadd.f32 %v5430, %v5547
    %v5557 = vadd.f32 %v5431, %v5551
    %v5558 = vadd.f32 %v5432, %v5553
    %s5559 = scalar_lea.vmem %s3, 3360
    %v5560 = vld [vmem:[%s5559] sm:$0xff]
    %v5561 = vld [vmem:[%s5559 + $0x8] sm:$0xff]
    %v5562 = vld [vmem:[%s5559 + $0x10] sm:$0xff]
    %v5563 = vld [vmem:[%s5559 + $0x18] sm:$0xff]
    %v5564 = vld [vmem:[%s5559 + $0x20] sm:$0xff]
    %v5565 = vld [vmem:[%s5559 + $0x28] sm:$0xff]
    %v5566 = vld [vmem:[%s5559 + $0x30] sm:$0xff]
    %v5567 = vld [vmem:[%s5559 + $0x38] sm:$0xff]
    %v5568 = vld [vmem:[%s5559 + $0x40] sm:$0xff]
    %v5569 = vld [vmem:[%s5559 + $0x48] sm:$0xff]
    %v5570 = vld [vmem:[%s5559 + $0x50] sm:$0xff]
    %v5571 = vld [vmem:[%s5559 + $0x58] sm:$0xff]
    %v5572 = vld [vmem:[%s5559 + $0x60] sm:$0xff]
    %v5573 = vld [vmem:[%s5559 + $0x68] sm:$0xff]
    %v5574 = vld [vmem:[%s5559 + $0x70] sm:$0xff]
    %v5575 = vld [vmem:[%s5559 + $0x78] sm:$0xff]
    %v5576 = vld [vmem:[%s5559 + $0x80] sm:$0xff]
    %v5577 = vld [vmem:[%s5559 + $0x88] sm:$0xff]
    %v5578 = vld [vmem:[%s5559 + $0x90] sm:$0xff]
    %v5579 = vld [vmem:[%s5559 + $0x98] sm:$0xff]
    %v5580 = vld [vmem:[%s5559 + $0xa0] sm:$0xff]
    %v5581 = vld [vmem:[%s5559 + $0xa8] sm:$0xff]
    %v5582 = vld [vmem:[%s5559 + $0xb0] sm:$0xff]
    %v5583 = vld [vmem:[%s5559 + $0xb8] sm:$0xff]
    %v5584 = vld [vmem:[%s5559 + $0xc0] sm:$0xff]
    %v5585 = vld [vmem:[%s5559 + $0xc8] sm:$0xff]
    %v5586 = vld [vmem:[%s5559 + $0xd0] sm:$0xff]
    %v5587 = vld [vmem:[%s5559 + $0xd8] sm:$0xff]
    %v5588 = vld [vmem:[%s5559 + $0xe0] sm:$0xff]
    %v5589 = vld [vmem:[%s5559 + $0xe8] sm:$0xff]
    %5590 = vrot.lane.b32.xlu0 %v5092, 80
    %v5591 = vpop.permute.xlu0 %5590
    %5592 = vrot.lane.b32.xlu0 %v5211, 80
    %v5593 = vpop.permute.xlu0 %5592
    %5594 = vrot.lane.b32.xlu0 %v5091, 80
    %v5595 = vpop.permute.xlu0 %5594
    %5596 = vrot.lane.b32.xlu0 %v5210, 80
    %v5597 = vpop.permute.xlu0 %5596
    %v5598 = vsel %vm4345, %v5591, %v5593
    %v5599 = vsel %vm4345, %v5595, %v5597
    %v5600 = vsel %vm3889, %v5598, 0
    %v5602 = vsel %vm3889, %v5599, 0
    %5604 = vmatprep.subr.mxu0 %v5561
    %5605 = vmatpush1.msra.mxu0 %v5560
    %5606 = vmatprep.subr.mxu0 %v5563
    %5607 = vmatpush1.msra.mxu0 %v5562
    %5608 = vmatprep.subr.mxu0 %v5565
    %5609 = vmatpush1.msra.mxu0 %v5564
    %5610 = vmatprep.subr.mxu0 %v5567
    %5611 = vmatpush1.msra.mxu0 %v5566
    %5612 = vmatprep.subr.mxu0 %v5569
    %5613 = vmatpush1.msra.mxu0 %v5568
    %5614 = vmatprep.subr.mxu0 %v5571
    %5615 = vmatpush1.msra.mxu0 %v5570
    %5616 = vmatprep.subr.mxu0 %v5573
    %5617 = vmatpush1.msra.mxu0 %v5572
    %5618 = vmatprep.subr.mxu0 %v5575
    %5619 = vmatpush1.msra.mxu0 %v5574
    %5620 = vmatprep.subr.mxu0 %v5577
    %5621 = vmatpush1.msra.mxu0 %v5576
    %5622 = vmatprep.subr.mxu0 %v5579
    %5623 = vmatpush1.msra.mxu0 %v5578
    %5624 = vmatprep.subr.mxu0 %v5581
    %5625 = vmatpush1.msra.mxu0 %v5580
    %5626 = vmatprep.subr.mxu0 %v5583
    %5627 = vmatpush1.msra.mxu0 %v5582
    %5628 = vmatprep.subr.mxu0 %v5585
    %5629 = vmatpush1.msra.mxu0 %v5584
    %5630 = vmatprep.subr.mxu0 %v5587
    %5631 = vmatpush1.msra.mxu0 %v5586
    %5632 = vmatprep.subr.mxu0 %v5589
    %5633 = vmatpush1.msra.mxu0 %v5588
    %5634 = vmatprep.subr.mxu0 0.0
    %5635 = vmatpush1.msra.mxu0 0.0
    %5636 = vmatprep.subr.mxu0 0.0
    %5637 = vmatpush1.msra.mxu0 0.0
    %5638 = vmatprep.subr.mxu0 0.0
    %5639 = vmatpush1.msra.mxu0 0.0
    %5640 = vmatprep.subr.mxu0 0.0
    %5641 = vmatpush1.msra.mxu0 0.0
    %5642 = vmatprep.subr.mxu0 0.0
    %5643 = vmatpush1.msra.mxu0 0.0
    %5644 = vmatprep.subr.mxu0 0.0
    %5645 = vmatpush1.msra.mxu0 0.0
    %5646 = vmatprep.subr.mxu0 0.0
    %5647 = vmatpush1.msra.mxu0 0.0
    %5648 = vmatprep.subr.mxu0 0.0
    %5649 = vmatpush1.msra.mxu0 0.0
    %5650 = vmatprep.subr.mxu0 0.0
    %5651 = vmatpush1.msra.mxu0 0.0
    %5652 = vmatprep.subr.mxu0 0.0
    %5653 = vmatpush1.msra.mxu0 0.0
    %5654 = vmatprep.subr.mxu0 0.0
    %5655 = vmatpush1.msra.mxu0 0.0
    %5656 = vmatprep.subr.mxu0 0.0
    %5657 = vmatpush1.msra.mxu0 0.0
    %5658 = vmatprep.subr.mxu0 0.0
    %5659 = vmatpush1.msra.mxu0 0.0
    %5660 = vmatprep.subr.mxu0 0.0
    %5661 = vmatpush1.msra.mxu0 0.0
    %5662 = vmatprep.subr.mxu0 0.0
    %5663 = vmatpush1.msra.mxu0 0.0
    %5664 = vmatprep.subr.mxu0 0.0
    %5665 = vmatpush1.msra.mxu0 0.0
    %5666 = vmatprep.subr.mxu0 0.0
    %5667 = vmatpush1.msra.mxu0 0.0
    %5668 = vmatprep.mubr.f32.mxu0 0.0
    %5669 = vmatmul.mubr.f32.gmra.mrb[0].mxu0 %v5600
    %v5670 = vpop.f32.mrb[0].mxu0
    %v5671 = vadd.f32 0.0, %v5670
    %v5672 = vpop.f32.mrb[0].mxu0
    %v5673 = vadd.f32 0.0, %v5672
    %5674 = vmatprep.mubr.f32.mxu0 0.0
    %5675 = vmatmul.mubr.f32.gmra.mrb[0].mxu0 %v5602
    %v5676 = vpop.f32.mrb[0].mxu0
    %v5677 = vadd.f32 0.0, %v5676
    %v5678 = vpop.f32.mrb[0].mxu0
    %v5679 = vadd.f32 0.0, %v5678
    %5680 = vdwg.mxu0
    %v5681 = vadd.f32 %v5555, %v5671
    %v5682 = vadd.f32 %v5556, %v5673
    %v5683 = vadd.f32 %v5557, %v5677
    %v5684 = vadd.f32 %v5558, %v5679
    %s5685 = scalar_lea.vmem %s3, 3600
    %v5686 = vld [vmem:[%s5685] sm:$0xff]
    %v5687 = vld [vmem:[%s5685 + $0x8] sm:$0xff]
    %v5688 = vld [vmem:[%s5685 + $0x10] sm:$0xff]
    %v5689 = vld [vmem:[%s5685 + $0x18] sm:$0xff]
    %v5690 = vld [vmem:[%s5685 + $0x20] sm:$0xff]
    %v5691 = vld [vmem:[%s5685 + $0x28] sm:$0xff]
    %v5692 = vld [vmem:[%s5685 + $0x30] sm:$0xff]
    %v5693 = vld [vmem:[%s5685 + $0x38] sm:$0xff]
    %v5694 = vld [vmem:[%s5685 + $0x40] sm:$0xff]
    %v5695 = vld [vmem:[%s5685 + $0x48] sm:$0xff]
    %v5696 = vld [vmem:[%s5685 + $0x50] sm:$0xff]
    %v5697 = vld [vmem:[%s5685 + $0x58] sm:$0xff]
    %v5698 = vld [vmem:[%s5685 + $0x60] sm:$0xff]
    %v5699 = vld [vmem:[%s5685 + $0x68] sm:$0xff]
    %v5700 = vld [vmem:[%s5685 + $0x70] sm:$0xff]
    %v5701 = vld [vmem:[%s5685 + $0x78] sm:$0xff]
    %v5702 = vld [vmem:[%s5685 + $0x80] sm:$0xff]
    %v5703 = vld [vmem:[%s5685 + $0x88] sm:$0xff]
    %v5704 = vld [vmem:[%s5685 + $0x90] sm:$0xff]
    %v5705 = vld [vmem:[%s5685 + $0x98] sm:$0xff]
    %v5706 = vld [vmem:[%s5685 + $0xa0] sm:$0xff]
    %v5707 = vld [vmem:[%s5685 + $0xa8] sm:$0xff]
    %v5708 = vld [vmem:[%s5685 + $0xb0] sm:$0xff]
    %v5709 = vld [vmem:[%s5685 + $0xb8] sm:$0xff]
    %v5710 = vld [vmem:[%s5685 + $0xc0] sm:$0xff]
    %v5711 = vld [vmem:[%s5685 + $0xc8] sm:$0xff]
    %v5712 = vld [vmem:[%s5685 + $0xd0] sm:$0xff]
    %v5713 = vld [vmem:[%s5685 + $0xd8] sm:$0xff]
    %v5714 = vld [vmem:[%s5685 + $0xe0] sm:$0xff]
    %v5715 = vld [vmem:[%s5685 + $0xe8] sm:$0xff]
    %v5716 = vrot.slane %v3809, 3
    %v5717 = vrot.slane %v3811, 3
    %v5718 = vsel %vm2251, %v5716, %v5717
    %v5719 = vsel %vm3889, %v5718, 0
    %v5721 = vsel %vm3889, %v5717, 0
    %5723 = vmatprep.subr.mxu0 %v5687
    %5724 = vmatpush1.msra.mxu0 %v5686
    %5725 = vmatprep.subr.mxu0 %v5689
    %5726 = vmatpush1.msra.mxu0 %v5688
    %5727 = vmatprep.subr.mxu0 %v5691
    %5728 = vmatpush1.msra.mxu0 %v5690
    %5729 = vmatprep.subr.mxu0 %v5693
    %5730 = vmatpush1.msra.mxu0 %v5692
    %5731 = vmatprep.subr.mxu0 %v5695
    %5732 = vmatpush1.msra.mxu0 %v5694
    %5733 = vmatprep.subr.mxu0 %v5697
    %5734 = vmatpush1.msra.mxu0 %v5696
    %5735 = vmatprep.subr.mxu0 %v5699
    %5736 = vmatpush1.msra.mxu0 %v5698
    %5737 = vmatprep.subr.mxu0 %v5701
    %5738 = vmatpush1.msra.mxu0 %v5700
    %5739 = vmatprep.subr.mxu0 %v5703
    %5740 = vmatpush1.msra.mxu0 %v5702
    %5741 = vmatprep.subr.mxu0 %v5705
    %5742 = vmatpush1.msra.mxu0 %v5704
    %5743 = vmatprep.subr.mxu0 %v5707
    %5744 = vmatpush1.msra.mxu0 %v5706
    %5745 = vmatprep.subr.mxu0 %v5709
    %5746 = vmatpush1.msra.mxu0 %v5708
    %5747 = vmatprep.subr.mxu0 %v5711
    %5748 = vmatpush1.msra.mxu0 %v5710
    %5749 = vmatprep.subr.mxu0 %v5713
    %5750 = vmatpush1.msra.mxu0 %v5712
    %5751 = vmatprep.subr.mxu0 %v5715
    %5752 = vmatpush1.msra.mxu0 %v5714
    %5753 = vmatprep.subr.mxu0 0.0
    %5754 = vmatpush1.msra.mxu0 0.0
    %5755 = vmatprep.subr.mxu0 0.0
    %5756 = vmatpush1.msra.mxu0 0.0
    %5757 = vmatprep.subr.mxu0 0.0
    %5758 = vmatpush1.msra.mxu0 0.0
    %5759 = vmatprep.subr.mxu0 0.0
    %5760 = vmatpush1.msra.mxu0 0.0
    %5761 = vmatprep.subr.mxu0 0.0
    %5762 = vmatpush1.msra.mxu0 0.0
    %5763 = vmatprep.subr.mxu0 0.0
    %5764 = vmatpush1.msra.mxu0 0.0
    %5765 = vmatprep.subr.mxu0 0.0
    %5766 = vmatpush1.msra.mxu0 0.0
    %5767 = vmatprep.subr.mxu0 0.0
    %5768 = vmatpush1.msra.mxu0 0.0
    %5769 = vmatprep.subr.mxu0 0.0
    %5770 = vmatpush1.msra.mxu0 0.0
    %5771 = vmatprep.subr.mxu0 0.0
    %5772 = vmatpush1.msra.mxu0 0.0
    %5773 = vmatprep.subr.mxu0 0.0
    %5774 = vmatpush1.msra.mxu0 0.0
    %5775 = vmatprep.subr.mxu0 0.0
    %5776 = vmatpush1.msra.mxu0 0.0
    %5777 = vmatprep.subr.mxu0 0.0
    %5778 = vmatpush1.msra.mxu0 0.0
    %5779 = vmatprep.subr.mxu0 0.0
    %5780 = vmatpush1.msra.mxu0 0.0
    %5781 = vmatprep.subr.mxu0 0.0
    %5782 = vmatpush1.msra.mxu0 0.0
    %5783 = vmatprep.subr.mxu0 0.0
    %5784 = vmatpush1.msra.mxu0 0.0
    %5785 = vmatprep.subr.mxu0 0.0
    %5786 = vmatpush1.msra.mxu0 0.0
    %5787 = vmatprep.mubr.f32.mxu0 0.0
    %5788 = vmatmul.mubr.f32.gmra.mrb[0].mxu0 %v5719
    %v5789 = vpop.f32.mrb[0].mxu0
    %v5790 = vadd.f32 0.0, %v5789
    %v5791 = vpop.f32.mrb[0].mxu0
    %v5792 = vadd.f32 0.0, %v5791
    %5793 = vmatprep.mubr.f32.mxu0 0.0
    %5794 = vmatmul.mubr.f32.gmra.mrb[0].mxu0 %v5721
    %v5795 = vpop.f32.mrb[0].mxu0
    %v5796 = vadd.f32 0.0, %v5795
    %v5797 = vpop.f32.mrb[0].mxu0
    %v5798 = vadd.f32 0.0, %v5797
    %5799 = vdwg.mxu0
    %v5800 = vadd.f32 %v5681, %v5790
    %v5801 = vadd.f32 %v5682, %v5792
    %v5802 = vadd.f32 %v5683, %v5796
    %v5803 = vadd.f32 %v5684, %v5798
    %s5804 = scalar_lea.vmem %s3, 3840
    %v5805 = vld [vmem:[%s5804] sm:$0xff]
    %v5806 = vld [vmem:[%s5804 + $0x8] sm:$0xff]
    %v5807 = vld [vmem:[%s5804 + $0x10] sm:$0xff]
    %v5808 = vld [vmem:[%s5804 + $0x18] sm:$0xff]
    %v5809 = vld [vmem:[%s5804 + $0x20] sm:$0xff]
    %v5810 = vld [vmem:[%s5804 + $0x28] sm:$0xff]
    %v5811 = vld [vmem:[%s5804 + $0x30] sm:$0xff]
    %v5812 = vld [vmem:[%s5804 + $0x38] sm:$0xff]
    %v5813 = vld [vmem:[%s5804 + $0x40] sm:$0xff]
    %v5814 = vld [vmem:[%s5804 + $0x48] sm:$0xff]
    %v5815 = vld [vmem:[%s5804 + $0x50] sm:$0xff]
    %v5816 = vld [vmem:[%s5804 + $0x58] sm:$0xff]
    %v5817 = vld [vmem:[%s5804 + $0x60] sm:$0xff]
    %v5818 = vld [vmem:[%s5804 + $0x68] sm:$0xff]
    %v5819 = vld [vmem:[%s5804 + $0x70] sm:$0xff]
    %v5820 = vld [vmem:[%s5804 + $0x78] sm:$0xff]
    %v5821 = vld [vmem:[%s5804 + $0x80] sm:$0xff]
    %v5822 = vld [vmem:[%s5804 + $0x88] sm:$0xff]
    %v5823 = vld [vmem:[%s5804 + $0x90] sm:$0xff]
    %v5824 = vld [vmem:[%s5804 + $0x98] sm:$0xff]
    %v5825 = vld [vmem:[%s5804 + $0xa0] sm:$0xff]
    %v5826 = vld [vmem:[%s5804 + $0xa8] sm:$0xff]
    %v5827 = vld [vmem:[%s5804 + $0xb0] sm:$0xff]
    %v5828 = vld [vmem:[%s5804 + $0xb8] sm:$0xff]
    %v5829 = vld [vmem:[%s5804 + $0xc0] sm:$0xff]
    %v5830 = vld [vmem:[%s5804 + $0xc8] sm:$0xff]
    %v5831 = vld [vmem:[%s5804 + $0xd0] sm:$0xff]
    %v5832 = vld [vmem:[%s5804 + $0xd8] sm:$0xff]
    %v5833 = vld [vmem:[%s5804 + $0xe0] sm:$0xff]
    %v5834 = vld [vmem:[%s5804 + $0xe8] sm:$0xff]
    %v5835 = vrot.slane %v3810, 3
    %v5836 = vrot.slane %v3812, 3
    %v5837 = vsel %vm2251, %v5835, %v5836
    %5838 = vrot.lane.b32.xlu0 %v5718, 116
    %v5839 = vpop.permute.xlu0 %5838
    %5840 = vrot.lane.b32.xlu0 %v5837, 116
    %v5841 = vpop.permute.xlu0 %5840
    %5842 = vrot.lane.b32.xlu0 %v5717, 116
    %v5843 = vpop.permute.xlu0 %5842
    %5844 = vrot.lane.b32.xlu0 %v5836, 116
    %v5845 = vpop.permute.xlu0 %5844
    %v5846 = vsel %vm3886, %v5839, %v5841
    %v5847 = vsel %vm3886, %v5843, %v5845
    %v5848 = vsel %vm3889, %v5846, 0
    %v5850 = vsel %vm3889, %v5847, 0
    %5852 = vmatprep.subr.mxu0 %v5806
    %5853 = vmatpush1.msra.mxu0 %v5805
    %5854 = vmatprep.subr.mxu0 %v5808
    %5855 = vmatpush1.msra.mxu0 %v5807
    %5856 = vmatprep.subr.mxu0 %v5810
    %5857 = vmatpush1.msra.mxu0 %v5809
    %5858 = vmatprep.subr.mxu0 %v5812
    %5859 = vmatpush1.msra.mxu0 %v5811
    %5860 = vmatprep.subr.mxu0 %v5814
    %5861 = vmatpush1.msra.mxu0 %v5813
    %5862 = vmatprep.subr.mxu0 %v5816
    %5863 = vmatpush1.msra.mxu0 %v5815
    %5864 = vmatprep.subr.mxu0 %v5818
    %5865 = vmatpush1.msra.mxu0 %v5817
    %5866 = vmatprep.subr.mxu0 %v5820
    %5867 = vmatpush1.msra.mxu0 %v5819
    %5868 = vmatprep.subr.mxu0 %v5822
    %5869 = vmatpush1.msra.mxu0 %v5821
    %5870 = vmatprep.subr.mxu0 %v5824
    %5871 = vmatpush1.msra.mxu0 %v5823
    %5872 = vmatprep.subr.mxu0 %v5826
    %5873 = vmatpush1.msra.mxu0 %v5825
    %5874 = vmatprep.subr.mxu0 %v5828
    %5875 = vmatpush1.msra.mxu0 %v5827
    %5876 = vmatprep.subr.mxu0 %v5830
    %5877 = vmatpush1.msra.mxu0 %v5829
    %5878 = vmatprep.subr.mxu0 %v5832
    %5879 = vmatpush1.msra.mxu0 %v5831
    %5880 = vmatprep.subr.mxu0 %v5834
    %5881 = vmatpush1.msra.mxu0 %v5833
    %5882 = vmatprep.subr.mxu0 0.0
    %5883 = vmatpush1.msra.mxu0 0.0
    %5884 = vmatprep.subr.mxu0 0.0
    %5885 = vmatpush1.msra.mxu0 0.0
    %5886 = vmatprep.subr.mxu0 0.0
    %5887 = vmatpush1.msra.mxu0 0.0
    %5888 = vmatprep.subr.mxu0 0.0
    %5889 = vmatpush1.msra.mxu0 0.0
    %5890 = vmatprep.subr.mxu0 0.0
    %5891 = vmatpush1.msra.mxu0 0.0
    %5892 = vmatprep.subr.mxu0 0.0
    %5893 = vmatpush1.msra.mxu0 0.0
    %5894 = vmatprep.subr.mxu0 0.0
    %5895 = vmatpush1.msra.mxu0 0.0
    %5896 = vmatprep.subr.mxu0 0.0
    %5897 = vmatpush1.msra.mxu0 0.0
    %5898 = vmatprep.subr.mxu0 0.0
    %5899 = vmatpush1.msra.mxu0 0.0
    %5900 = vmatprep.subr.mxu0 0.0
    %5901 = vmatpush1.msra.mxu0 0.0
    %5902 = vmatprep.subr.mxu0 0.0
    %5903 = vmatpush1.msra.mxu0 0.0
    %5904 = vmatprep.subr.mxu0 0.0
    %5905 = vmatpush1.msra.mxu0 0.0
    %5906 = vmatprep.subr.mxu0 0.0
    %5907 = vmatpush1.msra.mxu0 0.0
    %5908 = vmatprep.subr.mxu0 0.0
    %5909 = vmatpush1.msra.mxu0 0.0
    %5910 = vmatprep.subr.mxu0 0.0
    %5911 = vmatpush1.msra.mxu0 0.0
    %5912 = vmatprep.subr.mxu0 0.0
    %5913 = vmatpush1.msra.mxu0 0.0
    %5914 = vmatprep.subr.mxu0 0.0
    %5915 = vmatpush1.msra.mxu0 0.0
    %5916 = vmatprep.mubr.f32.mxu0 0.0
    %5917 = vmatmul.mubr.f32.gmra.mrb[0].mxu0 %v5848
    %v5918 = vpop.f32.mrb[0].mxu0
    %v5919 = vadd.f32 0.0, %v5918
    %v5920 = vpop.f32.mrb[0].mxu0
    %v5921 = vadd.f32 0.0, %v5920
    %5922 = vmatprep.mubr.f32.mxu0 0.0
    %5923 = vmatmul.mubr.f32.gmra.mrb[0].mxu0 %v5850
    %v5924 = vpop.f32.mrb[0].mxu0
    %v5925 = vadd.f32 0.0, %v5924
    %v5926 = vpop.f32.mrb[0].mxu0
    %v5927 = vadd.f32 0.0, %v5926
    %5928 = vdwg.mxu0
    %v5929 = vadd.f32 %v5800, %v5919
    %v5930 = vadd.f32 %v5801, %v5921
    %v5931 = vadd.f32 %v5802, %v5925
    %v5932 = vadd.f32 %v5803, %v5927
    %s5933 = scalar_lea.vmem %s3, 4080
    %v5934 = vld [vmem:[%s5933] sm:$0xff]
    %v5935 = vld [vmem:[%s5933 + $0x8] sm:$0xff]
    %v5936 = vld [vmem:[%s5933 + $0x10] sm:$0xff]
    %v5937 = vld [vmem:[%s5933 + $0x18] sm:$0xff]
    %v5938 = vld [vmem:[%s5933 + $0x20] sm:$0xff]
    %v5939 = vld [vmem:[%s5933 + $0x28] sm:$0xff]
    %v5940 = vld [vmem:[%s5933 + $0x30] sm:$0xff]
    %v5941 = vld [vmem:[%s5933 + $0x38] sm:$0xff]
    %v5942 = vld [vmem:[%s5933 + $0x40] sm:$0xff]
    %v5943 = vld [vmem:[%s5933 + $0x48] sm:$0xff]
    %v5944 = vld [vmem:[%s5933 + $0x50] sm:$0xff]
    %v5945 = vld [vmem:[%s5933 + $0x58] sm:$0xff]
    %v5946 = vld [vmem:[%s5933 + $0x60] sm:$0xff]
    %v5947 = vld [vmem:[%s5933 + $0x68] sm:$0xff]
    %v5948 = vld [vmem:[%s5933 + $0x70] sm:$0xff]
    %v5949 = vld [vmem:[%s5933 + $0x78] sm:$0xff]
    %v5950 = vld [vmem:[%s5933 + $0x80] sm:$0xff]
    %v5951 = vld [vmem:[%s5933 + $0x88] sm:$0xff]
    %v5952 = vld [vmem:[%s5933 + $0x90] sm:$0xff]
    %v5953 = vld [vmem:[%s5933 + $0x98] sm:$0xff]
    %v5954 = vld [vmem:[%s5933 + $0xa0] sm:$0xff]
    %v5955 = vld [vmem:[%s5933 + $0xa8] sm:$0xff]
    %v5956 = vld [vmem:[%s5933 + $0xb0] sm:$0xff]
    %v5957 = vld [vmem:[%s5933 + $0xb8] sm:$0xff]
    %v5958 = vld [vmem:[%s5933 + $0xc0] sm:$0xff]
    %v5959 = vld [vmem:[%s5933 + $0xc8] sm:$0xff]
    %v5960 = vld [vmem:[%s5933 + $0xd0] sm:$0xff]
    %v5961 = vld [vmem:[%s5933 + $0xd8] sm:$0xff]
    %v5962 = vld [vmem:[%s5933 + $0xe0] sm:$0xff]
    %v5963 = vld [vmem:[%s5933 + $0xe8] sm:$0xff]
    %5964 = vrot.lane.b32.xlu0 %v5718, 104
    %v5965 = vpop.permute.xlu0 %5964
    %5966 = vrot.lane.b32.xlu0 %v5837, 104
    %v5967 = vpop.permute.xlu0 %5966
    %5968 = vrot.lane.b32.xlu0 %v5717, 104
    %v5969 = vpop.permute.xlu0 %5968
    %5970 = vrot.lane.b32.xlu0 %v5836, 104
    %v5971 = vpop.permute.xlu0 %5970
    %v5972 = vsel %vm4091, %v5965, %v5967
    %v5973 = vsel %vm4091, %v5969, %v5971
    %v5974 = vsel %vm3889, %v5972, 0
    %v5976 = vsel %vm3889, %v5973, 0
    %5978 = vmatprep.subr.mxu0 %v5935
    %5979 = vmatpush1.msra.mxu0 %v5934
    %5980 = vmatprep.subr.mxu0 %v5937
    %5981 = vmatpush1.msra.mxu0 %v5936
    %5982 = vmatprep.subr.mxu0 %v5939
    %5983 = vmatpush1.msra.mxu0 %v5938
    %5984 = vmatprep.subr.mxu0 %v5941
    %5985 = vmatpush1.msra.mxu0 %v5940
    %5986 = vmatprep.subr.mxu0 %v5943
    %5987 = vmatpush1.msra.mxu0 %v5942
    %5988 = vmatprep.subr.mxu0 %v5945
    %5989 = vmatpush1.msra.mxu0 %v5944
    %5990 = vmatprep.subr.mxu0 %v5947
    %5991 = vmatpush1.msra.mxu0 %v5946
    %5992 = vmatprep.subr.mxu0 %v5949
    %5993 = vmatpush1.msra.mxu0 %v5948
    %5994 = vmatprep.subr.mxu0 %v5951
    %5995 = vmatpush1.msra.mxu0 %v5950
    %5996 = vmatprep.subr.mxu0 %v5953
    %5997 = vmatpush1.msra.mxu0 %v5952
    %5998 = vmatprep.subr.mxu0 %v5955
    %5999 = vmatpush1.msra.mxu0 %v5954
    %6000 = vmatprep.subr.mxu0 %v5957
    %6001 = vmatpush1.msra.mxu0 %v5956
    %6002 = vmatprep.subr.mxu0 %v5959
    %6003 = vmatpush1.msra.mxu0 %v5958
    %6004 = vmatprep.subr.mxu0 %v5961
    %6005 = vmatpush1.msra.mxu0 %v5960
    %6006 = vmatprep.subr.mxu0 %v5963
    %6007 = vmatpush1.msra.mxu0 %v5962
    %6008 = vmatprep.subr.mxu0 0.0
    %6009 = vmatpush1.msra.mxu0 0.0
    %6010 = vmatprep.subr.mxu0 0.0
    %6011 = vmatpush1.msra.mxu0 0.0
    %6012 = vmatprep.subr.mxu0 0.0
    %6013 = vmatpush1.msra.mxu0 0.0
    %6014 = vmatprep.subr.mxu0 0.0
    %6015 = vmatpush1.msra.mxu0 0.0
    %6016 = vmatprep.subr.mxu0 0.0
    %6017 = vmatpush1.msra.mxu0 0.0
    %6018 = vmatprep.subr.mxu0 0.0
    %6019 = vmatpush1.msra.mxu0 0.0
    %6020 = vmatprep.subr.mxu0 0.0
    %6021 = vmatpush1.msra.mxu0 0.0
    %6022 = vmatprep.subr.mxu0 0.0
    %6023 = vmatpush1.msra.mxu0 0.0
    %6024 = vmatprep.subr.mxu0 0.0
    %6025 = vmatpush1.msra.mxu0 0.0
    %6026 = vmatprep.subr.mxu0 0.0
    %6027 = vmatpush1.msra.mxu0 0.0
    %6028 = vmatprep.subr.mxu0 0.0
    %6029 = vmatpush1.msra.mxu0 0.0
    %6030 = vmatprep.subr.mxu0 0.0
    %6031 = vmatpush1.msra.mxu0 0.0
    %6032 = vmatprep.subr.mxu0 0.0
    %6033 = vmatpush1.msra.mxu0 0.0
    %6034 = vmatprep.subr.mxu0 0.0
    %6035 = vmatpush1.msra.mxu0 0.0
    %6036 = vmatprep.subr.mxu0 0.0
    %6037 = vmatpush1.msra.mxu0 0.0
    %6038 = vmatprep.subr.mxu0 0.0
    %6039 = vmatpush1.msra.mxu0 0.0
    %6040 = vmatprep.subr.mxu0 0.0
    %6041 = vmatpush1.msra.mxu0 0.0
    %6042 = vmatprep.mubr.f32.mxu0 0.0
    %6043 = vmatmul.mubr.f32.gmra.mrb[0].mxu0 %v5974
    %v6044 = vpop.f32.mrb[0].mxu0
    %v6045 = vadd.f32 0.0, %v6044
    %v6046 = vpop.f32.mrb[0].mxu0
    %v6047 = vadd.f32 0.0, %v6046
    %6048 = vmatprep.mubr.f32.mxu0 0.0
    %6049 = vmatmul.mubr.f32.gmra.mrb[0].mxu0 %v5976
    %v6050 = vpop.f32.mrb[0].mxu0
    %v6051 = vadd.f32 0.0, %v6050
    %v6052 = vpop.f32.mrb[0].mxu0
    %v6053 = vadd.f32 0.0, %v6052
    %6054 = vdwg.mxu0
    %v6055 = vadd.f32 %v5929, %v6045
    %v6056 = vadd.f32 %v5930, %v6047
    %v6057 = vadd.f32 %v5931, %v6051
    %v6058 = vadd.f32 %v5932, %v6053
    %s6059 = scalar_lea.vmem %s3, 4320
    %v6060 = vld [vmem:[%s6059] sm:$0xff]
    %v6061 = vld [vmem:[%s6059 + $0x8] sm:$0xff]
    %v6062 = vld [vmem:[%s6059 + $0x10] sm:$0xff]
    %v6063 = vld [vmem:[%s6059 + $0x18] sm:$0xff]
    %v6064 = vld [vmem:[%s6059 + $0x20] sm:$0xff]
    %v6065 = vld [vmem:[%s6059 + $0x28] sm:$0xff]
    %v6066 = vld [vmem:[%s6059 + $0x30] sm:$0xff]
    %v6067 = vld [vmem:[%s6059 + $0x38] sm:$0xff]
    %v6068 = vld [vmem:[%s6059 + $0x40] sm:$0xff]
    %v6069 = vld [vmem:[%s6059 + $0x48] sm:$0xff]
    %v6070 = vld [vmem:[%s6059 + $0x50] sm:$0xff]
    %v6071 = vld [vmem:[%s6059 + $0x58] sm:$0xff]
    %v6072 = vld [vmem:[%s6059 + $0x60] sm:$0xff]
    %v6073 = vld [vmem:[%s6059 + $0x68] sm:$0xff]
    %v6074 = vld [vmem:[%s6059 + $0x70] sm:$0xff]
    %v6075 = vld [vmem:[%s6059 + $0x78] sm:$0xff]
    %v6076 = vld [vmem:[%s6059 + $0x80] sm:$0xff]
    %v6077 = vld [vmem:[%s6059 + $0x88] sm:$0xff]
    %v6078 = vld [vmem:[%s6059 + $0x90] sm:$0xff]
    %v6079 = vld [vmem:[%s6059 + $0x98] sm:$0xff]
    %v6080 = vld [vmem:[%s6059 + $0xa0] sm:$0xff]
    %v6081 = vld [vmem:[%s6059 + $0xa8] sm:$0xff]
    %v6082 = vld [vmem:[%s6059 + $0xb0] sm:$0xff]
    %v6083 = vld [vmem:[%s6059 + $0xb8] sm:$0xff]
    %v6084 = vld [vmem:[%s6059 + $0xc0] sm:$0xff]
    %v6085 = vld [vmem:[%s6059 + $0xc8] sm:$0xff]
    %v6086 = vld [vmem:[%s6059 + $0xd0] sm:$0xff]
    %v6087 = vld [vmem:[%s6059 + $0xd8] sm:$0xff]
    %v6088 = vld [vmem:[%s6059 + $0xe0] sm:$0xff]
    %v6089 = vld [vmem:[%s6059 + $0xe8] sm:$0xff]
    %6090 = vrot.lane.b32.xlu0 %v5718, 92
    %v6091 = vpop.permute.xlu0 %6090
    %6092 = vrot.lane.b32.xlu0 %v5837, 92
    %v6093 = vpop.permute.xlu0 %6092
    %6094 = vrot.lane.b32.xlu0 %v5717, 92
    %v6095 = vpop.permute.xlu0 %6094
    %6096 = vrot.lane.b32.xlu0 %v5836, 92
    %v6097 = vpop.permute.xlu0 %6096
    %v6098 = vsel %vm4218, %v6091, %v6093
    %v6099 = vsel %vm4218, %v6095, %v6097
    %v6100 = vsel %vm3889, %v6098, 0
    %v6102 = vsel %vm3889, %v6099, 0
    %6104 = vmatprep.subr.mxu0 %v6061
    %6105 = vmatpush1.msra.mxu0 %v6060
    %6106 = vmatprep.subr.mxu0 %v6063
    %6107 = vmatpush1.msra.mxu0 %v6062
    %6108 = vmatprep.subr.mxu0 %v6065
    %6109 = vmatpush1.msra.mxu0 %v6064
    %6110 = vmatprep.subr.mxu0 %v6067
    %6111 = vmatpush1.msra.mxu0 %v6066
    %6112 = vmatprep.subr.mxu0 %v6069
    %6113 = vmatpush1.msra.mxu0 %v6068
    %6114 = vmatprep.subr.mxu0 %v6071
    %6115 = vmatpush1.msra.mxu0 %v6070
    %6116 = vmatprep.subr.mxu0 %v6073
    %6117 = vmatpush1.msra.mxu0 %v6072
    %6118 = vmatprep.subr.mxu0 %v6075
    %6119 = vmatpush1.msra.mxu0 %v6074
    %6120 = vmatprep.subr.mxu0 %v6077
    %6121 = vmatpush1.msra.mxu0 %v6076
    %6122 = vmatprep.subr.mxu0 %v6079
    %6123 = vmatpush1.msra.mxu0 %v6078
    %6124 = vmatprep.subr.mxu0 %v6081
    %6125 = vmatpush1.msra.mxu0 %v6080
    %6126 = vmatprep.subr.mxu0 %v6083
    %6127 = vmatpush1.msra.mxu0 %v6082
    %6128 = vmatprep.subr.mxu0 %v6085
    %6129 = vmatpush1.msra.mxu0 %v6084
    %6130 = vmatprep.subr.mxu0 %v6087
    %6131 = vmatpush1.msra.mxu0 %v6086
    %6132 = vmatprep.subr.mxu0 %v6089
    %6133 = vmatpush1.msra.mxu0 %v6088
    %6134 = vmatprep.subr.mxu0 0.0
    %6135 = vmatpush1.msra.mxu0 0.0
    %6136 = vmatprep.subr.mxu0 0.0
    %6137 = vmatpush1.msra.mxu0 0.0
    %6138 = vmatprep.subr.mxu0 0.0
    %6139 = vmatpush1.msra.mxu0 0.0
    %6140 = vmatprep.subr.mxu0 0.0
    %6141 = vmatpush1.msra.mxu0 0.0
    %6142 = vmatprep.subr.mxu0 0.0
    %6143 = vmatpush1.msra.mxu0 0.0
    %6144 = vmatprep.subr.mxu0 0.0
    %6145 = vmatpush1.msra.mxu0 0.0
    %6146 = vmatprep.subr.mxu0 0.0
    %6147 = vmatpush1.msra.mxu0 0.0
    %6148 = vmatprep.subr.mxu0 0.0
    %6149 = vmatpush1.msra.mxu0 0.0
    %6150 = vmatprep.subr.mxu0 0.0
    %6151 = vmatpush1.msra.mxu0 0.0
    %6152 = vmatprep.subr.mxu0 0.0
    %6153 = vmatpush1.msra.mxu0 0.0
    %6154 = vmatprep.subr.mxu0 0.0
    %6155 = vmatpush1.msra.mxu0 0.0
    %6156 = vmatprep.subr.mxu0 0.0
    %6157 = vmatpush1.msra.mxu0 0.0
    %6158 = vmatprep.subr.mxu0 0.0
    %6159 = vmatpush1.msra.mxu0 0.0
    %6160 = vmatprep.subr.mxu0 0.0
    %6161 = vmatpush1.msra.mxu0 0.0
    %6162 = vmatprep.subr.mxu0 0.0
    %6163 = vmatpush1.msra.mxu0 0.0
    %6164 = vmatprep.subr.mxu0 0.0
    %6165 = vmatpush1.msra.mxu0 0.0
    %6166 = vmatprep.subr.mxu0 0.0
    %6167 = vmatpush1.msra.mxu0 0.0
    %6168 = vmatprep.mubr.f32.mxu0 0.0
    %6169 = vmatmul.mubr.f32.gmra.mrb[0].mxu0 %v6100
    %v6170 = vpop.f32.mrb[0].mxu0
    %v6171 = vadd.f32 0.0, %v6170
    %v6172 = vpop.f32.mrb[0].mxu0
    %v6173 = vadd.f32 0.0, %v6172
    %6174 = vmatprep.mubr.f32.mxu0 0.0
    %6175 = vmatmul.mubr.f32.gmra.mrb[0].mxu0 %v6102
    %v6176 = vpop.f32.mrb[0].mxu0
    %v6177 = vadd.f32 0.0, %v6176
    %v6178 = vpop.f32.mrb[0].mxu0
    %v6179 = vadd.f32 0.0, %v6178
    %6180 = vdwg.mxu0
    %v6181 = vadd.f32 %v6055, %v6171
    %v6182 = vadd.f32 %v6056, %v6173
    %v6183 = vadd.f32 %v6057, %v6177
    %v6184 = vadd.f32 %v6058, %v6179
    %s6185 = scalar_lea.vmem %s3, 4560
    %v6186 = vld [vmem:[%s6185] sm:$0xff]
    %v6187 = vld [vmem:[%s6185 + $0x8] sm:$0xff]
    %v6188 = vld [vmem:[%s6185 + $0x10] sm:$0xff]
    %v6189 = vld [vmem:[%s6185 + $0x18] sm:$0xff]
    %v6190 = vld [vmem:[%s6185 + $0x20] sm:$0xff]
    %v6191 = vld [vmem:[%s6185 + $0x28] sm:$0xff]
    %v6192 = vld [vmem:[%s6185 + $0x30] sm:$0xff]
    %v6193 = vld [vmem:[%s6185 + $0x38] sm:$0xff]
    %v6194 = vld [vmem:[%s6185 + $0x40] sm:$0xff]
    %v6195 = vld [vmem:[%s6185 + $0x48] sm:$0xff]
    %v6196 = vld [vmem:[%s6185 + $0x50] sm:$0xff]
    %v6197 = vld [vmem:[%s6185 + $0x58] sm:$0xff]
    %v6198 = vld [vmem:[%s6185 + $0x60] sm:$0xff]
    %v6199 = vld [vmem:[%s6185 + $0x68] sm:$0xff]
    %v6200 = vld [vmem:[%s6185 + $0x70] sm:$0xff]
    %v6201 = vld [vmem:[%s6185 + $0x78] sm:$0xff]
    %v6202 = vld [vmem:[%s6185 + $0x80] sm:$0xff]
    %v6203 = vld [vmem:[%s6185 + $0x88] sm:$0xff]
    %v6204 = vld [vmem:[%s6185 + $0x90] sm:$0xff]
    %v6205 = vld [vmem:[%s6185 + $0x98] sm:$0xff]
    %v6206 = vld [vmem:[%s6185 + $0xa0] sm:$0xff]
    %v6207 = vld [vmem:[%s6185 + $0xa8] sm:$0xff]
    %v6208 = vld [vmem:[%s6185 + $0xb0] sm:$0xff]
    %v6209 = vld [vmem:[%s6185 + $0xb8] sm:$0xff]
    %v6210 = vld [vmem:[%s6185 + $0xc0] sm:$0xff]
    %v6211 = vld [vmem:[%s6185 + $0xc8] sm:$0xff]
    %v6212 = vld [vmem:[%s6185 + $0xd0] sm:$0xff]
    %v6213 = vld [vmem:[%s6185 + $0xd8] sm:$0xff]
    %v6214 = vld [vmem:[%s6185 + $0xe0] sm:$0xff]
    %v6215 = vld [vmem:[%s6185 + $0xe8] sm:$0xff]
    %6216 = vrot.lane.b32.xlu0 %v5718, 80
    %v6217 = vpop.permute.xlu0 %6216
    %6218 = vrot.lane.b32.xlu0 %v5837, 80
    %v6219 = vpop.permute.xlu0 %6218
    %6220 = vrot.lane.b32.xlu0 %v5717, 80
    %v6221 = vpop.permute.xlu0 %6220
    %6222 = vrot.lane.b32.xlu0 %v5836, 80
    %v6223 = vpop.permute.xlu0 %6222
    %v6224 = vsel %vm4345, %v6217, %v6219
    %v6225 = vsel %vm4345, %v6221, %v6223
    %v6226 = vsel %vm3889, %v6224, 0
    %v6228 = vsel %vm3889, %v6225, 0
    %6230 = vmatprep.subr.mxu0 %v6187
    %6231 = vmatpush1.msra.mxu0 %v6186
    %6232 = vmatprep.subr.mxu0 %v6189
    %6233 = vmatpush1.msra.mxu0 %v6188
    %6234 = vmatprep.subr.mxu0 %v6191
    %6235 = vmatpush1.msra.mxu0 %v6190
    %6236 = vmatprep.subr.mxu0 %v6193
    %6237 = vmatpush1.msra.mxu0 %v6192
    %6238 = vmatprep.subr.mxu0 %v6195
    %6239 = vmatpush1.msra.mxu0 %v6194
    %6240 = vmatprep.subr.mxu0 %v6197
    %6241 = vmatpush1.msra.mxu0 %v6196
    %6242 = vmatprep.subr.mxu0 %v6199
    %6243 = vmatpush1.msra.mxu0 %v6198
    %6244 = vmatprep.subr.mxu0 %v6201
    %6245 = vmatpush1.msra.mxu0 %v6200
    %6246 = vmatprep.subr.mxu0 %v6203
    %6247 = vmatpush1.msra.mxu0 %v6202
    %6248 = vmatprep.subr.mxu0 %v6205
    %6249 = vmatpush1.msra.mxu0 %v6204
    %6250 = vmatprep.subr.mxu0 %v6207
    %6251 = vmatpush1.msra.mxu0 %v6206
    %6252 = vmatprep.subr.mxu0 %v6209
    %6253 = vmatpush1.msra.mxu0 %v6208
    %6254 = vmatprep.subr.mxu0 %v6211
    %6255 = vmatpush1.msra.mxu0 %v6210
    %6256 = vmatprep.subr.mxu0 %v6213
    %6257 = vmatpush1.msra.mxu0 %v6212
    %6258 = vmatprep.subr.mxu0 %v6215
    %6259 = vmatpush1.msra.mxu0 %v6214
    %6260 = vmatprep.subr.mxu0 0.0
    %6261 = vmatpush1.msra.mxu0 0.0
    %6262 = vmatprep.subr.mxu0 0.0
    %6263 = vmatpush1.msra.mxu0 0.0
    %6264 = vmatprep.subr.mxu0 0.0
    %6265 = vmatpush1.msra.mxu0 0.0
    %6266 = vmatprep.subr.mxu0 0.0
    %6267 = vmatpush1.msra.mxu0 0.0
    %6268 = vmatprep.subr.mxu0 0.0
    %6269 = vmatpush1.msra.mxu0 0.0
    %6270 = vmatprep.subr.mxu0 0.0
    %6271 = vmatpush1.msra.mxu0 0.0
    %6272 = vmatprep.subr.mxu0 0.0
    %6273 = vmatpush1.msra.mxu0 0.0
    %6274 = vmatprep.subr.mxu0 0.0
    %6275 = vmatpush1.msra.mxu0 0.0
    %6276 = vmatprep.subr.mxu0 0.0
    %6277 = vmatpush1.msra.mxu0 0.0
    %6278 = vmatprep.subr.mxu0 0.0
    %6279 = vmatpush1.msra.mxu0 0.0
    %6280 = vmatprep.subr.mxu0 0.0
    %6281 = vmatpush1.msra.mxu0 0.0
    %6282 = vmatprep.subr.mxu0 0.0
    %6283 = vmatpush1.msra.mxu0 0.0
    %6284 = vmatprep.subr.mxu0 0.0
    %6285 = vmatpush1.msra.mxu0 0.0
    %6286 = vmatprep.subr.mxu0 0.0
    %6287 = vmatpush1.msra.mxu0 0.0
    %6288 = vmatprep.subr.mxu0 0.0
    %6289 = vmatpush1.msra.mxu0 0.0
    %6290 = vmatprep.subr.mxu0 0.0
    %6291 = vmatpush1.msra.mxu0 0.0
    %6292 = vmatprep.subr.mxu0 0.0
    %6293 = vmatpush1.msra.mxu0 0.0
    %6294 = vmatprep.mubr.f32.mxu0 0.0
    %6295 = vmatmul.mubr.f32.gmra.mrb[0].mxu0 %v6226
    %v6296 = vpop.f32.mrb[0].mxu0
    %v6297 = vadd.f32 0.0, %v6296
    %v6298 = vpop.f32.mrb[0].mxu0
    %v6299 = vadd.f32 0.0, %v6298
    %6300 = vmatprep.mubr.f32.mxu0 0.0
    %6301 = vmatmul.mubr.f32.gmra.mrb[0].mxu0 %v6228
    %v6302 = vpop.f32.mrb[0].mxu0
    %v6303 = vadd.f32 0.0, %v6302
    %v6304 = vpop.f32.mrb[0].mxu0
    %v6305 = vadd.f32 0.0, %v6304
    %6306 = vdwg.mxu0
    %v6307 = vadd.f32 %v6181, %v6297
    %v6308 = vadd.f32 %v6182, %v6299
    %v6309 = vadd.f32 %v6183, %v6303
    %v6310 = vadd.f32 %v6184, %v6305
    %s6311 = scalar_lea.vmem %s3, 4800
    %v6312 = vld [vmem:[%s6311] sm:$0xff]
    %v6313 = vld [vmem:[%s6311 + $0x8] sm:$0xff]
    %v6314 = vld [vmem:[%s6311 + $0x10] sm:$0xff]
    %v6315 = vld [vmem:[%s6311 + $0x18] sm:$0xff]
    %v6316 = vld [vmem:[%s6311 + $0x20] sm:$0xff]
    %v6317 = vld [vmem:[%s6311 + $0x28] sm:$0xff]
    %v6318 = vld [vmem:[%s6311 + $0x30] sm:$0xff]
    %v6319 = vld [vmem:[%s6311 + $0x38] sm:$0xff]
    %v6320 = vld [vmem:[%s6311 + $0x40] sm:$0xff]
    %v6321 = vld [vmem:[%s6311 + $0x48] sm:$0xff]
    %v6322 = vld [vmem:[%s6311 + $0x50] sm:$0xff]
    %v6323 = vld [vmem:[%s6311 + $0x58] sm:$0xff]
    %v6324 = vld [vmem:[%s6311 + $0x60] sm:$0xff]
    %v6325 = vld [vmem:[%s6311 + $0x68] sm:$0xff]
    %v6326 = vld [vmem:[%s6311 + $0x70] sm:$0xff]
    %v6327 = vld [vmem:[%s6311 + $0x78] sm:$0xff]
    %v6328 = vld [vmem:[%s6311 + $0x80] sm:$0xff]
    %v6329 = vld [vmem:[%s6311 + $0x88] sm:$0xff]
    %v6330 = vld [vmem:[%s6311 + $0x90] sm:$0xff]
    %v6331 = vld [vmem:[%s6311 + $0x98] sm:$0xff]
    %v6332 = vld [vmem:[%s6311 + $0xa0] sm:$0xff]
    %v6333 = vld [vmem:[%s6311 + $0xa8] sm:$0xff]
    %v6334 = vld [vmem:[%s6311 + $0xb0] sm:$0xff]
    %v6335 = vld [vmem:[%s6311 + $0xb8] sm:$0xff]
    %v6336 = vld [vmem:[%s6311 + $0xc0] sm:$0xff]
    %v6337 = vld [vmem:[%s6311 + $0xc8] sm:$0xff]
    %v6338 = vld [vmem:[%s6311 + $0xd0] sm:$0xff]
    %v6339 = vld [vmem:[%s6311 + $0xd8] sm:$0xff]
    %v6340 = vld [vmem:[%s6311 + $0xe0] sm:$0xff]
    %v6341 = vld [vmem:[%s6311 + $0xe8] sm:$0xff]
    %v6342 = vrot.slane %v3809, 4
    %v6343 = vrot.slane %v3811, 4
    %v6344 = vsel %vm379, %v6342, %v6343
    %v6345 = vsel %vm3889, %v6344, 0
    %v6347 = vsel %vm3889, %v6343, 0
    %6349 = vmatprep.subr.mxu0 %v6313
    %6350 = vmatpush1.msra.mxu0 %v6312
    %6351 = vmatprep.subr.mxu0 %v6315
    %6352 = vmatpush1.msra.mxu0 %v6314
    %6353 = vmatprep.subr.mxu0 %v6317
    %6354 = vmatpush1.msra.mxu0 %v6316
    %6355 = vmatprep.subr.mxu0 %v6319
    %6356 = vmatpush1.msra.mxu0 %v6318
    %6357 = vmatprep.subr.mxu0 %v6321
    %6358 = vmatpush1.msra.mxu0 %v6320
    %6359 = vmatprep.subr.mxu0 %v6323
    %6360 = vmatpush1.msra.mxu0 %v6322
    %6361 = vmatprep.subr.mxu0 %v6325
    %6362 = vmatpush1.msra.mxu0 %v6324
    %6363 = vmatprep.subr.mxu0 %v6327
    %6364 = vmatpush1.msra.mxu0 %v6326
    %6365 = vmatprep.subr.mxu0 %v6329
    %6366 = vmatpush1.msra.mxu0 %v6328
    %6367 = vmatprep.subr.mxu0 %v6331
    %6368 = vmatpush1.msra.mxu0 %v6330
    %6369 = vmatprep.subr.mxu0 %v6333
    %6370 = vmatpush1.msra.mxu0 %v6332
    %6371 = vmatprep.subr.mxu0 %v6335
    %6372 = vmatpush1.msra.mxu0 %v6334
    %6373 = vmatprep.subr.mxu0 %v6337
    %6374 = vmatpush1.msra.mxu0 %v6336
    %6375 = vmatprep.subr.mxu0 %v6339
    %6376 = vmatpush1.msra.mxu0 %v6338
    %6377 = vmatprep.subr.mxu0 %v6341
    %6378 = vmatpush1.msra.mxu0 %v6340
    %6379 = vmatprep.subr.mxu0 0.0
    %6380 = vmatpush1.msra.mxu0 0.0
    %6381 = vmatprep.subr.mxu0 0.0
    %6382 = vmatpush1.msra.mxu0 0.0
    %6383 = vmatprep.subr.mxu0 0.0
    %6384 = vmatpush1.msra.mxu0 0.0
    %6385 = vmatprep.subr.mxu0 0.0
    %6386 = vmatpush1.msra.mxu0 0.0
    %6387 = vmatprep.subr.mxu0 0.0
    %6388 = vmatpush1.msra.mxu0 0.0
    %6389 = vmatprep.subr.mxu0 0.0
    %6390 = vmatpush1.msra.mxu0 0.0
    %6391 = vmatprep.subr.mxu0 0.0
    %6392 = vmatpush1.msra.mxu0 0.0
    %6393 = vmatprep.subr.mxu0 0.0
    %6394 = vmatpush1.msra.mxu0 0.0
    %6395 = vmatprep.subr.mxu0 0.0
    %6396 = vmatpush1.msra.mxu0 0.0
    %6397 = vmatprep.subr.mxu0 0.0
    %6398 = vmatpush1.msra.mxu0 0.0
    %6399 = vmatprep.subr.mxu0 0.0
    %6400 = vmatpush1.msra.mxu0 0.0
    %6401 = vmatprep.subr.mxu0 0.0
    %6402 = vmatpush1.msra.mxu0 0.0
    %6403 = vmatprep.subr.mxu0 0.0
    %6404 = vmatpush1.msra.mxu0 0.0
    %6405 = vmatprep.subr.mxu0 0.0
    %6406 = vmatpush1.msra.mxu0 0.0
    %6407 = vmatprep.subr.mxu0 0.0
    %6408 = vmatpush1.msra.mxu0 0.0
    %6409 = vmatprep.subr.mxu0 0.0
    %6410 = vmatpush1.msra.mxu0 0.0
    %6411 = vmatprep.subr.mxu0 0.0
    %6412 = vmatpush1.msra.mxu0 0.0
    %6413 = vmatprep.mubr.f32.mxu0 0.0
    %6414 = vmatmul.mubr.f32.gmra.mrb[0].mxu0 %v6345
    %v6415 = vpop.f32.mrb[0].mxu0
    %v6416 = vadd.f32 0.0, %v6415
    %v6417 = vpop.f32.mrb[0].mxu0
    %v6418 = vadd.f32 0.0, %v6417
    %6419 = vmatprep.mubr.f32.mxu0 0.0
    %6420 = vmatmul.mubr.f32.gmra.mrb[0].mxu0 %v6347
    %v6421 = vpop.f32.mrb[0].mxu0
    %v6422 = vadd.f32 0.0, %v6421
    %v6423 = vpop.f32.mrb[0].mxu0
    %v6424 = vadd.f32 0.0, %v6423
    %6425 = vdwg.mxu0
    %v6426 = vadd.f32 %v6307, %v6416
    %v6427 = vadd.f32 %v6308, %v6418
    %v6428 = vadd.f32 %v6309, %v6422
    %v6429 = vadd.f32 %v6310, %v6424
    %s6430 = scalar_lea.vmem %s3, 5040
    %v6431 = vld [vmem:[%s6430] sm:$0xff]
    %v6432 = vld [vmem:[%s6430 + $0x8] sm:$0xff]
    %v6433 = vld [vmem:[%s6430 + $0x10] sm:$0xff]
    %v6434 = vld [vmem:[%s6430 + $0x18] sm:$0xff]
    %v6435 = vld [vmem:[%s6430 + $0x20] sm:$0xff]
    %v6436 = vld [vmem:[%s6430 + $0x28] sm:$0xff]
    %v6437 = vld [vmem:[%s6430 + $0x30] sm:$0xff]
    %v6438 = vld [vmem:[%s6430 + $0x38] sm:$0xff]
    %v6439 = vld [vmem:[%s6430 + $0x40] sm:$0xff]
    %v6440 = vld [vmem:[%s6430 + $0x48] sm:$0xff]
    %v6441 = vld [vmem:[%s6430 + $0x50] sm:$0xff]
    %v6442 = vld [vmem:[%s6430 + $0x58] sm:$0xff]
    %v6443 = vld [vmem:[%s6430 + $0x60] sm:$0xff]
    %v6444 = vld [vmem:[%s6430 + $0x68] sm:$0xff]
    %v6445 = vld [vmem:[%s6430 + $0x70] sm:$0xff]
    %v6446 = vld [vmem:[%s6430 + $0x78] sm:$0xff]
    %v6447 = vld [vmem:[%s6430 + $0x80] sm:$0xff]
    %v6448 = vld [vmem:[%s6430 + $0x88] sm:$0xff]
    %v6449 = vld [vmem:[%s6430 + $0x90] sm:$0xff]
    %v6450 = vld [vmem:[%s6430 + $0x98] sm:$0xff]
    %v6451 = vld [vmem:[%s6430 + $0xa0] sm:$0xff]
    %v6452 = vld [vmem:[%s6430 + $0xa8] sm:$0xff]
    %v6453 = vld [vmem:[%s6430 + $0xb0] sm:$0xff]
    %v6454 = vld [vmem:[%s6430 + $0xb8] sm:$0xff]
    %v6455 = vld [vmem:[%s6430 + $0xc0] sm:$0xff]
    %v6456 = vld [vmem:[%s6430 + $0xc8] sm:$0xff]
    %v6457 = vld [vmem:[%s6430 + $0xd0] sm:$0xff]
    %v6458 = vld [vmem:[%s6430 + $0xd8] sm:$0xff]
    %v6459 = vld [vmem:[%s6430 + $0xe0] sm:$0xff]
    %v6460 = vld [vmem:[%s6430 + $0xe8] sm:$0xff]
    %v6461 = vrot.slane %v3810, 4
    %v6462 = vrot.slane %v3812, 4
    %v6463 = vsel %vm379, %v6461, %v6462
    %6464 = vrot.lane.b32.xlu0 %v6344, 116
    %v6465 = vpop.permute.xlu0 %6464
    %6466 = vrot.lane.b32.xlu0 %v6463, 116
    %v6467 = vpop.permute.xlu0 %6466
    %6468 = vrot.lane.b32.xlu0 %v6343, 116
    %v6469 = vpop.permute.xlu0 %6468
    %6470 = vrot.lane.b32.xlu0 %v6462, 116
    %v6471 = vpop.permute.xlu0 %6470
    %v6472 = vsel %vm3886, %v6465, %v6467
    %v6473 = vsel %vm3886, %v6469, %v6471
    %v6474 = vsel %vm3889, %v6472, 0
    %v6476 = vsel %vm3889, %v6473, 0
    %6478 = vmatprep.subr.mxu0 %v6432
    %6479 = vmatpush1.msra.mxu0 %v6431
    %6480 = vmatprep.subr.mxu0 %v6434
    %6481 = vmatpush1.msra.mxu0 %v6433
    %6482 = vmatprep.subr.mxu0 %v6436
    %6483 = vmatpush1.msra.mxu0 %v6435
    %6484 = vmatprep.subr.mxu0 %v6438
    %6485 = vmatpush1.msra.mxu0 %v6437
    %6486 = vmatprep.subr.mxu0 %v6440
    %6487 = vmatpush1.msra.mxu0 %v6439
    %6488 = vmatprep.subr.mxu0 %v6442
    %6489 = vmatpush1.msra.mxu0 %v6441
    %6490 = vmatprep.subr.mxu0 %v6444
    %6491 = vmatpush1.msra.mxu0 %v6443
    %6492 = vmatprep.subr.mxu0 %v6446
    %6493 = vmatpush1.msra.mxu0 %v6445
    %6494 = vmatprep.subr.mxu0 %v6448
    %6495 = vmatpush1.msra.mxu0 %v6447
    %6496 = vmatprep.subr.mxu0 %v6450
    %6497 = vmatpush1.msra.mxu0 %v6449
    %6498 = vmatprep.subr.mxu0 %v6452
    %6499 = vmatpush1.msra.mxu0 %v6451
    %6500 = vmatprep.subr.mxu0 %v6454
    %6501 = vmatpush1.msra.mxu0 %v6453
    %6502 = vmatprep.subr.mxu0 %v6456
    %6503 = vmatpush1.msra.mxu0 %v6455
    %6504 = vmatprep.subr.mxu0 %v6458
    %6505 = vmatpush1.msra.mxu0 %v6457
    %6506 = vmatprep.subr.mxu0 %v6460
    %6507 = vmatpush1.msra.mxu0 %v6459
    %6508 = vmatprep.subr.mxu0 0.0
    %6509 = vmatpush1.msra.mxu0 0.0
    %6510 = vmatprep.subr.mxu0 0.0
    %6511 = vmatpush1.msra.mxu0 0.0
    %6512 = vmatprep.subr.mxu0 0.0
    %6513 = vmatpush1.msra.mxu0 0.0
    %6514 = vmatprep.subr.mxu0 0.0
    %6515 = vmatpush1.msra.mxu0 0.0
    %6516 = vmatprep.subr.mxu0 0.0
    %6517 = vmatpush1.msra.mxu0 0.0
    %6518 = vmatprep.subr.mxu0 0.0
    %6519 = vmatpush1.msra.mxu0 0.0
    %6520 = vmatprep.subr.mxu0 0.0
    %6521 = vmatpush1.msra.mxu0 0.0
    %6522 = vmatprep.subr.mxu0 0.0
    %6523 = vmatpush1.msra.mxu0 0.0
    %6524 = vmatprep.subr.mxu0 0.0
    %6525 = vmatpush1.msra.mxu0 0.0
    %6526 = vmatprep.subr.mxu0 0.0
    %6527 = vmatpush1.msra.mxu0 0.0
    %6528 = vmatprep.subr.mxu0 0.0
    %6529 = vmatpush1.msra.mxu0 0.0
    %6530 = vmatprep.subr.mxu0 0.0
    %6531 = vmatpush1.msra.mxu0 0.0
    %6532 = vmatprep.subr.mxu0 0.0
    %6533 = vmatpush1.msra.mxu0 0.0
    %6534 = vmatprep.subr.mxu0 0.0
    %6535 = vmatpush1.msra.mxu0 0.0
    %6536 = vmatprep.subr.mxu0 0.0
    %6537 = vmatpush1.msra.mxu0 0.0
    %6538 = vmatprep.subr.mxu0 0.0
    %6539 = vmatpush1.msra.mxu0 0.0
    %6540 = vmatprep.subr.mxu0 0.0
    %6541 = vmatpush1.msra.mxu0 0.0
    %6542 = vmatprep.mubr.f32.mxu0 0.0
    %6543 = vmatmul.mubr.f32.gmra.mrb[0].mxu0 %v6474
    %v6544 = vpop.f32.mrb[0].mxu0
    %v6545 = vadd.f32 0.0, %v6544
    %v6546 = vpop.f32.mrb[0].mxu0
    %v6547 = vadd.f32 0.0, %v6546
    %6548 = vmatprep.mubr.f32.mxu0 0.0
    %6549 = vmatmul.mubr.f32.gmra.mrb[0].mxu0 %v6476
    %v6550 = vpop.f32.mrb[0].mxu0
    %v6551 = vadd.f32 0.0, %v6550
    %v6552 = vpop.f32.mrb[0].mxu0
    %v6553 = vadd.f32 0.0, %v6552
    %6554 = vdwg.mxu0
    %v6555 = vadd.f32 %v6426, %v6545
    %v6556 = vadd.f32 %v6427, %v6547
    %v6557 = vadd.f32 %v6428, %v6551
    %v6558 = vadd.f32 %v6429, %v6553
    %s6559 = scalar_lea.vmem %s3, 5280
    %v6560 = vld [vmem:[%s6559] sm:$0xff]
    %v6561 = vld [vmem:[%s6559 + $0x8] sm:$0xff]
    %v6562 = vld [vmem:[%s6559 + $0x10] sm:$0xff]
    %v6563 = vld [vmem:[%s6559 + $0x18] sm:$0xff]
    %v6564 = vld [vmem:[%s6559 + $0x20] sm:$0xff]
    %v6565 = vld [vmem:[%s6559 + $0x28] sm:$0xff]
    %v6566 = vld [vmem:[%s6559 + $0x30] sm:$0xff]
    %v6567 = vld [vmem:[%s6559 + $0x38] sm:$0xff]
    %v6568 = vld [vmem:[%s6559 + $0x40] sm:$0xff]
    %v6569 = vld [vmem:[%s6559 + $0x48] sm:$0xff]
    %v6570 = vld [vmem:[%s6559 + $0x50] sm:$0xff]
    %v6571 = vld [vmem:[%s6559 + $0x58] sm:$0xff]
    %v6572 = vld [vmem:[%s6559 + $0x60] sm:$0xff]
    %v6573 = vld [vmem:[%s6559 + $0x68] sm:$0xff]
    %v6574 = vld [vmem:[%s6559 + $0x70] sm:$0xff]
    %v6575 = vld [vmem:[%s6559 + $0x78] sm:$0xff]
    %v6576 = vld [vmem:[%s6559 + $0x80] sm:$0xff]
    %v6577 = vld [vmem:[%s6559 + $0x88] sm:$0xff]
    %v6578 = vld [vmem:[%s6559 + $0x90] sm:$0xff]
    %v6579 = vld [vmem:[%s6559 + $0x98] sm:$0xff]
    %v6580 = vld [vmem:[%s6559 + $0xa0] sm:$0xff]
    %v6581 = vld [vmem:[%s6559 + $0xa8] sm:$0xff]
    %v6582 = vld [vmem:[%s6559 + $0xb0] sm:$0xff]
    %v6583 = vld [vmem:[%s6559 + $0xb8] sm:$0xff]
    %v6584 = vld [vmem:[%s6559 + $0xc0] sm:$0xff]
    %v6585 = vld [vmem:[%s6559 + $0xc8] sm:$0xff]
    %v6586 = vld [vmem:[%s6559 + $0xd0] sm:$0xff]
    %v6587 = vld [vmem:[%s6559 + $0xd8] sm:$0xff]
    %v6588 = vld [vmem:[%s6559 + $0xe0] sm:$0xff]
    %v6589 = vld [vmem:[%s6559 + $0xe8] sm:$0xff]
    %6590 = vrot.lane.b32.xlu0 %v6344, 104
    %v6591 = vpop.permute.xlu0 %6590
    %6592 = vrot.lane.b32.xlu0 %v6463, 104
    %v6593 = vpop.permute.xlu0 %6592
    %6594 = vrot.lane.b32.xlu0 %v6343, 104
    %v6595 = vpop.permute.xlu0 %6594
    %6596 = vrot.lane.b32.xlu0 %v6462, 104
    %v6597 = vpop.permute.xlu0 %6596
    %v6598 = vsel %vm4091, %v6591, %v6593
    %v6599 = vsel %vm4091, %v6595, %v6597
    %v6600 = vsel %vm3889, %v6598, 0
    %v6602 = vsel %vm3889, %v6599, 0
    %6604 = vmatprep.subr.mxu0 %v6561
    %6605 = vmatpush1.msra.mxu0 %v6560
    %6606 = vmatprep.subr.mxu0 %v6563
    %6607 = vmatpush1.msra.mxu0 %v6562
    %6608 = vmatprep.subr.mxu0 %v6565
    %6609 = vmatpush1.msra.mxu0 %v6564
    %6610 = vmatprep.subr.mxu0 %v6567
    %6611 = vmatpush1.msra.mxu0 %v6566
    %6612 = vmatprep.subr.mxu0 %v6569
    %6613 = vmatpush1.msra.mxu0 %v6568
    %6614 = vmatprep.subr.mxu0 %v6571
    %6615 = vmatpush1.msra.mxu0 %v6570
    %6616 = vmatprep.subr.mxu0 %v6573
    %6617 = vmatpush1.msra.mxu0 %v6572
    %6618 = vmatprep.subr.mxu0 %v6575
    %6619 = vmatpush1.msra.mxu0 %v6574
    %6620 = vmatprep.subr.mxu0 %v6577
    %6621 = vmatpush1.msra.mxu0 %v6576
    %6622 = vmatprep.subr.mxu0 %v6579
    %6623 = vmatpush1.msra.mxu0 %v6578
    %6624 = vmatprep.subr.mxu0 %v6581
    %6625 = vmatpush1.msra.mxu0 %v6580
    %6626 = vmatprep.subr.mxu0 %v6583
    %6627 = vmatpush1.msra.mxu0 %v6582
    %6628 = vmatprep.subr.mxu0 %v6585
    %6629 = vmatpush1.msra.mxu0 %v6584
    %6630 = vmatprep.subr.mxu0 %v6587
    %6631 = vmatpush1.msra.mxu0 %v6586
    %6632 = vmatprep.subr.mxu0 %v6589
    %6633 = vmatpush1.msra.mxu0 %v6588
    %6634 = vmatprep.subr.mxu0 0.0
    %6635 = vmatpush1.msra.mxu0 0.0
    %6636 = vmatprep.subr.mxu0 0.0
    %6637 = vmatpush1.msra.mxu0 0.0
    %6638 = vmatprep.subr.mxu0 0.0
    %6639 = vmatpush1.msra.mxu0 0.0
    %6640 = vmatprep.subr.mxu0 0.0
    %6641 = vmatpush1.msra.mxu0 0.0
    %6642 = vmatprep.subr.mxu0 0.0
    %6643 = vmatpush1.msra.mxu0 0.0
    %6644 = vmatprep.subr.mxu0 0.0
    %6645 = vmatpush1.msra.mxu0 0.0
    %6646 = vmatprep.subr.mxu0 0.0
    %6647 = vmatpush1.msra.mxu0 0.0
    %6648 = vmatprep.subr.mxu0 0.0
    %6649 = vmatpush1.msra.mxu0 0.0
    %6650 = vmatprep.subr.mxu0 0.0
    %6651 = vmatpush1.msra.mxu0 0.0
    %6652 = vmatprep.subr.mxu0 0.0
    %6653 = vmatpush1.msra.mxu0 0.0
    %6654 = vmatprep.subr.mxu0 0.0
    %6655 = vmatpush1.msra.mxu0 0.0
    %6656 = vmatprep.subr.mxu0 0.0
    %6657 = vmatpush1.msra.mxu0 0.0
    %6658 = vmatprep.subr.mxu0 0.0
    %6659 = vmatpush1.msra.mxu0 0.0
    %6660 = vmatprep.subr.mxu0 0.0
    %6661 = vmatpush1.msra.mxu0 0.0
    %6662 = vmatprep.subr.mxu0 0.0
    %6663 = vmatpush1.msra.mxu0 0.0
    %6664 = vmatprep.subr.mxu0 0.0
    %6665 = vmatpush1.msra.mxu0 0.0
    %6666 = vmatprep.subr.mxu0 0.0
    %6667 = vmatpush1.msra.mxu0 0.0
    %6668 = vmatprep.mubr.f32.mxu0 0.0
    %6669 = vmatmul.mubr.f32.gmra.mrb[0].mxu0 %v6600
    %v6670 = vpop.f32.mrb[0].mxu0
    %v6671 = vadd.f32 0.0, %v6670
    %v6672 = vpop.f32.mrb[0].mxu0
    %v6673 = vadd.f32 0.0, %v6672
    %6674 = vmatprep.mubr.f32.mxu0 0.0
    %6675 = vmatmul.mubr.f32.gmra.mrb[0].mxu0 %v6602
    %v6676 = vpop.f32.mrb[0].mxu0
    %v6677 = vadd.f32 0.0, %v6676
    %v6678 = vpop.f32.mrb[0].mxu0
    %v6679 = vadd.f32 0.0, %v6678
    %6680 = vdwg.mxu0
    %v6681 = vadd.f32 %v6555, %v6671
    %v6682 = vadd.f32 %v6556, %v6673
    %v6683 = vadd.f32 %v6557, %v6677
    %v6684 = vadd.f32 %v6558, %v6679
    %s6685 = scalar_lea.vmem %s3, 5520
    %v6686 = vld [vmem:[%s6685] sm:$0xff]
    %v6687 = vld [vmem:[%s6685 + $0x8] sm:$0xff]
    %v6688 = vld [vmem:[%s6685 + $0x10] sm:$0xff]
    %v6689 = vld [vmem:[%s6685 + $0x18] sm:$0xff]
    %v6690 = vld [vmem:[%s6685 + $0x20] sm:$0xff]
    %v6691 = vld [vmem:[%s6685 + $0x28] sm:$0xff]
    %v6692 = vld [vmem:[%s6685 + $0x30] sm:$0xff]
    %v6693 = vld [vmem:[%s6685 + $0x38] sm:$0xff]
    %v6694 = vld [vmem:[%s6685 + $0x40] sm:$0xff]
    %v6695 = vld [vmem:[%s6685 + $0x48] sm:$0xff]
    %v6696 = vld [vmem:[%s6685 + $0x50] sm:$0xff]
    %v6697 = vld [vmem:[%s6685 + $0x58] sm:$0xff]
    %v6698 = vld [vmem:[%s6685 + $0x60] sm:$0xff]
    %v6699 = vld [vmem:[%s6685 + $0x68] sm:$0xff]
    %v6700 = vld [vmem:[%s6685 + $0x70] sm:$0xff]
    %v6701 = vld [vmem:[%s6685 + $0x78] sm:$0xff]
    %v6702 = vld [vmem:[%s6685 + $0x80] sm:$0xff]
    %v6703 = vld [vmem:[%s6685 + $0x88] sm:$0xff]
    %v6704 = vld [vmem:[%s6685 + $0x90] sm:$0xff]
    %v6705 = vld [vmem:[%s6685 + $0x98] sm:$0xff]
    %v6706 = vld [vmem:[%s6685 + $0xa0] sm:$0xff]
    %v6707 = vld [vmem:[%s6685 + $0xa8] sm:$0xff]
    %v6708 = vld [vmem:[%s6685 + $0xb0] sm:$0xff]
    %v6709 = vld [vmem:[%s6685 + $0xb8] sm:$0xff]
    %v6710 = vld [vmem:[%s6685 + $0xc0] sm:$0xff]
    %v6711 = vld [vmem:[%s6685 + $0xc8] sm:$0xff]
    %v6712 = vld [vmem:[%s6685 + $0xd0] sm:$0xff]
    %v6713 = vld [vmem:[%s6685 + $0xd8] sm:$0xff]
    %v6714 = vld [vmem:[%s6685 + $0xe0] sm:$0xff]
    %v6715 = vld [vmem:[%s6685 + $0xe8] sm:$0xff]
    %6716 = vrot.lane.b32.xlu0 %v6344, 92
    %v6717 = vpop.permute.xlu0 %6716
    %6718 = vrot.lane.b32.xlu0 %v6463, 92
    %v6719 = vpop.permute.xlu0 %6718
    %6720 = vrot.lane.b32.xlu0 %v6343, 92
    %v6721 = vpop.permute.xlu0 %6720
    %6722 = vrot.lane.b32.xlu0 %v6462, 92
    %v6723 = vpop.permute.xlu0 %6722
    %v6724 = vsel %vm4218, %v6717, %v6719
    %v6725 = vsel %vm4218, %v6721, %v6723
    %v6726 = vsel %vm3889, %v6724, 0
    %v6728 = vsel %vm3889, %v6725, 0
    %6730 = vmatprep.subr.mxu0 %v6687
    %6731 = vmatpush1.msra.mxu0 %v6686
    %6732 = vmatprep.subr.mxu0 %v6689
    %6733 = vmatpush1.msra.mxu0 %v6688
    %6734 = vmatprep.subr.mxu0 %v6691
    %6735 = vmatpush1.msra.mxu0 %v6690
    %6736 = vmatprep.subr.mxu0 %v6693
    %6737 = vmatpush1.msra.mxu0 %v6692
    %6738 = vmatprep.subr.mxu0 %v6695
    %6739 = vmatpush1.msra.mxu0 %v6694
    %6740 = vmatprep.subr.mxu0 %v6697
    %6741 = vmatpush1.msra.mxu0 %v6696
    %6742 = vmatprep.subr.mxu0 %v6699
    %6743 = vmatpush1.msra.mxu0 %v6698
    %6744 = vmatprep.subr.mxu0 %v6701
    %6745 = vmatpush1.msra.mxu0 %v6700
    %6746 = vmatprep.subr.mxu0 %v6703
    %6747 = vmatpush1.msra.mxu0 %v6702
    %6748 = vmatprep.subr.mxu0 %v6705
    %6749 = vmatpush1.msra.mxu0 %v6704
    %6750 = vmatprep.subr.mxu0 %v6707
    %6751 = vmatpush1.msra.mxu0 %v6706
    %6752 = vmatprep.subr.mxu0 %v6709
    %6753 = vmatpush1.msra.mxu0 %v6708
    %6754 = vmatprep.subr.mxu0 %v6711
    %6755 = vmatpush1.msra.mxu0 %v6710
    %6756 = vmatprep.subr.mxu0 %v6713
    %6757 = vmatpush1.msra.mxu0 %v6712
    %6758 = vmatprep.subr.mxu0 %v6715
    %6759 = vmatpush1.msra.mxu0 %v6714
    %6760 = vmatprep.subr.mxu0 0.0
    %6761 = vmatpush1.msra.mxu0 0.0
    %6762 = vmatprep.subr.mxu0 0.0
    %6763 = vmatpush1.msra.mxu0 0.0
    %6764 = vmatprep.subr.mxu0 0.0
    %6765 = vmatpush1.msra.mxu0 0.0
    %6766 = vmatprep.subr.mxu0 0.0
    %6767 = vmatpush1.msra.mxu0 0.0
    %6768 = vmatprep.subr.mxu0 0.0
    %6769 = vmatpush1.msra.mxu0 0.0
    %6770 = vmatprep.subr.mxu0 0.0
    %6771 = vmatpush1.msra.mxu0 0.0
    %6772 = vmatprep.subr.mxu0 0.0
    %6773 = vmatpush1.msra.mxu0 0.0
    %6774 = vmatprep.subr.mxu0 0.0
    %6775 = vmatpush1.msra.mxu0 0.0
    %6776 = vmatprep.subr.mxu0 0.0
    %6777 = vmatpush1.msra.mxu0 0.0
    %6778 = vmatprep.subr.mxu0 0.0
    %6779 = vmatpush1.msra.mxu0 0.0
    %6780 = vmatprep.subr.mxu0 0.0
    %6781 = vmatpush1.msra.mxu0 0.0
    %6782 = vmatprep.subr.mxu0 0.0
    %6783 = vmatpush1.msra.mxu0 0.0
    %6784 = vmatprep.subr.mxu0 0.0
    %6785 = vmatpush1.msra.mxu0 0.0
    %6786 = vmatprep.subr.mxu0 0.0
    %6787 = vmatpush1.msra.mxu0 0.0
    %6788 = vmatprep.subr.mxu0 0.0
    %6789 = vmatpush1.msra.mxu0 0.0
    %6790 = vmatprep.subr.mxu0 0.0
    %6791 = vmatpush1.msra.mxu0 0.0
    %6792 = vmatprep.subr.mxu0 0.0
    %6793 = vmatpush1.msra.mxu0 0.0
    %6794 = vmatprep.mubr.f32.mxu0 0.0
    %6795 = vmatmul.mubr.f32.gmra.mrb[0].mxu0 %v6726
    %v6796 = vpop.f32.mrb[0].mxu0
    %v6797 = vadd.f32 0.0, %v6796
    %v6798 = vpop.f32.mrb[0].mxu0
    %v6799 = vadd.f32 0.0, %v6798
    %6800 = vmatprep.mubr.f32.mxu0 0.0
    %6801 = vmatmul.mubr.f32.gmra.mrb[0].mxu0 %v6728
    %v6802 = vpop.f32.mrb[0].mxu0
    %v6803 = vadd.f32 0.0, %v6802
    %v6804 = vpop.f32.mrb[0].mxu0
    %v6805 = vadd.f32 0.0, %v6804
    %6806 = vdwg.mxu0
    %v6807 = vadd.f32 %v6681, %v6797
    %v6808 = vadd.f32 %v6682, %v6799
    %v6809 = vadd.f32 %v6683, %v6803
    %v6810 = vadd.f32 %v6684, %v6805
    %s6811 = scalar_lea.vmem %s3, 5760
    %v6812 = vld [vmem:[%s6811] sm:$0xff]
    %v6813 = vld [vmem:[%s6811 + $0x8] sm:$0xff]
    %v6814 = vld [vmem:[%s6811 + $0x10] sm:$0xff]
    %v6815 = vld [vmem:[%s6811 + $0x18] sm:$0xff]
    %v6816 = vld [vmem:[%s6811 + $0x20] sm:$0xff]
    %v6817 = vld [vmem:[%s6811 + $0x28] sm:$0xff]
    %v6818 = vld [vmem:[%s6811 + $0x30] sm:$0xff]
    %v6819 = vld [vmem:[%s6811 + $0x38] sm:$0xff]
    %v6820 = vld [vmem:[%s6811 + $0x40] sm:$0xff]
    %v6821 = vld [vmem:[%s6811 + $0x48] sm:$0xff]
    %v6822 = vld [vmem:[%s6811 + $0x50] sm:$0xff]
    %v6823 = vld [vmem:[%s6811 + $0x58] sm:$0xff]
    %v6824 = vld [vmem:[%s6811 + $0x60] sm:$0xff]
    %v6825 = vld [vmem:[%s6811 + $0x68] sm:$0xff]
    %v6826 = vld [vmem:[%s6811 + $0x70] sm:$0xff]
    %v6827 = vld [vmem:[%s6811 + $0x78] sm:$0xff]
    %v6828 = vld [vmem:[%s6811 + $0x80] sm:$0xff]
    %v6829 = vld [vmem:[%s6811 + $0x88] sm:$0xff]
    %v6830 = vld [vmem:[%s6811 + $0x90] sm:$0xff]
    %v6831 = vld [vmem:[%s6811 + $0x98] sm:$0xff]
    %v6832 = vld [vmem:[%s6811 + $0xa0] sm:$0xff]
    %v6833 = vld [vmem:[%s6811 + $0xa8] sm:$0xff]
    %v6834 = vld [vmem:[%s6811 + $0xb0] sm:$0xff]
    %v6835 = vld [vmem:[%s6811 + $0xb8] sm:$0xff]
    %v6836 = vld [vmem:[%s6811 + $0xc0] sm:$0xff]
    %v6837 = vld [vmem:[%s6811 + $0xc8] sm:$0xff]
    %v6838 = vld [vmem:[%s6811 + $0xd0] sm:$0xff]
    %v6839 = vld [vmem:[%s6811 + $0xd8] sm:$0xff]
    %v6840 = vld [vmem:[%s6811 + $0xe0] sm:$0xff]
    %v6841 = vld [vmem:[%s6811 + $0xe8] sm:$0xff]
    %6842 = vrot.lane.b32.xlu0 %v6344, 80
    %v6843 = vpop.permute.xlu0 %6842
    %6844 = vrot.lane.b32.xlu0 %v6463, 80
    %v6845 = vpop.permute.xlu0 %6844
    %6846 = vrot.lane.b32.xlu0 %v6343, 80
    %v6847 = vpop.permute.xlu0 %6846
    %6848 = vrot.lane.b32.xlu0 %v6462, 80
    %v6849 = vpop.permute.xlu0 %6848
    %v6850 = vsel %vm4345, %v6843, %v6845
    %v6851 = vsel %vm4345, %v6847, %v6849
    %v6852 = vsel %vm3889, %v6850, 0
    %v6854 = vsel %vm3889, %v6851, 0
    %6856 = vmatprep.subr.mxu0 %v6813
    %6857 = vmatpush1.msra.mxu0 %v6812
    %6858 = vmatprep.subr.mxu0 %v6815
    %6859 = vmatpush1.msra.mxu0 %v6814
    %6860 = vmatprep.subr.mxu0 %v6817
    %6861 = vmatpush1.msra.mxu0 %v6816
    %6862 = vmatprep.subr.mxu0 %v6819
    %6863 = vmatpush1.msra.mxu0 %v6818
    %6864 = vmatprep.subr.mxu0 %v6821
    %6865 = vmatpush1.msra.mxu0 %v6820
    %6866 = vmatprep.subr.mxu0 %v6823
    %6867 = vmatpush1.msra.mxu0 %v6822
    %6868 = vmatprep.subr.mxu0 %v6825
    %6869 = vmatpush1.msra.mxu0 %v6824
    %6870 = vmatprep.subr.mxu0 %v6827
    %6871 = vmatpush1.msra.mxu0 %v6826
    %6872 = vmatprep.subr.mxu0 %v6829
    %6873 = vmatpush1.msra.mxu0 %v6828
    %6874 = vmatprep.subr.mxu0 %v6831
    %6875 = vmatpush1.msra.mxu0 %v6830
    %6876 = vmatprep.subr.mxu0 %v6833
    %6877 = vmatpush1.msra.mxu0 %v6832
    %6878 = vmatprep.subr.mxu0 %v6835
    %6879 = vmatpush1.msra.mxu0 %v6834
    %6880 = vmatprep.subr.mxu0 %v6837
    %6881 = vmatpush1.msra.mxu0 %v6836
    %6882 = vmatprep.subr.mxu0 %v6839
    %6883 = vmatpush1.msra.mxu0 %v6838
    %6884 = vmatprep.subr.mxu0 %v6841
    %6885 = vmatpush1.msra.mxu0 %v6840
    %6886 = vmatprep.subr.mxu0 0.0
    %6887 = vmatpush1.msra.mxu0 0.0
    %6888 = vmatprep.subr.mxu0 0.0
    %6889 = vmatpush1.msra.mxu0 0.0
    %6890 = vmatprep.subr.mxu0 0.0
    %6891 = vmatpush1.msra.mxu0 0.0
    %6892 = vmatprep.subr.mxu0 0.0
    %6893 = vmatpush1.msra.mxu0 0.0
    %6894 = vmatprep.subr.mxu0 0.0
    %6895 = vmatpush1.msra.mxu0 0.0
    %6896 = vmatprep.subr.mxu0 0.0
    %6897 = vmatpush1.msra.mxu0 0.0
    %6898 = vmatprep.subr.mxu0 0.0
    %6899 = vmatpush1.msra.mxu0 0.0
    %6900 = vmatprep.subr.mxu0 0.0
    %6901 = vmatpush1.msra.mxu0 0.0
    %6902 = vmatprep.subr.mxu0 0.0
    %6903 = vmatpush1.msra.mxu0 0.0
    %6904 = vmatprep.subr.mxu0 0.0
    %6905 = vmatpush1.msra.mxu0 0.0
    %6906 = vmatprep.subr.mxu0 0.0
    %6907 = vmatpush1.msra.mxu0 0.0
    %6908 = vmatprep.subr.mxu0 0.0
    %6909 = vmatpush1.msra.mxu0 0.0
    %6910 = vmatprep.subr.mxu0 0.0
    %6911 = vmatpush1.msra.mxu0 0.0
    %6912 = vmatprep.subr.mxu0 0.0
    %6913 = vmatpush1.msra.mxu0 0.0
    %6914 = vmatprep.subr.mxu0 0.0
    %6915 = vmatpush1.msra.mxu0 0.0
    %6916 = vmatprep.subr.mxu0 0.0
    %6917 = vmatpush1.msra.mxu0 0.0
    %6918 = vmatprep.subr.mxu0 0.0
    %6919 = vmatpush1.msra.mxu0 0.0
    %6920 = vmatprep.mubr.f32.mxu0 0.0
    %6921 = vmatmul.mubr.f32.gmra.mrb[0].mxu0 %v6852
    %v6922 = vpop.f32.mrb[0].mxu0
    %v6923 = vadd.f32 0.0, %v6922
    %v6924 = vpop.f32.mrb[0].mxu0
    %v6925 = vadd.f32 0.0, %v6924
    %6926 = vmatprep.mubr.f32.mxu0 0.0
    %6927 = vmatmul.mubr.f32.gmra.mrb[0].mxu0 %v6854
    %v6928 = vpop.f32.mrb[0].mxu0
    %v6929 = vadd.f32 0.0, %v6928
    %v6930 = vpop.f32.mrb[0].mxu0
    %v6931 = vadd.f32 0.0, %v6930
    %6932 = vdwg.mxu0
    %v6933 = vadd.f32 %v6807, %v6923
    %v6934 = vadd.f32 %v6808, %v6925
    %v6935 = vadd.f32 %v6809, %v6929
    %v6936 = vadd.f32 %v6810, %v6931
    %v6937 = vld [vmem:[%s4] sm:$0x3]
    %v6939 = vlaneseq
    %v6940 = vshrl.u32 %v6939, 7
    %v6941 = vsub.s32 0, %v6940
    %v6942 = vrot.slane %v6937, %v6941
    %v6943 = vlaneseq
    %v6944 = vshrl.u32 %v6943, 7
    %v6945 = vsub.s32 1, %v6944
    %v6946 = vrot.slane %v6937, %v6945
    %v6949 = vadd.f32 %v6933, %v6942
    %v6950 = vadd.f32 %v6934, %v6946
    %v6951 = vadd.f32 %v6935, %v6942
    %v6952 = vadd.f32 %v6936, %v6946
    %v6953 = vmax.f32 %v6949, 0.0
    %v6954 = vmax.f32 %v6950, 0.0
    %v6955 = vmax.f32 %v6951, 0.0
    %v6956 = vmax.f32 %v6952, 0.0
    %vm6957 = vcmask 80896
    %v6958 = vsel %vm6957, %v49, 0
    %vm6960 = vcmask 1041408
    %v6962 = vsel %vm6960, %v6955, 0
    %v6965 = vsel %vm6960, %v6956, 0
    %6967 = vmatprep.subr.mxu0 %v6954
    %6968 = vmatpush1.msra.mxu0 %v6953
    %6969 = vmatprep.subr.mxu0 %v6965
    %6970 = vmatpush1.msra.mxu0 %v6962
    %6971 = vmatprep.subr.mxu0 0.0
    %6972 = vmatpush1.msra.mxu0 0.0
    %6973 = vmatprep.subr.mxu0 0.0
    %6974 = vmatpush1.msra.mxu0 0.0
    %6975 = vmatprep.subr.mxu0 0.0
    %6976 = vmatpush1.msra.mxu0 0.0
    %6977 = vmatprep.subr.mxu0 0.0
    %6978 = vmatpush1.msra.mxu0 0.0
    %6979 = vmatprep.subr.mxu0 0.0
    %6980 = vmatpush1.msra.mxu0 0.0
    %6981 = vmatprep.subr.mxu0 0.0
    %6982 = vmatpush1.msra.mxu0 0.0
    %6983 = vmatprep.subr.mxu0 0.0
    %6984 = vmatpush1.msra.mxu0 0.0
    %6985 = vmatprep.subr.mxu0 0.0
    %6986 = vmatpush1.msra.mxu0 0.0
    %6987 = vmatprep.subr.mxu0 0.0
    %6988 = vmatpush1.msra.mxu0 0.0
    %6989 = vmatprep.subr.mxu0 0.0
    %6990 = vmatpush1.msra.mxu0 0.0
    %6991 = vmatprep.subr.mxu0 0.0
    %6992 = vmatpush1.msra.mxu0 0.0
    %6993 = vmatprep.subr.mxu0 0.0
    %6994 = vmatpush1.msra.mxu0 0.0
    %6995 = vmatprep.subr.mxu0 0.0
    %6996 = vmatpush1.msra.mxu0 0.0
    %6997 = vmatprep.subr.mxu0 0.0
    %6998 = vmatpush1.msra.mxu0 0.0
    %6999 = vmatprep.subr.mxu0 0.0
    %7000 = vmatpush1.msra.mxu0 0.0
    %7001 = vmatprep.subr.mxu0 0.0
    %7002 = vmatpush1.msra.mxu0 0.0
    %7003 = vmatprep.subr.mxu0 0.0
    %7004 = vmatpush1.msra.mxu0 0.0
    %7005 = vmatprep.subr.mxu0 0.0
    %7006 = vmatpush1.msra.mxu0 0.0
    %7007 = vmatprep.subr.mxu0 0.0
    %7008 = vmatpush1.msra.mxu0 0.0
    %7009 = vmatprep.subr.mxu0 0.0
    %7010 = vmatpush1.msra.mxu0 0.0
    %7011 = vmatprep.subr.mxu0 0.0
    %7012 = vmatpush1.msra.mxu0 0.0
    %7013 = vmatprep.subr.mxu0 0.0
    %7014 = vmatpush1.msra.mxu0 0.0
    %7015 = vmatprep.subr.mxu0 0.0
    %7016 = vmatpush1.msra.mxu0 0.0
    %7017 = vmatprep.subr.mxu0 0.0
    %7018 = vmatpush1.msra.mxu0 0.0
    %7019 = vmatprep.subr.mxu0 0.0
    %7020 = vmatpush1.msra.mxu0 0.0
    %7021 = vmatprep.subr.mxu0 0.0
    %7022 = vmatpush1.msra.mxu0 0.0
    %7023 = vmatprep.subr.mxu0 0.0
    %7024 = vmatpush1.msra.mxu0 0.0
    %7025 = vmatprep.subr.mxu0 0.0
    %7026 = vmatpush1.msra.mxu0 0.0
    %7027 = vmatprep.subr.mxu0 0.0
    %7028 = vmatpush1.msra.mxu0 0.0
    %7029 = vmatprep.subr.mxu0 0.0
    %7030 = vmatpush1.msra.mxu0 0.0
    %7031 = vmatprep.mubr.f32.mxu0 0.0
    %7032 = vmatmul.mubr.f32.gmra.mrb[0].mxu0 %v6958
    %v7033 = vpop.f32.mrb[0].mxu0
    %v7034 = vadd.f32 0.0, %v7033
    %v7035 = vpop.f32.mrb[0].mxu0
    %v7036 = vadd.f32 0.0, %v7035
    %7037 = vdwg.mxu0
    %v7038 = vsel %vm6957, %v57, 0
    %7040 = vmatprep.subr.mxu0 %v6954
    %7041 = vmatpush1.msra.mxu0 %v6953
    %7042 = vmatprep.subr.mxu0 %v6965
    %7043 = vmatpush1.msra.mxu0 %v6962
    %7044 = vmatprep.subr.mxu0 0.0
    %7045 = vmatpush1.msra.mxu0 0.0
    %7046 = vmatprep.subr.mxu0 0.0
    %7047 = vmatpush1.msra.mxu0 0.0
    %7048 = vmatprep.subr.mxu0 0.0
    %7049 = vmatpush1.msra.mxu0 0.0
    %7050 = vmatprep.subr.mxu0 0.0
    %7051 = vmatpush1.msra.mxu0 0.0
    %7052 = vmatprep.subr.mxu0 0.0
    %7053 = vmatpush1.msra.mxu0 0.0
    %7054 = vmatprep.subr.mxu0 0.0
    %7055 = vmatpush1.msra.mxu0 0.0
    %7056 = vmatprep.subr.mxu0 0.0
    %7057 = vmatpush1.msra.mxu0 0.0
    %7058 = vmatprep.subr.mxu0 0.0
    %7059 = vmatpush1.msra.mxu0 0.0
    %7060 = vmatprep.subr.mxu0 0.0
    %7061 = vmatpush1.msra.mxu0 0.0
    %7062 = vmatprep.subr.mxu0 0.0
    %7063 = vmatpush1.msra.mxu0 0.0
    %7064 = vmatprep.subr.mxu0 0.0
    %7065 = vmatpush1.msra.mxu0 0.0
    %7066 = vmatprep.subr.mxu0 0.0
    %7067 = vmatpush1.msra.mxu0 0.0
    %7068 = vmatprep.subr.mxu0 0.0
    %7069 = vmatpush1.msra.mxu0 0.0
    %7070 = vmatprep.subr.mxu0 0.0
    %7071 = vmatpush1.msra.mxu0 0.0
    %7072 = vmatprep.subr.mxu0 0.0
    %7073 = vmatpush1.msra.mxu0 0.0
    %7074 = vmatprep.subr.mxu0 0.0
    %7075 = vmatpush1.msra.mxu0 0.0
    %7076 = vmatprep.subr.mxu0 0.0
    %7077 = vmatpush1.msra.mxu0 0.0
    %7078 = vmatprep.subr.mxu0 0.0
    %7079 = vmatpush1.msra.mxu0 0.0
    %7080 = vmatprep.subr.mxu0 0.0
    %7081 = vmatpush1.msra.mxu0 0.0
    %7082 = vmatprep.subr.mxu0 0.0
    %7083 = vmatpush1.msra.mxu0 0.0
    %7084 = vmatprep.subr.mxu0 0.0
    %7085 = vmatpush1.msra.mxu0 0.0
    %7086 = vmatprep.subr.mxu0 0.0
    %7087 = vmatpush1.msra.mxu0 0.0
    %7088 = vmatprep.subr.mxu0 0.0
    %7089 = vmatpush1.msra.mxu0 0.0
    %7090 = vmatprep.subr.mxu0 0.0
    %7091 = vmatpush1.msra.mxu0 0.0
    %7092 = vmatprep.subr.mxu0 0.0
    %7093 = vmatpush1.msra.mxu0 0.0
    %7094 = vmatprep.subr.mxu0 0.0
    %7095 = vmatpush1.msra.mxu0 0.0
    %7096 = vmatprep.subr.mxu0 0.0
    %7097 = vmatpush1.msra.mxu0 0.0
    %7098 = vmatprep.subr.mxu0 0.0
    %7099 = vmatpush1.msra.mxu0 0.0
    %7100 = vmatprep.subr.mxu0 0.0
    %7101 = vmatpush1.msra.mxu0 0.0
    %7102 = vmatprep.subr.mxu0 0.0
    %7103 = vmatpush1.msra.mxu0 0.0
    %7104 = vmatprep.mubr.f32.mxu0 0.0
    %7105 = vmatmul.mubr.f32.gmra.mrb[0].mxu0 %v7038
    %v7106 = vpop.f32.mrb[0].mxu0
    %v7107 = vadd.f32 0.0, %v7106
    %v7108 = vpop.f32.mrb[0].mxu0
    %v7109 = vadd.f32 0.0, %v7108
    %7110 = vdwg.mxu0
    %v7111 = vmax.f32 %v7034, %v7107
    %v7112 = vmax.f32 %v7036, %v7109
    %vm7113 = vcmask 261120
    %v7115 = vsel %vm7113, %v7112, 0
    %7117 = vmatprep.subr.mxu0 %v290
    %7118 = vmatpush1.msra.mxu0 %v289
    %7119 = vmatprep.subr.mxu0 %v292
    %7120 = vmatpush1.msra.mxu0 %v291
    %7121 = vmatprep.subr.mxu0 %v294
    %7122 = vmatpush1.msra.mxu0 %v293
    %7123 = vmatprep.subr.mxu0 %v296
    %7124 = vmatpush1.msra.mxu0 %v295
    %7125 = vmatprep.subr.mxu0 %v298
    %7126 = vmatpush1.msra.mxu0 %v297
    %7127 = vmatprep.subr.mxu0 %v300
    %7128 = vmatpush1.msra.mxu0 %v299
    %7129 = vmatprep.subr.mxu0 %v302
    %7130 = vmatpush1.msra.mxu0 %v301
    %7131 = vmatprep.subr.mxu0 %v304
    %7132 = vmatpush1.msra.mxu0 %v303
    %7133 = vmatprep.subr.mxu0 %v306
    %7134 = vmatpush1.msra.mxu0 %v305
    %7135 = vmatprep.subr.mxu0 %v308
    %7136 = vmatpush1.msra.mxu0 %v307
    %7137 = vmatprep.subr.mxu0 %v310
    %7138 = vmatpush1.msra.mxu0 %v309
    %7139 = vmatprep.subr.mxu0 %v312
    %7140 = vmatpush1.msra.mxu0 %v311
    %7141 = vmatprep.subr.mxu0 %v314
    %7142 = vmatpush1.msra.mxu0 %v313
    %7143 = vmatprep.subr.mxu0 %v316
    %7144 = vmatpush1.msra.mxu0 %v315
    %7145 = vmatprep.subr.mxu0 %v318
    %7146 = vmatpush1.msra.mxu0 %v317
    %7147 = vmatprep.subr.mxu0 %v320
    %7148 = vmatpush1.msra.mxu0 %v319
    %7149 = vmatprep.subr.mxu0 %v322
    %7150 = vmatpush1.msra.mxu0 %v321
    %7151 = vmatprep.subr.mxu0 %v324
    %7152 = vmatpush1.msra.mxu0 %v323
    %7153 = vmatprep.subr.mxu0 %v326
    %7154 = vmatpush1.msra.mxu0 %v325
    %7155 = vmatprep.subr.mxu0 %v328
    %7156 = vmatpush1.msra.mxu0 %v327
    %7157 = vmatprep.subr.mxu0 0.0
    %7158 = vmatpush1.msra.mxu0 0.0
    %7159 = vmatprep.subr.mxu0 0.0
    %7160 = vmatpush1.msra.mxu0 0.0
    %7161 = vmatprep.subr.mxu0 0.0
    %7162 = vmatpush1.msra.mxu0 0.0
    %7163 = vmatprep.subr.mxu0 0.0
    %7164 = vmatpush1.msra.mxu0 0.0
    %7165 = vmatprep.subr.mxu0 0.0
    %7166 = vmatpush1.msra.mxu0 0.0
    %7167 = vmatprep.subr.mxu0 0.0
    %7168 = vmatpush1.msra.mxu0 0.0
    %7169 = vmatprep.subr.mxu0 0.0
    %7170 = vmatpush1.msra.mxu0 0.0
    %7171 = vmatprep.subr.mxu0 0.0
    %7172 = vmatpush1.msra.mxu0 0.0
    %7173 = vmatprep.subr.mxu0 0.0
    %7174 = vmatpush1.msra.mxu0 0.0
    %7175 = vmatprep.subr.mxu0 0.0
    %7176 = vmatpush1.msra.mxu0 0.0
    %7177 = vmatprep.subr.mxu0 0.0
    %7178 = vmatpush1.msra.mxu0 0.0
    %7179 = vmatprep.subr.mxu0 0.0
    %7180 = vmatpush1.msra.mxu0 0.0
    %7181 = vmatprep.mubr.f32.mxu0 %v7115
    %7182 = vmatmul.mubr.f32.gmra.mrb[0].mxu0 %v7111
    %v7183 = vpop.f32.mrb[0].mxu0
    %v7184 = vadd.f32 0.0, %v7183
    %v7185 = vpop.f32.mrb[0].mxu0
    %v7186 = vadd.f32 0.0, %v7185
    %7187 = vdwg.mxu0
    %v7188 = vmax.f32 %v7111, %v7184
    %v7189 = vmax.f32 %v7112, %v7186
    %v7190 = vld [vmem:[%s5] sm:$0xff]
    %v7191 = vld [vmem:[%s5 + $0x8] sm:$0xff]
    %v7192 = vld [vmem:[%s5 + $0x10] sm:$0xff]
    %v7193 = vld [vmem:[%s5 + $0x18] sm:$0xff]
    %v7194 = vld [vmem:[%s5 + $0x20] sm:$0xff]
    %v7195 = vld [vmem:[%s5 + $0x28] sm:$0xff]
    %v7196 = vld [vmem:[%s5 + $0x30] sm:$0xff]
    %v7197 = vld [vmem:[%s5 + $0x38] sm:$0xff]
    %v7198 = vld [vmem:[%s5 + $0x40] sm:$0xff]
    %v7199 = vld [vmem:[%s5 + $0x48] sm:$0xff]
    %v7200 = vld [vmem:[%s5 + $0x50] sm:$0xff]
    %v7201 = vld [vmem:[%s5 + $0x58] sm:$0xff]
    %v7202 = vld [vmem:[%s5 + $0x60] sm:$0xff]
    %v7203 = vld [vmem:[%s5 + $0x68] sm:$0xff]
    %v7204 = vld [vmem:[%s5 + $0x70] sm:$0xff]
    %v7205 = vld [vmem:[%s5 + $0x78] sm:$0xff]
    %v7206 = vld [vmem:[%s5 + $0x80] sm:$0xff]
    %v7207 = vld [vmem:[%s5 + $0x88] sm:$0xff]
    %v7208 = vld [vmem:[%s5 + $0x90] sm:$0xff]
    %v7209 = vld [vmem:[%s5 + $0x98] sm:$0xff]
    %s7210 = scalar_lea.vmem %s5, 160
    %v7211 = vld [vmem:[%s7210] sm:$0xff]
    %v7212 = vld [vmem:[%s7210 + $0x8] sm:$0xff]
    %v7213 = vld [vmem:[%s7210 + $0x10] sm:$0xff]
    %v7214 = vld [vmem:[%s7210 + $0x18] sm:$0xff]
    %v7215 = vld [vmem:[%s7210 + $0x20] sm:$0xff]
    %v7216 = vld [vmem:[%s7210 + $0x28] sm:$0xff]
    %v7217 = vld [vmem:[%s7210 + $0x30] sm:$0xff]
    %v7218 = vld [vmem:[%s7210 + $0x38] sm:$0xff]
    %v7219 = vld [vmem:[%s7210 + $0x40] sm:$0xff]
    %v7220 = vld [vmem:[%s7210 + $0x48] sm:$0xff]
    %v7221 = vld [vmem:[%s7210 + $0x50] sm:$0xff]
    %v7222 = vld [vmem:[%s7210 + $0x58] sm:$0xff]
    %v7223 = vld [vmem:[%s7210 + $0x60] sm:$0xff]
    %v7224 = vld [vmem:[%s7210 + $0x68] sm:$0xff]
    %v7225 = vld [vmem:[%s7210 + $0x70] sm:$0xff]
    %v7226 = vld [vmem:[%s7210 + $0x78] sm:$0xff]
    %v7227 = vld [vmem:[%s7210 + $0x80] sm:$0xff]
    %v7228 = vld [vmem:[%s7210 + $0x88] sm:$0xff]
    %v7229 = vld [vmem:[%s7210 + $0x90] sm:$0xff]
    %v7230 = vld [vmem:[%s7210 + $0x98] sm:$0xff]
    %v7233 = vrot.slane %v7188, 1
    %v7234 = vrot.slane %v7189, 1
    %v7236 = vsel %vm7113, %v7234, 0
    %7238 = vmatprep.subr.mxu0 0.0
    %7239 = vmatpush1.msra.mxu0 %v7211
    %7240 = vmatprep.subr.mxu0 0.0
    %7241 = vmatpush1.msra.mxu0 %v7212
    %7242 = vmatprep.subr.mxu0 0.0
    %7243 = vmatpush1.msra.mxu0 %v7213
    %7244 = vmatprep.subr.mxu0 0.0
    %7245 = vmatpush1.msra.mxu0 %v7214
    %7246 = vmatprep.subr.mxu0 0.0
    %7247 = vmatpush1.msra.mxu0 %v7215
    %7248 = vmatprep.subr.mxu0 0.0
    %7249 = vmatpush1.msra.mxu0 %v7216
    %7250 = vmatprep.subr.mxu0 0.0
    %7251 = vmatpush1.msra.mxu0 %v7217
    %7252 = vmatprep.subr.mxu0 0.0
    %7253 = vmatpush1.msra.mxu0 %v7218
    %7254 = vmatprep.subr.mxu0 0.0
    %7255 = vmatpush1.msra.mxu0 %v7219
    %7256 = vmatprep.subr.mxu0 0.0
    %7257 = vmatpush1.msra.mxu0 %v7220
    %7258 = vmatprep.subr.mxu0 0.0
    %7259 = vmatpush1.msra.mxu0 %v7221
    %7260 = vmatprep.subr.mxu0 0.0
    %7261 = vmatpush1.msra.mxu0 %v7222
    %7262 = vmatprep.subr.mxu0 0.0
    %7263 = vmatpush1.msra.mxu0 %v7223
    %7264 = vmatprep.subr.mxu0 0.0
    %7265 = vmatpush1.msra.mxu0 %v7224
    %7266 = vmatprep.subr.mxu0 0.0
    %7267 = vmatpush1.msra.mxu0 %v7225
    %7268 = vmatprep.subr.mxu0 0.0
    %7269 = vmatpush1.msra.mxu0 %v7226
    %7270 = vmatprep.subr.mxu0 0.0
    %7271 = vmatpush1.msra.mxu0 %v7227
    %7272 = vmatprep.subr.mxu0 0.0
    %7273 = vmatpush1.msra.mxu0 %v7228
    %7274 = vmatprep.subr.mxu0 0.0
    %7275 = vmatpush1.msra.mxu0 %v7229
    %7276 = vmatprep.subr.mxu0 0.0
    %7277 = vmatpush1.msra.mxu0 %v7230
    %7278 = vmatprep.subr.mxu0 0.0
    %7279 = vmatpush1.msra.mxu0 0.0
    %7280 = vmatprep.subr.mxu0 0.0
    %7281 = vmatpush1.msra.mxu0 0.0
    %7282 = vmatprep.subr.mxu0 0.0
    %7283 = vmatpush1.msra.mxu0 0.0
    %7284 = vmatprep.subr.mxu0 0.0
    %7285 = vmatpush1.msra.mxu0 0.0
    %7286 = vmatprep.subr.mxu0 0.0
    %7287 = vmatpush1.msra.mxu0 0.0
    %7288 = vmatprep.subr.mxu0 0.0
    %7289 = vmatpush1.msra.mxu0 0.0
    %7290 = vmatprep.subr.mxu0 0.0
    %7291 = vmatpush1.msra.mxu0 0.0
    %7292 = vmatprep.subr.mxu0 0.0
    %7293 = vmatpush1.msra.mxu0 0.0
    %7294 = vmatprep.subr.mxu0 0.0
    %7295 = vmatpush1.msra.mxu0 0.0
    %7296 = vmatprep.subr.mxu0 0.0
    %7297 = vmatpush1.msra.mxu0 0.0
    %7298 = vmatprep.subr.mxu0 0.0
    %7299 = vmatpush1.msra.mxu0 0.0
    %7300 = vmatprep.subr.mxu0 0.0
    %7301 = vmatpush1.msra.mxu0 0.0
    %7302 = vmatprep.mubr.f32.mxu0 %v7236
    %7303 = vmatmul.mubr.f32.gmra.mrb[0].mxu0 %v7233
    %v7304 = vpop.f32.mrb[0].mxu0
    %v7305 = vadd.f32 0.0, %v7304
    %v7306 = vpop.f32.mrb[0].mxu0
    %7307 = vdwg.mxu0
    %v7308 = vsel %vm7113, %v7189, 0
    %7310 = vmatprep.subr.mxu0 0.0
    %7311 = vmatpush1.msra.mxu0 %v7190
    %7312 = vmatprep.subr.mxu0 0.0
    %7313 = vmatpush1.msra.mxu0 %v7191
    %7314 = vmatprep.subr.mxu0 0.0
    %7315 = vmatpush1.msra.mxu0 %v7192
    %7316 = vmatprep.subr.mxu0 0.0
    %7317 = vmatpush1.msra.mxu0 %v7193
    %7318 = vmatprep.subr.mxu0 0.0
    %7319 = vmatpush1.msra.mxu0 %v7194
    %7320 = vmatprep.subr.mxu0 0.0
    %7321 = vmatpush1.msra.mxu0 %v7195
    %7322 = vmatprep.subr.mxu0 0.0
    %7323 = vmatpush1.msra.mxu0 %v7196
    %7324 = vmatprep.subr.mxu0 0.0
    %7325 = vmatpush1.msra.mxu0 %v7197
    %7326 = vmatprep.subr.mxu0 0.0
    %7327 = vmatpush1.msra.mxu0 %v7198
    %7328 = vmatprep.subr.mxu0 0.0
    %7329 = vmatpush1.msra.mxu0 %v7199
    %7330 = vmatprep.subr.mxu0 0.0
    %7331 = vmatpush1.msra.mxu0 %v7200
    %7332 = vmatprep.subr.mxu0 0.0
    %7333 = vmatpush1.msra.mxu0 %v7201
    %7334 = vmatprep.subr.mxu0 0.0
    %7335 = vmatpush1.msra.mxu0 %v7202
    %7336 = vmatprep.subr.mxu0 0.0
    %7337 = vmatpush1.msra.mxu0 %v7203
    %7338 = vmatprep.subr.mxu0 0.0
    %7339 = vmatpush1.msra.mxu0 %v7204
    %7340 = vmatprep.subr.mxu0 0.0
    %7341 = vmatpush1.msra.mxu0 %v7205
    %7342 = vmatprep.subr.mxu0 0.0
    %7343 = vmatpush1.msra.mxu0 %v7206
    %7344 = vmatprep.subr.mxu0 0.0
    %7345 = vmatpush1.msra.mxu0 %v7207
    %7346 = vmatprep.subr.mxu0 0.0
    %7347 = vmatpush1.msra.mxu0 %v7208
    %7348 = vmatprep.subr.mxu0 0.0
    %7349 = vmatpush1.msra.mxu0 %v7209
    %7350 = vmatprep.subr.mxu0 0.0
    %7351 = vmatpush1.msra.mxu0 0.0
    %7352 = vmatprep.subr.mxu0 0.0
    %7353 = vmatpush1.msra.mxu0 0.0
    %7354 = vmatprep.subr.mxu0 0.0
    %7355 = vmatpush1.msra.mxu0 0.0
    %7356 = vmatprep.subr.mxu0 0.0
    %7357 = vmatpush1.msra.mxu0 0.0
    %7358 = vmatprep.subr.mxu0 0.0
    %7359 = vmatpush1.msra.mxu0 0.0
    %7360 = vmatprep.subr.mxu0 0.0
    %7361 = vmatpush1.msra.mxu0 0.0
    %7362 = vmatprep.subr.mxu0 0.0
    %7363 = vmatpush1.msra.mxu0 0.0
    %7364 = vmatprep.subr.mxu0 0.0
    %7365 = vmatpush1.msra.mxu0 0.0
    %7366 = vmatprep.subr.mxu0 0.0
    %7367 = vmatpush1.msra.mxu0 0.0
    %7368 = vmatprep.subr.mxu0 0.0
    %7369 = vmatpush1.msra.mxu0 0.0
    %7370 = vmatprep.subr.mxu0 0.0
    %7371 = vmatpush1.msra.mxu0 0.0
    %7372 = vmatprep.subr.mxu0 0.0
    %7373 = vmatpush1.msra.mxu0 0.0
    %7374 = vmatprep.mubr.f32.mxu0 %v7308
    %7375 = vmatmul.mubr.f32.gmra.mrb[0].mxu0 %v7188
    %v7376 = vpop.f32.mrb[0].mxu0
    %v7377 = vadd.f32 %v7305, %v7376
    %v7378 = vpop.f32.mrb[0].mxu0
    %7379 = vdwg.mxu0
    %s7380 = scalar_lea.vmem %s5, 320
    %v7381 = vld [vmem:[%s7380] sm:$0xff]
    %v7382 = vld [vmem:[%s7380 + $0x8] sm:$0xff]
    %v7383 = vld [vmem:[%s7380 + $0x10] sm:$0xff]
    %v7384 = vld [vmem:[%s7380 + $0x18] sm:$0xff]
    %v7385 = vld [vmem:[%s7380 + $0x20] sm:$0xff]
    %v7386 = vld [vmem:[%s7380 + $0x28] sm:$0xff]
    %v7387 = vld [vmem:[%s7380 + $0x30] sm:$0xff]
    %v7388 = vld [vmem:[%s7380 + $0x38] sm:$0xff]
    %v7389 = vld [vmem:[%s7380 + $0x40] sm:$0xff]
    %v7390 = vld [vmem:[%s7380 + $0x48] sm:$0xff]
    %v7391 = vld [vmem:[%s7380 + $0x50] sm:$0xff]
    %v7392 = vld [vmem:[%s7380 + $0x58] sm:$0xff]
    %v7393 = vld [vmem:[%s7380 + $0x60] sm:$0xff]
    %v7394 = vld [vmem:[%s7380 + $0x68] sm:$0xff]
    %v7395 = vld [vmem:[%s7380 + $0x70] sm:$0xff]
    %v7396 = vld [vmem:[%s7380 + $0x78] sm:$0xff]
    %v7397 = vld [vmem:[%s7380 + $0x80] sm:$0xff]
    %v7398 = vld [vmem:[%s7380 + $0x88] sm:$0xff]
    %v7399 = vld [vmem:[%s7380 + $0x90] sm:$0xff]
    %v7400 = vld [vmem:[%s7380 + $0x98] sm:$0xff]
    %v7401 = vrot.slane %v7188, 2
    %v7402 = vrot.slane %v7189, 2
    %v7404 = vsel %vm7113, %v7402, 0
    %7406 = vmatprep.subr.mxu0 0.0
    %7407 = vmatpush1.msra.mxu0 %v7381
    %7408 = vmatprep.subr.mxu0 0.0
    %7409 = vmatpush1.msra.mxu0 %v7382
    %7410 = vmatprep.subr.mxu0 0.0
    %7411 = vmatpush1.msra.mxu0 %v7383
    %7412 = vmatprep.subr.mxu0 0.0
    %7413 = vmatpush1.msra.mxu0 %v7384
    %7414 = vmatprep.subr.mxu0 0.0
    %7415 = vmatpush1.msra.mxu0 %v7385
    %7416 = vmatprep.subr.mxu0 0.0
    %7417 = vmatpush1.msra.mxu0 %v7386
    %7418 = vmatprep.subr.mxu0 0.0
    %7419 = vmatpush1.msra.mxu0 %v7387
    %7420 = vmatprep.subr.mxu0 0.0
    %7421 = vmatpush1.msra.mxu0 %v7388
    %7422 = vmatprep.subr.mxu0 0.0
    %7423 = vmatpush1.msra.mxu0 %v7389
    %7424 = vmatprep.subr.mxu0 0.0
    %7425 = vmatpush1.msra.mxu0 %v7390
    %7426 = vmatprep.subr.mxu0 0.0
    %7427 = vmatpush1.msra.mxu0 %v7391
    %7428 = vmatprep.subr.mxu0 0.0
    %7429 = vmatpush1.msra.mxu0 %v7392
    %7430 = vmatprep.subr.mxu0 0.0
    %7431 = vmatpush1.msra.mxu0 %v7393
    %7432 = vmatprep.subr.mxu0 0.0
    %7433 = vmatpush1.msra.mxu0 %v7394
    %7434 = vmatprep.subr.mxu0 0.0
    %7435 = vmatpush1.msra.mxu0 %v7395
    %7436 = vmatprep.subr.mxu0 0.0
    %7437 = vmatpush1.msra.mxu0 %v7396
    %7438 = vmatprep.subr.mxu0 0.0
    %7439 = vmatpush1.msra.mxu0 %v7397
    %7440 = vmatprep.subr.mxu0 0.0
    %7441 = vmatpush1.msra.mxu0 %v7398
    %7442 = vmatprep.subr.mxu0 0.0
    %7443 = vmatpush1.msra.mxu0 %v7399
    %7444 = vmatprep.subr.mxu0 0.0
    %7445 = vmatpush1.msra.mxu0 %v7400
    %7446 = vmatprep.subr.mxu0 0.0
    %7447 = vmatpush1.msra.mxu0 0.0
    %7448 = vmatprep.subr.mxu0 0.0
    %7449 = vmatpush1.msra.mxu0 0.0
    %7450 = vmatprep.subr.mxu0 0.0
    %7451 = vmatpush1.msra.mxu0 0.0
    %7452 = vmatprep.subr.mxu0 0.0
    %7453 = vmatpush1.msra.mxu0 0.0
    %7454 = vmatprep.subr.mxu0 0.0
    %7455 = vmatpush1.msra.mxu0 0.0
    %7456 = vmatprep.subr.mxu0 0.0
    %7457 = vmatpush1.msra.mxu0 0.0
    %7458 = vmatprep.subr.mxu0 0.0
    %7459 = vmatpush1.msra.mxu0 0.0
    %7460 = vmatprep.subr.mxu0 0.0
    %7461 = vmatpush1.msra.mxu0 0.0
    %7462 = vmatprep.subr.mxu0 0.0
    %7463 = vmatpush1.msra.mxu0 0.0
    %7464 = vmatprep.subr.mxu0 0.0
    %7465 = vmatpush1.msra.mxu0 0.0
    %7466 = vmatprep.subr.mxu0 0.0
    %7467 = vmatpush1.msra.mxu0 0.0
    %7468 = vmatprep.subr.mxu0 0.0
    %7469 = vmatpush1.msra.mxu0 0.0
    %7470 = vmatprep.mubr.f32.mxu0 %v7404
    %7471 = vmatmul.mubr.f32.gmra.mrb[0].mxu0 %v7401
    %v7472 = vpop.f32.mrb[0].mxu0
    %v7473 = vadd.f32 0.0, %v7472
    %v7474 = vpop.f32.mrb[0].mxu0
    %7475 = vdwg.mxu0
    %v7476 = vadd.f32 %v7377, %v7473
    %s7477 = scalar_lea.vmem %s5, 480
    %v7478 = vld [vmem:[%s7477] sm:$0xff]
    %v7479 = vld [vmem:[%s7477 + $0x8] sm:$0xff]
    %v7480 = vld [vmem:[%s7477 + $0x10] sm:$0xff]
    %v7481 = vld [vmem:[%s7477 + $0x18] sm:$0xff]
    %v7482 = vld [vmem:[%s7477 + $0x20] sm:$0xff]
    %v7483 = vld [vmem:[%s7477 + $0x28] sm:$0xff]
    %v7484 = vld [vmem:[%s7477 + $0x30] sm:$0xff]
    %v7485 = vld [vmem:[%s7477 + $0x38] sm:$0xff]
    %v7486 = vld [vmem:[%s7477 + $0x40] sm:$0xff]
    %v7487 = vld [vmem:[%s7477 + $0x48] sm:$0xff]
    %v7488 = vld [vmem:[%s7477 + $0x50] sm:$0xff]
    %v7489 = vld [vmem:[%s7477 + $0x58] sm:$0xff]
    %v7490 = vld [vmem:[%s7477 + $0x60] sm:$0xff]
    %v7491 = vld [vmem:[%s7477 + $0x68] sm:$0xff]
    %v7492 = vld [vmem:[%s7477 + $0x70] sm:$0xff]
    %v7493 = vld [vmem:[%s7477 + $0x78] sm:$0xff]
    %v7494 = vld [vmem:[%s7477 + $0x80] sm:$0xff]
    %v7495 = vld [vmem:[%s7477 + $0x88] sm:$0xff]
    %v7496 = vld [vmem:[%s7477 + $0x90] sm:$0xff]
    %v7497 = vld [vmem:[%s7477 + $0x98] sm:$0xff]
    %v7498 = vrot.slane %v7188, 3
    %v7499 = vrot.slane %v7189, 3
    %v7501 = vsel %vm7113, %v7499, 0
    %7503 = vmatprep.subr.mxu0 0.0
    %7504 = vmatpush1.msra.mxu0 %v7478
    %7505 = vmatprep.subr.mxu0 0.0
    %7506 = vmatpush1.msra.mxu0 %v7479
    %7507 = vmatprep.subr.mxu0 0.0
    %7508 = vmatpush1.msra.mxu0 %v7480
    %7509 = vmatprep.subr.mxu0 0.0
    %7510 = vmatpush1.msra.mxu0 %v7481
    %7511 = vmatprep.subr.mxu0 0.0
    %7512 = vmatpush1.msra.mxu0 %v7482
    %7513 = vmatprep.subr.mxu0 0.0
    %7514 = vmatpush1.msra.mxu0 %v7483
    %7515 = vmatprep.subr.mxu0 0.0
    %7516 = vmatpush1.msra.mxu0 %v7484
    %7517 = vmatprep.subr.mxu0 0.0
    %7518 = vmatpush1.msra.mxu0 %v7485
    %7519 = vmatprep.subr.mxu0 0.0
    %7520 = vmatpush1.msra.mxu0 %v7486
    %7521 = vmatprep.subr.mxu0 0.0
    %7522 = vmatpush1.msra.mxu0 %v7487
    %7523 = vmatprep.subr.mxu0 0.0
    %7524 = vmatpush1.msra.mxu0 %v7488
    %7525 = vmatprep.subr.mxu0 0.0
    %7526 = vmatpush1.msra.mxu0 %v7489
    %7527 = vmatprep.subr.mxu0 0.0
    %7528 = vmatpush1.msra.mxu0 %v7490
    %7529 = vmatprep.subr.mxu0 0.0
    %7530 = vmatpush1.msra.mxu0 %v7491
    %7531 = vmatprep.subr.mxu0 0.0
    %7532 = vmatpush1.msra.mxu0 %v7492
    %7533 = vmatprep.subr.mxu0 0.0
    %7534 = vmatpush1.msra.mxu0 %v7493
    %7535 = vmatprep.subr.mxu0 0.0
    %7536 = vmatpush1.msra.mxu0 %v7494
    %7537 = vmatprep.subr.mxu0 0.0
    %7538 = vmatpush1.msra.mxu0 %v7495
    %7539 = vmatprep.subr.mxu0 0.0
    %7540 = vmatpush1.msra.mxu0 %v7496
    %7541 = vmatprep.subr.mxu0 0.0
    %7542 = vmatpush1.msra.mxu0 %v7497
    %7543 = vmatprep.subr.mxu0 0.0
    %7544 = vmatpush1.msra.mxu0 0.0
    %7545 = vmatprep.subr.mxu0 0.0
    %7546 = vmatpush1.msra.mxu0 0.0
    %7547 = vmatprep.subr.mxu0 0.0
    %7548 = vmatpush1.msra.mxu0 0.0
    %7549 = vmatprep.subr.mxu0 0.0
    %7550 = vmatpush1.msra.mxu0 0.0
    %7551 = vmatprep.subr.mxu0 0.0
    %7552 = vmatpush1.msra.mxu0 0.0
    %7553 = vmatprep.subr.mxu0 0.0
    %7554 = vmatpush1.msra.mxu0 0.0
    %7555 = vmatprep.subr.mxu0 0.0
    %7556 = vmatpush1.msra.mxu0 0.0
    %7557 = vmatprep.subr.mxu0 0.0
    %7558 = vmatpush1.msra.mxu0 0.0
    %7559 = vmatprep.subr.mxu0 0.0
    %7560 = vmatpush1.msra.mxu0 0.0
    %7561 = vmatprep.subr.mxu0 0.0
    %7562 = vmatpush1.msra.mxu0 0.0
    %7563 = vmatprep.subr.mxu0 0.0
    %7564 = vmatpush1.msra.mxu0 0.0
    %7565 = vmatprep.subr.mxu0 0.0
    %7566 = vmatpush1.msra.mxu0 0.0
    %7567 = vmatprep.mubr.f32.mxu0 %v7501
    %7568 = vmatmul.mubr.f32.gmra.mrb[0].mxu0 %v7498
    %v7569 = vpop.f32.mrb[0].mxu0
    %v7570 = vadd.f32 0.0, %v7569
    %v7571 = vpop.f32.mrb[0].mxu0
    %7572 = vdwg.mxu0
    %v7573 = vadd.f32 %v7476, %v7570
    %s7574 = scalar_lea.vmem %s5, 640
    %v7575 = vld [vmem:[%s7574] sm:$0xff]
    %v7576 = vld [vmem:[%s7574 + $0x8] sm:$0xff]
    %v7577 = vld [vmem:[%s7574 + $0x10] sm:$0xff]
    %v7578 = vld [vmem:[%s7574 + $0x18] sm:$0xff]
    %v7579 = vld [vmem:[%s7574 + $0x20] sm:$0xff]
    %v7580 = vld [vmem:[%s7574 + $0x28] sm:$0xff]
    %v7581 = vld [vmem:[%s7574 + $0x30] sm:$0xff]
    %v7582 = vld [vmem:[%s7574 + $0x38] sm:$0xff]
    %v7583 = vld [vmem:[%s7574 + $0x40] sm:$0xff]
    %v7584 = vld [vmem:[%s7574 + $0x48] sm:$0xff]
    %v7585 = vld [vmem:[%s7574 + $0x50] sm:$0xff]
    %v7586 = vld [vmem:[%s7574 + $0x58] sm:$0xff]
    %v7587 = vld [vmem:[%s7574 + $0x60] sm:$0xff]
    %v7588 = vld [vmem:[%s7574 + $0x68] sm:$0xff]
    %v7589 = vld [vmem:[%s7574 + $0x70] sm:$0xff]
    %v7590 = vld [vmem:[%s7574 + $0x78] sm:$0xff]
    %v7591 = vld [vmem:[%s7574 + $0x80] sm:$0xff]
    %v7592 = vld [vmem:[%s7574 + $0x88] sm:$0xff]
    %v7593 = vld [vmem:[%s7574 + $0x90] sm:$0xff]
    %v7594 = vld [vmem:[%s7574 + $0x98] sm:$0xff]
    %v7595 = vrot.slane %v7188, 4
    %v7596 = vrot.slane %v7189, 4
    %v7598 = vsel %vm7113, %v7596, 0
    %7600 = vmatprep.subr.mxu0 0.0
    %7601 = vmatpush1.msra.mxu0 %v7575
    %7602 = vmatprep.subr.mxu0 0.0
    %7603 = vmatpush1.msra.mxu0 %v7576
    %7604 = vmatprep.subr.mxu0 0.0
    %7605 = vmatpush1.msra.mxu0 %v7577
    %7606 = vmatprep.subr.mxu0 0.0
    %7607 = vmatpush1.msra.mxu0 %v7578
    %7608 = vmatprep.subr.mxu0 0.0
    %7609 = vmatpush1.msra.mxu0 %v7579
    %7610 = vmatprep.subr.mxu0 0.0
    %7611 = vmatpush1.msra.mxu0 %v7580
    %7612 = vmatprep.subr.mxu0 0.0
    %7613 = vmatpush1.msra.mxu0 %v7581
    %7614 = vmatprep.subr.mxu0 0.0
    %7615 = vmatpush1.msra.mxu0 %v7582
    %7616 = vmatprep.subr.mxu0 0.0
    %7617 = vmatpush1.msra.mxu0 %v7583
    %7618 = vmatprep.subr.mxu0 0.0
    %7619 = vmatpush1.msra.mxu0 %v7584
    %7620 = vmatprep.subr.mxu0 0.0
    %7621 = vmatpush1.msra.mxu0 %v7585
    %7622 = vmatprep.subr.mxu0 0.0
    %7623 = vmatpush1.msra.mxu0 %v7586
    %7624 = vmatprep.subr.mxu0 0.0
    %7625 = vmatpush1.msra.mxu0 %v7587
    %7626 = vmatprep.subr.mxu0 0.0
    %7627 = vmatpush1.msra.mxu0 %v7588
    %7628 = vmatprep.subr.mxu0 0.0
    %7629 = vmatpush1.msra.mxu0 %v7589
    %7630 = vmatprep.subr.mxu0 0.0
    %7631 = vmatpush1.msra.mxu0 %v7590
    %7632 = vmatprep.subr.mxu0 0.0
    %7633 = vmatpush1.msra.mxu0 %v7591
    %7634 = vmatprep.subr.mxu0 0.0
    %7635 = vmatpush1.msra.mxu0 %v7592
    %7636 = vmatprep.subr.mxu0 0.0
    %7637 = vmatpush1.msra.mxu0 %v7593
    %7638 = vmatprep.subr.mxu0 0.0
    %7639 = vmatpush1.msra.mxu0 %v7594
    %7640 = vmatprep.subr.mxu0 0.0
    %7641 = vmatpush1.msra.mxu0 0.0
    %7642 = vmatprep.subr.mxu0 0.0
    %7643 = vmatpush1.msra.mxu0 0.0
    %7644 = vmatprep.subr.mxu0 0.0
    %7645 = vmatpush1.msra.mxu0 0.0
    %7646 = vmatprep.subr.mxu0 0.0
    %7647 = vmatpush1.msra.mxu0 0.0
    %7648 = vmatprep.subr.mxu0 0.0
    %7649 = vmatpush1.msra.mxu0 0.0
    %7650 = vmatprep.subr.mxu0 0.0
    %7651 = vmatpush1.msra.mxu0 0.0
    %7652 = vmatprep.subr.mxu0 0.0
    %7653 = vmatpush1.msra.mxu0 0.0
    %7654 = vmatprep.subr.mxu0 0.0
    %7655 = vmatpush1.msra.mxu0 0.0
    %7656 = vmatprep.subr.mxu0 0.0
    %7657 = vmatpush1.msra.mxu0 0.0
    %7658 = vmatprep.subr.mxu0 0.0
    %7659 = vmatpush1.msra.mxu0 0.0
    %7660 = vmatprep.subr.mxu0 0.0
    %7661 = vmatpush1.msra.mxu0 0.0
    %7662 = vmatprep.subr.mxu0 0.0
    %7663 = vmatpush1.msra.mxu0 0.0
    %7664 = vmatprep.mubr.f32.mxu0 %v7598
    %7665 = vmatmul.mubr.f32.gmra.mrb[0].mxu0 %v7595
    %v7666 = vpop.f32.mrb[0].mxu0
    %v7667 = vadd.f32 0.0, %v7666
    %v7668 = vpop.f32.mrb[0].mxu0
    %7669 = vdwg.mxu0
    %v7670 = vadd.f32 %v7573, %v7667
    %v7671 = vld [vmem:[%s6] sm:$0x1]
    %v7672 = vadd.f32 %v7670, %v7671
    %v7673 = vmax.f32 %v7672, 0.0
    %s7674 = scalar_lea.vmem [#allocation2], %s330
    %7675 = vst [vmem:[%s7674] sm:$0x1] %v7673
  $region50: #{lenet5_forward.1} parent=0 // loop_footer
    %s334 = sadd.s32 1, %s330
  $region51: #{lenet5_forward.1} parent=0 // loop_footer_branch
    %329 = sbr.rel target = $region47
  $region52: #{lenet5_forward.1} parent=0 // loop_exit
    _
  %v7676 = vld [vmem:[#allocation2] sm:$0xff]
  %v7677 = vld [vmem:[%s7] sm:$0xff]
  %v7678 = vld [vmem:[%s7 + $0x8] sm:$0xff]
  %v7679 = vld [vmem:[%s7 + $0x10] sm:$0xff]
  %v7680 = vld [vmem:[%s7 + $0x18] sm:$0xff]
  %v7681 = vld [vmem:[%s7 + $0x20] sm:$0xff]
  %v7682 = vld [vmem:[%s7 + $0x28] sm:$0xff]
  %v7683 = vld [vmem:[%s7 + $0x30] sm:$0xff]
  %v7684 = vld [vmem:[%s7 + $0x38] sm:$0xff]
  %v7685 = vld [vmem:[%s7 + $0x40] sm:$0xff]
  %v7686 = vld [vmem:[%s7 + $0x48] sm:$0xff]
  %v7687 = vld [vmem:[%s7 + $0x50] sm:$0xff]
  %v7688 = vld [vmem:[%s7 + $0x58] sm:$0xff]
  %v7689 = vld [vmem:[%s7 + $0x60] sm:$0xff]
  %v7690 = vld [vmem:[%s7 + $0x68] sm:$0xff]
  %v7691 = vld [vmem:[%s7 + $0x70] sm:$0xff]
  %v7692 = vld [vmem:[%s7 + $0x78] sm:$0xff]
  %v7693 = vld [vmem:[%s8] sm:$0x1]
  %v7695 = vlaneseq
  %v7696 = vshrl.u32 %v7695, 7
  %v7697 = vsub.s32 0, %v7696
  %v7698 = vrot.slane %v7693, %v7697
  %7700 = vmatprep.subr.mxu0 0.0
  %7701 = vmatpush1.msra.mxu0 %v7677
  %7702 = vmatprep.subr.mxu0 0.0
  %7703 = vmatpush1.msra.mxu0 %v7678
  %7704 = vmatprep.subr.mxu0 0.0
  %7705 = vmatpush1.msra.mxu0 %v7679
  %7706 = vmatprep.subr.mxu0 0.0
  %7707 = vmatpush1.msra.mxu0 %v7680
  %7708 = vmatprep.subr.mxu0 0.0
  %7709 = vmatpush1.msra.mxu0 %v7681
  %7710 = vmatprep.subr.mxu0 0.0
  %7711 = vmatpush1.msra.mxu0 %v7682
  %7712 = vmatprep.subr.mxu0 0.0
  %7713 = vmatpush1.msra.mxu0 %v7683
  %7714 = vmatprep.subr.mxu0 0.0
  %7715 = vmatpush1.msra.mxu0 %v7684
  %7716 = vmatprep.subr.mxu0 0.0
  %7717 = vmatpush1.msra.mxu0 %v7685
  %7718 = vmatprep.subr.mxu0 0.0
  %7719 = vmatpush1.msra.mxu0 %v7686
  %7720 = vmatprep.subr.mxu0 0.0
  %7721 = vmatpush1.msra.mxu0 %v7687
  %7722 = vmatprep.subr.mxu0 0.0
  %7723 = vmatpush1.msra.mxu0 %v7688
  %7724 = vmatprep.subr.mxu0 0.0
  %7725 = vmatpush1.msra.mxu0 %v7689
  %7726 = vmatprep.subr.mxu0 0.0
  %7727 = vmatpush1.msra.mxu0 %v7690
  %7728 = vmatprep.subr.mxu0 0.0
  %7729 = vmatpush1.msra.mxu0 %v7691
  %7730 = vmatprep.subr.mxu0 0.0
  %7731 = vmatpush1.msra.mxu0 %v7692
  %7732 = vmatprep.subr.mxu0 0.0
  %7733 = vmatpush1.msra.mxu0 0.0
  %7734 = vmatprep.subr.mxu0 0.0
  %7735 = vmatpush1.msra.mxu0 0.0
  %7736 = vmatprep.subr.mxu0 0.0
  %7737 = vmatpush1.msra.mxu0 0.0
  %7738 = vmatprep.subr.mxu0 0.0
  %7739 = vmatpush1.msra.mxu0 0.0
  %7740 = vmatprep.subr.mxu0 0.0
  %7741 = vmatpush1.msra.mxu0 0.0
  %7742 = vmatprep.subr.mxu0 0.0
  %7743 = vmatpush1.msra.mxu0 0.0
  %7744 = vmatprep.subr.mxu0 0.0
  %7745 = vmatpush1.msra.mxu0 0.0
  %7746 = vmatprep.subr.mxu0 0.0
  %7747 = vmatpush1.msra.mxu0 0.0
  %7748 = vmatprep.subr.mxu0 0.0
  %7749 = vmatpush1.msra.mxu0 0.0
  %7750 = vmatprep.subr.mxu0 0.0
  %7751 = vmatpush1.msra.mxu0 0.0
  %7752 = vmatprep.subr.mxu0 0.0
  %7753 = vmatpush1.msra.mxu0 0.0
  %7754 = vmatprep.subr.mxu0 0.0
  %7755 = vmatpush1.msra.mxu0 0.0
  %7756 = vmatprep.subr.mxu0 0.0
  %7757 = vmatpush1.msra.mxu0 0.0
  %7758 = vmatprep.subr.mxu0 0.0
  %7759 = vmatpush1.msra.mxu0 0.0
  %7760 = vmatprep.subr.mxu0 0.0
  %7761 = vmatpush1.msra.mxu0 0.0
  %7762 = vmatprep.subr.mxu0 0.0
  %7763 = vmatpush1.msra.mxu0 0.0
  %7764 = vmatprep.mubr.f32.mxu0 0.0
  %7765 = vmatmul.mubr.f32.gmra.mrb[0].mxu0 %v7676
  %v7766 = vpop.f32.mrb[0].mxu0
  %v7767 = vadd.f32 %v7698, %v7766
  %v7768 = vpop.f32.mrb[0].mxu0
  %7769 = vdwg.mxu0
  %v7770 = vmax.f32 %v7767, 0.0
  %v7771 = vld [vmem:[%s9] sm:$0xff]
  %v7772 = vld [vmem:[%s9 + $0x8] sm:$0xff]
  %v7773 = vld [vmem:[%s9 + $0x10] sm:$0xff]
  %v7774 = vld [vmem:[%s9 + $0x18] sm:$0xff]
  %v7775 = vld [vmem:[%s9 + $0x20] sm:$0xff]
  %v7776 = vld [vmem:[%s9 + $0x28] sm:$0xff]
  %v7777 = vld [vmem:[%s9 + $0x30] sm:$0xff]
  %v7778 = vld [vmem:[%s9 + $0x38] sm:$0xff]
  %v7779 = vld [vmem:[%s9 + $0x40] sm:$0xff]
  %v7780 = vld [vmem:[%s9 + $0x48] sm:$0xff]
  %v7781 = vld [vmem:[%s9 + $0x50] sm:$0xff]
  %v7782 = vld [vmem:[%s9 + $0x58] sm:$0xff]
  %v7783 = vld [vmem:[%s9 + $0x60] sm:$0xff]
  %v7784 = vld [vmem:[%s9 + $0x68] sm:$0xff]
  %v7785 = vld [vmem:[%s9 + $0x70] sm:$0xff]
  %v7786 = vld [vmem:[%s9 + $0x78] sm:$0xff]
  %v7787 = vld [vmem:[%s10] sm:$0x1]
  %v7789 = vlaneseq
  %v7790 = vshrl.u32 %v7789, 7
  %v7791 = vsub.s32 0, %v7790
  %v7792 = vrot.slane %v7787, %v7791
  %7794 = vmatprep.subr.mxu0 0.0
  %7795 = vmatpush1.msra.mxu0 %v7771
  %7796 = vmatprep.subr.mxu0 0.0
  %7797 = vmatpush1.msra.mxu0 %v7772
  %7798 = vmatprep.subr.mxu0 0.0
  %7799 = vmatpush1.msra.mxu0 %v7773
  %7800 = vmatprep.subr.mxu0 0.0
  %7801 = vmatpush1.msra.mxu0 %v7774
  %7802 = vmatprep.subr.mxu0 0.0
  %7803 = vmatpush1.msra.mxu0 %v7775
  %7804 = vmatprep.subr.mxu0 0.0
  %7805 = vmatpush1.msra.mxu0 %v7776
  %7806 = vmatprep.subr.mxu0 0.0
  %7807 = vmatpush1.msra.mxu0 %v7777
  %7808 = vmatprep.subr.mxu0 0.0
  %7809 = vmatpush1.msra.mxu0 %v7778
  %7810 = vmatprep.subr.mxu0 0.0
  %7811 = vmatpush1.msra.mxu0 %v7779
  %7812 = vmatprep.subr.mxu0 0.0
  %7813 = vmatpush1.msra.mxu0 %v7780
  %7814 = vmatprep.subr.mxu0 0.0
  %7815 = vmatpush1.msra.mxu0 %v7781
  %7816 = vmatprep.subr.mxu0 0.0
  %7817 = vmatpush1.msra.mxu0 %v7782
  %7818 = vmatprep.subr.mxu0 0.0
  %7819 = vmatpush1.msra.mxu0 %v7783
  %7820 = vmatprep.subr.mxu0 0.0
  %7821 = vmatpush1.msra.mxu0 %v7784
  %7822 = vmatprep.subr.mxu0 0.0
  %7823 = vmatpush1.msra.mxu0 %v7785
  %7824 = vmatprep.subr.mxu0 0.0
  %7825 = vmatpush1.msra.mxu0 %v7786
  %7826 = vmatprep.subr.mxu0 0.0
  %7827 = vmatpush1.msra.mxu0 0.0
  %7828 = vmatprep.subr.mxu0 0.0
  %7829 = vmatpush1.msra.mxu0 0.0
  %7830 = vmatprep.subr.mxu0 0.0
  %7831 = vmatpush1.msra.mxu0 0.0
  %7832 = vmatprep.subr.mxu0 0.0
  %7833 = vmatpush1.msra.mxu0 0.0
  %7834 = vmatprep.subr.mxu0 0.0
  %7835 = vmatpush1.msra.mxu0 0.0
  %7836 = vmatprep.subr.mxu0 0.0
  %7837 = vmatpush1.msra.mxu0 0.0
  %7838 = vmatprep.subr.mxu0 0.0
  %7839 = vmatpush1.msra.mxu0 0.0
  %7840 = vmatprep.subr.mxu0 0.0
  %7841 = vmatpush1.msra.mxu0 0.0
  %7842 = vmatprep.subr.mxu0 0.0
  %7843 = vmatpush1.msra.mxu0 0.0
  %7844 = vmatprep.subr.mxu0 0.0
  %7845 = vmatpush1.msra.mxu0 0.0
  %7846 = vmatprep.subr.mxu0 0.0
  %7847 = vmatpush1.msra.mxu0 0.0
  %7848 = vmatprep.subr.mxu0 0.0
  %7849 = vmatpush1.msra.mxu0 0.0
  %7850 = vmatprep.subr.mxu0 0.0
  %7851 = vmatpush1.msra.mxu0 0.0
  %7852 = vmatprep.subr.mxu0 0.0
  %7853 = vmatpush1.msra.mxu0 0.0
  %7854 = vmatprep.subr.mxu0 0.0
  %7855 = vmatpush1.msra.mxu0 0.0
  %7856 = vmatprep.subr.mxu0 0.0
  %7857 = vmatpush1.msra.mxu0 0.0
  %7858 = vmatprep.mubr.f32.mxu0 0.0
  %7859 = vmatmul.mubr.f32.gmra.mrb[0].mxu0 %v7770
  %v7860 = vpop.f32.mrb[0].mxu0
  %v7861 = vadd.f32 %v7792, %v7860
  %v7862 = vpop.f32.mrb[0].mxu0
  %7863 = vdwg.mxu0
  %7864 = vst [vmem:[%s11] sm:$0xff] %v7861
  // Predicated region
  $region53: #{lenet5_forward.1} parent=0 // pred_check
    _
  $region54: #{lenet5_forward.1} parent=0 // pred_check_branch
    %7866 = sbr.rel (0) target = $region56
  $region55: #{lenet5_forward.1} parent=0 // pred_region
    _
  $region56: #{lenet5_forward.1} parent=0 // pred_fallthru
    _
  // Predicated region
  $region57: #{lenet5_forward.1} parent=0 // pred_check
    _
  $region58: #{lenet5_forward.1} parent=0 // pred_check_branch
    %7868 = sbr.rel (0) target = $region60
  $region59: #{lenet5_forward.1} parent=0 // pred_region
    _
  $region60: #{lenet5_forward.1} parent=0 // pred_fallthru
    _

</llo_original>
